<compile_context>
chip_gen: v6e
topology: v6e:2x2x1
jax: 0.10.0
libtpu: 0.0.40
codegen_flags: <defaults>
</compile_context>

<pallas_src>
import functools

import jax
import jax.numpy as jnp
from jax.experimental import pallas as pl
from jax.experimental.pallas import tpu as pltpu


# ----------------------------- Pallas kernel -------------------------------


def _unified_dwconv7x7(xp_nhwc, w7, bias, H, W):
    """Depthwise 7x7 conv on a pre-padded NHWC tensor, one image per grid step.

    xp_nhwc: (B, H+6, W+6, C) zero-padded input.
    w7:      (7, 7, C) per-channel kernels.
    bias:    (C,) per-channel bias.
    Returns (B, H, W, C) float32.
    """
    B = xp_nhwc.shape[0]
    C = xp_nhwc.shape[-1]
    w4 = w7.reshape(7, 7, 1, C)
    b2 = bias.reshape(1, C)

    def kernel(xp_ref, w_ref, b_ref, o_ref):
        acc = jnp.zeros((H, W, C), jnp.float32)
        # 49 shifted multiply-adds on the VPU; C stays in the lane dimension.
        for di in range(7):
            for dj in range(7):
                acc = acc + xp_ref[0, di:di + H, dj:dj + W, :] * w_ref[di, dj]
        o_ref[0] = acc + b_ref[...]

    return pl.pallas_call(
        kernel,
        out_shape=jax.ShapeDtypeStruct((B, H, W, C), jnp.float32),
        grid=(B,),
        in_specs=[
            pl.BlockSpec((1, H + 6, W + 6, C), lambda i: (i, 0, 0, 0)),
            pl.BlockSpec((7, 7, 1, C), lambda i: (0, 0, 0, 0)),
            pl.BlockSpec((1, C), lambda i: (0, 0)),
        ],
        out_specs=pl.BlockSpec((1, H, W, C), lambda i: (i, 0, 0, 0)),
        compiler_params=pltpu.CompilerParams(
            dimension_semantics=("parallel",)),
    )(xp_nhwc, w4, b2)


# ----------------------------- Forward wrapper ------------------------------


def _build_unified_weights(params, dim):
    """Embed the per-group kernels (identity / 3x3 / 5x5 / 7x7) into one
    per-channel 7x7 weight tensor + bias so all four branches run as a single
    depthwise 7x7 "same" conv."""
    g = dim // 4
    w7 = jnp.zeros((7, 7, dim), jnp.float32)
    b = jnp.zeros((dim,), jnp.float32)
    # group 0: identity -> centered delta, zero bias
    w7 = w7.at[3, 3, 0:g].set(1.0)
    # group 1: 3x3 kernel centered in the 7x7 window (same result as pad=1)
    w7 = w7.at[2:5, 2:5, g:2 * g].set(params['w3'])
    b = b.at[g:2 * g].set(params['b3'])
    # group 2: 5x5 kernel centered (same result as pad=2)
    w7 = w7.at[1:6, 1:6, 2 * g:3 * g].set(params['w5'])
    b = b.at[2 * g:3 * g].set(params['b5'])
    # group 3: full 7x7
    w7 = w7.at[:, :, 3 * g:4 * g].set(params['w7'])
    b = b.at[3 * g:4 * g].set(params['b7'])
    return w7, b


def inception_forward(x, params):
    """Inception forward.  x: (B, C, H, W) NCHW -> (B, C, H, W) NCHW."""
    B, C, H, W = x.shape
    assert C % 4 == 0, "dim must be divisible by 4"
    w7, bias = _build_unified_weights(params, C)

    # Single NCHW -> NHWC transpose + spatial zero-pad by 3 (7x7 "same").
    x_nhwc = jnp.transpose(x, (0, 2, 3, 1))
    xp = jnp.pad(x_nhwc, ((0, 0), (3, 3), (3, 3), (0, 0)))

    y_nhwc = _unified_dwconv7x7(xp, w7, bias, H, W)

    # Single NHWC -> NCHW transpose back to the PyTorch layout.
    return jnp.transpose(y_nhwc, (0, 3, 1, 2))


# ----------------------------- Plain-JAX reference --------------------------


def inception_ref(x, params):
    """Straight port of the PyTorch forward (chunk -> per-group conv -> cat),
    computed with explicit shifted slices in NCHW; used for verification."""
    B, C, H, W = x.shape
    g = C // 4
    outs = [x[:, 0:g]]  # identity branch
    specs = [(params['w3'], params['b3'], 3),
             (params['w5'], params['b5'], 5),
             (params['w7'], params['b7'], 7)]
    for idx, (wk, bk, ksz) in enumerate(specs, start=1):
        xg = x[:, idx * g:(idx + 1) * g]
        p = ksz // 2
        xpad = jnp.pad(xg, ((0, 0), (0, 0), (p, p), (p, p)))
        acc = jnp.zeros_like(xg)
        for di in range(ksz):
            for dj in range(ksz):
                acc = acc + (xpad[:, :, di:di + H, dj:dj + W]
                             * wk[di, dj].reshape(1, g, 1, 1))
        outs.append(acc + bk.reshape(1, g, 1, 1))
    return jnp.concatenate(outs, axis=1)


# ----------------------------- Parameters -----------------------------------


def init_params(key, dim):
    g = dim // 4
    ks = jax.random.split(key, 6)

    def rnd(i, shape, s=0.1):
        return s * jax.random.normal(ks[i], shape, jnp.float32)

    return {
        'w3': rnd(0, (3, 3, g)), 'b3': rnd(1, (g,)),
        'w5': rnd(2, (5, 5, g)), 'b5': rnd(3, (g,)),
        'w7': rnd(4, (7, 7, g)), 'b7': rnd(5, (g,)),
    }


if __name__ == "__main__":
    key = jax.random.PRNGKey(0)
    kx, kp = jax.random.split(key)
    B, C, H, W = 2, 128, 16, 16          # C=128 -> full 128-lane channel dim
    x = jax.random.normal(kx, (B, C, H, W), jnp.float32)
    params = init_params(kp, C)

    fwd = jax.jit(inception_forward)
    y = fwd(x, params)
    jax.block_until_ready(y)

    assert y.shape == (B, C, H, W)

    # Correctness check against a pure-JAX port of the PyTorch forward.
    y_ref = inception_ref(x, params)
    jax.block_until_ready(y_ref)
    assert jnp.allclose(y, y_ref, atol=1e-4, rtol=1e-4), \
        float(jnp.max(jnp.abs(y - y_ref)))

    print("KERNEL_OK")
</pallas_src>

<mosaic_0001>
module attributes {stable_mosaic.version = 11 : i64} {
  func.func @kernel(%arg0: i32, %arg1: memref<1x22x22x128xf32, #tpu.memory_space<vmem>>, %arg2: memref<7x7x1x128xf32, #tpu.memory_space<vmem>>, %arg3: memref<1x128xf32, #tpu.memory_space<vmem>>, %arg4: memref<1x16x16x128xf32, #tpu.memory_space<vmem>>) attributes {dimension_semantics = [#tpu.dimension_semantics<parallel>], iteration_bounds = array<i64: 2>, scalar_prefetch = 0 : i64, scratch_operands = 0 : i64, tpu.core_type = #tpu.core_type<tc>, window_params = [{transform_indices = @transform_0, window_bounds = array<i64: 1, 22, 22, 128>}, {pipeline_mode = #tpu.pipeline_mode<synchronous>, transform_indices = @transform_1, window_bounds = array<i64: 7, 7, 1, 128>}, {pipeline_mode = #tpu.pipeline_mode<synchronous>, transform_indices = @transform_2, window_bounds = array<i64: 1, 128>}, {transform_indices = @transform_3, window_bounds = array<i64: 1, 16, 16, 128>}]} {
    %cst = arith.constant 0.000000e+00 : f32
    %0 = vector.broadcast %cst : f32 to vector<16x16x128xf32>
    %c0 = arith.constant 0 : index
    %c0_0 = arith.constant 0 : index
    %c0_1 = arith.constant 0 : index
    %c0_2 = arith.constant 0 : index
    %1 = vector.load %arg1[%c0, %c0_0, %c0_1, %c0_2] : memref<1x22x22x128xf32, #tpu.memory_space<vmem>>, vector<1x16x16x128xf32>
    %2 = vector.shape_cast %1 : vector<1x16x16x128xf32> to vector<16x16x128xf32>
    %c0_3 = arith.constant 0 : index
    %c0_4 = arith.constant 0 : index
    %c0_5 = arith.constant 0 : index
    %c0_6 = arith.constant 0 : index
    %3 = vector.load %arg2[%c0_3, %c0_4, %c0_5, %c0_6] : memref<7x7x1x128xf32, #tpu.memory_space<vmem>>, vector<1x1x1x128xf32>
    %4 = vector.shape_cast %3 : vector<1x1x1x128xf32> to vector<1x128xf32>
    %5 = vector.shape_cast %4 : vector<1x128xf32> to vector<1x1x128xf32>
    %6 = vector.broadcast %5 : vector<1x1x128xf32> to vector<16x16x128xf32>
    %7 = arith.mulf %2, %6 : vector<16x16x128xf32>
    %8 = arith.addf %0, %7 : vector<16x16x128xf32>
    %c0_7 = arith.constant 0 : index
    %c0_8 = arith.constant 0 : index
    %c1 = arith.constant 1 : index
    %c0_9 = arith.constant 0 : index
    %9 = vector.load %arg1[%c0_7, %c0_8, %c1, %c0_9] : memref<1x22x22x128xf32, #tpu.memory_space<vmem>>, vector<1x16x16x128xf32>
    %10 = vector.shape_cast %9 : vector<1x16x16x128xf32> to vector<16x16x128xf32>
    %c0_10 = arith.constant 0 : index
    %c1_11 = arith.constant 1 : index
    %c0_12 = arith.constant 0 : index
    %c0_13 = arith.constant 0 : index
    %11 = vector.load %arg2[%c0_10, %c1_11, %c0_12, %c0_13] : memref<7x7x1x128xf32, #tpu.memory_space<vmem>>, vector<1x1x1x128xf32>
    %12 = vector.shape_cast %11 : vector<1x1x1x128xf32> to vector<1x128xf32>
    %13 = vector.shape_cast %12 : vector<1x128xf32> to vector<1x1x128xf32>
    %14 = vector.broadcast %13 : vector<1x1x128xf32> to vector<16x16x128xf32>
    %15 = arith.mulf %10, %14 : vector<16x16x128xf32>
    %16 = arith.addf %8, %15 : vector<16x16x128xf32>
    %c0_14 = arith.constant 0 : index
    %c0_15 = arith.constant 0 : index
    %c2 = arith.constant 2 : index
    %c0_16 = arith.constant 0 : index
    %17 = vector.load %arg1[%c0_14, %c0_15, %c2, %c0_16] : memref<1x22x22x128xf32, #tpu.memory_space<vmem>>, vector<1x16x16x128xf32>
    %18 = vector.shape_cast %17 : vector<1x16x16x128xf32> to vector<16x16x128xf32>
    %c0_17 = arith.constant 0 : index
    %c2_18 = arith.constant 2 : index
    %c0_19 = arith.constant 0 : index
    %c0_20 = arith.constant 0 : index
    %19 = vector.load %arg2[%c0_17, %c2_18, %c0_19, %c0_20] : memref<7x7x1x128xf32, #tpu.memory_space<vmem>>, vector<1x1x1x128xf32>
    %20 = vector.shape_cast %19 : vector<1x1x1x128xf32> to vector<1x128xf32>
    %21 = vector.shape_cast %20 : vector<1x128xf32> to vector<1x1x128xf32>
    %22 = vector.broadcast %21 : vector<1x1x128xf32> to vector<16x16x128xf32>
    %23 = arith.mulf %18, %22 : vector<16x16x128xf32>
    %24 = arith.addf %16, %23 : vector<16x16x128xf32>
    %c0_21 = arith.constant 0 : index
    %c0_22 = arith.constant 0 : index
    %c3 = arith.constant 3 : index
    %c0_23 = arith.constant 0 : index
    %25 = vector.load %arg1[%c0_21, %c0_22, %c3, %c0_23] : memref<1x22x22x128xf32, #tpu.memory_space<vmem>>, vector<1x16x16x128xf32>
    %26 = vector.shape_cast %25 : vector<1x16x16x128xf32> to vector<16x16x128xf32>
    %c0_24 = arith.constant 0 : index
    %c3_25 = arith.constant 3 : index
    %c0_26 = arith.constant 0 : index
    %c0_27 = arith.constant 0 : index
    %27 = vector.load %arg2[%c0_24, %c3_25, %c0_26, %c0_27] : memref<7x7x1x128xf32, #tpu.memory_space<vmem>>, vector<1x1x1x128xf32>
    %28 = vector.shape_cast %27 : vector<1x1x1x128xf32> to vector<1x128xf32>
    %29 = vector.shape_cast %28 : vector<1x128xf32> to vector<1x1x128xf32>
    %30 = vector.broadcast %29 : vector<1x1x128xf32> to vector<16x16x128xf32>
    %31 = arith.mulf %26, %30 : vector<16x16x128xf32>
    %32 = arith.addf %24, %31 : vector<16x16x128xf32>
    %c0_28 = arith.constant 0 : index
    %c0_29 = arith.constant 0 : index
    %c4 = arith.constant 4 : index
    %c0_30 = arith.constant 0 : index
    %33 = vector.load %arg1[%c0_28, %c0_29, %c4, %c0_30] : memref<1x22x22x128xf32, #tpu.memory_space<vmem>>, vector<1x16x16x128xf32>
    %34 = vector.shape_cast %33 : vector<1x16x16x128xf32> to vector<16x16x128xf32>
    %c0_31 = arith.constant 0 : index
    %c4_32 = arith.constant 4 : index
    %c0_33 = arith.constant 0 : index
    %c0_34 = arith.constant 0 : index
    %35 = vector.load %arg2[%c0_31, %c4_32, %c0_33, %c0_34] : memref<7x7x1x128xf32, #tpu.memory_space<vmem>>, vector<1x1x1x128xf32>
    %36 = vector.shape_cast %35 : vector<1x1x1x128xf32> to vector<1x128xf32>
    %37 = vector.shape_cast %36 : vector<1x128xf32> to vector<1x1x128xf32>
    %38 = vector.broadcast %37 : vector<1x1x128xf32> to vector<16x16x128xf32>
    %39 = arith.mulf %34, %38 : vector<16x16x128xf32>
    %40 = arith.addf %32, %39 : vector<16x16x128xf32>
    %c0_35 = arith.constant 0 : index
    %c0_36 = arith.constant 0 : index
    %c5 = arith.constant 5 : index
    %c0_37 = arith.constant 0 : index
    %41 = vector.load %arg1[%c0_35, %c0_36, %c5, %c0_37] : memref<1x22x22x128xf32, #tpu.memory_space<vmem>>, vector<1x16x16x128xf32>
    %42 = vector.shape_cast %41 : vector<1x16x16x128xf32> to vector<16x16x128xf32>
    %c0_38 = arith.constant 0 : index
    %c5_39 = arith.constant 5 : index
    %c0_40 = arith.constant 0 : index
    %c0_41 = arith.constant 0 : index
    %43 = vector.load %arg2[%c0_38, %c5_39, %c0_40, %c0_41] : memref<7x7x1x128xf32, #tpu.memory_space<vmem>>, vector<1x1x1x128xf32>
    %44 = vector.shape_cast %43 : vector<1x1x1x128xf32> to vector<1x128xf32>
    %45 = vector.shape_cast %44 : vector<1x128xf32> to vector<1x1x128xf32>
    %46 = vector.broadcast %45 : vector<1x1x128xf32> to vector<16x16x128xf32>
    %47 = arith.mulf %42, %46 : vector<16x16x128xf32>
    %48 = arith.addf %40, %47 : vector<16x16x128xf32>
    %c0_42 = arith.constant 0 : index
    %c0_43 = arith.constant 0 : index
    %c6 = arith.constant 6 : index
    %c0_44 = arith.constant 0 : index
    %49 = vector.load %arg1[%c0_42, %c0_43, %c6, %c0_44] : memref<1x22x22x128xf32, #tpu.memory_space<vmem>>, vector<1x16x16x128xf32>
    %50 = vector.shape_cast %49 : vector<1x16x16x128xf32> to vector<16x16x128xf32>
    %c0_45 = arith.constant 0 : index
    %c6_46 = arith.constant 6 : index
    %c0_47 = arith.constant 0 : index
    %c0_48 = arith.constant 0 : index
    %51 = vector.load %arg2[%c0_45, %c6_46, %c0_47, %c0_48] : memref<7x7x1x128xf32, #tpu.memory_space<vmem>>, vector<1x1x1x128xf32>
    %52 = vector.shape_cast %51 : vector<1x1x1x128xf32> to vector<1x128xf32>
    %53 = vector.shape_cast %52 : vector<1x128xf32> to vector<1x1x128xf32>
    %54 = vector.broadcast %53 : vector<1x1x128xf32> to vector<16x16x128xf32>
    %55 = arith.mulf %50, %54 : vector<16x16x128xf32>
    %56 = arith.addf %48, %55 : vector<16x16x128xf32>
    %c0_49 = arith.constant 0 : index
    %c1_50 = arith.constant 1 : index
    %c0_51 = arith.constant 0 : index
    %c0_52 = arith.constant 0 : index
    %57 = vector.load %arg1[%c0_49, %c1_50, %c0_51, %c0_52] : memref<1x22x22x128xf32, #tpu.memory_space<vmem>>, vector<1x16x16x128xf32>
    %58 = vector.shape_cast %57 : vector<1x16x16x128xf32> to vector<16x16x128xf32>
    %c1_53 = arith.constant 1 : index
    %c0_54 = arith.constant 0 : index
    %c0_55 = arith.constant 0 : index
    %c0_56 = arith.constant 0 : index
    %59 = vector.load %arg2[%c1_53, %c0_54, %c0_55, %c0_56] : memref<7x7x1x128xf32, #tpu.memory_space<vmem>>, vector<1x1x1x128xf32>
    %60 = vector.shape_cast %59 : vector<1x1x1x128xf32> to vector<1x128xf32>
    %61 = vector.shape_cast %60 : vector<1x128xf32> to vector<1x1x128xf32>
    %62 = vector.broadcast %61 : vector<1x1x128xf32> to vector<16x16x128xf32>
    %63 = arith.mulf %58, %62 : vector<16x16x128xf32>
    %64 = arith.addf %56, %63 : vector<16x16x128xf32>
    %c0_57 = arith.constant 0 : index
    %c1_58 = arith.constant 1 : index
    %c1_59 = arith.constant 1 : index
    %c0_60 = arith.constant 0 : index
    %65 = vector.load %arg1[%c0_57, %c1_58, %c1_59, %c0_60] : memref<1x22x22x128xf32, #tpu.memory_space<vmem>>, vector<1x16x16x128xf32>
    %66 = vector.shape_cast %65 : vector<1x16x16x128xf32> to vector<16x16x128xf32>
    %c1_61 = arith.constant 1 : index
    %c1_62 = arith.constant 1 : index
    %c0_63 = arith.constant 0 : index
    %c0_64 = arith.constant 0 : index
    %67 = vector.load %arg2[%c1_61, %c1_62, %c0_63, %c0_64] : memref<7x7x1x128xf32, #tpu.memory_space<vmem>>, vector<1x1x1x128xf32>
    %68 = vector.shape_cast %67 : vector<1x1x1x128xf32> to vector<1x128xf32>
    %69 = vector.shape_cast %68 : vector<1x128xf32> to vector<1x1x128xf32>
    %70 = vector.broadcast %69 : vector<1x1x128xf32> to vector<16x16x128xf32>
    %71 = arith.mulf %66, %70 : vector<16x16x128xf32>
    %72 = arith.addf %64, %71 : vector<16x16x128xf32>
    %c0_65 = arith.constant 0 : index
    %c1_66 = arith.constant 1 : index
    %c2_67 = arith.constant 2 : index
    %c0_68 = arith.constant 0 : index
    %73 = vector.load %arg1[%c0_65, %c1_66, %c2_67, %c0_68] : memref<1x22x22x128xf32, #tpu.memory_space<vmem>>, vector<1x16x16x128xf32>
    %74 = vector.shape_cast %73 : vector<1x16x16x128xf32> to vector<16x16x128xf32>
    %c1_69 = arith.constant 1 : index
    %c2_70 = arith.constant 2 : index
    %c0_71 = arith.constant 0 : index
    %c0_72 = arith.constant 0 : index
    %75 = vector.load %arg2[%c1_69, %c2_70, %c0_71, %c0_72] : memref<7x7x1x128xf32, #tpu.memory_space<vmem>>, vector<1x1x1x128xf32>
    %76 = vector.shape_cast %75 : vector<1x1x1x128xf32> to vector<1x128xf32>
    %77 = vector.shape_cast %76 : vector<1x128xf32> to vector<1x1x128xf32>
    %78 = vector.broadcast %77 : vector<1x1x128xf32> to vector<16x16x128xf32>
    %79 = arith.mulf %74, %78 : vector<16x16x128xf32>
    %80 = arith.addf %72, %79 : vector<16x16x128xf32>
    %c0_73 = arith.constant 0 : index
    %c1_74 = arith.constant 1 : index
    %c3_75 = arith.constant 3 : index
    %c0_76 = arith.constant 0 : index
    %81 = vector.load %arg1[%c0_73, %c1_74, %c3_75, %c0_76] : memref<1x22x22x128xf32, #tpu.memory_space<vmem>>, vector<1x16x16x128xf32>
    %82 = vector.shape_cast %81 : vector<1x16x16x128xf32> to vector<16x16x128xf32>
    %c1_77 = arith.constant 1 : index
    %c3_78 = arith.constant 3 : index
    %c0_79 = arith.constant 0 : index
    %c0_80 = arith.constant 0 : index
    %83 = vector.load %arg2[%c1_77, %c3_78, %c0_79, %c0_80] : memref<7x7x1x128xf32, #tpu.memory_space<vmem>>, vector<1x1x1x128xf32>
    %84 = vector.shape_cast %83 : vector<1x1x1x128xf32> to vector<1x128xf32>
    %85 = vector.shape_cast %84 : vector<1x128xf32> to vector<1x1x128xf32>
    %86 = vector.broadcast %85 : vector<1x1x128xf32> to vector<16x16x128xf32>
    %87 = arith.mulf %82, %86 : vector<16x16x128xf32>
    %88 = arith.addf %80, %87 : vector<16x16x128xf32>
    %c0_81 = arith.constant 0 : index
    %c1_82 = arith.constant 1 : index
    %c4_83 = arith.constant 4 : index
    %c0_84 = arith.constant 0 : index
    %89 = vector.load %arg1[%c0_81, %c1_82, %c4_83, %c0_84] : memref<1x22x22x128xf32, #tpu.memory_space<vmem>>, vector<1x16x16x128xf32>
    %90 = vector.shape_cast %89 : vector<1x16x16x128xf32> to vector<16x16x128xf32>
    %c1_85 = arith.constant 1 : index
    %c4_86 = arith.constant 4 : index
    %c0_87 = arith.constant 0 : index
    %c0_88 = arith.constant 0 : index
    %91 = vector.load %arg2[%c1_85, %c4_86, %c0_87, %c0_88] : memref<7x7x1x128xf32, #tpu.memory_space<vmem>>, vector<1x1x1x128xf32>
    %92 = vector.shape_cast %91 : vector<1x1x1x128xf32> to vector<1x128xf32>
    %93 = vector.shape_cast %92 : vector<1x128xf32> to vector<1x1x128xf32>
    %94 = vector.broadcast %93 : vector<1x1x128xf32> to vector<16x16x128xf32>
    %95 = arith.mulf %90, %94 : vector<16x16x128xf32>
    %96 = arith.addf %88, %95 : vector<16x16x128xf32>
    %c0_89 = arith.constant 0 : index
    %c1_90 = arith.constant 1 : index
    %c5_91 = arith.constant 5 : index
    %c0_92 = arith.constant 0 : index
    %97 = vector.load %arg1[%c0_89, %c1_90, %c5_91, %c0_92] : memref<1x22x22x128xf32, #tpu.memory_space<vmem>>, vector<1x16x16x128xf32>
    %98 = vector.shape_cast %97 : vector<1x16x16x128xf32> to vector<16x16x128xf32>
    %c1_93 = arith.constant 1 : index
    %c5_94 = arith.constant 5 : index
    %c0_95 = arith.constant 0 : index
    %c0_96 = arith.constant 0 : index
    %99 = vector.load %arg2[%c1_93, %c5_94, %c0_95, %c0_96] : memref<7x7x1x128xf32, #tpu.memory_space<vmem>>, vector<1x1x1x128xf32>
    %100 = vector.shape_cast %99 : vector<1x1x1x128xf32> to vector<1x128xf32>
    %101 = vector.shape_cast %100 : vector<1x128xf32> to vector<1x1x128xf32>
    %102 = vector.broadcast %101 : vector<1x1x128xf32> to vector<16x16x128xf32>
    %103 = arith.mulf %98, %102 : vector<16x16x128xf32>
    %104 = arith.addf %96, %103 : vector<16x16x128xf32>
    %c0_97 = arith.constant 0 : index
    %c1_98 = arith.constant 1 : index
    %c6_99 = arith.constant 6 : index
    %c0_100 = arith.constant 0 : index
    %105 = vector.load %arg1[%c0_97, %c1_98, %c6_99, %c0_100] : memref<1x22x22x128xf32, #tpu.memory_space<vmem>>, vector<1x16x16x128xf32>
    %106 = vector.shape_cast %105 : vector<1x16x16x128xf32> to vector<16x16x128xf32>
    %c1_101 = arith.constant 1 : index
    %c6_102 = arith.constant 6 : index
    %c0_103 = arith.constant 0 : index
    %c0_104 = arith.constant 0 : index
    %107 = vector.load %arg2[%c1_101, %c6_102, %c0_103, %c0_104] : memref<7x7x1x128xf32, #tpu.memory_space<vmem>>, vector<1x1x1x128xf32>
    %108 = vector.shape_cast %107 : vector<1x1x1x128xf32> to vector<1x128xf32>
    %109 = vector.shape_cast %108 : vector<1x128xf32> to vector<1x1x128xf32>
    %110 = vector.broadcast %109 : vector<1x1x128xf32> to vector<16x16x128xf32>
    %111 = arith.mulf %106, %110 : vector<16x16x128xf32>
    %112 = arith.addf %104, %111 : vector<16x16x128xf32>
    %c0_105 = arith.constant 0 : index
    %c2_106 = arith.constant 2 : index
    %c0_107 = arith.constant 0 : index
    %c0_108 = arith.constant 0 : index
    %113 = vector.load %arg1[%c0_105, %c2_106, %c0_107, %c0_108] : memref<1x22x22x128xf32, #tpu.memory_space<vmem>>, vector<1x16x16x128xf32>
    %114 = vector.shape_cast %113 : vector<1x16x16x128xf32> to vector<16x16x128xf32>
    %c2_109 = arith.constant 2 : index
    %c0_110 = arith.constant 0 : index
    %c0_111 = arith.constant 0 : index
    %c0_112 = arith.constant 0 : index
    %115 = vector.load %arg2[%c2_109, %c0_110, %c0_111, %c0_112] : memref<7x7x1x128xf32, #tpu.memory_space<vmem>>, vector<1x1x1x128xf32>
    %116 = vector.shape_cast %115 : vector<1x1x1x128xf32> to vector<1x128xf32>
    %117 = vector.shape_cast %116 : vector<1x128xf32> to vector<1x1x128xf32>
    %118 = vector.broadcast %117 : vector<1x1x128xf32> to vector<16x16x128xf32>
    %119 = arith.mulf %114, %118 : vector<16x16x128xf32>
    %120 = arith.addf %112, %119 : vector<16x16x128xf32>
    %c0_113 = arith.constant 0 : index
    %c2_114 = arith.constant 2 : index
    %c1_115 = arith.constant 1 : index
    %c0_116 = arith.constant 0 : index
    %121 = vector.load %arg1[%c0_113, %c2_114, %c1_115, %c0_116] : memref<1x22x22x128xf32, #tpu.memory_space<vmem>>, vector<1x16x16x128xf32>
    %122 = vector.shape_cast %121 : vector<1x16x16x128xf32> to vector<16x16x128xf32>
    %c2_117 = arith.constant 2 : index
    %c1_118 = arith.constant 1 : index
    %c0_119 = arith.constant 0 : index
    %c0_120 = arith.constant 0 : index
    %123 = vector.load %arg2[%c2_117, %c1_118, %c0_119, %c0_120] : memref<7x7x1x128xf32, #tpu.memory_space<vmem>>, vector<1x1x1x128xf32>
    %124 = vector.shape_cast %123 : vector<1x1x1x128xf32> to vector<1x128xf32>
    %125 = vector.shape_cast %124 : vector<1x128xf32> to vector<1x1x128xf32>
    %126 = vector.broadcast %125 : vector<1x1x128xf32> to vector<16x16x128xf32>
    %127 = arith.mulf %122, %126 : vector<16x16x128xf32>
    %128 = arith.addf %120, %127 : vector<16x16x128xf32>
    %c0_121 = arith.constant 0 : index
    %c2_122 = arith.constant 2 : index
    %c2_123 = arith.constant 2 : index
    %c0_124 = arith.constant 0 : index
    %129 = vector.load %arg1[%c0_121, %c2_122, %c2_123, %c0_124] : memref<1x22x22x128xf32, #tpu.memory_space<vmem>>, vector<1x16x16x128xf32>
    %130 = vector.shape_cast %129 : vector<1x16x16x128xf32> to vector<16x16x128xf32>
    %c2_125 = arith.constant 2 : index
    %c2_126 = arith.constant 2 : index
    %c0_127 = arith.constant 0 : index
    %c0_128 = arith.constant 0 : index
    %131 = vector.load %arg2[%c2_125, %c2_126, %c0_127, %c0_128] : memref<7x7x1x128xf32, #tpu.memory_space<vmem>>, vector<1x1x1x128xf32>
    %132 = vector.shape_cast %131 : vector<1x1x1x128xf32> to vector<1x128xf32>
    %133 = vector.shape_cast %132 : vector<1x128xf32> to vector<1x1x128xf32>
    %134 = vector.broadcast %133 : vector<1x1x128xf32> to vector<16x16x128xf32>
    %135 = arith.mulf %130, %134 : vector<16x16x128xf32>
    %136 = arith.addf %128, %135 : vector<16x16x128xf32>
    %c0_129 = arith.constant 0 : index
    %c2_130 = arith.constant 2 : index
    %c3_131 = arith.constant 3 : index
    %c0_132 = arith.constant 0 : index
    %137 = vector.load %arg1[%c0_129, %c2_130, %c3_131, %c0_132] : memref<1x22x22x128xf32, #tpu.memory_space<vmem>>, vector<1x16x16x128xf32>
    %138 = vector.shape_cast %137 : vector<1x16x16x128xf32> to vector<16x16x128xf32>
    %c2_133 = arith.constant 2 : index
    %c3_134 = arith.constant 3 : index
    %c0_135 = arith.constant 0 : index
    %c0_136 = arith.constant 0 : index
    %139 = vector.load %arg2[%c2_133, %c3_134, %c0_135, %c0_136] : memref<7x7x1x128xf32, #tpu.memory_space<vmem>>, vector<1x1x1x128xf32>
    %140 = vector.shape_cast %139 : vector<1x1x1x128xf32> to vector<1x128xf32>
    %141 = vector.shape_cast %140 : vector<1x128xf32> to vector<1x1x128xf32>
    %142 = vector.broadcast %141 : vector<1x1x128xf32> to vector<16x16x128xf32>
    %143 = arith.mulf %138, %142 : vector<16x16x128xf32>
    %144 = arith.addf %136, %143 : vector<16x16x128xf32>
    %c0_137 = arith.constant 0 : index
    %c2_138 = arith.constant 2 : index
    %c4_139 = arith.constant 4 : index
    %c0_140 = arith.constant 0 : index
    %145 = vector.load %arg1[%c0_137, %c2_138, %c4_139, %c0_140] : memref<1x22x22x128xf32, #tpu.memory_space<vmem>>, vector<1x16x16x128xf32>
    %146 = vector.shape_cast %145 : vector<1x16x16x128xf32> to vector<16x16x128xf32>
    %c2_141 = arith.constant 2 : index
    %c4_142 = arith.constant 4 : index
    %c0_143 = arith.constant 0 : index
    %c0_144 = arith.constant 0 : index
    %147 = vector.load %arg2[%c2_141, %c4_142, %c0_143, %c0_144] : memref<7x7x1x128xf32, #tpu.memory_space<vmem>>, vector<1x1x1x128xf32>
    %148 = vector.shape_cast %147 : vector<1x1x1x128xf32> to vector<1x128xf32>
    %149 = vector.shape_cast %148 : vector<1x128xf32> to vector<1x1x128xf32>
    %150 = vector.broadcast %149 : vector<1x1x128xf32> to vector<16x16x128xf32>
    %151 = arith.mulf %146, %150 : vector<16x16x128xf32>
    %152 = arith.addf %144, %151 : vector<16x16x128xf32>
    %c0_145 = arith.constant 0 : index
    %c2_146 = arith.constant 2 : index
    %c5_147 = arith.constant 5 : index
    %c0_148 = arith.constant 0 : index
    %153 = vector.load %arg1[%c0_145, %c2_146, %c5_147, %c0_148] : memref<1x22x22x128xf32, #tpu.memory_space<vmem>>, vector<1x16x16x128xf32>
    %154 = vector.shape_cast %153 : vector<1x16x16x128xf32> to vector<16x16x128xf32>
    %c2_149 = arith.constant 2 : index
    %c5_150 = arith.constant 5 : index
    %c0_151 = arith.constant 0 : index
    %c0_152 = arith.constant 0 : index
    %155 = vector.load %arg2[%c2_149, %c5_150, %c0_151, %c0_152] : memref<7x7x1x128xf32, #tpu.memory_space<vmem>>, vector<1x1x1x128xf32>
    %156 = vector.shape_cast %155 : vector<1x1x1x128xf32> to vector<1x128xf32>
    %157 = vector.shape_cast %156 : vector<1x128xf32> to vector<1x1x128xf32>
    %158 = vector.broadcast %157 : vector<1x1x128xf32> to vector<16x16x128xf32>
    %159 = arith.mulf %154, %158 : vector<16x16x128xf32>
    %160 = arith.addf %152, %159 : vector<16x16x128xf32>
    %c0_153 = arith.constant 0 : index
    %c2_154 = arith.constant 2 : index
    %c6_155 = arith.constant 6 : index
    %c0_156 = arith.constant 0 : index
    %161 = vector.load %arg1[%c0_153, %c2_154, %c6_155, %c0_156] : memref<1x22x22x128xf32, #tpu.memory_space<vmem>>, vector<1x16x16x128xf32>
    %162 = vector.shape_cast %161 : vector<1x16x16x128xf32> to vector<16x16x128xf32>
    %c2_157 = arith.constant 2 : index
    %c6_158 = arith.constant 6 : index
    %c0_159 = arith.constant 0 : index
    %c0_160 = arith.constant 0 : index
    %163 = vector.load %arg2[%c2_157, %c6_158, %c0_159, %c0_160] : memref<7x7x1x128xf32, #tpu.memory_space<vmem>>, vector<1x1x1x128xf32>
    %164 = vector.shape_cast %163 : vector<1x1x1x128xf32> to vector<1x128xf32>
    %165 = vector.shape_cast %164 : vector<1x128xf32> to vector<1x1x128xf32>
    %166 = vector.broadcast %165 : vector<1x1x128xf32> to vector<16x16x128xf32>
    %167 = arith.mulf %162, %166 : vector<16x16x128xf32>
    %168 = arith.addf %160, %167 : vector<16x16x128xf32>
    %c0_161 = arith.constant 0 : index
    %c3_162 = arith.constant 3 : index
    %c0_163 = arith.constant 0 : index
    %c0_164 = arith.constant 0 : index
    %169 = vector.load %arg1[%c0_161, %c3_162, %c0_163, %c0_164] : memref<1x22x22x128xf32, #tpu.memory_space<vmem>>, vector<1x16x16x128xf32>
    %170 = vector.shape_cast %169 : vector<1x16x16x128xf32> to vector<16x16x128xf32>
    %c3_165 = arith.constant 3 : index
    %c0_166 = arith.constant 0 : index
    %c0_167 = arith.constant 0 : index
    %c0_168 = arith.constant 0 : index
    %171 = vector.load %arg2[%c3_165, %c0_166, %c0_167, %c0_168] : memref<7x7x1x128xf32, #tpu.memory_space<vmem>>, vector<1x1x1x128xf32>
    %172 = vector.shape_cast %171 : vector<1x1x1x128xf32> to vector<1x128xf32>
    %173 = vector.shape_cast %172 : vector<1x128xf32> to vector<1x1x128xf32>
    %174 = vector.broadcast %173 : vector<1x1x128xf32> to vector<16x16x128xf32>
    %175 = arith.mulf %170, %174 : vector<16x16x128xf32>
    %176 = arith.addf %168, %175 : vector<16x16x128xf32>
    %c0_169 = arith.constant 0 : index
    %c3_170 = arith.constant 3 : index
    %c1_171 = arith.constant 1 : index
    %c0_172 = arith.constant 0 : index
    %177 = vector.load %arg1[%c0_169, %c3_170, %c1_171, %c0_172] : memref<1x22x22x128xf32, #tpu.memory_space<vmem>>, vector<1x16x16x128xf32>
    %178 = vector.shape_cast %177 : vector<1x16x16x128xf32> to vector<16x16x128xf32>
    %c3_173 = arith.constant 3 : index
    %c1_174 = arith.constant 1 : index
    %c0_175 = arith.constant 0 : index
    %c0_176 = arith.constant 0 : index
    %179 = vector.load %arg2[%c3_173, %c1_174, %c0_175, %c0_176] : memref<7x7x1x128xf32, #tpu.memory_space<vmem>>, vector<1x1x1x128xf32>
    %180 = vector.shape_cast %179 : vector<1x1x1x128xf32> to vector<1x128xf32>
    %181 = vector.shape_cast %180 : vector<1x128xf32> to vector<1x1x128xf32>
    %182 = vector.broadcast %181 : vector<1x1x128xf32> to vector<16x16x128xf32>
    %183 = arith.mulf %178, %182 : vector<16x16x128xf32>
    %184 = arith.addf %176, %183 : vector<16x16x128xf32>
    %c0_177 = arith.constant 0 : index
    %c3_178 = arith.constant 3 : index
    %c2_179 = arith.constant 2 : index
    %c0_180 = arith.constant 0 : index
    %185 = vector.load %arg1[%c0_177, %c3_178, %c2_179, %c0_180] : memref<1x22x22x128xf32, #tpu.memory_space<vmem>>, vector<1x16x16x128xf32>
    %186 = vector.shape_cast %185 : vector<1x16x16x128xf32> to vector<16x16x128xf32>
    %c3_181 = arith.constant 3 : index
    %c2_182 = arith.constant 2 : index
    %c0_183 = arith.constant 0 : index
    %c0_184 = arith.constant 0 : index
    %187 = vector.load %arg2[%c3_181, %c2_182, %c0_183, %c0_184] : memref<7x7x1x128xf32, #tpu.memory_space<vmem>>, vector<1x1x1x128xf32>
    %188 = vector.shape_cast %187 : vector<1x1x1x128xf32> to vector<1x128xf32>
    %189 = vector.shape_cast %188 : vector<1x128xf32> to vector<1x1x128xf32>
    %190 = vector.broadcast %189 : vector<1x1x128xf32> to vector<16x16x128xf32>
    %191 = arith.mulf %186, %190 : vector<16x16x128xf32>
    %192 = arith.addf %184, %191 : vector<16x16x128xf32>
    %c0_185 = arith.constant 0 : index
    %c3_186 = arith.constant 3 : index
    %c3_187 = arith.constant 3 : index
    %c0_188 = arith.constant 0 : index
    %193 = vector.load %arg1[%c0_185, %c3_186, %c3_187, %c0_188] : memref<1x22x22x128xf32, #tpu.memory_space<vmem>>, vector<1x16x16x128xf32>
    %194 = vector.shape_cast %193 : vector<1x16x16x128xf32> to vector<16x16x128xf32>
    %c3_189 = arith.constant 3 : index
    %c3_190 = arith.constant 3 : index
    %c0_191 = arith.constant 0 : index
    %c0_192 = arith.constant 0 : index
    %195 = vector.load %arg2[%c3_189, %c3_190, %c0_191, %c0_192] : memref<7x7x1x128xf32, #tpu.memory_space<vmem>>, vector<1x1x1x128xf32>
    %196 = vector.shape_cast %195 : vector<1x1x1x128xf32> to vector<1x128xf32>
    %197 = vector.shape_cast %196 : vector<1x128xf32> to vector<1x1x128xf32>
    %198 = vector.broadcast %197 : vector<1x1x128xf32> to vector<16x16x128xf32>
    %199 = arith.mulf %194, %198 : vector<16x16x128xf32>
    %200 = arith.addf %192, %199 : vector<16x16x128xf32>
    %c0_193 = arith.constant 0 : index
    %c3_194 = arith.constant 3 : index
    %c4_195 = arith.constant 4 : index
    %c0_196 = arith.constant 0 : index
    %201 = vector.load %arg1[%c0_193, %c3_194, %c4_195, %c0_196] : memref<1x22x22x128xf32, #tpu.memory_space<vmem>>, vector<1x16x16x128xf32>
    %202 = vector.shape_cast %201 : vector<1x16x16x128xf32> to vector<16x16x128xf32>
    %c3_197 = arith.constant 3 : index
    %c4_198 = arith.constant 4 : index
    %c0_199 = arith.constant 0 : index
    %c0_200 = arith.constant 0 : index
    %203 = vector.load %arg2[%c3_197, %c4_198, %c0_199, %c0_200] : memref<7x7x1x128xf32, #tpu.memory_space<vmem>>, vector<1x1x1x128xf32>
    %204 = vector.shape_cast %203 : vector<1x1x1x128xf32> to vector<1x128xf32>
    %205 = vector.shape_cast %204 : vector<1x128xf32> to vector<1x1x128xf32>
    %206 = vector.broadcast %205 : vector<1x1x128xf32> to vector<16x16x128xf32>
    %207 = arith.mulf %202, %206 : vector<16x16x128xf32>
    %208 = arith.addf %200, %207 : vector<16x16x128xf32>
    %c0_201 = arith.constant 0 : index
    %c3_202 = arith.constant 3 : index
    %c5_203 = arith.constant 5 : index
    %c0_204 = arith.constant 0 : index
    %209 = vector.load %arg1[%c0_201, %c3_202, %c5_203, %c0_204] : memref<1x22x22x128xf32, #tpu.memory_space<vmem>>, vector<1x16x16x128xf32>
    %210 = vector.shape_cast %209 : vector<1x16x16x128xf32> to vector<16x16x128xf32>
    %c3_205 = arith.constant 3 : index
    %c5_206 = arith.constant 5 : index
    %c0_207 = arith.constant 0 : index
    %c0_208 = arith.constant 0 : index
    %211 = vector.load %arg2[%c3_205, %c5_206, %c0_207, %c0_208] : memref<7x7x1x128xf32, #tpu.memory_space<vmem>>, vector<1x1x1x128xf32>
    %212 = vector.shape_cast %211 : vector<1x1x1x128xf32> to vector<1x128xf32>
    %213 = vector.shape_cast %212 : vector<1x128xf32> to vector<1x1x128xf32>
    %214 = vector.broadcast %213 : vector<1x1x128xf32> to vector<16x16x128xf32>
    %215 = arith.mulf %210, %214 : vector<16x16x128xf32>
    %216 = arith.addf %208, %215 : vector<16x16x128xf32>
    %c0_209 = arith.constant 0 : index
    %c3_210 = arith.constant 3 : index
    %c6_211 = arith.constant 6 : index
    %c0_212 = arith.constant 0 : index
    %217 = vector.load %arg1[%c0_209, %c3_210, %c6_211, %c0_212] : memref<1x22x22x128xf32, #tpu.memory_space<vmem>>, vector<1x16x16x128xf32>
    %218 = vector.shape_cast %217 : vector<1x16x16x128xf32> to vector<16x16x128xf32>
    %c3_213 = arith.constant 3 : index
    %c6_214 = arith.constant 6 : index
    %c0_215 = arith.constant 0 : index
    %c0_216 = arith.constant 0 : index
    %219 = vector.load %arg2[%c3_213, %c6_214, %c0_215, %c0_216] : memref<7x7x1x128xf32, #tpu.memory_space<vmem>>, vector<1x1x1x128xf32>
    %220 = vector.shape_cast %219 : vector<1x1x1x128xf32> to vector<1x128xf32>
    %221 = vector.shape_cast %220 : vector<1x128xf32> to vector<1x1x128xf32>
    %222 = vector.broadcast %221 : vector<1x1x128xf32> to vector<16x16x128xf32>
    %223 = arith.mulf %218, %222 : vector<16x16x128xf32>
    %224 = arith.addf %216, %223 : vector<16x16x128xf32>
    %c0_217 = arith.constant 0 : index
    %c4_218 = arith.constant 4 : index
    %c0_219 = arith.constant 0 : index
    %c0_220 = arith.constant 0 : index
    %225 = vector.load %arg1[%c0_217, %c4_218, %c0_219, %c0_220] : memref<1x22x22x128xf32, #tpu.memory_space<vmem>>, vector<1x16x16x128xf32>
    %226 = vector.shape_cast %225 : vector<1x16x16x128xf32> to vector<16x16x128xf32>
    %c4_221 = arith.constant 4 : index
    %c0_222 = arith.constant 0 : index
    %c0_223 = arith.constant 0 : index
    %c0_224 = arith.constant 0 : index
    %227 = vector.load %arg2[%c4_221, %c0_222, %c0_223, %c0_224] : memref<7x7x1x128xf32, #tpu.memory_space<vmem>>, vector<1x1x1x128xf32>
    %228 = vector.shape_cast %227 : vector<1x1x1x128xf32> to vector<1x128xf32>
    %229 = vector.shape_cast %228 : vector<1x128xf32> to vector<1x1x128xf32>
    %230 = vector.broadcast %229 : vector<1x1x128xf32> to vector<16x16x128xf32>
    %231 = arith.mulf %226, %230 : vector<16x16x128xf32>
    %232 = arith.addf %224, %231 : vector<16x16x128xf32>
    %c0_225 = arith.constant 0 : index
    %c4_226 = arith.constant 4 : index
    %c1_227 = arith.constant 1 : index
    %c0_228 = arith.constant 0 : index
    %233 = vector.load %arg1[%c0_225, %c4_226, %c1_227, %c0_228] : memref<1x22x22x128xf32, #tpu.memory_space<vmem>>, vector<1x16x16x128xf32>
    %234 = vector.shape_cast %233 : vector<1x16x16x128xf32> to vector<16x16x128xf32>
    %c4_229 = arith.constant 4 : index
    %c1_230 = arith.constant 1 : index
    %c0_231 = arith.constant 0 : index
    %c0_232 = arith.constant 0 : index
    %235 = vector.load %arg2[%c4_229, %c1_230, %c0_231, %c0_232] : memref<7x7x1x128xf32, #tpu.memory_space<vmem>>, vector<1x1x1x128xf32>
    %236 = vector.shape_cast %235 : vector<1x1x1x128xf32> to vector<1x128xf32>
    %237 = vector.shape_cast %236 : vector<1x128xf32> to vector<1x1x128xf32>
    %238 = vector.broadcast %237 : vector<1x1x128xf32> to vector<16x16x128xf32>
    %239 = arith.mulf %234, %238 : vector<16x16x128xf32>
    %240 = arith.addf %232, %239 : vector<16x16x128xf32>
    %c0_233 = arith.constant 0 : index
    %c4_234 = arith.constant 4 : index
    %c2_235 = arith.constant 2 : index
    %c0_236 = arith.constant 0 : index
    %241 = vector.load %arg1[%c0_233, %c4_234, %c2_235, %c0_236] : memref<1x22x22x128xf32, #tpu.memory_space<vmem>>, vector<1x16x16x128xf32>
    %242 = vector.shape_cast %241 : vector<1x16x16x128xf32> to vector<16x16x128xf32>
    %c4_237 = arith.constant 4 : index
    %c2_238 = arith.constant 2 : index
    %c0_239 = arith.constant 0 : index
    %c0_240 = arith.constant 0 : index
    %243 = vector.load %arg2[%c4_237, %c2_238, %c0_239, %c0_240] : memref<7x7x1x128xf32, #tpu.memory_space<vmem>>, vector<1x1x1x128xf32>
    %244 = vector.shape_cast %243 : vector<1x1x1x128xf32> to vector<1x128xf32>
    %245 = vector.shape_cast %244 : vector<1x128xf32> to vector<1x1x128xf32>
    %246 = vector.broadcast %245 : vector<1x1x128xf32> to vector<16x16x128xf32>
    %247 = arith.mulf %242, %246 : vector<16x16x128xf32>
    %248 = arith.addf %240, %247 : vector<16x16x128xf32>
    %c0_241 = arith.constant 0 : index
    %c4_242 = arith.constant 4 : index
    %c3_243 = arith.constant 3 : index
    %c0_244 = arith.constant 0 : index
    %249 = vector.load %arg1[%c0_241, %c4_242, %c3_243, %c0_244] : memref<1x22x22x128xf32, #tpu.memory_space<vmem>>, vector<1x16x16x128xf32>
    %250 = vector.shape_cast %249 : vector<1x16x16x128xf32> to vector<16x16x128xf32>
    %c4_245 = arith.constant 4 : index
    %c3_246 = arith.constant 3 : index
    %c0_247 = arith.constant 0 : index
    %c0_248 = arith.constant 0 : index
    %251 = vector.load %arg2[%c4_245, %c3_246, %c0_247, %c0_248] : memref<7x7x1x128xf32, #tpu.memory_space<vmem>>, vector<1x1x1x128xf32>
    %252 = vector.shape_cast %251 : vector<1x1x1x128xf32> to vector<1x128xf32>
    %253 = vector.shape_cast %252 : vector<1x128xf32> to vector<1x1x128xf32>
    %254 = vector.broadcast %253 : vector<1x1x128xf32> to vector<16x16x128xf32>
    %255 = arith.mulf %250, %254 : vector<16x16x128xf32>
    %256 = arith.addf %248, %255 : vector<16x16x128xf32>
    %c0_249 = arith.constant 0 : index
    %c4_250 = arith.constant 4 : index
    %c4_251 = arith.constant 4 : index
    %c0_252 = arith.constant 0 : index
    %257 = vector.load %arg1[%c0_249, %c4_250, %c4_251, %c0_252] : memref<1x22x22x128xf32, #tpu.memory_space<vmem>>, vector<1x16x16x128xf32>
    %258 = vector.shape_cast %257 : vector<1x16x16x128xf32> to vector<16x16x128xf32>
    %c4_253 = arith.constant 4 : index
    %c4_254 = arith.constant 4 : index
    %c0_255 = arith.constant 0 : index
    %c0_256 = arith.constant 0 : index
    %259 = vector.load %arg2[%c4_253, %c4_254, %c0_255, %c0_256] : memref<7x7x1x128xf32, #tpu.memory_space<vmem>>, vector<1x1x1x128xf32>
    %260 = vector.shape_cast %259 : vector<1x1x1x128xf32> to vector<1x128xf32>
    %261 = vector.shape_cast %260 : vector<1x128xf32> to vector<1x1x128xf32>
    %262 = vector.broadcast %261 : vector<1x1x128xf32> to vector<16x16x128xf32>
    %263 = arith.mulf %258, %262 : vector<16x16x128xf32>
    %264 = arith.addf %256, %263 : vector<16x16x128xf32>
    %c0_257 = arith.constant 0 : index
    %c4_258 = arith.constant 4 : index
    %c5_259 = arith.constant 5 : index
    %c0_260 = arith.constant 0 : index
    %265 = vector.load %arg1[%c0_257, %c4_258, %c5_259, %c0_260] : memref<1x22x22x128xf32, #tpu.memory_space<vmem>>, vector<1x16x16x128xf32>
    %266 = vector.shape_cast %265 : vector<1x16x16x128xf32> to vector<16x16x128xf32>
    %c4_261 = arith.constant 4 : index
    %c5_262 = arith.constant 5 : index
    %c0_263 = arith.constant 0 : index
    %c0_264 = arith.constant 0 : index
    %267 = vector.load %arg2[%c4_261, %c5_262, %c0_263, %c0_264] : memref<7x7x1x128xf32, #tpu.memory_space<vmem>>, vector<1x1x1x128xf32>
    %268 = vector.shape_cast %267 : vector<1x1x1x128xf32> to vector<1x128xf32>
    %269 = vector.shape_cast %268 : vector<1x128xf32> to vector<1x1x128xf32>
    %270 = vector.broadcast %269 : vector<1x1x128xf32> to vector<16x16x128xf32>
    %271 = arith.mulf %266, %270 : vector<16x16x128xf32>
    %272 = arith.addf %264, %271 : vector<16x16x128xf32>
    %c0_265 = arith.constant 0 : index
    %c4_266 = arith.constant 4 : index
    %c6_267 = arith.constant 6 : index
    %c0_268 = arith.constant 0 : index
    %273 = vector.load %arg1[%c0_265, %c4_266, %c6_267, %c0_268] : memref<1x22x22x128xf32, #tpu.memory_space<vmem>>, vector<1x16x16x128xf32>
    %274 = vector.shape_cast %273 : vector<1x16x16x128xf32> to vector<16x16x128xf32>
    %c4_269 = arith.constant 4 : index
    %c6_270 = arith.constant 6 : index
    %c0_271 = arith.constant 0 : index
    %c0_272 = arith.constant 0 : index
    %275 = vector.load %arg2[%c4_269, %c6_270, %c0_271, %c0_272] : memref<7x7x1x128xf32, #tpu.memory_space<vmem>>, vector<1x1x1x128xf32>
    %276 = vector.shape_cast %275 : vector<1x1x1x128xf32> to vector<1x128xf32>
    %277 = vector.shape_cast %276 : vector<1x128xf32> to vector<1x1x128xf32>
    %278 = vector.broadcast %277 : vector<1x1x128xf32> to vector<16x16x128xf32>
    %279 = arith.mulf %274, %278 : vector<16x16x128xf32>
    %280 = arith.addf %272, %279 : vector<16x16x128xf32>
    %c0_273 = arith.constant 0 : index
    %c5_274 = arith.constant 5 : index
    %c0_275 = arith.constant 0 : index
    %c0_276 = arith.constant 0 : index
    %281 = vector.load %arg1[%c0_273, %c5_274, %c0_275, %c0_276] : memref<1x22x22x128xf32, #tpu.memory_space<vmem>>, vector<1x16x16x128xf32>
    %282 = vector.shape_cast %281 : vector<1x16x16x128xf32> to vector<16x16x128xf32>
    %c5_277 = arith.constant 5 : index
    %c0_278 = arith.constant 0 : index
    %c0_279 = arith.constant 0 : index
    %c0_280 = arith.constant 0 : index
    %283 = vector.load %arg2[%c5_277, %c0_278, %c0_279, %c0_280] : memref<7x7x1x128xf32, #tpu.memory_space<vmem>>, vector<1x1x1x128xf32>
    %284 = vector.shape_cast %283 : vector<1x1x1x128xf32> to vector<1x128xf32>
    %285 = vector.shape_cast %284 : vector<1x128xf32> to vector<1x1x128xf32>
    %286 = vector.broadcast %285 : vector<1x1x128xf32> to vector<16x16x128xf32>
    %287 = arith.mulf %282, %286 : vector<16x16x128xf32>
    %288 = arith.addf %280, %287 : vector<16x16x128xf32>
    %c0_281 = arith.constant 0 : index
    %c5_282 = arith.constant 5 : index
    %c1_283 = arith.constant 1 : index
    %c0_284 = arith.constant 0 : index
    %289 = vector.load %arg1[%c0_281, %c5_282, %c1_283, %c0_284] : memref<1x22x22x128xf32, #tpu.memory_space<vmem>>, vector<1x16x16x128xf32>
    %290 = vector.shape_cast %289 : vector<1x16x16x128xf32> to vector<16x16x128xf32>
    %c5_285 = arith.constant 5 : index
    %c1_286 = arith.constant 1 : index
    %c0_287 = arith.constant 0 : index
    %c0_288 = arith.constant 0 : index
    %291 = vector.load %arg2[%c5_285, %c1_286, %c0_287, %c0_288] : memref<7x7x1x128xf32, #tpu.memory_space<vmem>>, vector<1x1x1x128xf32>
    %292 = vector.shape_cast %291 : vector<1x1x1x128xf32> to vector<1x128xf32>
    %293 = vector.shape_cast %292 : vector<1x128xf32> to vector<1x1x128xf32>
    %294 = vector.broadcast %293 : vector<1x1x128xf32> to vector<16x16x128xf32>
    %295 = arith.mulf %290, %294 : vector<16x16x128xf32>
    %296 = arith.addf %288, %295 : vector<16x16x128xf32>
    %c0_289 = arith.constant 0 : index
    %c5_290 = arith.constant 5 : index
    %c2_291 = arith.constant 2 : index
    %c0_292 = arith.constant 0 : index
    %297 = vector.load %arg1[%c0_289, %c5_290, %c2_291, %c0_292] : memref<1x22x22x128xf32, #tpu.memory_space<vmem>>, vector<1x16x16x128xf32>
    %298 = vector.shape_cast %297 : vector<1x16x16x128xf32> to vector<16x16x128xf32>
    %c5_293 = arith.constant 5 : index
    %c2_294 = arith.constant 2 : index
    %c0_295 = arith.constant 0 : index
    %c0_296 = arith.constant 0 : index
    %299 = vector.load %arg2[%c5_293, %c2_294, %c0_295, %c0_296] : memref<7x7x1x128xf32, #tpu.memory_space<vmem>>, vector<1x1x1x128xf32>
    %300 = vector.shape_cast %299 : vector<1x1x1x128xf32> to vector<1x128xf32>
    %301 = vector.shape_cast %300 : vector<1x128xf32> to vector<1x1x128xf32>
    %302 = vector.broadcast %301 : vector<1x1x128xf32> to vector<16x16x128xf32>
    %303 = arith.mulf %298, %302 : vector<16x16x128xf32>
    %304 = arith.addf %296, %303 : vector<16x16x128xf32>
    %c0_297 = arith.constant 0 : index
    %c5_298 = arith.constant 5 : index
    %c3_299 = arith.constant 3 : index
    %c0_300 = arith.constant 0 : index
    %305 = vector.load %arg1[%c0_297, %c5_298, %c3_299, %c0_300] : memref<1x22x22x128xf32, #tpu.memory_space<vmem>>, vector<1x16x16x128xf32>
    %306 = vector.shape_cast %305 : vector<1x16x16x128xf32> to vector<16x16x128xf32>
    %c5_301 = arith.constant 5 : index
    %c3_302 = arith.constant 3 : index
    %c0_303 = arith.constant 0 : index
    %c0_304 = arith.constant 0 : index
    %307 = vector.load %arg2[%c5_301, %c3_302, %c0_303, %c0_304] : memref<7x7x1x128xf32, #tpu.memory_space<vmem>>, vector<1x1x1x128xf32>
    %308 = vector.shape_cast %307 : vector<1x1x1x128xf32> to vector<1x128xf32>
    %309 = vector.shape_cast %308 : vector<1x128xf32> to vector<1x1x128xf32>
    %310 = vector.broadcast %309 : vector<1x1x128xf32> to vector<16x16x128xf32>
    %311 = arith.mulf %306, %310 : vector<16x16x128xf32>
    %312 = arith.addf %304, %311 : vector<16x16x128xf32>
    %c0_305 = arith.constant 0 : index
    %c5_306 = arith.constant 5 : index
    %c4_307 = arith.constant 4 : index
    %c0_308 = arith.constant 0 : index
    %313 = vector.load %arg1[%c0_305, %c5_306, %c4_307, %c0_308] : memref<1x22x22x128xf32, #tpu.memory_space<vmem>>, vector<1x16x16x128xf32>
    %314 = vector.shape_cast %313 : vector<1x16x16x128xf32> to vector<16x16x128xf32>
    %c5_309 = arith.constant 5 : index
    %c4_310 = arith.constant 4 : index
    %c0_311 = arith.constant 0 : index
    %c0_312 = arith.constant 0 : index
    %315 = vector.load %arg2[%c5_309, %c4_310, %c0_311, %c0_312] : memref<7x7x1x128xf32, #tpu.memory_space<vmem>>, vector<1x1x1x128xf32>
    %316 = vector.shape_cast %315 : vector<1x1x1x128xf32> to vector<1x128xf32>
    %317 = vector.shape_cast %316 : vector<1x128xf32> to vector<1x1x128xf32>
    %318 = vector.broadcast %317 : vector<1x1x128xf32> to vector<16x16x128xf32>
    %319 = arith.mulf %314, %318 : vector<16x16x128xf32>
    %320 = arith.addf %312, %319 : vector<16x16x128xf32>
    %c0_313 = arith.constant 0 : index
    %c5_314 = arith.constant 5 : index
    %c5_315 = arith.constant 5 : index
    %c0_316 = arith.constant 0 : index
    %321 = vector.load %arg1[%c0_313, %c5_314, %c5_315, %c0_316] : memref<1x22x22x128xf32, #tpu.memory_space<vmem>>, vector<1x16x16x128xf32>
    %322 = vector.shape_cast %321 : vector<1x16x16x128xf32> to vector<16x16x128xf32>
    %c5_317 = arith.constant 5 : index
    %c5_318 = arith.constant 5 : index
    %c0_319 = arith.constant 0 : index
    %c0_320 = arith.constant 0 : index
    %323 = vector.load %arg2[%c5_317, %c5_318, %c0_319, %c0_320] : memref<7x7x1x128xf32, #tpu.memory_space<vmem>>, vector<1x1x1x128xf32>
    %324 = vector.shape_cast %323 : vector<1x1x1x128xf32> to vector<1x128xf32>
    %325 = vector.shape_cast %324 : vector<1x128xf32> to vector<1x1x128xf32>
    %326 = vector.broadcast %325 : vector<1x1x128xf32> to vector<16x16x128xf32>
    %327 = arith.mulf %322, %326 : vector<16x16x128xf32>
    %328 = arith.addf %320, %327 : vector<16x16x128xf32>
    %c0_321 = arith.constant 0 : index
    %c5_322 = arith.constant 5 : index
    %c6_323 = arith.constant 6 : index
    %c0_324 = arith.constant 0 : index
    %329 = vector.load %arg1[%c0_321, %c5_322, %c6_323, %c0_324] : memref<1x22x22x128xf32, #tpu.memory_space<vmem>>, vector<1x16x16x128xf32>
    %330 = vector.shape_cast %329 : vector<1x16x16x128xf32> to vector<16x16x128xf32>
    %c5_325 = arith.constant 5 : index
    %c6_326 = arith.constant 6 : index
    %c0_327 = arith.constant 0 : index
    %c0_328 = arith.constant 0 : index
    %331 = vector.load %arg2[%c5_325, %c6_326, %c0_327, %c0_328] : memref<7x7x1x128xf32, #tpu.memory_space<vmem>>, vector<1x1x1x128xf32>
    %332 = vector.shape_cast %331 : vector<1x1x1x128xf32> to vector<1x128xf32>
    %333 = vector.shape_cast %332 : vector<1x128xf32> to vector<1x1x128xf32>
    %334 = vector.broadcast %333 : vector<1x1x128xf32> to vector<16x16x128xf32>
    %335 = arith.mulf %330, %334 : vector<16x16x128xf32>
    %336 = arith.addf %328, %335 : vector<16x16x128xf32>
    %c0_329 = arith.constant 0 : index
    %c6_330 = arith.constant 6 : index
    %c0_331 = arith.constant 0 : index
    %c0_332 = arith.constant 0 : index
    %337 = vector.load %arg1[%c0_329, %c6_330, %c0_331, %c0_332] : memref<1x22x22x128xf32, #tpu.memory_space<vmem>>, vector<1x16x16x128xf32>
    %338 = vector.shape_cast %337 : vector<1x16x16x128xf32> to vector<16x16x128xf32>
    %c6_333 = arith.constant 6 : index
    %c0_334 = arith.constant 0 : index
    %c0_335 = arith.constant 0 : index
    %c0_336 = arith.constant 0 : index
    %339 = vector.load %arg2[%c6_333, %c0_334, %c0_335, %c0_336] : memref<7x7x1x128xf32, #tpu.memory_space<vmem>>, vector<1x1x1x128xf32>
    %340 = vector.shape_cast %339 : vector<1x1x1x128xf32> to vector<1x128xf32>
    %341 = vector.shape_cast %340 : vector<1x128xf32> to vector<1x1x128xf32>
    %342 = vector.broadcast %341 : vector<1x1x128xf32> to vector<16x16x128xf32>
    %343 = arith.mulf %338, %342 : vector<16x16x128xf32>
    %344 = arith.addf %336, %343 : vector<16x16x128xf32>
    %c0_337 = arith.constant 0 : index
    %c6_338 = arith.constant 6 : index
    %c1_339 = arith.constant 1 : index
    %c0_340 = arith.constant 0 : index
    %345 = vector.load %arg1[%c0_337, %c6_338, %c1_339, %c0_340] : memref<1x22x22x128xf32, #tpu.memory_space<vmem>>, vector<1x16x16x128xf32>
    %346 = vector.shape_cast %345 : vector<1x16x16x128xf32> to vector<16x16x128xf32>
    %c6_341 = arith.constant 6 : index
    %c1_342 = arith.constant 1 : index
    %c0_343 = arith.constant 0 : index
    %c0_344 = arith.constant 0 : index
    %347 = vector.load %arg2[%c6_341, %c1_342, %c0_343, %c0_344] : memref<7x7x1x128xf32, #tpu.memory_space<vmem>>, vector<1x1x1x128xf32>
    %348 = vector.shape_cast %347 : vector<1x1x1x128xf32> to vector<1x128xf32>
    %349 = vector.shape_cast %348 : vector<1x128xf32> to vector<1x1x128xf32>
    %350 = vector.broadcast %349 : vector<1x1x128xf32> to vector<16x16x128xf32>
    %351 = arith.mulf %346, %350 : vector<16x16x128xf32>
    %352 = arith.addf %344, %351 : vector<16x16x128xf32>
    %c0_345 = arith.constant 0 : index
    %c6_346 = arith.constant 6 : index
    %c2_347 = arith.constant 2 : index
    %c0_348 = arith.constant 0 : index
    %353 = vector.load %arg1[%c0_345, %c6_346, %c2_347, %c0_348] : memref<1x22x22x128xf32, #tpu.memory_space<vmem>>, vector<1x16x16x128xf32>
    %354 = vector.shape_cast %353 : vector<1x16x16x128xf32> to vector<16x16x128xf32>
    %c6_349 = arith.constant 6 : index
    %c2_350 = arith.constant 2 : index
    %c0_351 = arith.constant 0 : index
    %c0_352 = arith.constant 0 : index
    %355 = vector.load %arg2[%c6_349, %c2_350, %c0_351, %c0_352] : memref<7x7x1x128xf32, #tpu.memory_space<vmem>>, vector<1x1x1x128xf32>
    %356 = vector.shape_cast %355 : vector<1x1x1x128xf32> to vector<1x128xf32>
    %357 = vector.shape_cast %356 : vector<1x128xf32> to vector<1x1x128xf32>
    %358 = vector.broadcast %357 : vector<1x1x128xf32> to vector<16x16x128xf32>
    %359 = arith.mulf %354, %358 : vector<16x16x128xf32>
    %360 = arith.addf %352, %359 : vector<16x16x128xf32>
    %c0_353 = arith.constant 0 : index
    %c6_354 = arith.constant 6 : index
    %c3_355 = arith.constant 3 : index
    %c0_356 = arith.constant 0 : index
    %361 = vector.load %arg1[%c0_353, %c6_354, %c3_355, %c0_356] : memref<1x22x22x128xf32, #tpu.memory_space<vmem>>, vector<1x16x16x128xf32>
    %362 = vector.shape_cast %361 : vector<1x16x16x128xf32> to vector<16x16x128xf32>
    %c6_357 = arith.constant 6 : index
    %c3_358 = arith.constant 3 : index
    %c0_359 = arith.constant 0 : index
    %c0_360 = arith.constant 0 : index
    %363 = vector.load %arg2[%c6_357, %c3_358, %c0_359, %c0_360] : memref<7x7x1x128xf32, #tpu.memory_space<vmem>>, vector<1x1x1x128xf32>
    %364 = vector.shape_cast %363 : vector<1x1x1x128xf32> to vector<1x128xf32>
    %365 = vector.shape_cast %364 : vector<1x128xf32> to vector<1x1x128xf32>
    %366 = vector.broadcast %365 : vector<1x1x128xf32> to vector<16x16x128xf32>
    %367 = arith.mulf %362, %366 : vector<16x16x128xf32>
    %368 = arith.addf %360, %367 : vector<16x16x128xf32>
    %c0_361 = arith.constant 0 : index
    %c6_362 = arith.constant 6 : index
    %c4_363 = arith.constant 4 : index
    %c0_364 = arith.constant 0 : index
    %369 = vector.load %arg1[%c0_361, %c6_362, %c4_363, %c0_364] : memref<1x22x22x128xf32, #tpu.memory_space<vmem>>, vector<1x16x16x128xf32>
    %370 = vector.shape_cast %369 : vector<1x16x16x128xf32> to vector<16x16x128xf32>
    %c6_365 = arith.constant 6 : index
    %c4_366 = arith.constant 4 : index
    %c0_367 = arith.constant 0 : index
    %c0_368 = arith.constant 0 : index
    %371 = vector.load %arg2[%c6_365, %c4_366, %c0_367, %c0_368] : memref<7x7x1x128xf32, #tpu.memory_space<vmem>>, vector<1x1x1x128xf32>
    %372 = vector.shape_cast %371 : vector<1x1x1x128xf32> to vector<1x128xf32>
    %373 = vector.shape_cast %372 : vector<1x128xf32> to vector<1x1x128xf32>
    %374 = vector.broadcast %373 : vector<1x1x128xf32> to vector<16x16x128xf32>
    %375 = arith.mulf %370, %374 : vector<16x16x128xf32>
    %376 = arith.addf %368, %375 : vector<16x16x128xf32>
    %c0_369 = arith.constant 0 : index
    %c6_370 = arith.constant 6 : index
    %c5_371 = arith.constant 5 : index
    %c0_372 = arith.constant 0 : index
    %377 = vector.load %arg1[%c0_369, %c6_370, %c5_371, %c0_372] : memref<1x22x22x128xf32, #tpu.memory_space<vmem>>, vector<1x16x16x128xf32>
    %378 = vector.shape_cast %377 : vector<1x16x16x128xf32> to vector<16x16x128xf32>
    %c6_373 = arith.constant 6 : index
    %c5_374 = arith.constant 5 : index
    %c0_375 = arith.constant 0 : index
    %c0_376 = arith.constant 0 : index
    %379 = vector.load %arg2[%c6_373, %c5_374, %c0_375, %c0_376] : memref<7x7x1x128xf32, #tpu.memory_space<vmem>>, vector<1x1x1x128xf32>
    %380 = vector.shape_cast %379 : vector<1x1x1x128xf32> to vector<1x128xf32>
    %381 = vector.shape_cast %380 : vector<1x128xf32> to vector<1x1x128xf32>
    %382 = vector.broadcast %381 : vector<1x1x128xf32> to vector<16x16x128xf32>
    %383 = arith.mulf %378, %382 : vector<16x16x128xf32>
    %384 = arith.addf %376, %383 : vector<16x16x128xf32>
    %c0_377 = arith.constant 0 : index
    %c6_378 = arith.constant 6 : index
    %c6_379 = arith.constant 6 : index
    %c0_380 = arith.constant 0 : index
    %385 = vector.load %arg1[%c0_377, %c6_378, %c6_379, %c0_380] : memref<1x22x22x128xf32, #tpu.memory_space<vmem>>, vector<1x16x16x128xf32>
    %386 = vector.shape_cast %385 : vector<1x16x16x128xf32> to vector<16x16x128xf32>
    %c6_381 = arith.constant 6 : index
    %c6_382 = arith.constant 6 : index
    %c0_383 = arith.constant 0 : index
    %c0_384 = arith.constant 0 : index
    %387 = vector.load %arg2[%c6_381, %c6_382, %c0_383, %c0_384] : memref<7x7x1x128xf32, #tpu.memory_space<vmem>>, vector<1x1x1x128xf32>
    %388 = vector.shape_cast %387 : vector<1x1x1x128xf32> to vector<1x128xf32>
    %389 = vector.shape_cast %388 : vector<1x128xf32> to vector<1x1x128xf32>
    %390 = vector.broadcast %389 : vector<1x1x128xf32> to vector<16x16x128xf32>
    %391 = arith.mulf %386, %390 : vector<16x16x128xf32>
    %392 = arith.addf %384, %391 : vector<16x16x128xf32>
    %c0_385 = arith.constant 0 : index
    %c0_386 = arith.constant 0 : index
    %393 = vector.load %arg3[%c0_385, %c0_386] : memref<1x128xf32, #tpu.memory_space<vmem>>, vector<1x128xf32>
    %394 = vector.shape_cast %393 : vector<1x128xf32> to vector<1x1x128xf32>
    %395 = vector.broadcast %394 : vector<1x1x128xf32> to vector<16x16x128xf32>
    %396 = arith.addf %392, %395 : vector<16x16x128xf32>
    %c0_387 = arith.constant 0 : index
    %c0_388 = arith.constant 0 : index
    %c0_389 = arith.constant 0 : index
    %c0_390 = arith.constant 0 : index
    %397 = vector.load %arg4[%c0_387, %c0_388, %c0_389, %c0_390] : memref<1x16x16x128xf32, #tpu.memory_space<vmem>>, vector<1x16x16x128xf32>
    %398 = vector.shape_cast %397 : vector<1x16x16x128xf32> to vector<16x16x128xf32>
    %399 = vector.shape_cast %396 : vector<16x16x128xf32> to vector<1x16x16x128xf32>
    tpu.vector_store %arg4[%c0_387, %c0_388, %c0_389, %c0_390], %399 {strides = array<i32>} : memref<1x16x16x128xf32, #tpu.memory_space<vmem>>, vector<1x16x16x128xf32>,
    return
  }
  func.func @transform_0(%arg0: i32) -> (i32, i32, i32, i32) {
    %c0_i32 = arith.constant 0 : i32
    %c0_i32_0 = arith.constant 0 : i32
    %c0_i32_1 = arith.constant 0 : i32
    %c0_i32_2 = arith.constant 0 : i32
    return %arg0, %c0_i32, %c0_i32_0, %c0_i32_1 : i32, i32, i32, i32
  }
  func.func @transform_1(%arg0: i32) -> (i32, i32, i32, i32) {
    %c0_i32 = arith.constant 0 : i32
    %c0_i32_0 = arith.constant 0 : i32
    %c0_i32_1 = arith.constant 0 : i32
    %c0_i32_2 = arith.constant 0 : i32
    %c0_i32_3 = arith.constant 0 : i32
    return %c0_i32, %c0_i32_0, %c0_i32_1, %c0_i32_2 : i32, i32, i32, i32
  }
  func.func @transform_2(%arg0: i32) -> (i32, i32) {
    %c0_i32 = arith.constant 0 : i32
    %c0_i32_0 = arith.constant 0 : i32
    %c0_i32_1 = arith.constant 0 : i32
    return %c0_i32, %c0_i32_0 : i32, i32
  }
  func.func @transform_3(%arg0: i32) -> (i32, i32, i32, i32) {
    %c0_i32 = arith.constant 0 : i32
    %c0_i32_0 = arith.constant 0 : i32
    %c0_i32_1 = arith.constant 0 : i32
    %c0_i32_2 = arith.constant 0 : i32
    return %arg0, %c0_i32, %c0_i32_0, %c0_i32_1 : i32, i32, i32, i32
  }
}

</mosaic_0001>

<llo_original>
// kernel: inception_forward.1
$region0: #{inception_forward.1}
  #allocation0 [shape = 'u32[]', space=smem, size = 0x4, offset = 0x4, fixed_abs, tag = 'smem constant byte address 0x4 - core index']
  #allocation1 [shape = 'u32[144,128]{1,0:T(1,128)}', space=vmem, size = 0x12000, scoped, tag = 'internal scratch']
  %s0 = inlined_call_operand.vmem [shape: f32[2,22,22,128], index: 0, kind: input, shape index: {}]
  %s1 = inlined_call_operand.vmem [shape: f32[7,7,1,128], index: 1, kind: input, shape index: {}]
  %s2 = inlined_call_operand.vmem [shape: f32[1,128], index: 2, kind: input, shape index: {}]
  %s3 = inlined_call_operand.hbm [shape: f32[2,16,16,128], index: 3, kind: output, shape index: {}]
  %s4 = sld [smem:[#allocation0]]
  $region45: #{inception_forward.1} parent=0
    _
  %s6 = ssub.s32 1, %s4
  %s7 = scalar_select 0, %s6, %s4
  $region1: #{inception_forward.1} parent=0
    #allocation2 [shape = 'u8[262144]{0}', space=vmem, size = 0x40000, scoped, tag = 'output window, operand 0']
    #allocation3 [shape = 's32[2]{0}', space=sflag, size = 0x8, scoped, tag = 'scoped memory for inception_forward.1']
    %8 = vsyncpa [#allocation3], 0
    %s9 = scalar_lea.sflag [#allocation3], 1
    %10 = vsyncpa %s9, 0
    loop: start=0, step=1, limit=4
    $region2: #{inception_forward.1} parent=1 // loop_pre_header
      _
    $region3: #{inception_forward.1} parent=1 // loop_header
      %s12 = sphi 0, %s16
      %p13 = scmp.ge.s32.totalorder %s12, 4
      %s22 = sphi 0, %s24
      %s25 = sphi 0, %s22
      %s26 = sphi 0, %s25
      %s42 = sphi 0, %s26
      %s46 = sphi 0, %s46
      %s48 = sphi 0, %s46
      %s49 = sphi 0, %s48
      %s63 = sphi 0, %s49
      %s67 = sphi 0, %s67
      %s69 = sphi 0, %s67
      %s70 = sphi 0, %s69
      %s84 = sphi 0, %s70
      %s90 = sphi 0, %s92
      %s93 = sphi 0, %s90
      %s94 = sphi 0, %s93
      %s110 = sphi 0, %s94
    $region4: #{inception_forward.1} parent=1 // loop_header_branch
      %15 = sbr.rel (%p13) target = $region8
    $region5: #{inception_forward.1} parent=1 // loop_body
      %s17 = ssub.s32 %s12, 1
      %s18 = ssub.s32 %s12, 2
      %s19 = sadd.s32 %s12, 1
      %s20 = ssub.s32 %s12, %s19
      %p21 = scmp.eq.s32.totalorder %s20, 0
      %s23 = sadd.s32 %s22, 1
      %s24 = scalar_select %p21, %s22, %s23
      %p27 = pneg %p21
      %p28 = scmp.eq.s32.totalorder %s12, 1
      %p29 = por %p27, %p28
      %p30 = scmp.ne.s32.totalorder %s22, %s25
      %p31 = scmp.eq.s32.totalorder %s12, 0
      %p32 = por %p30, %p31
      %p33 = scmp.ne.s32.totalorder %s22, %s25
      %p34 = scmp.eq.s32.totalorder %s17, 1
      %p35 = por %p33, %p34
      %p36 = scmp.ne.s32.totalorder %s25, %s26
      %p37 = scmp.eq.s32.totalorder %s17, 0
      %p38 = por %p36, %p37
      %p39 = scmp.ne.s32.totalorder %s25, %s26
      %p40 = scmp.eq.s32.totalorder %s18, 1
      %p41 = por %p39, %p40
      %p43 = scmp.ne.s32.totalorder %s26, %s42
      %p44 = scmp.eq.s32.totalorder %s18, 0
      %p45 = por %p43, %p44
      %s47 = sadd.s32 %s46, 1
      %p50 = scmp.eq.s32.totalorder %s12, 1
      %p51 = scmp.ne.s32.totalorder %s46, %s48
      %p52 = scmp.eq.s32.totalorder %s12, 0
      %p53 = por %p51, %p52
      %p54 = scmp.ne.s32.totalorder %s46, %s48
      %p55 = scmp.eq.s32.totalorder %s17, 1
      %p56 = por %p54, %p55
      %p57 = scmp.ne.s32.totalorder %s48, %s49
      %p58 = scmp.eq.s32.totalorder %s17, 0
      %p59 = por %p57, %p58
      %p60 = scmp.ne.s32.totalorder %s48, %s49
      %p61 = scmp.eq.s32.totalorder %s18, 1
      %p62 = por %p60, %p61
      %p64 = scmp.ne.s32.totalorder %s49, %s63
      %p65 = scmp.eq.s32.totalorder %s18, 0
      %p66 = por %p64, %p65
      %s68 = sadd.s32 %s67, 1
      %p71 = scmp.eq.s32.totalorder %s12, 1
      %p72 = scmp.ne.s32.totalorder %s67, %s69
      %p73 = scmp.eq.s32.totalorder %s12, 0
      %p74 = por %p72, %p73
      %p75 = scmp.ne.s32.totalorder %s67, %s69
      %p76 = scmp.eq.s32.totalorder %s17, 1
      %p77 = por %p75, %p76
      %p78 = scmp.ne.s32.totalorder %s69, %s70
      %p79 = scmp.eq.s32.totalorder %s17, 0
      %p80 = por %p78, %p79
      %p81 = scmp.ne.s32.totalorder %s69, %s70
      %p82 = scmp.eq.s32.totalorder %s18, 1
      %p83 = por %p81, %p82
      %p85 = scmp.ne.s32.totalorder %s70, %s84
      %p86 = scmp.eq.s32.totalorder %s18, 0
      %p87 = por %p85, %p86
      %s88 = ssub.s32 %s12, %s19
      %p89 = scmp.eq.s32.totalorder %s88, 0
      %s91 = sadd.s32 %s90, 1
      %s92 = scalar_select %p89, %s90, %s91
      %p95 = pneg %p89
      %p96 = scmp.eq.s32.totalorder %s12, 1
      %p97 = por %p95, %p96
      %p98 = scmp.ne.s32.totalorder %s90, %s93
      %p99 = scmp.eq.s32.totalorder %s12, 0
      %p100 = por %p98, %p99
      %p101 = scmp.ne.s32.totalorder %s90, %s93
      %p102 = scmp.eq.s32.totalorder %s17, 1
      %p103 = por %p101, %p102
      %p104 = scmp.ne.s32.totalorder %s93, %s94
      %p105 = scmp.eq.s32.totalorder %s17, 0
      %p106 = por %p104, %p105
      %p107 = scmp.ne.s32.totalorder %s93, %s94
      %p108 = scmp.eq.s32.totalorder %s18, 1
      %p109 = por %p107, %p108
      %p111 = scmp.ne.s32.totalorder %s94, %s110
      %p112 = scmp.eq.s32.totalorder %s18, 0
      %p113 = por %p111, %p112
      %p114 = scmp.le.s32.totalorder 1, %s12
      %p115 = scmp.lt.s32.totalorder %s12, 3
      %p116 = pnand %p114, %p115
      %p117 = pneg %p116
      // Predicated region
      $region9: #{inception_forward.1} parent=5 // pred_check
        _
      $region10: #{inception_forward.1} parent=5 // pred_check_branch
        %119 = sbr.rel (%p116) target = $region12
      $region11: #{inception_forward.1} parent=5 // pred_region
        %s120 = ssub.s32 %s12, 1
        // Predicated region
        $region13: #{inception_forward.1} parent=11 // pred_check
          %p121 = pneg %p59
        $region14: #{inception_forward.1} parent=11 // pred_check_branch
          %123 = sbr.rel (%p121) target = $region16
        $region15: #{inception_forward.1} parent=11 // pred_region
          _
        $region16: #{inception_forward.1} parent=11 // pred_fallthru
          _
        // Predicated region
        $region17: #{inception_forward.1} parent=11 // pred_check
          %p124 = pneg %p80
        $region18: #{inception_forward.1} parent=11 // pred_check_branch
          %126 = sbr.rel (%p124) target = $region20
        $region19: #{inception_forward.1} parent=11 // pred_region
          _
        $region20: #{inception_forward.1} parent=11 // pred_fallthru
          _
      $region12: #{inception_forward.1} parent=5 // pred_fallthru
        _
      %p127 = scmp.lt.s32.totalorder %s12, 2
      // Predicated region
      $region21: #{inception_forward.1} parent=5 // pred_check
        %p128 = pneg %p127
      $region22: #{inception_forward.1} parent=5 // pred_check_branch
        %130 = sbr.rel (%p128) target = $region24
      $region23: #{inception_forward.1} parent=5 // pred_region
        // Predicated region
        $region25: #{inception_forward.1} parent=23 // pred_check
          %p131 = pneg %p32
        $region26: #{inception_forward.1} parent=23 // pred_check_branch
          %133 = sbr.rel (%p131) target = $region28
        $region27: #{inception_forward.1} parent=23 // pred_region
          %p134 = scmp.lt.s32.totalorder %s12, 1
          %s135 = scalar_select %p134, %s12, 1
          %s136 = smul.addr %s135, 66
          %s137 = smul.addr %s136, 8
          %s138 = scalar_lea.vmem %s0, %s137
        $region28: #{inception_forward.1} parent=23 // pred_fallthru
          _
      $region24: #{inception_forward.1} parent=5 // pred_fallthru
        _
      %p139 = scmp.le.s32.totalorder 1, %s12
      %p140 = scmp.lt.s32.totalorder %s12, 3
      %p141 = pnand %p139, %p140
      %p142 = pneg %p141
      // Predicated region
      $region29: #{inception_forward.1} parent=5 // pred_check
        _
      $region30: #{inception_forward.1} parent=5 // pred_check_branch
        %144 = sbr.rel (%p141) target = $region32
      $region31: #{inception_forward.1} parent=5 // pred_region
        %s145 = ssub.s32 %s12, 1
        %p146 = scmp.lt.s32.totalorder %s17, 1
        %s147 = scalar_select %p146, %s17, 1
        %s148 = smul.addr %s147, 66
        %s149 = smul.addr %s148, 8
        %s150 = scalar_lea.vmem %s0, %s149
        %p151 = pneg %p38
        %p152 = pneg %p35
        %p153 = pneg %p59
        %p154 = pneg %p56
        %p155 = pneg %p80
        %p156 = pneg %p77
        %p157 = pneg %p106
        %p158 = pneg %p103
        %s159 = sand.u32 %s93, 1
        %s160 = scalar_lea.sflag [#allocation3], %s159
        %s161 = sand.u32 %s93, 1
        %s162 = smul.addr %s161, 256
        %s163 = scalar_lea.vmem [#allocation2], %s162
        %p164 = scmp.lt.s32.totalorder %s17, 1
        %s165 = scalar_select %p164, %s17, 1
        %s166 = smul.addr %s165, 66
        %s167 = smul.addr %s166, 8
        %s168 = scalar_lea.vmem %s0, %s167
        %v169 = vld [vmem:[%s168] sm:$0xff]
        %v170 = vld [vmem:[%s168 + $0x8] sm:$0xff]
        %v171 = vld [vmem:[%s168 + $0x18] sm:$0xff]
        %v172 = vld [vmem:[%s168 + $0x20] sm:$0xff]
        %v173 = vld [vmem:[%s168 + $0x30] sm:$0xff]
        %v174 = vld [vmem:[%s168 + $0x38] sm:$0xff]
        %v175 = vld [vmem:[%s168 + $0x48] sm:$0xff]
        %v176 = vld [vmem:[%s168 + $0x50] sm:$0xff]
        %v177 = vld [vmem:[%s168 + $0x60] sm:$0xff]
        %v178 = vld [vmem:[%s168 + $0x68] sm:$0xff]
        %v179 = vld [vmem:[%s168 + $0x78] sm:$0xff]
        %v180 = vld [vmem:[%s168 + $0x80] sm:$0xff]
        %v181 = vld [vmem:[%s168 + $0x90] sm:$0xff]
        %v182 = vld [vmem:[%s168 + $0x98] sm:$0xff]
        %v183 = vld [vmem:[%s168 + $0xa8] sm:$0xff]
        %v184 = vld [vmem:[%s168 + $0xb0] sm:$0xff]
        %v185 = vld [vmem:[%s168 + $0xc0] sm:$0xff]
        %v186 = vld [vmem:[%s168 + $0xc8] sm:$0xff]
        %v187 = vld [vmem:[%s168 + $0xd8] sm:$0xff]
        %v188 = vld [vmem:[%s168 + $0xe0] sm:$0xff]
        %v189 = vld [vmem:[%s168 + $0xf0] sm:$0xff]
        %v190 = vld [vmem:[%s168 + $0xf8] sm:$0xff]
        %v191 = vld [vmem:[%s168 + $0x108] sm:$0xff]
        %v192 = vld [vmem:[%s168 + $0x110] sm:$0xff]
        %v193 = vld [vmem:[%s168 + $0x120] sm:$0xff]
        %v194 = vld [vmem:[%s168 + $0x128] sm:$0xff]
        %v195 = vld [vmem:[%s168 + $0x138] sm:$0xff]
        %v196 = vld [vmem:[%s168 + $0x140] sm:$0xff]
        %v197 = vld [vmem:[%s168 + $0x150] sm:$0xff]
        %v198 = vld [vmem:[%s168 + $0x158] sm:$0xff]
        %v199 = vld [vmem:[%s168 + $0x168] sm:$0xff]
        %v200 = vld [vmem:[%s168 + $0x170] sm:$0xff]
        %v201 = vld [vmem:[%s1] sm:$0x1]
        %v203 = vlaneseq
        %v204 = vshrl.u32 %v203, 7
        %v205 = vsub.s32 0, %v204
        %v206 = vrot.slane %v201, %v205
        %v208 = vmul.f32 %v169, %v206
        %v209 = vmul.f32 %v170, %v206
        %v210 = vmul.f32 %v171, %v206
        %v211 = vmul.f32 %v172, %v206
        %v212 = vmul.f32 %v173, %v206
        %v213 = vmul.f32 %v174, %v206
        %v214 = vmul.f32 %v175, %v206
        %v215 = vmul.f32 %v176, %v206
        %v216 = vmul.f32 %v177, %v206
        %v217 = vmul.f32 %v178, %v206
        %v218 = vmul.f32 %v179, %v206
        %v219 = vmul.f32 %v180, %v206
        %v220 = vmul.f32 %v181, %v206
        %v221 = vmul.f32 %v182, %v206
        %v222 = vmul.f32 %v183, %v206
        %v223 = vmul.f32 %v184, %v206
        %v224 = vmul.f32 %v185, %v206
        %v225 = vmul.f32 %v186, %v206
        %v226 = vmul.f32 %v187, %v206
        %v227 = vmul.f32 %v188, %v206
        %v228 = vmul.f32 %v189, %v206
        %v229 = vmul.f32 %v190, %v206
        %v230 = vmul.f32 %v191, %v206
        %v231 = vmul.f32 %v192, %v206
        %v232 = vmul.f32 %v193, %v206
        %v233 = vmul.f32 %v194, %v206
        %v234 = vmul.f32 %v195, %v206
        %v235 = vmul.f32 %v196, %v206
        %v236 = vmul.f32 %v197, %v206
        %v237 = vmul.f32 %v198, %v206
        %v238 = vmul.f32 %v199, %v206
        %v239 = vmul.f32 %v200, %v206
        %v240 = vadd.f32 %v208, 0.0
        %v241 = vadd.f32 %v209, 0.0
        %v242 = vadd.f32 %v210, 0.0
        %v243 = vadd.f32 %v211, 0.0
        %v244 = vadd.f32 %v212, 0.0
        %v245 = vadd.f32 %v213, 0.0
        %v246 = vadd.f32 %v214, 0.0
        %v247 = vadd.f32 %v215, 0.0
        %v248 = vadd.f32 %v216, 0.0
        %v249 = vadd.f32 %v217, 0.0
        %v250 = vadd.f32 %v218, 0.0
        %v251 = vadd.f32 %v219, 0.0
        %v252 = vadd.f32 %v220, 0.0
        %v253 = vadd.f32 %v221, 0.0
        %v254 = vadd.f32 %v222, 0.0
        %v255 = vadd.f32 %v223, 0.0
        %v256 = vadd.f32 %v224, 0.0
        %v257 = vadd.f32 %v225, 0.0
        %v258 = vadd.f32 %v226, 0.0
        %v259 = vadd.f32 %v227, 0.0
        %v260 = vadd.f32 %v228, 0.0
        %v261 = vadd.f32 %v229, 0.0
        %v262 = vadd.f32 %v230, 0.0
        %v263 = vadd.f32 %v231, 0.0
        %v264 = vadd.f32 %v232, 0.0
        %v265 = vadd.f32 %v233, 0.0
        %v266 = vadd.f32 %v234, 0.0
        %v267 = vadd.f32 %v235, 0.0
        %v268 = vadd.f32 %v236, 0.0
        %v269 = vadd.f32 %v237, 0.0
        %v270 = vadd.f32 %v238, 0.0
        %v271 = vadd.f32 %v239, 0.0
        %v272 = vld [vmem:[%s168 + $0x1] sm:$0xff]
        %v273 = vld [vmem:[%s168 + $0x9] sm:$0xff]
        %v274 = vld [vmem:[%s168 + $0x19] sm:$0xff]
        %v275 = vld [vmem:[%s168 + $0x21] sm:$0xff]
        %v276 = vld [vmem:[%s168 + $0x31] sm:$0xff]
        %v277 = vld [vmem:[%s168 + $0x39] sm:$0xff]
        %v278 = vld [vmem:[%s168 + $0x49] sm:$0xff]
        %v279 = vld [vmem:[%s168 + $0x51] sm:$0xff]
        %v280 = vld [vmem:[%s168 + $0x61] sm:$0xff]
        %v281 = vld [vmem:[%s168 + $0x69] sm:$0xff]
        %v282 = vld [vmem:[%s168 + $0x79] sm:$0xff]
        %v283 = vld [vmem:[%s168 + $0x81] sm:$0xff]
        %v284 = vld [vmem:[%s168 + $0x91] sm:$0xff]
        %v285 = vld [vmem:[%s168 + $0x99] sm:$0xff]
        %v286 = vld [vmem:[%s168 + $0xa9] sm:$0xff]
        %v287 = vld [vmem:[%s168 + $0xb1] sm:$0xff]
        %v288 = vld [vmem:[%s168 + $0xc1] sm:$0xff]
        %v289 = vld [vmem:[%s168 + $0xc9] sm:$0xff]
        %v290 = vld [vmem:[%s168 + $0xd9] sm:$0xff]
        %v291 = vld [vmem:[%s168 + $0xe1] sm:$0xff]
        %v292 = vld [vmem:[%s168 + $0xf1] sm:$0xff]
        %v293 = vld [vmem:[%s168 + $0xf9] sm:$0xff]
        %v294 = vld [vmem:[%s168 + $0x109] sm:$0xff]
        %v295 = vld [vmem:[%s168 + $0x111] sm:$0xff]
        %v296 = vld [vmem:[%s168 + $0x121] sm:$0xff]
        %v297 = vld [vmem:[%s168 + $0x129] sm:$0xff]
        %v298 = vld [vmem:[%s168 + $0x139] sm:$0xff]
        %v299 = vld [vmem:[%s168 + $0x141] sm:$0xff]
        %v300 = vld [vmem:[%s168 + $0x151] sm:$0xff]
        %v301 = vld [vmem:[%s168 + $0x159] sm:$0xff]
        %v302 = vld [vmem:[%s168 + $0x169] sm:$0xff]
        %v303 = vld [vmem:[%s168 + $0x171] sm:$0xff]
        %s304 = scalar_lea.vmem %s1, 1
        %v305 = vld [vmem:[%s304] sm:$0x1]
        %v307 = vlaneseq
        %v308 = vshrl.u32 %v307, 7
        %v309 = vsub.s32 0, %v308
        %v310 = vrot.slane %v305, %v309
        %v312 = vmul.f32 %v272, %v310
        %v313 = vmul.f32 %v273, %v310
        %v314 = vmul.f32 %v274, %v310
        %v315 = vmul.f32 %v275, %v310
        %v316 = vmul.f32 %v276, %v310
        %v317 = vmul.f32 %v277, %v310
        %v318 = vmul.f32 %v278, %v310
        %v319 = vmul.f32 %v279, %v310
        %v320 = vmul.f32 %v280, %v310
        %v321 = vmul.f32 %v281, %v310
        %v322 = vmul.f32 %v282, %v310
        %v323 = vmul.f32 %v283, %v310
        %v324 = vmul.f32 %v284, %v310
        %v325 = vmul.f32 %v285, %v310
        %v326 = vmul.f32 %v286, %v310
        %v327 = vmul.f32 %v287, %v310
        %v328 = vmul.f32 %v288, %v310
        %v329 = vmul.f32 %v289, %v310
        %v330 = vmul.f32 %v290, %v310
        %v331 = vmul.f32 %v291, %v310
        %v332 = vmul.f32 %v292, %v310
        %v333 = vmul.f32 %v293, %v310
        %v334 = vmul.f32 %v294, %v310
        %v335 = vmul.f32 %v295, %v310
        %v336 = vmul.f32 %v296, %v310
        %v337 = vmul.f32 %v297, %v310
        %v338 = vmul.f32 %v298, %v310
        %v339 = vmul.f32 %v299, %v310
        %v340 = vmul.f32 %v300, %v310
        %v341 = vmul.f32 %v301, %v310
        %v342 = vmul.f32 %v302, %v310
        %v343 = vmul.f32 %v303, %v310
        %v344 = vadd.f32 %v240, %v312
        %v345 = vadd.f32 %v241, %v313
        %v346 = vadd.f32 %v242, %v314
        %v347 = vadd.f32 %v243, %v315
        %v348 = vadd.f32 %v244, %v316
        %v349 = vadd.f32 %v245, %v317
        %v350 = vadd.f32 %v246, %v318
        %v351 = vadd.f32 %v247, %v319
        %v352 = vadd.f32 %v248, %v320
        %v353 = vadd.f32 %v249, %v321
        %v354 = vadd.f32 %v250, %v322
        %v355 = vadd.f32 %v251, %v323
        %v356 = vadd.f32 %v252, %v324
        %v357 = vadd.f32 %v253, %v325
        %v358 = vadd.f32 %v254, %v326
        %v359 = vadd.f32 %v255, %v327
        %v360 = vadd.f32 %v256, %v328
        %v361 = vadd.f32 %v257, %v329
        %v362 = vadd.f32 %v258, %v330
        %v363 = vadd.f32 %v259, %v331
        %v364 = vadd.f32 %v260, %v332
        %v365 = vadd.f32 %v261, %v333
        %v366 = vadd.f32 %v262, %v334
        %v367 = vadd.f32 %v263, %v335
        %v368 = vadd.f32 %v264, %v336
        %v369 = vadd.f32 %v265, %v337
        %v370 = vadd.f32 %v266, %v338
        %v371 = vadd.f32 %v267, %v339
        %v372 = vadd.f32 %v268, %v340
        %v373 = vadd.f32 %v269, %v341
        %v374 = vadd.f32 %v270, %v342
        %v375 = vadd.f32 %v271, %v343
        %v376 = vld [vmem:[%s168 + $0x2] sm:$0xff]
        %v377 = vld [vmem:[%s168 + $0xa] sm:$0xff]
        %v378 = vld [vmem:[%s168 + $0x1a] sm:$0xff]
        %v379 = vld [vmem:[%s168 + $0x22] sm:$0xff]
        %v380 = vld [vmem:[%s168 + $0x32] sm:$0xff]
        %v381 = vld [vmem:[%s168 + $0x3a] sm:$0xff]
        %v382 = vld [vmem:[%s168 + $0x4a] sm:$0xff]
        %v383 = vld [vmem:[%s168 + $0x52] sm:$0xff]
        %v384 = vld [vmem:[%s168 + $0x62] sm:$0xff]
        %v385 = vld [vmem:[%s168 + $0x6a] sm:$0xff]
        %v386 = vld [vmem:[%s168 + $0x7a] sm:$0xff]
        %v387 = vld [vmem:[%s168 + $0x82] sm:$0xff]
        %v388 = vld [vmem:[%s168 + $0x92] sm:$0xff]
        %v389 = vld [vmem:[%s168 + $0x9a] sm:$0xff]
        %v390 = vld [vmem:[%s168 + $0xaa] sm:$0xff]
        %v391 = vld [vmem:[%s168 + $0xb2] sm:$0xff]
        %v392 = vld [vmem:[%s168 + $0xc2] sm:$0xff]
        %v393 = vld [vmem:[%s168 + $0xca] sm:$0xff]
        %v394 = vld [vmem:[%s168 + $0xda] sm:$0xff]
        %v395 = vld [vmem:[%s168 + $0xe2] sm:$0xff]
        %v396 = vld [vmem:[%s168 + $0xf2] sm:$0xff]
        %v397 = vld [vmem:[%s168 + $0xfa] sm:$0xff]
        %v398 = vld [vmem:[%s168 + $0x10a] sm:$0xff]
        %v399 = vld [vmem:[%s168 + $0x112] sm:$0xff]
        %v400 = vld [vmem:[%s168 + $0x122] sm:$0xff]
        %v401 = vld [vmem:[%s168 + $0x12a] sm:$0xff]
        %v402 = vld [vmem:[%s168 + $0x13a] sm:$0xff]
        %v403 = vld [vmem:[%s168 + $0x142] sm:$0xff]
        %v404 = vld [vmem:[%s168 + $0x152] sm:$0xff]
        %v405 = vld [vmem:[%s168 + $0x15a] sm:$0xff]
        %v406 = vld [vmem:[%s168 + $0x16a] sm:$0xff]
        %v407 = vld [vmem:[%s168 + $0x172] sm:$0xff]
        %s408 = scalar_lea.vmem %s1, 2
        %v409 = vld [vmem:[%s408] sm:$0x1]
        %v411 = vlaneseq
        %v412 = vshrl.u32 %v411, 7
        %v413 = vsub.s32 0, %v412
        %v414 = vrot.slane %v409, %v413
        %v416 = vmul.f32 %v376, %v414
        %v417 = vmul.f32 %v377, %v414
        %v418 = vmul.f32 %v378, %v414
        %v419 = vmul.f32 %v379, %v414
        %v420 = vmul.f32 %v380, %v414
        %v421 = vmul.f32 %v381, %v414
        %v422 = vmul.f32 %v382, %v414
        %v423 = vmul.f32 %v383, %v414
        %v424 = vmul.f32 %v384, %v414
        %v425 = vmul.f32 %v385, %v414
        %v426 = vmul.f32 %v386, %v414
        %v427 = vmul.f32 %v387, %v414
        %v428 = vmul.f32 %v388, %v414
        %v429 = vmul.f32 %v389, %v414
        %v430 = vmul.f32 %v390, %v414
        %v431 = vmul.f32 %v391, %v414
        %v432 = vmul.f32 %v392, %v414
        %v433 = vmul.f32 %v393, %v414
        %v434 = vmul.f32 %v394, %v414
        %v435 = vmul.f32 %v395, %v414
        %v436 = vmul.f32 %v396, %v414
        %v437 = vmul.f32 %v397, %v414
        %v438 = vmul.f32 %v398, %v414
        %v439 = vmul.f32 %v399, %v414
        %v440 = vmul.f32 %v400, %v414
        %v441 = vmul.f32 %v401, %v414
        %v442 = vmul.f32 %v402, %v414
        %v443 = vmul.f32 %v403, %v414
        %v444 = vmul.f32 %v404, %v414
        %v445 = vmul.f32 %v405, %v414
        %v446 = vmul.f32 %v406, %v414
        %v447 = vmul.f32 %v407, %v414
        %v448 = vadd.f32 %v344, %v416
        %v449 = vadd.f32 %v345, %v417
        %v450 = vadd.f32 %v346, %v418
        %v451 = vadd.f32 %v347, %v419
        %v452 = vadd.f32 %v348, %v420
        %v453 = vadd.f32 %v349, %v421
        %v454 = vadd.f32 %v350, %v422
        %v455 = vadd.f32 %v351, %v423
        %v456 = vadd.f32 %v352, %v424
        %v457 = vadd.f32 %v353, %v425
        %v458 = vadd.f32 %v354, %v426
        %v459 = vadd.f32 %v355, %v427
        %v460 = vadd.f32 %v356, %v428
        %v461 = vadd.f32 %v357, %v429
        %v462 = vadd.f32 %v358, %v430
        %v463 = vadd.f32 %v359, %v431
        %v464 = vadd.f32 %v360, %v432
        %v465 = vadd.f32 %v361, %v433
        %v466 = vadd.f32 %v362, %v434
        %v467 = vadd.f32 %v363, %v435
        %v468 = vadd.f32 %v364, %v436
        %v469 = vadd.f32 %v365, %v437
        %v470 = vadd.f32 %v366, %v438
        %v471 = vadd.f32 %v367, %v439
        %v472 = vadd.f32 %v368, %v440
        %v473 = vadd.f32 %v369, %v441
        %v474 = vadd.f32 %v370, %v442
        %v475 = vadd.f32 %v371, %v443
        %v476 = vadd.f32 %v372, %v444
        %v477 = vadd.f32 %v373, %v445
        %v478 = vadd.f32 %v374, %v446
        %v479 = vadd.f32 %v375, %v447
        %v480 = vld [vmem:[%s168 + $0x3] sm:$0xff]
        %v481 = vld [vmem:[%s168 + $0xb] sm:$0xff]
        %v482 = vld [vmem:[%s168 + $0x1b] sm:$0xff]
        %v483 = vld [vmem:[%s168 + $0x23] sm:$0xff]
        %v484 = vld [vmem:[%s168 + $0x33] sm:$0xff]
        %v485 = vld [vmem:[%s168 + $0x3b] sm:$0xff]
        %v486 = vld [vmem:[%s168 + $0x4b] sm:$0xff]
        %v487 = vld [vmem:[%s168 + $0x53] sm:$0xff]
        %v488 = vld [vmem:[%s168 + $0x63] sm:$0xff]
        %v489 = vld [vmem:[%s168 + $0x6b] sm:$0xff]
        %v490 = vld [vmem:[%s168 + $0x7b] sm:$0xff]
        %v491 = vld [vmem:[%s168 + $0x83] sm:$0xff]
        %v492 = vld [vmem:[%s168 + $0x93] sm:$0xff]
        %v493 = vld [vmem:[%s168 + $0x9b] sm:$0xff]
        %v494 = vld [vmem:[%s168 + $0xab] sm:$0xff]
        %v495 = vld [vmem:[%s168 + $0xb3] sm:$0xff]
        %v496 = vld [vmem:[%s168 + $0xc3] sm:$0xff]
        %v497 = vld [vmem:[%s168 + $0xcb] sm:$0xff]
        %v498 = vld [vmem:[%s168 + $0xdb] sm:$0xff]
        %v499 = vld [vmem:[%s168 + $0xe3] sm:$0xff]
        %v500 = vld [vmem:[%s168 + $0xf3] sm:$0xff]
        %v501 = vld [vmem:[%s168 + $0xfb] sm:$0xff]
        %v502 = vld [vmem:[%s168 + $0x10b] sm:$0xff]
        %v503 = vld [vmem:[%s168 + $0x113] sm:$0xff]
        %v504 = vld [vmem:[%s168 + $0x123] sm:$0xff]
        %v505 = vld [vmem:[%s168 + $0x12b] sm:$0xff]
        %v506 = vld [vmem:[%s168 + $0x13b] sm:$0xff]
        %v507 = vld [vmem:[%s168 + $0x143] sm:$0xff]
        %v508 = vld [vmem:[%s168 + $0x153] sm:$0xff]
        %v509 = vld [vmem:[%s168 + $0x15b] sm:$0xff]
        %v510 = vld [vmem:[%s168 + $0x16b] sm:$0xff]
        %v511 = vld [vmem:[%s168 + $0x173] sm:$0xff]
        %s512 = scalar_lea.vmem %s1, 3
        %v513 = vld [vmem:[%s512] sm:$0x1]
        %v515 = vlaneseq
        %v516 = vshrl.u32 %v515, 7
        %v517 = vsub.s32 0, %v516
        %v518 = vrot.slane %v513, %v517
        %v520 = vmul.f32 %v480, %v518
        %v521 = vmul.f32 %v481, %v518
        %v522 = vmul.f32 %v482, %v518
        %v523 = vmul.f32 %v483, %v518
        %v524 = vmul.f32 %v484, %v518
        %v525 = vmul.f32 %v485, %v518
        %v526 = vmul.f32 %v486, %v518
        %v527 = vmul.f32 %v487, %v518
        %v528 = vmul.f32 %v488, %v518
        %v529 = vmul.f32 %v489, %v518
        %v530 = vmul.f32 %v490, %v518
        %v531 = vmul.f32 %v491, %v518
        %v532 = vmul.f32 %v492, %v518
        %v533 = vmul.f32 %v493, %v518
        %v534 = vmul.f32 %v494, %v518
        %v535 = vmul.f32 %v495, %v518
        %v536 = vmul.f32 %v496, %v518
        %v537 = vmul.f32 %v497, %v518
        %v538 = vmul.f32 %v498, %v518
        %v539 = vmul.f32 %v499, %v518
        %v540 = vmul.f32 %v500, %v518
        %v541 = vmul.f32 %v501, %v518
        %v542 = vmul.f32 %v502, %v518
        %v543 = vmul.f32 %v503, %v518
        %v544 = vmul.f32 %v504, %v518
        %v545 = vmul.f32 %v505, %v518
        %v546 = vmul.f32 %v506, %v518
        %v547 = vmul.f32 %v507, %v518
        %v548 = vmul.f32 %v508, %v518
        %v549 = vmul.f32 %v509, %v518
        %v550 = vmul.f32 %v510, %v518
        %v551 = vmul.f32 %v511, %v518
        %v552 = vadd.f32 %v448, %v520
        %v553 = vadd.f32 %v449, %v521
        %v554 = vadd.f32 %v450, %v522
        %v555 = vadd.f32 %v451, %v523
        %v556 = vadd.f32 %v452, %v524
        %v557 = vadd.f32 %v453, %v525
        %v558 = vadd.f32 %v454, %v526
        %v559 = vadd.f32 %v455, %v527
        %v560 = vadd.f32 %v456, %v528
        %v561 = vadd.f32 %v457, %v529
        %v562 = vadd.f32 %v458, %v530
        %v563 = vadd.f32 %v459, %v531
        %v564 = vadd.f32 %v460, %v532
        %v565 = vadd.f32 %v461, %v533
        %v566 = vadd.f32 %v462, %v534
        %v567 = vadd.f32 %v463, %v535
        %v568 = vadd.f32 %v464, %v536
        %v569 = vadd.f32 %v465, %v537
        %v570 = vadd.f32 %v466, %v538
        %v571 = vadd.f32 %v467, %v539
        %v572 = vadd.f32 %v468, %v540
        %v573 = vadd.f32 %v469, %v541
        %v574 = vadd.f32 %v470, %v542
        %v575 = vadd.f32 %v471, %v543
        %v576 = vadd.f32 %v472, %v544
        %v577 = vadd.f32 %v473, %v545
        %v578 = vadd.f32 %v474, %v546
        %v579 = vadd.f32 %v475, %v547
        %v580 = vadd.f32 %v476, %v548
        %v581 = vadd.f32 %v477, %v549
        %v582 = vadd.f32 %v478, %v550
        %v583 = vadd.f32 %v479, %v551
        %v584 = vld [vmem:[%s168 + $0x4] sm:$0xff]
        %v585 = vld [vmem:[%s168 + $0xc] sm:$0xff]
        %v586 = vld [vmem:[%s168 + $0x1c] sm:$0xff]
        %v587 = vld [vmem:[%s168 + $0x24] sm:$0xff]
        %v588 = vld [vmem:[%s168 + $0x34] sm:$0xff]
        %v589 = vld [vmem:[%s168 + $0x3c] sm:$0xff]
        %v590 = vld [vmem:[%s168 + $0x4c] sm:$0xff]
        %v591 = vld [vmem:[%s168 + $0x54] sm:$0xff]
        %v592 = vld [vmem:[%s168 + $0x64] sm:$0xff]
        %v593 = vld [vmem:[%s168 + $0x6c] sm:$0xff]
        %v594 = vld [vmem:[%s168 + $0x7c] sm:$0xff]
        %v595 = vld [vmem:[%s168 + $0x84] sm:$0xff]
        %v596 = vld [vmem:[%s168 + $0x94] sm:$0xff]
        %v597 = vld [vmem:[%s168 + $0x9c] sm:$0xff]
        %v598 = vld [vmem:[%s168 + $0xac] sm:$0xff]
        %v599 = vld [vmem:[%s168 + $0xb4] sm:$0xff]
        %v600 = vld [vmem:[%s168 + $0xc4] sm:$0xff]
        %v601 = vld [vmem:[%s168 + $0xcc] sm:$0xff]
        %v602 = vld [vmem:[%s168 + $0xdc] sm:$0xff]
        %v603 = vld [vmem:[%s168 + $0xe4] sm:$0xff]
        %v604 = vld [vmem:[%s168 + $0xf4] sm:$0xff]
        %v605 = vld [vmem:[%s168 + $0xfc] sm:$0xff]
        %v606 = vld [vmem:[%s168 + $0x10c] sm:$0xff]
        %v607 = vld [vmem:[%s168 + $0x114] sm:$0xff]
        %v608 = vld [vmem:[%s168 + $0x124] sm:$0xff]
        %v609 = vld [vmem:[%s168 + $0x12c] sm:$0xff]
        %v610 = vld [vmem:[%s168 + $0x13c] sm:$0xff]
        %v611 = vld [vmem:[%s168 + $0x144] sm:$0xff]
        %v612 = vld [vmem:[%s168 + $0x154] sm:$0xff]
        %v613 = vld [vmem:[%s168 + $0x15c] sm:$0xff]
        %v614 = vld [vmem:[%s168 + $0x16c] sm:$0xff]
        %v615 = vld [vmem:[%s168 + $0x174] sm:$0xff]
        %s616 = scalar_lea.vmem %s1, 4
        %v617 = vld [vmem:[%s616] sm:$0x1]
        %v619 = vlaneseq
        %v620 = vshrl.u32 %v619, 7
        %v621 = vsub.s32 0, %v620
        %v622 = vrot.slane %v617, %v621
        %v624 = vmul.f32 %v584, %v622
        %v625 = vmul.f32 %v585, %v622
        %v626 = vmul.f32 %v586, %v622
        %v627 = vmul.f32 %v587, %v622
        %v628 = vmul.f32 %v588, %v622
        %v629 = vmul.f32 %v589, %v622
        %v630 = vmul.f32 %v590, %v622
        %v631 = vmul.f32 %v591, %v622
        %v632 = vmul.f32 %v592, %v622
        %v633 = vmul.f32 %v593, %v622
        %v634 = vmul.f32 %v594, %v622
        %v635 = vmul.f32 %v595, %v622
        %v636 = vmul.f32 %v596, %v622
        %v637 = vmul.f32 %v597, %v622
        %v638 = vmul.f32 %v598, %v622
        %v639 = vmul.f32 %v599, %v622
        %v640 = vmul.f32 %v600, %v622
        %v641 = vmul.f32 %v601, %v622
        %v642 = vmul.f32 %v602, %v622
        %v643 = vmul.f32 %v603, %v622
        %v644 = vmul.f32 %v604, %v622
        %v645 = vmul.f32 %v605, %v622
        %v646 = vmul.f32 %v606, %v622
        %v647 = vmul.f32 %v607, %v622
        %v648 = vmul.f32 %v608, %v622
        %v649 = vmul.f32 %v609, %v622
        %v650 = vmul.f32 %v610, %v622
        %v651 = vmul.f32 %v611, %v622
        %v652 = vmul.f32 %v612, %v622
        %v653 = vmul.f32 %v613, %v622
        %v654 = vmul.f32 %v614, %v622
        %v655 = vmul.f32 %v615, %v622
        %v656 = vadd.f32 %v552, %v624
        %v657 = vadd.f32 %v553, %v625
        %v658 = vadd.f32 %v554, %v626
        %v659 = vadd.f32 %v555, %v627
        %v660 = vadd.f32 %v556, %v628
        %v661 = vadd.f32 %v557, %v629
        %v662 = vadd.f32 %v558, %v630
        %v663 = vadd.f32 %v559, %v631
        %v664 = vadd.f32 %v560, %v632
        %v665 = vadd.f32 %v561, %v633
        %v666 = vadd.f32 %v562, %v634
        %v667 = vadd.f32 %v563, %v635
        %v668 = vadd.f32 %v564, %v636
        %v669 = vadd.f32 %v565, %v637
        %v670 = vadd.f32 %v566, %v638
        %v671 = vadd.f32 %v567, %v639
        %v672 = vadd.f32 %v568, %v640
        %v673 = vadd.f32 %v569, %v641
        %v674 = vadd.f32 %v570, %v642
        %v675 = vadd.f32 %v571, %v643
        %v676 = vadd.f32 %v572, %v644
        %v677 = vadd.f32 %v573, %v645
        %v678 = vadd.f32 %v574, %v646
        %v679 = vadd.f32 %v575, %v647
        %v680 = vadd.f32 %v576, %v648
        %v681 = vadd.f32 %v577, %v649
        %v682 = vadd.f32 %v578, %v650
        %v683 = vadd.f32 %v579, %v651
        %v684 = vadd.f32 %v580, %v652
        %v685 = vadd.f32 %v581, %v653
        %v686 = vadd.f32 %v582, %v654
        %v687 = vadd.f32 %v583, %v655
        %v688 = vld [vmem:[%s168 + $0x5] sm:$0xff]
        %v689 = vld [vmem:[%s168 + $0xd] sm:$0xff]
        %v690 = vld [vmem:[%s168 + $0x1d] sm:$0xff]
        %v691 = vld [vmem:[%s168 + $0x25] sm:$0xff]
        %v692 = vld [vmem:[%s168 + $0x35] sm:$0xff]
        %v693 = vld [vmem:[%s168 + $0x3d] sm:$0xff]
        %v694 = vld [vmem:[%s168 + $0x4d] sm:$0xff]
        %v695 = vld [vmem:[%s168 + $0x55] sm:$0xff]
        %v696 = vld [vmem:[%s168 + $0x65] sm:$0xff]
        %v697 = vld [vmem:[%s168 + $0x6d] sm:$0xff]
        %v698 = vld [vmem:[%s168 + $0x7d] sm:$0xff]
        %v699 = vld [vmem:[%s168 + $0x85] sm:$0xff]
        %v700 = vld [vmem:[%s168 + $0x95] sm:$0xff]
        %v701 = vld [vmem:[%s168 + $0x9d] sm:$0xff]
        %v702 = vld [vmem:[%s168 + $0xad] sm:$0xff]
        %v703 = vld [vmem:[%s168 + $0xb5] sm:$0xff]
        %v704 = vld [vmem:[%s168 + $0xc5] sm:$0xff]
        %v705 = vld [vmem:[%s168 + $0xcd] sm:$0xff]
        %v706 = vld [vmem:[%s168 + $0xdd] sm:$0xff]
        %v707 = vld [vmem:[%s168 + $0xe5] sm:$0xff]
        %v708 = vld [vmem:[%s168 + $0xf5] sm:$0xff]
        %v709 = vld [vmem:[%s168 + $0xfd] sm:$0xff]
        %v710 = vld [vmem:[%s168 + $0x10d] sm:$0xff]
        %v711 = vld [vmem:[%s168 + $0x115] sm:$0xff]
        %v712 = vld [vmem:[%s168 + $0x125] sm:$0xff]
        %v713 = vld [vmem:[%s168 + $0x12d] sm:$0xff]
        %v714 = vld [vmem:[%s168 + $0x13d] sm:$0xff]
        %v715 = vld [vmem:[%s168 + $0x145] sm:$0xff]
        %v716 = vld [vmem:[%s168 + $0x155] sm:$0xff]
        %v717 = vld [vmem:[%s168 + $0x15d] sm:$0xff]
        %v718 = vld [vmem:[%s168 + $0x16d] sm:$0xff]
        %v719 = vld [vmem:[%s168 + $0x175] sm:$0xff]
        %s720 = scalar_lea.vmem %s1, 5
        %v721 = vld [vmem:[%s720] sm:$0x1]
        %v723 = vlaneseq
        %v724 = vshrl.u32 %v723, 7
        %v725 = vsub.s32 0, %v724
        %v726 = vrot.slane %v721, %v725
        %v728 = vmul.f32 %v688, %v726
        %v729 = vmul.f32 %v689, %v726
        %v730 = vmul.f32 %v690, %v726
        %v731 = vmul.f32 %v691, %v726
        %v732 = vmul.f32 %v692, %v726
        %v733 = vmul.f32 %v693, %v726
        %v734 = vmul.f32 %v694, %v726
        %v735 = vmul.f32 %v695, %v726
        %v736 = vmul.f32 %v696, %v726
        %v737 = vmul.f32 %v697, %v726
        %v738 = vmul.f32 %v698, %v726
        %v739 = vmul.f32 %v699, %v726
        %v740 = vmul.f32 %v700, %v726
        %v741 = vmul.f32 %v701, %v726
        %v742 = vmul.f32 %v702, %v726
        %v743 = vmul.f32 %v703, %v726
        %v744 = vmul.f32 %v704, %v726
        %v745 = vmul.f32 %v705, %v726
        %v746 = vmul.f32 %v706, %v726
        %v747 = vmul.f32 %v707, %v726
        %v748 = vmul.f32 %v708, %v726
        %v749 = vmul.f32 %v709, %v726
        %v750 = vmul.f32 %v710, %v726
        %v751 = vmul.f32 %v711, %v726
        %v752 = vmul.f32 %v712, %v726
        %v753 = vmul.f32 %v713, %v726
        %v754 = vmul.f32 %v714, %v726
        %v755 = vmul.f32 %v715, %v726
        %v756 = vmul.f32 %v716, %v726
        %v757 = vmul.f32 %v717, %v726
        %v758 = vmul.f32 %v718, %v726
        %v759 = vmul.f32 %v719, %v726
        %v760 = vadd.f32 %v656, %v728
        %v761 = vadd.f32 %v657, %v729
        %v762 = vadd.f32 %v658, %v730
        %v763 = vadd.f32 %v659, %v731
        %v764 = vadd.f32 %v660, %v732
        %v765 = vadd.f32 %v661, %v733
        %v766 = vadd.f32 %v662, %v734
        %v767 = vadd.f32 %v663, %v735
        %v768 = vadd.f32 %v664, %v736
        %v769 = vadd.f32 %v665, %v737
        %v770 = vadd.f32 %v666, %v738
        %v771 = vadd.f32 %v667, %v739
        %v772 = vadd.f32 %v668, %v740
        %v773 = vadd.f32 %v669, %v741
        %v774 = vadd.f32 %v670, %v742
        %v775 = vadd.f32 %v671, %v743
        %v776 = vadd.f32 %v672, %v744
        %v777 = vadd.f32 %v673, %v745
        %v778 = vadd.f32 %v674, %v746
        %v779 = vadd.f32 %v675, %v747
        %v780 = vadd.f32 %v676, %v748
        %v781 = vadd.f32 %v677, %v749
        %v782 = vadd.f32 %v678, %v750
        %v783 = vadd.f32 %v679, %v751
        %v784 = vadd.f32 %v680, %v752
        %v785 = vadd.f32 %v681, %v753
        %v786 = vadd.f32 %v682, %v754
        %v787 = vadd.f32 %v683, %v755
        %v788 = vadd.f32 %v684, %v756
        %v789 = vadd.f32 %v685, %v757
        %v790 = vadd.f32 %v686, %v758
        %v791 = vadd.f32 %v687, %v759
        %v792 = vld [vmem:[%s168 + $0x6] sm:$0xff]
        %v793 = vld [vmem:[%s168 + $0xe] sm:$0xff]
        %v794 = vld [vmem:[%s168 + $0x1e] sm:$0xff]
        %v795 = vld [vmem:[%s168 + $0x26] sm:$0xff]
        %v796 = vld [vmem:[%s168 + $0x36] sm:$0xff]
        %v797 = vld [vmem:[%s168 + $0x3e] sm:$0xff]
        %v798 = vld [vmem:[%s168 + $0x4e] sm:$0xff]
        %v799 = vld [vmem:[%s168 + $0x56] sm:$0xff]
        %v800 = vld [vmem:[%s168 + $0x66] sm:$0xff]
        %v801 = vld [vmem:[%s168 + $0x6e] sm:$0xff]
        %v802 = vld [vmem:[%s168 + $0x7e] sm:$0xff]
        %v803 = vld [vmem:[%s168 + $0x86] sm:$0xff]
        %v804 = vld [vmem:[%s168 + $0x96] sm:$0xff]
        %v805 = vld [vmem:[%s168 + $0x9e] sm:$0xff]
        %v806 = vld [vmem:[%s168 + $0xae] sm:$0xff]
        %v807 = vld [vmem:[%s168 + $0xb6] sm:$0xff]
        %v808 = vld [vmem:[%s168 + $0xc6] sm:$0xff]
        %v809 = vld [vmem:[%s168 + $0xce] sm:$0xff]
        %v810 = vld [vmem:[%s168 + $0xde] sm:$0xff]
        %v811 = vld [vmem:[%s168 + $0xe6] sm:$0xff]
        %v812 = vld [vmem:[%s168 + $0xf6] sm:$0xff]
        %v813 = vld [vmem:[%s168 + $0xfe] sm:$0xff]
        %v814 = vld [vmem:[%s168 + $0x10e] sm:$0xff]
        %v815 = vld [vmem:[%s168 + $0x116] sm:$0xff]
        %v816 = vld [vmem:[%s168 + $0x126] sm:$0xff]
        %v817 = vld [vmem:[%s168 + $0x12e] sm:$0xff]
        %v818 = vld [vmem:[%s168 + $0x13e] sm:$0xff]
        %v819 = vld [vmem:[%s168 + $0x146] sm:$0xff]
        %v820 = vld [vmem:[%s168 + $0x156] sm:$0xff]
        %v821 = vld [vmem:[%s168 + $0x15e] sm:$0xff]
        %v822 = vld [vmem:[%s168 + $0x16e] sm:$0xff]
        %v823 = vld [vmem:[%s168 + $0x176] sm:$0xff]
        %s824 = scalar_lea.vmem %s1, 6
        %v825 = vld [vmem:[%s824] sm:$0x1]
        %v827 = vlaneseq
        %v828 = vshrl.u32 %v827, 7
        %v829 = vsub.s32 0, %v828
        %v830 = vrot.slane %v825, %v829
        %v832 = vmul.f32 %v792, %v830
        %v833 = vmul.f32 %v793, %v830
        %v834 = vmul.f32 %v794, %v830
        %v835 = vmul.f32 %v795, %v830
        %v836 = vmul.f32 %v796, %v830
        %v837 = vmul.f32 %v797, %v830
        %v838 = vmul.f32 %v798, %v830
        %v839 = vmul.f32 %v799, %v830
        %v840 = vmul.f32 %v800, %v830
        %v841 = vmul.f32 %v801, %v830
        %v842 = vmul.f32 %v802, %v830
        %v843 = vmul.f32 %v803, %v830
        %v844 = vmul.f32 %v804, %v830
        %v845 = vmul.f32 %v805, %v830
        %v846 = vmul.f32 %v806, %v830
        %v847 = vmul.f32 %v807, %v830
        %v848 = vmul.f32 %v808, %v830
        %v849 = vmul.f32 %v809, %v830
        %v850 = vmul.f32 %v810, %v830
        %v851 = vmul.f32 %v811, %v830
        %v852 = vmul.f32 %v812, %v830
        %v853 = vmul.f32 %v813, %v830
        %v854 = vmul.f32 %v814, %v830
        %v855 = vmul.f32 %v815, %v830
        %v856 = vmul.f32 %v816, %v830
        %v857 = vmul.f32 %v817, %v830
        %v858 = vmul.f32 %v818, %v830
        %v859 = vmul.f32 %v819, %v830
        %v860 = vmul.f32 %v820, %v830
        %v861 = vmul.f32 %v821, %v830
        %v862 = vmul.f32 %v822, %v830
        %v863 = vmul.f32 %v823, %v830
        %v864 = vadd.f32 %v760, %v832
        %v865 = vadd.f32 %v761, %v833
        %v866 = vadd.f32 %v762, %v834
        %v867 = vadd.f32 %v763, %v835
        %v868 = vadd.f32 %v764, %v836
        %v869 = vadd.f32 %v765, %v837
        %v870 = vadd.f32 %v766, %v838
        %v871 = vadd.f32 %v767, %v839
        %v872 = vadd.f32 %v768, %v840
        %v873 = vadd.f32 %v769, %v841
        %v874 = vadd.f32 %v770, %v842
        %v875 = vadd.f32 %v771, %v843
        %v876 = vadd.f32 %v772, %v844
        %v877 = vadd.f32 %v773, %v845
        %v878 = vadd.f32 %v774, %v846
        %v879 = vadd.f32 %v775, %v847
        %v880 = vadd.f32 %v776, %v848
        %v881 = vadd.f32 %v777, %v849
        %v882 = vadd.f32 %v778, %v850
        %v883 = vadd.f32 %v779, %v851
        %v884 = vadd.f32 %v780, %v852
        %v885 = vadd.f32 %v781, %v853
        %v886 = vadd.f32 %v782, %v854
        %v887 = vadd.f32 %v783, %v855
        %v888 = vadd.f32 %v784, %v856
        %v889 = vadd.f32 %v785, %v857
        %v890 = vadd.f32 %v786, %v858
        %v891 = vadd.f32 %v787, %v859
        %v892 = vadd.f32 %v788, %v860
        %v893 = vadd.f32 %v789, %v861
        %v894 = vadd.f32 %v790, %v862
        %v895 = vadd.f32 %v791, %v863
        %s896 = scalar_lea.vmem %s168, 24
        %v897 = vld [vmem:[%s896] sm:$0xff]
        %v898 = vld [vmem:[%s896 + $0x8] sm:$0xff]
        %v899 = vld [vmem:[%s896 + $0x18] sm:$0xff]
        %v900 = vld [vmem:[%s896 + $0x20] sm:$0xff]
        %v901 = vld [vmem:[%s896 + $0x30] sm:$0xff]
        %v902 = vld [vmem:[%s896 + $0x38] sm:$0xff]
        %v903 = vld [vmem:[%s896 + $0x48] sm:$0xff]
        %v904 = vld [vmem:[%s896 + $0x50] sm:$0xff]
        %v905 = vld [vmem:[%s896 + $0x60] sm:$0xff]
        %v906 = vld [vmem:[%s896 + $0x68] sm:$0xff]
        %v907 = vld [vmem:[%s896 + $0x78] sm:$0xff]
        %v908 = vld [vmem:[%s896 + $0x80] sm:$0xff]
        %v909 = vld [vmem:[%s896 + $0x90] sm:$0xff]
        %v910 = vld [vmem:[%s896 + $0x98] sm:$0xff]
        %v911 = vld [vmem:[%s896 + $0xa8] sm:$0xff]
        %v912 = vld [vmem:[%s896 + $0xb0] sm:$0xff]
        %v913 = vld [vmem:[%s896 + $0xc0] sm:$0xff]
        %v914 = vld [vmem:[%s896 + $0xc8] sm:$0xff]
        %v915 = vld [vmem:[%s896 + $0xd8] sm:$0xff]
        %v916 = vld [vmem:[%s896 + $0xe0] sm:$0xff]
        %v917 = vld [vmem:[%s896 + $0xf0] sm:$0xff]
        %v918 = vld [vmem:[%s896 + $0xf8] sm:$0xff]
        %v919 = vld [vmem:[%s896 + $0x108] sm:$0xff]
        %v920 = vld [vmem:[%s896 + $0x110] sm:$0xff]
        %v921 = vld [vmem:[%s896 + $0x120] sm:$0xff]
        %v922 = vld [vmem:[%s896 + $0x128] sm:$0xff]
        %v923 = vld [vmem:[%s896 + $0x138] sm:$0xff]
        %v924 = vld [vmem:[%s896 + $0x140] sm:$0xff]
        %v925 = vld [vmem:[%s896 + $0x150] sm:$0xff]
        %v926 = vld [vmem:[%s896 + $0x158] sm:$0xff]
        %v927 = vld [vmem:[%s896 + $0x168] sm:$0xff]
        %v928 = vld [vmem:[%s896 + $0x170] sm:$0xff]
        %s929 = scalar_lea.vmem %s1, 7
        %v930 = vld [vmem:[%s929] sm:$0x1]
        %v932 = vlaneseq
        %v933 = vshrl.u32 %v932, 7
        %v934 = vsub.s32 0, %v933
        %v935 = vrot.slane %v930, %v934
        %v937 = vmul.f32 %v897, %v935
        %v938 = vmul.f32 %v898, %v935
        %v939 = vmul.f32 %v899, %v935
        %v940 = vmul.f32 %v900, %v935
        %v941 = vmul.f32 %v901, %v935
        %v942 = vmul.f32 %v902, %v935
        %v943 = vmul.f32 %v903, %v935
        %v944 = vmul.f32 %v904, %v935
        %v945 = vmul.f32 %v905, %v935
        %v946 = vmul.f32 %v906, %v935
        %v947 = vmul.f32 %v907, %v935
        %v948 = vmul.f32 %v908, %v935
        %v949 = vmul.f32 %v909, %v935
        %v950 = vmul.f32 %v910, %v935
        %v951 = vmul.f32 %v911, %v935
        %v952 = vmul.f32 %v912, %v935
        %v953 = vmul.f32 %v913, %v935
        %v954 = vmul.f32 %v914, %v935
        %v955 = vmul.f32 %v915, %v935
        %v956 = vmul.f32 %v916, %v935
        %v957 = vmul.f32 %v917, %v935
        %v958 = vmul.f32 %v918, %v935
        %v959 = vmul.f32 %v919, %v935
        %v960 = vmul.f32 %v920, %v935
        %v961 = vmul.f32 %v921, %v935
        %v962 = vmul.f32 %v922, %v935
        %v963 = vmul.f32 %v923, %v935
        %v964 = vmul.f32 %v924, %v935
        %v965 = vmul.f32 %v925, %v935
        %v966 = vmul.f32 %v926, %v935
        %v967 = vmul.f32 %v927, %v935
        %v968 = vmul.f32 %v928, %v935
        %v969 = vadd.f32 %v864, %v937
        %v970 = vadd.f32 %v865, %v938
        %v971 = vadd.f32 %v866, %v939
        %v972 = vadd.f32 %v867, %v940
        %v973 = vadd.f32 %v868, %v941
        %v974 = vadd.f32 %v869, %v942
        %v975 = vadd.f32 %v870, %v943
        %v976 = vadd.f32 %v871, %v944
        %v977 = vadd.f32 %v872, %v945
        %v978 = vadd.f32 %v873, %v946
        %v979 = vadd.f32 %v874, %v947
        %v980 = vadd.f32 %v875, %v948
        %v981 = vadd.f32 %v876, %v949
        %v982 = vadd.f32 %v877, %v950
        %v983 = vadd.f32 %v878, %v951
        %v984 = vadd.f32 %v879, %v952
        %v985 = vadd.f32 %v880, %v953
        %v986 = vadd.f32 %v881, %v954
        %v987 = vadd.f32 %v882, %v955
        %v988 = vadd.f32 %v883, %v956
        %v989 = vadd.f32 %v884, %v957
        %v990 = vadd.f32 %v885, %v958
        %v991 = vadd.f32 %v886, %v959
        %v992 = vadd.f32 %v887, %v960
        %v993 = vadd.f32 %v888, %v961
        %v994 = vadd.f32 %v889, %v962
        %v995 = vadd.f32 %v890, %v963
        %v996 = vadd.f32 %v891, %v964
        %v997 = vadd.f32 %v892, %v965
        %v998 = vadd.f32 %v893, %v966
        %v999 = vadd.f32 %v894, %v967
        %v1000 = vadd.f32 %v895, %v968
        %v1001 = vld [vmem:[%s896 + $0x1] sm:$0xff]
        %v1002 = vld [vmem:[%s896 + $0x9] sm:$0xff]
        %v1003 = vld [vmem:[%s896 + $0x19] sm:$0xff]
        %v1004 = vld [vmem:[%s896 + $0x21] sm:$0xff]
        %v1005 = vld [vmem:[%s896 + $0x31] sm:$0xff]
        %v1006 = vld [vmem:[%s896 + $0x39] sm:$0xff]
        %v1007 = vld [vmem:[%s896 + $0x49] sm:$0xff]
        %v1008 = vld [vmem:[%s896 + $0x51] sm:$0xff]
        %v1009 = vld [vmem:[%s896 + $0x61] sm:$0xff]
        %v1010 = vld [vmem:[%s896 + $0x69] sm:$0xff]
        %v1011 = vld [vmem:[%s896 + $0x79] sm:$0xff]
        %v1012 = vld [vmem:[%s896 + $0x81] sm:$0xff]
        %v1013 = vld [vmem:[%s896 + $0x91] sm:$0xff]
        %v1014 = vld [vmem:[%s896 + $0x99] sm:$0xff]
        %v1015 = vld [vmem:[%s896 + $0xa9] sm:$0xff]
        %v1016 = vld [vmem:[%s896 + $0xb1] sm:$0xff]
        %v1017 = vld [vmem:[%s896 + $0xc1] sm:$0xff]
        %v1018 = vld [vmem:[%s896 + $0xc9] sm:$0xff]
        %v1019 = vld [vmem:[%s896 + $0xd9] sm:$0xff]
        %v1020 = vld [vmem:[%s896 + $0xe1] sm:$0xff]
        %v1021 = vld [vmem:[%s896 + $0xf1] sm:$0xff]
        %v1022 = vld [vmem:[%s896 + $0xf9] sm:$0xff]
        %v1023 = vld [vmem:[%s896 + $0x109] sm:$0xff]
        %v1024 = vld [vmem:[%s896 + $0x111] sm:$0xff]
        %v1025 = vld [vmem:[%s896 + $0x121] sm:$0xff]
        %v1026 = vld [vmem:[%s896 + $0x129] sm:$0xff]
        %v1027 = vld [vmem:[%s896 + $0x139] sm:$0xff]
        %v1028 = vld [vmem:[%s896 + $0x141] sm:$0xff]
        %v1029 = vld [vmem:[%s896 + $0x151] sm:$0xff]
        %v1030 = vld [vmem:[%s896 + $0x159] sm:$0xff]
        %v1031 = vld [vmem:[%s896 + $0x169] sm:$0xff]
        %v1032 = vld [vmem:[%s896 + $0x171] sm:$0xff]
        %s1033 = scalar_lea.vmem %s1, 8
        %v1034 = vld [vmem:[%s1033] sm:$0x1]
        %v1036 = vlaneseq
        %v1037 = vshrl.u32 %v1036, 7
        %v1038 = vsub.s32 0, %v1037
        %v1039 = vrot.slane %v1034, %v1038
        %v1041 = vmul.f32 %v1001, %v1039
        %v1042 = vmul.f32 %v1002, %v1039
        %v1043 = vmul.f32 %v1003, %v1039
        %v1044 = vmul.f32 %v1004, %v1039
        %v1045 = vmul.f32 %v1005, %v1039
        %v1046 = vmul.f32 %v1006, %v1039
        %v1047 = vmul.f32 %v1007, %v1039
        %v1048 = vmul.f32 %v1008, %v1039
        %v1049 = vmul.f32 %v1009, %v1039
        %v1050 = vmul.f32 %v1010, %v1039
        %v1051 = vmul.f32 %v1011, %v1039
        %v1052 = vmul.f32 %v1012, %v1039
        %v1053 = vmul.f32 %v1013, %v1039
        %v1054 = vmul.f32 %v1014, %v1039
        %v1055 = vmul.f32 %v1015, %v1039
        %v1056 = vmul.f32 %v1016, %v1039
        %v1057 = vmul.f32 %v1017, %v1039
        %v1058 = vmul.f32 %v1018, %v1039
        %v1059 = vmul.f32 %v1019, %v1039
        %v1060 = vmul.f32 %v1020, %v1039
        %v1061 = vmul.f32 %v1021, %v1039
        %v1062 = vmul.f32 %v1022, %v1039
        %v1063 = vmul.f32 %v1023, %v1039
        %v1064 = vmul.f32 %v1024, %v1039
        %v1065 = vmul.f32 %v1025, %v1039
        %v1066 = vmul.f32 %v1026, %v1039
        %v1067 = vmul.f32 %v1027, %v1039
        %v1068 = vmul.f32 %v1028, %v1039
        %v1069 = vmul.f32 %v1029, %v1039
        %v1070 = vmul.f32 %v1030, %v1039
        %v1071 = vmul.f32 %v1031, %v1039
        %v1072 = vmul.f32 %v1032, %v1039
        %v1073 = vadd.f32 %v969, %v1041
        %v1074 = vadd.f32 %v970, %v1042
        %v1075 = vadd.f32 %v971, %v1043
        %v1076 = vadd.f32 %v972, %v1044
        %v1077 = vadd.f32 %v973, %v1045
        %v1078 = vadd.f32 %v974, %v1046
        %v1079 = vadd.f32 %v975, %v1047
        %v1080 = vadd.f32 %v976, %v1048
        %v1081 = vadd.f32 %v977, %v1049
        %v1082 = vadd.f32 %v978, %v1050
        %v1083 = vadd.f32 %v979, %v1051
        %v1084 = vadd.f32 %v980, %v1052
        %v1085 = vadd.f32 %v981, %v1053
        %v1086 = vadd.f32 %v982, %v1054
        %v1087 = vadd.f32 %v983, %v1055
        %v1088 = vadd.f32 %v984, %v1056
        %v1089 = vadd.f32 %v985, %v1057
        %v1090 = vadd.f32 %v986, %v1058
        %v1091 = vadd.f32 %v987, %v1059
        %v1092 = vadd.f32 %v988, %v1060
        %v1093 = vadd.f32 %v989, %v1061
        %v1094 = vadd.f32 %v990, %v1062
        %v1095 = vadd.f32 %v991, %v1063
        %v1096 = vadd.f32 %v992, %v1064
        %v1097 = vadd.f32 %v993, %v1065
        %v1098 = vadd.f32 %v994, %v1066
        %v1099 = vadd.f32 %v995, %v1067
        %v1100 = vadd.f32 %v996, %v1068
        %v1101 = vadd.f32 %v997, %v1069
        %v1102 = vadd.f32 %v998, %v1070
        %v1103 = vadd.f32 %v999, %v1071
        %v1104 = vadd.f32 %v1000, %v1072
        %v1105 = vld [vmem:[%s896 + $0x2] sm:$0xff]
        %v1106 = vld [vmem:[%s896 + $0xa] sm:$0xff]
        %v1107 = vld [vmem:[%s896 + $0x1a] sm:$0xff]
        %v1108 = vld [vmem:[%s896 + $0x22] sm:$0xff]
        %v1109 = vld [vmem:[%s896 + $0x32] sm:$0xff]
        %v1110 = vld [vmem:[%s896 + $0x3a] sm:$0xff]
        %v1111 = vld [vmem:[%s896 + $0x4a] sm:$0xff]
        %v1112 = vld [vmem:[%s896 + $0x52] sm:$0xff]
        %v1113 = vld [vmem:[%s896 + $0x62] sm:$0xff]
        %v1114 = vld [vmem:[%s896 + $0x6a] sm:$0xff]
        %v1115 = vld [vmem:[%s896 + $0x7a] sm:$0xff]
        %v1116 = vld [vmem:[%s896 + $0x82] sm:$0xff]
        %v1117 = vld [vmem:[%s896 + $0x92] sm:$0xff]
        %v1118 = vld [vmem:[%s896 + $0x9a] sm:$0xff]
        %v1119 = vld [vmem:[%s896 + $0xaa] sm:$0xff]
        %v1120 = vld [vmem:[%s896 + $0xb2] sm:$0xff]
        %v1121 = vld [vmem:[%s896 + $0xc2] sm:$0xff]
        %v1122 = vld [vmem:[%s896 + $0xca] sm:$0xff]
        %v1123 = vld [vmem:[%s896 + $0xda] sm:$0xff]
        %v1124 = vld [vmem:[%s896 + $0xe2] sm:$0xff]
        %v1125 = vld [vmem:[%s896 + $0xf2] sm:$0xff]
        %v1126 = vld [vmem:[%s896 + $0xfa] sm:$0xff]
        %v1127 = vld [vmem:[%s896 + $0x10a] sm:$0xff]
        %v1128 = vld [vmem:[%s896 + $0x112] sm:$0xff]
        %v1129 = vld [vmem:[%s896 + $0x122] sm:$0xff]
        %v1130 = vld [vmem:[%s896 + $0x12a] sm:$0xff]
        %v1131 = vld [vmem:[%s896 + $0x13a] sm:$0xff]
        %v1132 = vld [vmem:[%s896 + $0x142] sm:$0xff]
        %v1133 = vld [vmem:[%s896 + $0x152] sm:$0xff]
        %v1134 = vld [vmem:[%s896 + $0x15a] sm:$0xff]
        %v1135 = vld [vmem:[%s896 + $0x16a] sm:$0xff]
        %v1136 = vld [vmem:[%s896 + $0x172] sm:$0xff]
        %s1137 = scalar_lea.vmem %s1, 9
        %v1138 = vld [vmem:[%s1137] sm:$0x1]
        %v1140 = vlaneseq
        %v1141 = vshrl.u32 %v1140, 7
        %v1142 = vsub.s32 0, %v1141
        %v1143 = vrot.slane %v1138, %v1142
        %v1145 = vmul.f32 %v1105, %v1143
        %v1146 = vmul.f32 %v1106, %v1143
        %v1147 = vmul.f32 %v1107, %v1143
        %v1148 = vmul.f32 %v1108, %v1143
        %v1149 = vmul.f32 %v1109, %v1143
        %v1150 = vmul.f32 %v1110, %v1143
        %v1151 = vmul.f32 %v1111, %v1143
        %v1152 = vmul.f32 %v1112, %v1143
        %v1153 = vmul.f32 %v1113, %v1143
        %v1154 = vmul.f32 %v1114, %v1143
        %v1155 = vmul.f32 %v1115, %v1143
        %v1156 = vmul.f32 %v1116, %v1143
        %v1157 = vmul.f32 %v1117, %v1143
        %v1158 = vmul.f32 %v1118, %v1143
        %v1159 = vmul.f32 %v1119, %v1143
        %v1160 = vmul.f32 %v1120, %v1143
        %v1161 = vmul.f32 %v1121, %v1143
        %v1162 = vmul.f32 %v1122, %v1143
        %v1163 = vmul.f32 %v1123, %v1143
        %v1164 = vmul.f32 %v1124, %v1143
        %v1165 = vmul.f32 %v1125, %v1143
        %v1166 = vmul.f32 %v1126, %v1143
        %v1167 = vmul.f32 %v1127, %v1143
        %v1168 = vmul.f32 %v1128, %v1143
        %v1169 = vmul.f32 %v1129, %v1143
        %v1170 = vmul.f32 %v1130, %v1143
        %v1171 = vmul.f32 %v1131, %v1143
        %v1172 = vmul.f32 %v1132, %v1143
        %v1173 = vmul.f32 %v1133, %v1143
        %v1174 = vmul.f32 %v1134, %v1143
        %v1175 = vmul.f32 %v1135, %v1143
        %v1176 = vmul.f32 %v1136, %v1143
        %v1177 = vadd.f32 %v1073, %v1145
        %v1178 = vadd.f32 %v1074, %v1146
        %v1179 = vadd.f32 %v1075, %v1147
        %v1180 = vadd.f32 %v1076, %v1148
        %v1181 = vadd.f32 %v1077, %v1149
        %v1182 = vadd.f32 %v1078, %v1150
        %v1183 = vadd.f32 %v1079, %v1151
        %v1184 = vadd.f32 %v1080, %v1152
        %v1185 = vadd.f32 %v1081, %v1153
        %v1186 = vadd.f32 %v1082, %v1154
        %v1187 = vadd.f32 %v1083, %v1155
        %v1188 = vadd.f32 %v1084, %v1156
        %v1189 = vadd.f32 %v1085, %v1157
        %v1190 = vadd.f32 %v1086, %v1158
        %v1191 = vadd.f32 %v1087, %v1159
        %v1192 = vadd.f32 %v1088, %v1160
        %v1193 = vadd.f32 %v1089, %v1161
        %v1194 = vadd.f32 %v1090, %v1162
        %v1195 = vadd.f32 %v1091, %v1163
        %v1196 = vadd.f32 %v1092, %v1164
        %v1197 = vadd.f32 %v1093, %v1165
        %v1198 = vadd.f32 %v1094, %v1166
        %v1199 = vadd.f32 %v1095, %v1167
        %v1200 = vadd.f32 %v1096, %v1168
        %v1201 = vadd.f32 %v1097, %v1169
        %v1202 = vadd.f32 %v1098, %v1170
        %v1203 = vadd.f32 %v1099, %v1171
        %v1204 = vadd.f32 %v1100, %v1172
        %v1205 = vadd.f32 %v1101, %v1173
        %v1206 = vadd.f32 %v1102, %v1174
        %v1207 = vadd.f32 %v1103, %v1175
        %v1208 = vadd.f32 %v1104, %v1176
        %v1209 = vld [vmem:[%s896 + $0x3] sm:$0xff]
        %v1210 = vld [vmem:[%s896 + $0xb] sm:$0xff]
        %v1211 = vld [vmem:[%s896 + $0x1b] sm:$0xff]
        %v1212 = vld [vmem:[%s896 + $0x23] sm:$0xff]
        %v1213 = vld [vmem:[%s896 + $0x33] sm:$0xff]
        %v1214 = vld [vmem:[%s896 + $0x3b] sm:$0xff]
        %v1215 = vld [vmem:[%s896 + $0x4b] sm:$0xff]
        %v1216 = vld [vmem:[%s896 + $0x53] sm:$0xff]
        %v1217 = vld [vmem:[%s896 + $0x63] sm:$0xff]
        %v1218 = vld [vmem:[%s896 + $0x6b] sm:$0xff]
        %v1219 = vld [vmem:[%s896 + $0x7b] sm:$0xff]
        %v1220 = vld [vmem:[%s896 + $0x83] sm:$0xff]
        %v1221 = vld [vmem:[%s896 + $0x93] sm:$0xff]
        %v1222 = vld [vmem:[%s896 + $0x9b] sm:$0xff]
        %v1223 = vld [vmem:[%s896 + $0xab] sm:$0xff]
        %v1224 = vld [vmem:[%s896 + $0xb3] sm:$0xff]
        %v1225 = vld [vmem:[%s896 + $0xc3] sm:$0xff]
        %v1226 = vld [vmem:[%s896 + $0xcb] sm:$0xff]
        %v1227 = vld [vmem:[%s896 + $0xdb] sm:$0xff]
        %v1228 = vld [vmem:[%s896 + $0xe3] sm:$0xff]
        %v1229 = vld [vmem:[%s896 + $0xf3] sm:$0xff]
        %v1230 = vld [vmem:[%s896 + $0xfb] sm:$0xff]
        %v1231 = vld [vmem:[%s896 + $0x10b] sm:$0xff]
        %v1232 = vld [vmem:[%s896 + $0x113] sm:$0xff]
        %v1233 = vld [vmem:[%s896 + $0x123] sm:$0xff]
        %v1234 = vld [vmem:[%s896 + $0x12b] sm:$0xff]
        %v1235 = vld [vmem:[%s896 + $0x13b] sm:$0xff]
        %v1236 = vld [vmem:[%s896 + $0x143] sm:$0xff]
        %v1237 = vld [vmem:[%s896 + $0x153] sm:$0xff]
        %v1238 = vld [vmem:[%s896 + $0x15b] sm:$0xff]
        %v1239 = vld [vmem:[%s896 + $0x16b] sm:$0xff]
        %v1240 = vld [vmem:[%s896 + $0x173] sm:$0xff]
        %s1241 = scalar_lea.vmem %s1, 10
        %v1242 = vld [vmem:[%s1241] sm:$0x1]
        %v1244 = vlaneseq
        %v1245 = vshrl.u32 %v1244, 7
        %v1246 = vsub.s32 0, %v1245
        %v1247 = vrot.slane %v1242, %v1246
        %v1249 = vmul.f32 %v1209, %v1247
        %v1250 = vmul.f32 %v1210, %v1247
        %v1251 = vmul.f32 %v1211, %v1247
        %v1252 = vmul.f32 %v1212, %v1247
        %v1253 = vmul.f32 %v1213, %v1247
        %v1254 = vmul.f32 %v1214, %v1247
        %v1255 = vmul.f32 %v1215, %v1247
        %v1256 = vmul.f32 %v1216, %v1247
        %v1257 = vmul.f32 %v1217, %v1247
        %v1258 = vmul.f32 %v1218, %v1247
        %v1259 = vmul.f32 %v1219, %v1247
        %v1260 = vmul.f32 %v1220, %v1247
        %v1261 = vmul.f32 %v1221, %v1247
        %v1262 = vmul.f32 %v1222, %v1247
        %v1263 = vmul.f32 %v1223, %v1247
        %v1264 = vmul.f32 %v1224, %v1247
        %v1265 = vmul.f32 %v1225, %v1247
        %v1266 = vmul.f32 %v1226, %v1247
        %v1267 = vmul.f32 %v1227, %v1247
        %v1268 = vmul.f32 %v1228, %v1247
        %v1269 = vmul.f32 %v1229, %v1247
        %v1270 = vmul.f32 %v1230, %v1247
        %v1271 = vmul.f32 %v1231, %v1247
        %v1272 = vmul.f32 %v1232, %v1247
        %v1273 = vmul.f32 %v1233, %v1247
        %v1274 = vmul.f32 %v1234, %v1247
        %v1275 = vmul.f32 %v1235, %v1247
        %v1276 = vmul.f32 %v1236, %v1247
        %v1277 = vmul.f32 %v1237, %v1247
        %v1278 = vmul.f32 %v1238, %v1247
        %v1279 = vmul.f32 %v1239, %v1247
        %v1280 = vmul.f32 %v1240, %v1247
        %v1281 = vadd.f32 %v1177, %v1249
        %v1282 = vadd.f32 %v1178, %v1250
        %v1283 = vadd.f32 %v1179, %v1251
        %v1284 = vadd.f32 %v1180, %v1252
        %v1285 = vadd.f32 %v1181, %v1253
        %v1286 = vadd.f32 %v1182, %v1254
        %v1287 = vadd.f32 %v1183, %v1255
        %v1288 = vadd.f32 %v1184, %v1256
        %v1289 = vadd.f32 %v1185, %v1257
        %v1290 = vadd.f32 %v1186, %v1258
        %v1291 = vadd.f32 %v1187, %v1259
        %v1292 = vadd.f32 %v1188, %v1260
        %v1293 = vadd.f32 %v1189, %v1261
        %v1294 = vadd.f32 %v1190, %v1262
        %v1295 = vadd.f32 %v1191, %v1263
        %v1296 = vadd.f32 %v1192, %v1264
        %v1297 = vadd.f32 %v1193, %v1265
        %v1298 = vadd.f32 %v1194, %v1266
        %v1299 = vadd.f32 %v1195, %v1267
        %v1300 = vadd.f32 %v1196, %v1268
        %v1301 = vadd.f32 %v1197, %v1269
        %v1302 = vadd.f32 %v1198, %v1270
        %v1303 = vadd.f32 %v1199, %v1271
        %v1304 = vadd.f32 %v1200, %v1272
        %v1305 = vadd.f32 %v1201, %v1273
        %v1306 = vadd.f32 %v1202, %v1274
        %v1307 = vadd.f32 %v1203, %v1275
        %v1308 = vadd.f32 %v1204, %v1276
        %v1309 = vadd.f32 %v1205, %v1277
        %v1310 = vadd.f32 %v1206, %v1278
        %v1311 = vadd.f32 %v1207, %v1279
        %v1312 = vadd.f32 %v1208, %v1280
        %v1313 = vld [vmem:[%s896 + $0x4] sm:$0xff]
        %v1314 = vld [vmem:[%s896 + $0xc] sm:$0xff]
        %v1315 = vld [vmem:[%s896 + $0x1c] sm:$0xff]
        %v1316 = vld [vmem:[%s896 + $0x24] sm:$0xff]
        %v1317 = vld [vmem:[%s896 + $0x34] sm:$0xff]
        %v1318 = vld [vmem:[%s896 + $0x3c] sm:$0xff]
        %v1319 = vld [vmem:[%s896 + $0x4c] sm:$0xff]
        %v1320 = vld [vmem:[%s896 + $0x54] sm:$0xff]
        %v1321 = vld [vmem:[%s896 + $0x64] sm:$0xff]
        %v1322 = vld [vmem:[%s896 + $0x6c] sm:$0xff]
        %v1323 = vld [vmem:[%s896 + $0x7c] sm:$0xff]
        %v1324 = vld [vmem:[%s896 + $0x84] sm:$0xff]
        %v1325 = vld [vmem:[%s896 + $0x94] sm:$0xff]
        %v1326 = vld [vmem:[%s896 + $0x9c] sm:$0xff]
        %v1327 = vld [vmem:[%s896 + $0xac] sm:$0xff]
        %v1328 = vld [vmem:[%s896 + $0xb4] sm:$0xff]
        %v1329 = vld [vmem:[%s896 + $0xc4] sm:$0xff]
        %v1330 = vld [vmem:[%s896 + $0xcc] sm:$0xff]
        %v1331 = vld [vmem:[%s896 + $0xdc] sm:$0xff]
        %v1332 = vld [vmem:[%s896 + $0xe4] sm:$0xff]
        %v1333 = vld [vmem:[%s896 + $0xf4] sm:$0xff]
        %v1334 = vld [vmem:[%s896 + $0xfc] sm:$0xff]
        %v1335 = vld [vmem:[%s896 + $0x10c] sm:$0xff]
        %v1336 = vld [vmem:[%s896 + $0x114] sm:$0xff]
        %v1337 = vld [vmem:[%s896 + $0x124] sm:$0xff]
        %v1338 = vld [vmem:[%s896 + $0x12c] sm:$0xff]
        %v1339 = vld [vmem:[%s896 + $0x13c] sm:$0xff]
        %v1340 = vld [vmem:[%s896 + $0x144] sm:$0xff]
        %v1341 = vld [vmem:[%s896 + $0x154] sm:$0xff]
        %v1342 = vld [vmem:[%s896 + $0x15c] sm:$0xff]
        %v1343 = vld [vmem:[%s896 + $0x16c] sm:$0xff]
        %v1344 = vld [vmem:[%s896 + $0x174] sm:$0xff]
        %s1345 = scalar_lea.vmem %s1, 11
        %v1346 = vld [vmem:[%s1345] sm:$0x1]
        %v1348 = vlaneseq
        %v1349 = vshrl.u32 %v1348, 7
        %v1350 = vsub.s32 0, %v1349
        %v1351 = vrot.slane %v1346, %v1350
        %v1353 = vmul.f32 %v1313, %v1351
        %v1354 = vmul.f32 %v1314, %v1351
        %v1355 = vmul.f32 %v1315, %v1351
        %v1356 = vmul.f32 %v1316, %v1351
        %v1357 = vmul.f32 %v1317, %v1351
        %v1358 = vmul.f32 %v1318, %v1351
        %v1359 = vmul.f32 %v1319, %v1351
        %v1360 = vmul.f32 %v1320, %v1351
        %v1361 = vmul.f32 %v1321, %v1351
        %v1362 = vmul.f32 %v1322, %v1351
        %v1363 = vmul.f32 %v1323, %v1351
        %v1364 = vmul.f32 %v1324, %v1351
        %v1365 = vmul.f32 %v1325, %v1351
        %v1366 = vmul.f32 %v1326, %v1351
        %v1367 = vmul.f32 %v1327, %v1351
        %v1368 = vmul.f32 %v1328, %v1351
        %v1369 = vmul.f32 %v1329, %v1351
        %v1370 = vmul.f32 %v1330, %v1351
        %v1371 = vmul.f32 %v1331, %v1351
        %v1372 = vmul.f32 %v1332, %v1351
        %v1373 = vmul.f32 %v1333, %v1351
        %v1374 = vmul.f32 %v1334, %v1351
        %v1375 = vmul.f32 %v1335, %v1351
        %v1376 = vmul.f32 %v1336, %v1351
        %v1377 = vmul.f32 %v1337, %v1351
        %v1378 = vmul.f32 %v1338, %v1351
        %v1379 = vmul.f32 %v1339, %v1351
        %v1380 = vmul.f32 %v1340, %v1351
        %v1381 = vmul.f32 %v1341, %v1351
        %v1382 = vmul.f32 %v1342, %v1351
        %v1383 = vmul.f32 %v1343, %v1351
        %v1384 = vmul.f32 %v1344, %v1351
        %v1385 = vadd.f32 %v1281, %v1353
        %v1386 = vadd.f32 %v1282, %v1354
        %v1387 = vadd.f32 %v1283, %v1355
        %v1388 = vadd.f32 %v1284, %v1356
        %v1389 = vadd.f32 %v1285, %v1357
        %v1390 = vadd.f32 %v1286, %v1358
        %v1391 = vadd.f32 %v1287, %v1359
        %v1392 = vadd.f32 %v1288, %v1360
        %v1393 = vadd.f32 %v1289, %v1361
        %v1394 = vadd.f32 %v1290, %v1362
        %v1395 = vadd.f32 %v1291, %v1363
        %v1396 = vadd.f32 %v1292, %v1364
        %v1397 = vadd.f32 %v1293, %v1365
        %v1398 = vadd.f32 %v1294, %v1366
        %v1399 = vadd.f32 %v1295, %v1367
        %v1400 = vadd.f32 %v1296, %v1368
        %v1401 = vadd.f32 %v1297, %v1369
        %v1402 = vadd.f32 %v1298, %v1370
        %v1403 = vadd.f32 %v1299, %v1371
        %v1404 = vadd.f32 %v1300, %v1372
        %v1405 = vadd.f32 %v1301, %v1373
        %v1406 = vadd.f32 %v1302, %v1374
        %v1407 = vadd.f32 %v1303, %v1375
        %v1408 = vadd.f32 %v1304, %v1376
        %v1409 = vadd.f32 %v1305, %v1377
        %v1410 = vadd.f32 %v1306, %v1378
        %v1411 = vadd.f32 %v1307, %v1379
        %v1412 = vadd.f32 %v1308, %v1380
        %v1413 = vadd.f32 %v1309, %v1381
        %v1414 = vadd.f32 %v1310, %v1382
        %v1415 = vadd.f32 %v1311, %v1383
        %v1416 = vadd.f32 %v1312, %v1384
        %v1417 = vld [vmem:[%s896 + $0x5] sm:$0xff]
        %v1418 = vld [vmem:[%s896 + $0xd] sm:$0xff]
        %v1419 = vld [vmem:[%s896 + $0x1d] sm:$0xff]
        %v1420 = vld [vmem:[%s896 + $0x25] sm:$0xff]
        %v1421 = vld [vmem:[%s896 + $0x35] sm:$0xff]
        %v1422 = vld [vmem:[%s896 + $0x3d] sm:$0xff]
        %v1423 = vld [vmem:[%s896 + $0x4d] sm:$0xff]
        %v1424 = vld [vmem:[%s896 + $0x55] sm:$0xff]
        %v1425 = vld [vmem:[%s896 + $0x65] sm:$0xff]
        %v1426 = vld [vmem:[%s896 + $0x6d] sm:$0xff]
        %v1427 = vld [vmem:[%s896 + $0x7d] sm:$0xff]
        %v1428 = vld [vmem:[%s896 + $0x85] sm:$0xff]
        %v1429 = vld [vmem:[%s896 + $0x95] sm:$0xff]
        %v1430 = vld [vmem:[%s896 + $0x9d] sm:$0xff]
        %v1431 = vld [vmem:[%s896 + $0xad] sm:$0xff]
        %v1432 = vld [vmem:[%s896 + $0xb5] sm:$0xff]
        %v1433 = vld [vmem:[%s896 + $0xc5] sm:$0xff]
        %v1434 = vld [vmem:[%s896 + $0xcd] sm:$0xff]
        %v1435 = vld [vmem:[%s896 + $0xdd] sm:$0xff]
        %v1436 = vld [vmem:[%s896 + $0xe5] sm:$0xff]
        %v1437 = vld [vmem:[%s896 + $0xf5] sm:$0xff]
        %v1438 = vld [vmem:[%s896 + $0xfd] sm:$0xff]
        %v1439 = vld [vmem:[%s896 + $0x10d] sm:$0xff]
        %v1440 = vld [vmem:[%s896 + $0x115] sm:$0xff]
        %v1441 = vld [vmem:[%s896 + $0x125] sm:$0xff]
        %v1442 = vld [vmem:[%s896 + $0x12d] sm:$0xff]
        %v1443 = vld [vmem:[%s896 + $0x13d] sm:$0xff]
        %v1444 = vld [vmem:[%s896 + $0x145] sm:$0xff]
        %v1445 = vld [vmem:[%s896 + $0x155] sm:$0xff]
        %v1446 = vld [vmem:[%s896 + $0x15d] sm:$0xff]
        %v1447 = vld [vmem:[%s896 + $0x16d] sm:$0xff]
        %v1448 = vld [vmem:[%s896 + $0x175] sm:$0xff]
        %s1449 = scalar_lea.vmem %s1, 12
        %v1450 = vld [vmem:[%s1449] sm:$0x1]
        %v1452 = vlaneseq
        %v1453 = vshrl.u32 %v1452, 7
        %v1454 = vsub.s32 0, %v1453
        %v1455 = vrot.slane %v1450, %v1454
        %v1457 = vmul.f32 %v1417, %v1455
        %v1458 = vmul.f32 %v1418, %v1455
        %v1459 = vmul.f32 %v1419, %v1455
        %v1460 = vmul.f32 %v1420, %v1455
        %v1461 = vmul.f32 %v1421, %v1455
        %v1462 = vmul.f32 %v1422, %v1455
        %v1463 = vmul.f32 %v1423, %v1455
        %v1464 = vmul.f32 %v1424, %v1455
        %v1465 = vmul.f32 %v1425, %v1455
        %v1466 = vmul.f32 %v1426, %v1455
        %v1467 = vmul.f32 %v1427, %v1455
        %v1468 = vmul.f32 %v1428, %v1455
        %v1469 = vmul.f32 %v1429, %v1455
        %v1470 = vmul.f32 %v1430, %v1455
        %v1471 = vmul.f32 %v1431, %v1455
        %v1472 = vmul.f32 %v1432, %v1455
        %v1473 = vmul.f32 %v1433, %v1455
        %v1474 = vmul.f32 %v1434, %v1455
        %v1475 = vmul.f32 %v1435, %v1455
        %v1476 = vmul.f32 %v1436, %v1455
        %v1477 = vmul.f32 %v1437, %v1455
        %v1478 = vmul.f32 %v1438, %v1455
        %v1479 = vmul.f32 %v1439, %v1455
        %v1480 = vmul.f32 %v1440, %v1455
        %v1481 = vmul.f32 %v1441, %v1455
        %v1482 = vmul.f32 %v1442, %v1455
        %v1483 = vmul.f32 %v1443, %v1455
        %v1484 = vmul.f32 %v1444, %v1455
        %v1485 = vmul.f32 %v1445, %v1455
        %v1486 = vmul.f32 %v1446, %v1455
        %v1487 = vmul.f32 %v1447, %v1455
        %v1488 = vmul.f32 %v1448, %v1455
        %v1489 = vadd.f32 %v1385, %v1457
        %v1490 = vadd.f32 %v1386, %v1458
        %v1491 = vadd.f32 %v1387, %v1459
        %v1492 = vadd.f32 %v1388, %v1460
        %v1493 = vadd.f32 %v1389, %v1461
        %v1494 = vadd.f32 %v1390, %v1462
        %v1495 = vadd.f32 %v1391, %v1463
        %v1496 = vadd.f32 %v1392, %v1464
        %v1497 = vadd.f32 %v1393, %v1465
        %v1498 = vadd.f32 %v1394, %v1466
        %v1499 = vadd.f32 %v1395, %v1467
        %v1500 = vadd.f32 %v1396, %v1468
        %v1501 = vadd.f32 %v1397, %v1469
        %v1502 = vadd.f32 %v1398, %v1470
        %v1503 = vadd.f32 %v1399, %v1471
        %v1504 = vadd.f32 %v1400, %v1472
        %v1505 = vadd.f32 %v1401, %v1473
        %v1506 = vadd.f32 %v1402, %v1474
        %v1507 = vadd.f32 %v1403, %v1475
        %v1508 = vadd.f32 %v1404, %v1476
        %v1509 = vadd.f32 %v1405, %v1477
        %v1510 = vadd.f32 %v1406, %v1478
        %v1511 = vadd.f32 %v1407, %v1479
        %v1512 = vadd.f32 %v1408, %v1480
        %v1513 = vadd.f32 %v1409, %v1481
        %v1514 = vadd.f32 %v1410, %v1482
        %v1515 = vadd.f32 %v1411, %v1483
        %v1516 = vadd.f32 %v1412, %v1484
        %v1517 = vadd.f32 %v1413, %v1485
        %v1518 = vadd.f32 %v1414, %v1486
        %v1519 = vadd.f32 %v1415, %v1487
        %v1520 = vadd.f32 %v1416, %v1488
        %v1521 = vld [vmem:[%s896 + $0x6] sm:$0xff]
        %v1522 = vld [vmem:[%s896 + $0xe] sm:$0xff]
        %v1523 = vld [vmem:[%s896 + $0x1e] sm:$0xff]
        %v1524 = vld [vmem:[%s896 + $0x26] sm:$0xff]
        %v1525 = vld [vmem:[%s896 + $0x36] sm:$0xff]
        %v1526 = vld [vmem:[%s896 + $0x3e] sm:$0xff]
        %v1527 = vld [vmem:[%s896 + $0x4e] sm:$0xff]
        %v1528 = vld [vmem:[%s896 + $0x56] sm:$0xff]
        %v1529 = vld [vmem:[%s896 + $0x66] sm:$0xff]
        %v1530 = vld [vmem:[%s896 + $0x6e] sm:$0xff]
        %v1531 = vld [vmem:[%s896 + $0x7e] sm:$0xff]
        %v1532 = vld [vmem:[%s896 + $0x86] sm:$0xff]
        %v1533 = vld [vmem:[%s896 + $0x96] sm:$0xff]
        %v1534 = vld [vmem:[%s896 + $0x9e] sm:$0xff]
        %v1535 = vld [vmem:[%s896 + $0xae] sm:$0xff]
        %v1536 = vld [vmem:[%s896 + $0xb6] sm:$0xff]
        %v1537 = vld [vmem:[%s896 + $0xc6] sm:$0xff]
        %v1538 = vld [vmem:[%s896 + $0xce] sm:$0xff]
        %v1539 = vld [vmem:[%s896 + $0xde] sm:$0xff]
        %v1540 = vld [vmem:[%s896 + $0xe6] sm:$0xff]
        %v1541 = vld [vmem:[%s896 + $0xf6] sm:$0xff]
        %v1542 = vld [vmem:[%s896 + $0xfe] sm:$0xff]
        %v1543 = vld [vmem:[%s896 + $0x10e] sm:$0xff]
        %v1544 = vld [vmem:[%s896 + $0x116] sm:$0xff]
        %v1545 = vld [vmem:[%s896 + $0x126] sm:$0xff]
        %v1546 = vld [vmem:[%s896 + $0x12e] sm:$0xff]
        %v1547 = vld [vmem:[%s896 + $0x13e] sm:$0xff]
        %v1548 = vld [vmem:[%s896 + $0x146] sm:$0xff]
        %v1549 = vld [vmem:[%s896 + $0x156] sm:$0xff]
        %v1550 = vld [vmem:[%s896 + $0x15e] sm:$0xff]
        %v1551 = vld [vmem:[%s896 + $0x16e] sm:$0xff]
        %v1552 = vld [vmem:[%s896 + $0x176] sm:$0xff]
        %s1553 = scalar_lea.vmem %s1, 13
        %v1554 = vld [vmem:[%s1553] sm:$0x1]
        %v1556 = vlaneseq
        %v1557 = vshrl.u32 %v1556, 7
        %v1558 = vsub.s32 0, %v1557
        %v1559 = vrot.slane %v1554, %v1558
        %v1561 = vmul.f32 %v1521, %v1559
        %v1562 = vmul.f32 %v1522, %v1559
        %v1563 = vmul.f32 %v1523, %v1559
        %v1564 = vmul.f32 %v1524, %v1559
        %v1565 = vmul.f32 %v1525, %v1559
        %v1566 = vmul.f32 %v1526, %v1559
        %v1567 = vmul.f32 %v1527, %v1559
        %v1568 = vmul.f32 %v1528, %v1559
        %v1569 = vmul.f32 %v1529, %v1559
        %v1570 = vmul.f32 %v1530, %v1559
        %v1571 = vmul.f32 %v1531, %v1559
        %v1572 = vmul.f32 %v1532, %v1559
        %v1573 = vmul.f32 %v1533, %v1559
        %v1574 = vmul.f32 %v1534, %v1559
        %v1575 = vmul.f32 %v1535, %v1559
        %v1576 = vmul.f32 %v1536, %v1559
        %v1577 = vmul.f32 %v1537, %v1559
        %v1578 = vmul.f32 %v1538, %v1559
        %v1579 = vmul.f32 %v1539, %v1559
        %v1580 = vmul.f32 %v1540, %v1559
        %v1581 = vmul.f32 %v1541, %v1559
        %v1582 = vmul.f32 %v1542, %v1559
        %v1583 = vmul.f32 %v1543, %v1559
        %v1584 = vmul.f32 %v1544, %v1559
        %v1585 = vmul.f32 %v1545, %v1559
        %v1586 = vmul.f32 %v1546, %v1559
        %v1587 = vmul.f32 %v1547, %v1559
        %v1588 = vmul.f32 %v1548, %v1559
        %v1589 = vmul.f32 %v1549, %v1559
        %v1590 = vmul.f32 %v1550, %v1559
        %v1591 = vmul.f32 %v1551, %v1559
        %v1592 = vmul.f32 %v1552, %v1559
        %v1593 = vadd.f32 %v1489, %v1561
        %v1594 = vadd.f32 %v1490, %v1562
        %v1595 = vadd.f32 %v1491, %v1563
        %v1596 = vadd.f32 %v1492, %v1564
        %v1597 = vadd.f32 %v1493, %v1565
        %v1598 = vadd.f32 %v1494, %v1566
        %v1599 = vadd.f32 %v1495, %v1567
        %v1600 = vadd.f32 %v1496, %v1568
        %v1601 = vadd.f32 %v1497, %v1569
        %v1602 = vadd.f32 %v1498, %v1570
        %v1603 = vadd.f32 %v1499, %v1571
        %v1604 = vadd.f32 %v1500, %v1572
        %v1605 = vadd.f32 %v1501, %v1573
        %v1606 = vadd.f32 %v1502, %v1574
        %v1607 = vadd.f32 %v1503, %v1575
        %v1608 = vadd.f32 %v1504, %v1576
        %v1609 = vadd.f32 %v1505, %v1577
        %v1610 = vadd.f32 %v1506, %v1578
        %v1611 = vadd.f32 %v1507, %v1579
        %v1612 = vadd.f32 %v1508, %v1580
        %v1613 = vadd.f32 %v1509, %v1581
        %v1614 = vadd.f32 %v1510, %v1582
        %v1615 = vadd.f32 %v1511, %v1583
        %v1616 = vadd.f32 %v1512, %v1584
        %v1617 = vadd.f32 %v1513, %v1585
        %v1618 = vadd.f32 %v1514, %v1586
        %v1619 = vadd.f32 %v1515, %v1587
        %v1620 = vadd.f32 %v1516, %v1588
        %v1621 = vadd.f32 %v1517, %v1589
        %v1622 = vadd.f32 %v1518, %v1590
        %v1623 = vadd.f32 %v1519, %v1591
        %v1624 = vadd.f32 %v1520, %v1592
        %s1625 = scalar_lea.vmem %s168, 48
        %v1626 = vld [vmem:[%s1625] sm:$0xff]
        %v1627 = vld [vmem:[%s1625 + $0x8] sm:$0xff]
        %v1628 = vld [vmem:[%s1625 + $0x18] sm:$0xff]
        %v1629 = vld [vmem:[%s1625 + $0x20] sm:$0xff]
        %v1630 = vld [vmem:[%s1625 + $0x30] sm:$0xff]
        %v1631 = vld [vmem:[%s1625 + $0x38] sm:$0xff]
        %v1632 = vld [vmem:[%s1625 + $0x48] sm:$0xff]
        %v1633 = vld [vmem:[%s1625 + $0x50] sm:$0xff]
        %v1634 = vld [vmem:[%s1625 + $0x60] sm:$0xff]
        %v1635 = vld [vmem:[%s1625 + $0x68] sm:$0xff]
        %v1636 = vld [vmem:[%s1625 + $0x78] sm:$0xff]
        %v1637 = vld [vmem:[%s1625 + $0x80] sm:$0xff]
        %v1638 = vld [vmem:[%s1625 + $0x90] sm:$0xff]
        %v1639 = vld [vmem:[%s1625 + $0x98] sm:$0xff]
        %v1640 = vld [vmem:[%s1625 + $0xa8] sm:$0xff]
        %v1641 = vld [vmem:[%s1625 + $0xb0] sm:$0xff]
        %v1642 = vld [vmem:[%s1625 + $0xc0] sm:$0xff]
        %v1643 = vld [vmem:[%s1625 + $0xc8] sm:$0xff]
        %v1644 = vld [vmem:[%s1625 + $0xd8] sm:$0xff]
        %v1645 = vld [vmem:[%s1625 + $0xe0] sm:$0xff]
        %v1646 = vld [vmem:[%s1625 + $0xf0] sm:$0xff]
        %v1647 = vld [vmem:[%s1625 + $0xf8] sm:$0xff]
        %v1648 = vld [vmem:[%s1625 + $0x108] sm:$0xff]
        %v1649 = vld [vmem:[%s1625 + $0x110] sm:$0xff]
        %v1650 = vld [vmem:[%s1625 + $0x120] sm:$0xff]
        %v1651 = vld [vmem:[%s1625 + $0x128] sm:$0xff]
        %v1652 = vld [vmem:[%s1625 + $0x138] sm:$0xff]
        %v1653 = vld [vmem:[%s1625 + $0x140] sm:$0xff]
        %v1654 = vld [vmem:[%s1625 + $0x150] sm:$0xff]
        %v1655 = vld [vmem:[%s1625 + $0x158] sm:$0xff]
        %v1656 = vld [vmem:[%s1625 + $0x168] sm:$0xff]
        %v1657 = vld [vmem:[%s1625 + $0x170] sm:$0xff]
        %s1658 = scalar_lea.vmem %s1, 14
        %v1659 = vld [vmem:[%s1658] sm:$0x1]
        %v1661 = vlaneseq
        %v1662 = vshrl.u32 %v1661, 7
        %v1663 = vsub.s32 0, %v1662
        %v1664 = vrot.slane %v1659, %v1663
        %v1666 = vmul.f32 %v1626, %v1664
        %v1667 = vmul.f32 %v1627, %v1664
        %v1668 = vmul.f32 %v1628, %v1664
        %v1669 = vmul.f32 %v1629, %v1664
        %v1670 = vmul.f32 %v1630, %v1664
        %v1671 = vmul.f32 %v1631, %v1664
        %v1672 = vmul.f32 %v1632, %v1664
        %v1673 = vmul.f32 %v1633, %v1664
        %v1674 = vmul.f32 %v1634, %v1664
        %v1675 = vmul.f32 %v1635, %v1664
        %v1676 = vmul.f32 %v1636, %v1664
        %v1677 = vmul.f32 %v1637, %v1664
        %v1678 = vmul.f32 %v1638, %v1664
        %v1679 = vmul.f32 %v1639, %v1664
        %v1680 = vmul.f32 %v1640, %v1664
        %v1681 = vmul.f32 %v1641, %v1664
        %v1682 = vmul.f32 %v1642, %v1664
        %v1683 = vmul.f32 %v1643, %v1664
        %v1684 = vmul.f32 %v1644, %v1664
        %v1685 = vmul.f32 %v1645, %v1664
        %v1686 = vmul.f32 %v1646, %v1664
        %v1687 = vmul.f32 %v1647, %v1664
        %v1688 = vmul.f32 %v1648, %v1664
        %v1689 = vmul.f32 %v1649, %v1664
        %v1690 = vmul.f32 %v1650, %v1664
        %v1691 = vmul.f32 %v1651, %v1664
        %v1692 = vmul.f32 %v1652, %v1664
        %v1693 = vmul.f32 %v1653, %v1664
        %v1694 = vmul.f32 %v1654, %v1664
        %v1695 = vmul.f32 %v1655, %v1664
        %v1696 = vmul.f32 %v1656, %v1664
        %v1697 = vmul.f32 %v1657, %v1664
        %v1698 = vadd.f32 %v1593, %v1666
        %v1699 = vadd.f32 %v1594, %v1667
        %v1700 = vadd.f32 %v1595, %v1668
        %v1701 = vadd.f32 %v1596, %v1669
        %v1702 = vadd.f32 %v1597, %v1670
        %v1703 = vadd.f32 %v1598, %v1671
        %v1704 = vadd.f32 %v1599, %v1672
        %v1705 = vadd.f32 %v1600, %v1673
        %v1706 = vadd.f32 %v1601, %v1674
        %v1707 = vadd.f32 %v1602, %v1675
        %v1708 = vadd.f32 %v1603, %v1676
        %v1709 = vadd.f32 %v1604, %v1677
        %v1710 = vadd.f32 %v1605, %v1678
        %v1711 = vadd.f32 %v1606, %v1679
        %v1712 = vadd.f32 %v1607, %v1680
        %v1713 = vadd.f32 %v1608, %v1681
        %v1714 = vadd.f32 %v1609, %v1682
        %v1715 = vadd.f32 %v1610, %v1683
        %v1716 = vadd.f32 %v1611, %v1684
        %v1717 = vadd.f32 %v1612, %v1685
        %v1718 = vadd.f32 %v1613, %v1686
        %v1719 = vadd.f32 %v1614, %v1687
        %v1720 = vadd.f32 %v1615, %v1688
        %v1721 = vadd.f32 %v1616, %v1689
        %v1722 = vadd.f32 %v1617, %v1690
        %v1723 = vadd.f32 %v1618, %v1691
        %v1724 = vadd.f32 %v1619, %v1692
        %v1725 = vadd.f32 %v1620, %v1693
        %v1726 = vadd.f32 %v1621, %v1694
        %v1727 = vadd.f32 %v1622, %v1695
        %v1728 = vadd.f32 %v1623, %v1696
        %v1729 = vadd.f32 %v1624, %v1697
        %v1730 = vld [vmem:[%s1625 + $0x1] sm:$0xff]
        %v1731 = vld [vmem:[%s1625 + $0x9] sm:$0xff]
        %v1732 = vld [vmem:[%s1625 + $0x19] sm:$0xff]
        %v1733 = vld [vmem:[%s1625 + $0x21] sm:$0xff]
        %v1734 = vld [vmem:[%s1625 + $0x31] sm:$0xff]
        %v1735 = vld [vmem:[%s1625 + $0x39] sm:$0xff]
        %v1736 = vld [vmem:[%s1625 + $0x49] sm:$0xff]
        %v1737 = vld [vmem:[%s1625 + $0x51] sm:$0xff]
        %v1738 = vld [vmem:[%s1625 + $0x61] sm:$0xff]
        %v1739 = vld [vmem:[%s1625 + $0x69] sm:$0xff]
        %v1740 = vld [vmem:[%s1625 + $0x79] sm:$0xff]
        %v1741 = vld [vmem:[%s1625 + $0x81] sm:$0xff]
        %v1742 = vld [vmem:[%s1625 + $0x91] sm:$0xff]
        %v1743 = vld [vmem:[%s1625 + $0x99] sm:$0xff]
        %v1744 = vld [vmem:[%s1625 + $0xa9] sm:$0xff]
        %v1745 = vld [vmem:[%s1625 + $0xb1] sm:$0xff]
        %v1746 = vld [vmem:[%s1625 + $0xc1] sm:$0xff]
        %v1747 = vld [vmem:[%s1625 + $0xc9] sm:$0xff]
        %v1748 = vld [vmem:[%s1625 + $0xd9] sm:$0xff]
        %v1749 = vld [vmem:[%s1625 + $0xe1] sm:$0xff]
        %v1750 = vld [vmem:[%s1625 + $0xf1] sm:$0xff]
        %v1751 = vld [vmem:[%s1625 + $0xf9] sm:$0xff]
        %v1752 = vld [vmem:[%s1625 + $0x109] sm:$0xff]
        %v1753 = vld [vmem:[%s1625 + $0x111] sm:$0xff]
        %v1754 = vld [vmem:[%s1625 + $0x121] sm:$0xff]
        %v1755 = vld [vmem:[%s1625 + $0x129] sm:$0xff]
        %v1756 = vld [vmem:[%s1625 + $0x139] sm:$0xff]
        %v1757 = vld [vmem:[%s1625 + $0x141] sm:$0xff]
        %v1758 = vld [vmem:[%s1625 + $0x151] sm:$0xff]
        %v1759 = vld [vmem:[%s1625 + $0x159] sm:$0xff]
        %v1760 = vld [vmem:[%s1625 + $0x169] sm:$0xff]
        %v1761 = vld [vmem:[%s1625 + $0x171] sm:$0xff]
        %s1762 = scalar_lea.vmem %s1, 15
        %v1763 = vld [vmem:[%s1762] sm:$0x1]
        %v1765 = vlaneseq
        %v1766 = vshrl.u32 %v1765, 7
        %v1767 = vsub.s32 0, %v1766
        %v1768 = vrot.slane %v1763, %v1767
        %v1770 = vmul.f32 %v1730, %v1768
        %v1771 = vmul.f32 %v1731, %v1768
        %v1772 = vmul.f32 %v1732, %v1768
        %v1773 = vmul.f32 %v1733, %v1768
        %v1774 = vmul.f32 %v1734, %v1768
        %v1775 = vmul.f32 %v1735, %v1768
        %v1776 = vmul.f32 %v1736, %v1768
        %v1777 = vmul.f32 %v1737, %v1768
        %v1778 = vmul.f32 %v1738, %v1768
        %v1779 = vmul.f32 %v1739, %v1768
        %v1780 = vmul.f32 %v1740, %v1768
        %v1781 = vmul.f32 %v1741, %v1768
        %v1782 = vmul.f32 %v1742, %v1768
        %v1783 = vmul.f32 %v1743, %v1768
        %v1784 = vmul.f32 %v1744, %v1768
        %v1785 = vmul.f32 %v1745, %v1768
        %v1786 = vmul.f32 %v1746, %v1768
        %v1787 = vmul.f32 %v1747, %v1768
        %v1788 = vmul.f32 %v1748, %v1768
        %v1789 = vmul.f32 %v1749, %v1768
        %v1790 = vmul.f32 %v1750, %v1768
        %v1791 = vmul.f32 %v1751, %v1768
        %v1792 = vmul.f32 %v1752, %v1768
        %v1793 = vmul.f32 %v1753, %v1768
        %v1794 = vmul.f32 %v1754, %v1768
        %v1795 = vmul.f32 %v1755, %v1768
        %v1796 = vmul.f32 %v1756, %v1768
        %v1797 = vmul.f32 %v1757, %v1768
        %v1798 = vmul.f32 %v1758, %v1768
        %v1799 = vmul.f32 %v1759, %v1768
        %v1800 = vmul.f32 %v1760, %v1768
        %v1801 = vmul.f32 %v1761, %v1768
        %v1802 = vadd.f32 %v1698, %v1770
        %v1803 = vadd.f32 %v1699, %v1771
        %v1804 = vadd.f32 %v1700, %v1772
        %v1805 = vadd.f32 %v1701, %v1773
        %v1806 = vadd.f32 %v1702, %v1774
        %v1807 = vadd.f32 %v1703, %v1775
        %v1808 = vadd.f32 %v1704, %v1776
        %v1809 = vadd.f32 %v1705, %v1777
        %v1810 = vadd.f32 %v1706, %v1778
        %v1811 = vadd.f32 %v1707, %v1779
        %v1812 = vadd.f32 %v1708, %v1780
        %v1813 = vadd.f32 %v1709, %v1781
        %v1814 = vadd.f32 %v1710, %v1782
        %v1815 = vadd.f32 %v1711, %v1783
        %v1816 = vadd.f32 %v1712, %v1784
        %v1817 = vadd.f32 %v1713, %v1785
        %v1818 = vadd.f32 %v1714, %v1786
        %v1819 = vadd.f32 %v1715, %v1787
        %v1820 = vadd.f32 %v1716, %v1788
        %v1821 = vadd.f32 %v1717, %v1789
        %v1822 = vadd.f32 %v1718, %v1790
        %v1823 = vadd.f32 %v1719, %v1791
        %v1824 = vadd.f32 %v1720, %v1792
        %v1825 = vadd.f32 %v1721, %v1793
        %v1826 = vadd.f32 %v1722, %v1794
        %v1827 = vadd.f32 %v1723, %v1795
        %v1828 = vadd.f32 %v1724, %v1796
        %v1829 = vadd.f32 %v1725, %v1797
        %v1830 = vadd.f32 %v1726, %v1798
        %v1831 = vadd.f32 %v1727, %v1799
        %v1832 = vadd.f32 %v1728, %v1800
        %v1833 = vadd.f32 %v1729, %v1801
        %v1834 = vld [vmem:[%s1625 + $0x2] sm:$0xff]
        %v1835 = vld [vmem:[%s1625 + $0xa] sm:$0xff]
        %v1836 = vld [vmem:[%s1625 + $0x1a] sm:$0xff]
        %v1837 = vld [vmem:[%s1625 + $0x22] sm:$0xff]
        %v1838 = vld [vmem:[%s1625 + $0x32] sm:$0xff]
        %v1839 = vld [vmem:[%s1625 + $0x3a] sm:$0xff]
        %v1840 = vld [vmem:[%s1625 + $0x4a] sm:$0xff]
        %v1841 = vld [vmem:[%s1625 + $0x52] sm:$0xff]
        %v1842 = vld [vmem:[%s1625 + $0x62] sm:$0xff]
        %v1843 = vld [vmem:[%s1625 + $0x6a] sm:$0xff]
        %v1844 = vld [vmem:[%s1625 + $0x7a] sm:$0xff]
        %v1845 = vld [vmem:[%s1625 + $0x82] sm:$0xff]
        %v1846 = vld [vmem:[%s1625 + $0x92] sm:$0xff]
        %v1847 = vld [vmem:[%s1625 + $0x9a] sm:$0xff]
        %v1848 = vld [vmem:[%s1625 + $0xaa] sm:$0xff]
        %v1849 = vld [vmem:[%s1625 + $0xb2] sm:$0xff]
        %v1850 = vld [vmem:[%s1625 + $0xc2] sm:$0xff]
        %v1851 = vld [vmem:[%s1625 + $0xca] sm:$0xff]
        %v1852 = vld [vmem:[%s1625 + $0xda] sm:$0xff]
        %v1853 = vld [vmem:[%s1625 + $0xe2] sm:$0xff]
        %v1854 = vld [vmem:[%s1625 + $0xf2] sm:$0xff]
        %v1855 = vld [vmem:[%s1625 + $0xfa] sm:$0xff]
        %v1856 = vld [vmem:[%s1625 + $0x10a] sm:$0xff]
        %v1857 = vld [vmem:[%s1625 + $0x112] sm:$0xff]
        %v1858 = vld [vmem:[%s1625 + $0x122] sm:$0xff]
        %v1859 = vld [vmem:[%s1625 + $0x12a] sm:$0xff]
        %v1860 = vld [vmem:[%s1625 + $0x13a] sm:$0xff]
        %v1861 = vld [vmem:[%s1625 + $0x142] sm:$0xff]
        %v1862 = vld [vmem:[%s1625 + $0x152] sm:$0xff]
        %v1863 = vld [vmem:[%s1625 + $0x15a] sm:$0xff]
        %v1864 = vld [vmem:[%s1625 + $0x16a] sm:$0xff]
        %v1865 = vld [vmem:[%s1625 + $0x172] sm:$0xff]
        %s1866 = scalar_lea.vmem %s1, 16
        %v1867 = vld [vmem:[%s1866] sm:$0x1]
        %v1869 = vlaneseq
        %v1870 = vshrl.u32 %v1869, 7
        %v1871 = vsub.s32 0, %v1870
        %v1872 = vrot.slane %v1867, %v1871
        %v1874 = vmul.f32 %v1834, %v1872
        %v1875 = vmul.f32 %v1835, %v1872
        %v1876 = vmul.f32 %v1836, %v1872
        %v1877 = vmul.f32 %v1837, %v1872
        %v1878 = vmul.f32 %v1838, %v1872
        %v1879 = vmul.f32 %v1839, %v1872
        %v1880 = vmul.f32 %v1840, %v1872
        %v1881 = vmul.f32 %v1841, %v1872
        %v1882 = vmul.f32 %v1842, %v1872
        %v1883 = vmul.f32 %v1843, %v1872
        %v1884 = vmul.f32 %v1844, %v1872
        %v1885 = vmul.f32 %v1845, %v1872
        %v1886 = vmul.f32 %v1846, %v1872
        %v1887 = vmul.f32 %v1847, %v1872
        %v1888 = vmul.f32 %v1848, %v1872
        %v1889 = vmul.f32 %v1849, %v1872
        %v1890 = vmul.f32 %v1850, %v1872
        %v1891 = vmul.f32 %v1851, %v1872
        %v1892 = vmul.f32 %v1852, %v1872
        %v1893 = vmul.f32 %v1853, %v1872
        %v1894 = vmul.f32 %v1854, %v1872
        %v1895 = vmul.f32 %v1855, %v1872
        %v1896 = vmul.f32 %v1856, %v1872
        %v1897 = vmul.f32 %v1857, %v1872
        %v1898 = vmul.f32 %v1858, %v1872
        %v1899 = vmul.f32 %v1859, %v1872
        %v1900 = vmul.f32 %v1860, %v1872
        %v1901 = vmul.f32 %v1861, %v1872
        %v1902 = vmul.f32 %v1862, %v1872
        %v1903 = vmul.f32 %v1863, %v1872
        %v1904 = vmul.f32 %v1864, %v1872
        %v1905 = vmul.f32 %v1865, %v1872
        %v1906 = vadd.f32 %v1802, %v1874
        %v1907 = vadd.f32 %v1803, %v1875
        %v1908 = vadd.f32 %v1804, %v1876
        %v1909 = vadd.f32 %v1805, %v1877
        %v1910 = vadd.f32 %v1806, %v1878
        %v1911 = vadd.f32 %v1807, %v1879
        %v1912 = vadd.f32 %v1808, %v1880
        %v1913 = vadd.f32 %v1809, %v1881
        %v1914 = vadd.f32 %v1810, %v1882
        %v1915 = vadd.f32 %v1811, %v1883
        %v1916 = vadd.f32 %v1812, %v1884
        %v1917 = vadd.f32 %v1813, %v1885
        %v1918 = vadd.f32 %v1814, %v1886
        %v1919 = vadd.f32 %v1815, %v1887
        %v1920 = vadd.f32 %v1816, %v1888
        %v1921 = vadd.f32 %v1817, %v1889
        %v1922 = vadd.f32 %v1818, %v1890
        %v1923 = vadd.f32 %v1819, %v1891
        %v1924 = vadd.f32 %v1820, %v1892
        %v1925 = vadd.f32 %v1821, %v1893
        %v1926 = vadd.f32 %v1822, %v1894
        %v1927 = vadd.f32 %v1823, %v1895
        %v1928 = vadd.f32 %v1824, %v1896
        %v1929 = vadd.f32 %v1825, %v1897
        %v1930 = vadd.f32 %v1826, %v1898
        %v1931 = vadd.f32 %v1827, %v1899
        %v1932 = vadd.f32 %v1828, %v1900
        %v1933 = vadd.f32 %v1829, %v1901
        %v1934 = vadd.f32 %v1830, %v1902
        %v1935 = vadd.f32 %v1831, %v1903
        %v1936 = vadd.f32 %v1832, %v1904
        %v1937 = vadd.f32 %v1833, %v1905
        %v1938 = vld [vmem:[%s1625 + $0x3] sm:$0xff]
        %v1939 = vld [vmem:[%s1625 + $0xb] sm:$0xff]
        %v1940 = vld [vmem:[%s1625 + $0x1b] sm:$0xff]
        %v1941 = vld [vmem:[%s1625 + $0x23] sm:$0xff]
        %v1942 = vld [vmem:[%s1625 + $0x33] sm:$0xff]
        %v1943 = vld [vmem:[%s1625 + $0x3b] sm:$0xff]
        %v1944 = vld [vmem:[%s1625 + $0x4b] sm:$0xff]
        %v1945 = vld [vmem:[%s1625 + $0x53] sm:$0xff]
        %v1946 = vld [vmem:[%s1625 + $0x63] sm:$0xff]
        %v1947 = vld [vmem:[%s1625 + $0x6b] sm:$0xff]
        %v1948 = vld [vmem:[%s1625 + $0x7b] sm:$0xff]
        %v1949 = vld [vmem:[%s1625 + $0x83] sm:$0xff]
        %v1950 = vld [vmem:[%s1625 + $0x93] sm:$0xff]
        %v1951 = vld [vmem:[%s1625 + $0x9b] sm:$0xff]
        %v1952 = vld [vmem:[%s1625 + $0xab] sm:$0xff]
        %v1953 = vld [vmem:[%s1625 + $0xb3] sm:$0xff]
        %v1954 = vld [vmem:[%s1625 + $0xc3] sm:$0xff]
        %v1955 = vld [vmem:[%s1625 + $0xcb] sm:$0xff]
        %v1956 = vld [vmem:[%s1625 + $0xdb] sm:$0xff]
        %v1957 = vld [vmem:[%s1625 + $0xe3] sm:$0xff]
        %v1958 = vld [vmem:[%s1625 + $0xf3] sm:$0xff]
        %v1959 = vld [vmem:[%s1625 + $0xfb] sm:$0xff]
        %v1960 = vld [vmem:[%s1625 + $0x10b] sm:$0xff]
        %v1961 = vld [vmem:[%s1625 + $0x113] sm:$0xff]
        %v1962 = vld [vmem:[%s1625 + $0x123] sm:$0xff]
        %v1963 = vld [vmem:[%s1625 + $0x12b] sm:$0xff]
        %v1964 = vld [vmem:[%s1625 + $0x13b] sm:$0xff]
        %v1965 = vld [vmem:[%s1625 + $0x143] sm:$0xff]
        %v1966 = vld [vmem:[%s1625 + $0x153] sm:$0xff]
        %v1967 = vld [vmem:[%s1625 + $0x15b] sm:$0xff]
        %v1968 = vld [vmem:[%s1625 + $0x16b] sm:$0xff]
        %v1969 = vld [vmem:[%s1625 + $0x173] sm:$0xff]
        %s1970 = scalar_lea.vmem %s1, 17
        %v1971 = vld [vmem:[%s1970] sm:$0x1]
        %v1973 = vlaneseq
        %v1974 = vshrl.u32 %v1973, 7
        %v1975 = vsub.s32 0, %v1974
        %v1976 = vrot.slane %v1971, %v1975
        %v1978 = vmul.f32 %v1938, %v1976
        %v1979 = vmul.f32 %v1939, %v1976
        %v1980 = vmul.f32 %v1940, %v1976
        %v1981 = vmul.f32 %v1941, %v1976
        %v1982 = vmul.f32 %v1942, %v1976
        %v1983 = vmul.f32 %v1943, %v1976
        %v1984 = vmul.f32 %v1944, %v1976
        %v1985 = vmul.f32 %v1945, %v1976
        %v1986 = vmul.f32 %v1946, %v1976
        %v1987 = vmul.f32 %v1947, %v1976
        %v1988 = vmul.f32 %v1948, %v1976
        %v1989 = vmul.f32 %v1949, %v1976
        %v1990 = vmul.f32 %v1950, %v1976
        %v1991 = vmul.f32 %v1951, %v1976
        %v1992 = vmul.f32 %v1952, %v1976
        %v1993 = vmul.f32 %v1953, %v1976
        %v1994 = vmul.f32 %v1954, %v1976
        %v1995 = vmul.f32 %v1955, %v1976
        %v1996 = vmul.f32 %v1956, %v1976
        %v1997 = vmul.f32 %v1957, %v1976
        %v1998 = vmul.f32 %v1958, %v1976
        %v1999 = vmul.f32 %v1959, %v1976
        %v2000 = vmul.f32 %v1960, %v1976
        %v2001 = vmul.f32 %v1961, %v1976
        %v2002 = vmul.f32 %v1962, %v1976
        %v2003 = vmul.f32 %v1963, %v1976
        %v2004 = vmul.f32 %v1964, %v1976
        %v2005 = vmul.f32 %v1965, %v1976
        %v2006 = vmul.f32 %v1966, %v1976
        %v2007 = vmul.f32 %v1967, %v1976
        %v2008 = vmul.f32 %v1968, %v1976
        %v2009 = vmul.f32 %v1969, %v1976
        %v2010 = vadd.f32 %v1906, %v1978
        %v2011 = vadd.f32 %v1907, %v1979
        %v2012 = vadd.f32 %v1908, %v1980
        %v2013 = vadd.f32 %v1909, %v1981
        %v2014 = vadd.f32 %v1910, %v1982
        %v2015 = vadd.f32 %v1911, %v1983
        %v2016 = vadd.f32 %v1912, %v1984
        %v2017 = vadd.f32 %v1913, %v1985
        %v2018 = vadd.f32 %v1914, %v1986
        %v2019 = vadd.f32 %v1915, %v1987
        %v2020 = vadd.f32 %v1916, %v1988
        %v2021 = vadd.f32 %v1917, %v1989
        %v2022 = vadd.f32 %v1918, %v1990
        %v2023 = vadd.f32 %v1919, %v1991
        %v2024 = vadd.f32 %v1920, %v1992
        %v2025 = vadd.f32 %v1921, %v1993
        %v2026 = vadd.f32 %v1922, %v1994
        %v2027 = vadd.f32 %v1923, %v1995
        %v2028 = vadd.f32 %v1924, %v1996
        %v2029 = vadd.f32 %v1925, %v1997
        %v2030 = vadd.f32 %v1926, %v1998
        %v2031 = vadd.f32 %v1927, %v1999
        %v2032 = vadd.f32 %v1928, %v2000
        %v2033 = vadd.f32 %v1929, %v2001
        %v2034 = vadd.f32 %v1930, %v2002
        %v2035 = vadd.f32 %v1931, %v2003
        %v2036 = vadd.f32 %v1932, %v2004
        %v2037 = vadd.f32 %v1933, %v2005
        %v2038 = vadd.f32 %v1934, %v2006
        %v2039 = vadd.f32 %v1935, %v2007
        %v2040 = vadd.f32 %v1936, %v2008
        %v2041 = vadd.f32 %v1937, %v2009
        %v2042 = vld [vmem:[%s1625 + $0x4] sm:$0xff]
        %v2043 = vld [vmem:[%s1625 + $0xc] sm:$0xff]
        %v2044 = vld [vmem:[%s1625 + $0x1c] sm:$0xff]
        %v2045 = vld [vmem:[%s1625 + $0x24] sm:$0xff]
        %v2046 = vld [vmem:[%s1625 + $0x34] sm:$0xff]
        %v2047 = vld [vmem:[%s1625 + $0x3c] sm:$0xff]
        %v2048 = vld [vmem:[%s1625 + $0x4c] sm:$0xff]
        %v2049 = vld [vmem:[%s1625 + $0x54] sm:$0xff]
        %v2050 = vld [vmem:[%s1625 + $0x64] sm:$0xff]
        %v2051 = vld [vmem:[%s1625 + $0x6c] sm:$0xff]
        %v2052 = vld [vmem:[%s1625 + $0x7c] sm:$0xff]
        %v2053 = vld [vmem:[%s1625 + $0x84] sm:$0xff]
        %v2054 = vld [vmem:[%s1625 + $0x94] sm:$0xff]
        %v2055 = vld [vmem:[%s1625 + $0x9c] sm:$0xff]
        %v2056 = vld [vmem:[%s1625 + $0xac] sm:$0xff]
        %v2057 = vld [vmem:[%s1625 + $0xb4] sm:$0xff]
        %v2058 = vld [vmem:[%s1625 + $0xc4] sm:$0xff]
        %v2059 = vld [vmem:[%s1625 + $0xcc] sm:$0xff]
        %v2060 = vld [vmem:[%s1625 + $0xdc] sm:$0xff]
        %v2061 = vld [vmem:[%s1625 + $0xe4] sm:$0xff]
        %v2062 = vld [vmem:[%s1625 + $0xf4] sm:$0xff]
        %v2063 = vld [vmem:[%s1625 + $0xfc] sm:$0xff]
        %v2064 = vld [vmem:[%s1625 + $0x10c] sm:$0xff]
        %v2065 = vld [vmem:[%s1625 + $0x114] sm:$0xff]
        %v2066 = vld [vmem:[%s1625 + $0x124] sm:$0xff]
        %v2067 = vld [vmem:[%s1625 + $0x12c] sm:$0xff]
        %v2068 = vld [vmem:[%s1625 + $0x13c] sm:$0xff]
        %v2069 = vld [vmem:[%s1625 + $0x144] sm:$0xff]
        %v2070 = vld [vmem:[%s1625 + $0x154] sm:$0xff]
        %v2071 = vld [vmem:[%s1625 + $0x15c] sm:$0xff]
        %v2072 = vld [vmem:[%s1625 + $0x16c] sm:$0xff]
        %v2073 = vld [vmem:[%s1625 + $0x174] sm:$0xff]
        %s2074 = scalar_lea.vmem %s1, 18
        %v2075 = vld [vmem:[%s2074] sm:$0x1]
        %v2077 = vlaneseq
        %v2078 = vshrl.u32 %v2077, 7
        %v2079 = vsub.s32 0, %v2078
        %v2080 = vrot.slane %v2075, %v2079
        %v2082 = vmul.f32 %v2042, %v2080
        %v2083 = vmul.f32 %v2043, %v2080
        %v2084 = vmul.f32 %v2044, %v2080
        %v2085 = vmul.f32 %v2045, %v2080
        %v2086 = vmul.f32 %v2046, %v2080
        %v2087 = vmul.f32 %v2047, %v2080
        %v2088 = vmul.f32 %v2048, %v2080
        %v2089 = vmul.f32 %v2049, %v2080
        %v2090 = vmul.f32 %v2050, %v2080
        %v2091 = vmul.f32 %v2051, %v2080
        %v2092 = vmul.f32 %v2052, %v2080
        %v2093 = vmul.f32 %v2053, %v2080
        %v2094 = vmul.f32 %v2054, %v2080
        %v2095 = vmul.f32 %v2055, %v2080
        %v2096 = vmul.f32 %v2056, %v2080
        %v2097 = vmul.f32 %v2057, %v2080
        %v2098 = vmul.f32 %v2058, %v2080
        %v2099 = vmul.f32 %v2059, %v2080
        %v2100 = vmul.f32 %v2060, %v2080
        %v2101 = vmul.f32 %v2061, %v2080
        %v2102 = vmul.f32 %v2062, %v2080
        %v2103 = vmul.f32 %v2063, %v2080
        %v2104 = vmul.f32 %v2064, %v2080
        %v2105 = vmul.f32 %v2065, %v2080
        %v2106 = vmul.f32 %v2066, %v2080
        %v2107 = vmul.f32 %v2067, %v2080
        %v2108 = vmul.f32 %v2068, %v2080
        %v2109 = vmul.f32 %v2069, %v2080
        %v2110 = vmul.f32 %v2070, %v2080
        %v2111 = vmul.f32 %v2071, %v2080
        %v2112 = vmul.f32 %v2072, %v2080
        %v2113 = vmul.f32 %v2073, %v2080
        %v2114 = vadd.f32 %v2010, %v2082
        %v2115 = vadd.f32 %v2011, %v2083
        %v2116 = vadd.f32 %v2012, %v2084
        %v2117 = vadd.f32 %v2013, %v2085
        %v2118 = vadd.f32 %v2014, %v2086
        %v2119 = vadd.f32 %v2015, %v2087
        %v2120 = vadd.f32 %v2016, %v2088
        %v2121 = vadd.f32 %v2017, %v2089
        %v2122 = vadd.f32 %v2018, %v2090
        %v2123 = vadd.f32 %v2019, %v2091
        %v2124 = vadd.f32 %v2020, %v2092
        %v2125 = vadd.f32 %v2021, %v2093
        %v2126 = vadd.f32 %v2022, %v2094
        %v2127 = vadd.f32 %v2023, %v2095
        %v2128 = vadd.f32 %v2024, %v2096
        %v2129 = vadd.f32 %v2025, %v2097
        %v2130 = vadd.f32 %v2026, %v2098
        %v2131 = vadd.f32 %v2027, %v2099
        %v2132 = vadd.f32 %v2028, %v2100
        %v2133 = vadd.f32 %v2029, %v2101
        %v2134 = vadd.f32 %v2030, %v2102
        %v2135 = vadd.f32 %v2031, %v2103
        %v2136 = vadd.f32 %v2032, %v2104
        %v2137 = vadd.f32 %v2033, %v2105
        %v2138 = vadd.f32 %v2034, %v2106
        %v2139 = vadd.f32 %v2035, %v2107
        %v2140 = vadd.f32 %v2036, %v2108
        %v2141 = vadd.f32 %v2037, %v2109
        %v2142 = vadd.f32 %v2038, %v2110
        %v2143 = vadd.f32 %v2039, %v2111
        %v2144 = vadd.f32 %v2040, %v2112
        %v2145 = vadd.f32 %v2041, %v2113
        %v2146 = vld [vmem:[%s1625 + $0x5] sm:$0xff]
        %v2147 = vld [vmem:[%s1625 + $0xd] sm:$0xff]
        %v2148 = vld [vmem:[%s1625 + $0x1d] sm:$0xff]
        %v2149 = vld [vmem:[%s1625 + $0x25] sm:$0xff]
        %v2150 = vld [vmem:[%s1625 + $0x35] sm:$0xff]
        %v2151 = vld [vmem:[%s1625 + $0x3d] sm:$0xff]
        %v2152 = vld [vmem:[%s1625 + $0x4d] sm:$0xff]
        %v2153 = vld [vmem:[%s1625 + $0x55] sm:$0xff]
        %v2154 = vld [vmem:[%s1625 + $0x65] sm:$0xff]
        %v2155 = vld [vmem:[%s1625 + $0x6d] sm:$0xff]
        %v2156 = vld [vmem:[%s1625 + $0x7d] sm:$0xff]
        %v2157 = vld [vmem:[%s1625 + $0x85] sm:$0xff]
        %v2158 = vld [vmem:[%s1625 + $0x95] sm:$0xff]
        %v2159 = vld [vmem:[%s1625 + $0x9d] sm:$0xff]
        %v2160 = vld [vmem:[%s1625 + $0xad] sm:$0xff]
        %v2161 = vld [vmem:[%s1625 + $0xb5] sm:$0xff]
        %v2162 = vld [vmem:[%s1625 + $0xc5] sm:$0xff]
        %v2163 = vld [vmem:[%s1625 + $0xcd] sm:$0xff]
        %v2164 = vld [vmem:[%s1625 + $0xdd] sm:$0xff]
        %v2165 = vld [vmem:[%s1625 + $0xe5] sm:$0xff]
        %v2166 = vld [vmem:[%s1625 + $0xf5] sm:$0xff]
        %v2167 = vld [vmem:[%s1625 + $0xfd] sm:$0xff]
        %v2168 = vld [vmem:[%s1625 + $0x10d] sm:$0xff]
        %v2169 = vld [vmem:[%s1625 + $0x115] sm:$0xff]
        %v2170 = vld [vmem:[%s1625 + $0x125] sm:$0xff]
        %v2171 = vld [vmem:[%s1625 + $0x12d] sm:$0xff]
        %v2172 = vld [vmem:[%s1625 + $0x13d] sm:$0xff]
        %v2173 = vld [vmem:[%s1625 + $0x145] sm:$0xff]
        %v2174 = vld [vmem:[%s1625 + $0x155] sm:$0xff]
        %v2175 = vld [vmem:[%s1625 + $0x15d] sm:$0xff]
        %v2176 = vld [vmem:[%s1625 + $0x16d] sm:$0xff]
        %v2177 = vld [vmem:[%s1625 + $0x175] sm:$0xff]
        %s2178 = scalar_lea.vmem %s1, 19
        %v2179 = vld [vmem:[%s2178] sm:$0x1]
        %v2181 = vlaneseq
        %v2182 = vshrl.u32 %v2181, 7
        %v2183 = vsub.s32 0, %v2182
        %v2184 = vrot.slane %v2179, %v2183
        %v2186 = vmul.f32 %v2146, %v2184
        %v2187 = vmul.f32 %v2147, %v2184
        %v2188 = vmul.f32 %v2148, %v2184
        %v2189 = vmul.f32 %v2149, %v2184
        %v2190 = vmul.f32 %v2150, %v2184
        %v2191 = vmul.f32 %v2151, %v2184
        %v2192 = vmul.f32 %v2152, %v2184
        %v2193 = vmul.f32 %v2153, %v2184
        %v2194 = vmul.f32 %v2154, %v2184
        %v2195 = vmul.f32 %v2155, %v2184
        %v2196 = vmul.f32 %v2156, %v2184
        %v2197 = vmul.f32 %v2157, %v2184
        %v2198 = vmul.f32 %v2158, %v2184
        %v2199 = vmul.f32 %v2159, %v2184
        %v2200 = vmul.f32 %v2160, %v2184
        %v2201 = vmul.f32 %v2161, %v2184
        %v2202 = vmul.f32 %v2162, %v2184
        %v2203 = vmul.f32 %v2163, %v2184
        %v2204 = vmul.f32 %v2164, %v2184
        %v2205 = vmul.f32 %v2165, %v2184
        %v2206 = vmul.f32 %v2166, %v2184
        %v2207 = vmul.f32 %v2167, %v2184
        %v2208 = vmul.f32 %v2168, %v2184
        %v2209 = vmul.f32 %v2169, %v2184
        %v2210 = vmul.f32 %v2170, %v2184
        %v2211 = vmul.f32 %v2171, %v2184
        %v2212 = vmul.f32 %v2172, %v2184
        %v2213 = vmul.f32 %v2173, %v2184
        %v2214 = vmul.f32 %v2174, %v2184
        %v2215 = vmul.f32 %v2175, %v2184
        %v2216 = vmul.f32 %v2176, %v2184
        %v2217 = vmul.f32 %v2177, %v2184
        %v2218 = vadd.f32 %v2114, %v2186
        %v2219 = vadd.f32 %v2115, %v2187
        %v2220 = vadd.f32 %v2116, %v2188
        %v2221 = vadd.f32 %v2117, %v2189
        %v2222 = vadd.f32 %v2118, %v2190
        %v2223 = vadd.f32 %v2119, %v2191
        %v2224 = vadd.f32 %v2120, %v2192
        %v2225 = vadd.f32 %v2121, %v2193
        %v2226 = vadd.f32 %v2122, %v2194
        %v2227 = vadd.f32 %v2123, %v2195
        %v2228 = vadd.f32 %v2124, %v2196
        %v2229 = vadd.f32 %v2125, %v2197
        %v2230 = vadd.f32 %v2126, %v2198
        %v2231 = vadd.f32 %v2127, %v2199
        %v2232 = vadd.f32 %v2128, %v2200
        %v2233 = vadd.f32 %v2129, %v2201
        %v2234 = vadd.f32 %v2130, %v2202
        %v2235 = vadd.f32 %v2131, %v2203
        %v2236 = vadd.f32 %v2132, %v2204
        %v2237 = vadd.f32 %v2133, %v2205
        %v2238 = vadd.f32 %v2134, %v2206
        %v2239 = vadd.f32 %v2135, %v2207
        %v2240 = vadd.f32 %v2136, %v2208
        %v2241 = vadd.f32 %v2137, %v2209
        %v2242 = vadd.f32 %v2138, %v2210
        %v2243 = vadd.f32 %v2139, %v2211
        %v2244 = vadd.f32 %v2140, %v2212
        %v2245 = vadd.f32 %v2141, %v2213
        %v2246 = vadd.f32 %v2142, %v2214
        %v2247 = vadd.f32 %v2143, %v2215
        %v2248 = vadd.f32 %v2144, %v2216
        %v2249 = vadd.f32 %v2145, %v2217
        %v2250 = vld [vmem:[%s1625 + $0x6] sm:$0xff]
        %v2251 = vld [vmem:[%s1625 + $0xe] sm:$0xff]
        %v2252 = vld [vmem:[%s1625 + $0x1e] sm:$0xff]
        %v2253 = vld [vmem:[%s1625 + $0x26] sm:$0xff]
        %v2254 = vld [vmem:[%s1625 + $0x36] sm:$0xff]
        %v2255 = vld [vmem:[%s1625 + $0x3e] sm:$0xff]
        %v2256 = vld [vmem:[%s1625 + $0x4e] sm:$0xff]
        %v2257 = vld [vmem:[%s1625 + $0x56] sm:$0xff]
        %v2258 = vld [vmem:[%s1625 + $0x66] sm:$0xff]
        %v2259 = vld [vmem:[%s1625 + $0x6e] sm:$0xff]
        %v2260 = vld [vmem:[%s1625 + $0x7e] sm:$0xff]
        %v2261 = vld [vmem:[%s1625 + $0x86] sm:$0xff]
        %v2262 = vld [vmem:[%s1625 + $0x96] sm:$0xff]
        %v2263 = vld [vmem:[%s1625 + $0x9e] sm:$0xff]
        %v2264 = vld [vmem:[%s1625 + $0xae] sm:$0xff]
        %v2265 = vld [vmem:[%s1625 + $0xb6] sm:$0xff]
        %v2266 = vld [vmem:[%s1625 + $0xc6] sm:$0xff]
        %v2267 = vld [vmem:[%s1625 + $0xce] sm:$0xff]
        %v2268 = vld [vmem:[%s1625 + $0xde] sm:$0xff]
        %v2269 = vld [vmem:[%s1625 + $0xe6] sm:$0xff]
        %v2270 = vld [vmem:[%s1625 + $0xf6] sm:$0xff]
        %v2271 = vld [vmem:[%s1625 + $0xfe] sm:$0xff]
        %v2272 = vld [vmem:[%s1625 + $0x10e] sm:$0xff]
        %v2273 = vld [vmem:[%s1625 + $0x116] sm:$0xff]
        %v2274 = vld [vmem:[%s1625 + $0x126] sm:$0xff]
        %v2275 = vld [vmem:[%s1625 + $0x12e] sm:$0xff]
        %v2276 = vld [vmem:[%s1625 + $0x13e] sm:$0xff]
        %v2277 = vld [vmem:[%s1625 + $0x146] sm:$0xff]
        %v2278 = vld [vmem:[%s1625 + $0x156] sm:$0xff]
        %v2279 = vld [vmem:[%s1625 + $0x15e] sm:$0xff]
        %v2280 = vld [vmem:[%s1625 + $0x16e] sm:$0xff]
        %v2281 = vld [vmem:[%s1625 + $0x176] sm:$0xff]
        %s2282 = scalar_lea.vmem %s1, 20
        %v2283 = vld [vmem:[%s2282] sm:$0x1]
        %v2285 = vlaneseq
        %v2286 = vshrl.u32 %v2285, 7
        %v2287 = vsub.s32 0, %v2286
        %v2288 = vrot.slane %v2283, %v2287
        %v2290 = vmul.f32 %v2250, %v2288
        %v2291 = vmul.f32 %v2251, %v2288
        %v2292 = vmul.f32 %v2252, %v2288
        %v2293 = vmul.f32 %v2253, %v2288
        %v2294 = vmul.f32 %v2254, %v2288
        %v2295 = vmul.f32 %v2255, %v2288
        %v2296 = vmul.f32 %v2256, %v2288
        %v2297 = vmul.f32 %v2257, %v2288
        %v2298 = vmul.f32 %v2258, %v2288
        %v2299 = vmul.f32 %v2259, %v2288
        %v2300 = vmul.f32 %v2260, %v2288
        %v2301 = vmul.f32 %v2261, %v2288
        %v2302 = vmul.f32 %v2262, %v2288
        %v2303 = vmul.f32 %v2263, %v2288
        %v2304 = vmul.f32 %v2264, %v2288
        %v2305 = vmul.f32 %v2265, %v2288
        %v2306 = vmul.f32 %v2266, %v2288
        %v2307 = vmul.f32 %v2267, %v2288
        %v2308 = vmul.f32 %v2268, %v2288
        %v2309 = vmul.f32 %v2269, %v2288
        %v2310 = vmul.f32 %v2270, %v2288
        %v2311 = vmul.f32 %v2271, %v2288
        %v2312 = vmul.f32 %v2272, %v2288
        %v2313 = vmul.f32 %v2273, %v2288
        %v2314 = vmul.f32 %v2274, %v2288
        %v2315 = vmul.f32 %v2275, %v2288
        %v2316 = vmul.f32 %v2276, %v2288
        %v2317 = vmul.f32 %v2277, %v2288
        %v2318 = vmul.f32 %v2278, %v2288
        %v2319 = vmul.f32 %v2279, %v2288
        %v2320 = vmul.f32 %v2280, %v2288
        %v2321 = vmul.f32 %v2281, %v2288
        %v2322 = vadd.f32 %v2218, %v2290
        %v2323 = vadd.f32 %v2219, %v2291
        %v2324 = vadd.f32 %v2220, %v2292
        %v2325 = vadd.f32 %v2221, %v2293
        %v2326 = vadd.f32 %v2222, %v2294
        %v2327 = vadd.f32 %v2223, %v2295
        %v2328 = vadd.f32 %v2224, %v2296
        %v2329 = vadd.f32 %v2225, %v2297
        %v2330 = vadd.f32 %v2226, %v2298
        %v2331 = vadd.f32 %v2227, %v2299
        %v2332 = vadd.f32 %v2228, %v2300
        %v2333 = vadd.f32 %v2229, %v2301
        %v2334 = vadd.f32 %v2230, %v2302
        %v2335 = vadd.f32 %v2231, %v2303
        %v2336 = vadd.f32 %v2232, %v2304
        %v2337 = vadd.f32 %v2233, %v2305
        %v2338 = vadd.f32 %v2234, %v2306
        %v2339 = vadd.f32 %v2235, %v2307
        %v2340 = vadd.f32 %v2236, %v2308
        %v2341 = vadd.f32 %v2237, %v2309
        %v2342 = vadd.f32 %v2238, %v2310
        %v2343 = vadd.f32 %v2239, %v2311
        %v2344 = vadd.f32 %v2240, %v2312
        %v2345 = vadd.f32 %v2241, %v2313
        %v2346 = vadd.f32 %v2242, %v2314
        %v2347 = vadd.f32 %v2243, %v2315
        %v2348 = vadd.f32 %v2244, %v2316
        %v2349 = vadd.f32 %v2245, %v2317
        %v2350 = vadd.f32 %v2246, %v2318
        %v2351 = vadd.f32 %v2247, %v2319
        %v2352 = vadd.f32 %v2248, %v2320
        %v2353 = vadd.f32 %v2249, %v2321
        %s2354 = scalar_lea.vmem %s168, 72
        %v2355 = vld [vmem:[%s2354] sm:$0xff]
        %v2356 = vld [vmem:[%s2354 + $0x8] sm:$0xff]
        %v2357 = vld [vmem:[%s2354 + $0x18] sm:$0xff]
        %v2358 = vld [vmem:[%s2354 + $0x20] sm:$0xff]
        %v2359 = vld [vmem:[%s2354 + $0x30] sm:$0xff]
        %v2360 = vld [vmem:[%s2354 + $0x38] sm:$0xff]
        %v2361 = vld [vmem:[%s2354 + $0x48] sm:$0xff]
        %v2362 = vld [vmem:[%s2354 + $0x50] sm:$0xff]
        %v2363 = vld [vmem:[%s2354 + $0x60] sm:$0xff]
        %v2364 = vld [vmem:[%s2354 + $0x68] sm:$0xff]
        %v2365 = vld [vmem:[%s2354 + $0x78] sm:$0xff]
        %v2366 = vld [vmem:[%s2354 + $0x80] sm:$0xff]
        %v2367 = vld [vmem:[%s2354 + $0x90] sm:$0xff]
        %v2368 = vld [vmem:[%s2354 + $0x98] sm:$0xff]
        %v2369 = vld [vmem:[%s2354 + $0xa8] sm:$0xff]
        %v2370 = vld [vmem:[%s2354 + $0xb0] sm:$0xff]
        %v2371 = vld [vmem:[%s2354 + $0xc0] sm:$0xff]
        %v2372 = vld [vmem:[%s2354 + $0xc8] sm:$0xff]
        %v2373 = vld [vmem:[%s2354 + $0xd8] sm:$0xff]
        %v2374 = vld [vmem:[%s2354 + $0xe0] sm:$0xff]
        %v2375 = vld [vmem:[%s2354 + $0xf0] sm:$0xff]
        %v2376 = vld [vmem:[%s2354 + $0xf8] sm:$0xff]
        %v2377 = vld [vmem:[%s2354 + $0x108] sm:$0xff]
        %v2378 = vld [vmem:[%s2354 + $0x110] sm:$0xff]
        %v2379 = vld [vmem:[%s2354 + $0x120] sm:$0xff]
        %v2380 = vld [vmem:[%s2354 + $0x128] sm:$0xff]
        %v2381 = vld [vmem:[%s2354 + $0x138] sm:$0xff]
        %v2382 = vld [vmem:[%s2354 + $0x140] sm:$0xff]
        %v2383 = vld [vmem:[%s2354 + $0x150] sm:$0xff]
        %v2384 = vld [vmem:[%s2354 + $0x158] sm:$0xff]
        %v2385 = vld [vmem:[%s2354 + $0x168] sm:$0xff]
        %v2386 = vld [vmem:[%s2354 + $0x170] sm:$0xff]
        %s2387 = scalar_lea.vmem %s1, 21
        %v2388 = vld [vmem:[%s2387] sm:$0x1]
        %v2390 = vlaneseq
        %v2391 = vshrl.u32 %v2390, 7
        %v2392 = vsub.s32 0, %v2391
        %v2393 = vrot.slane %v2388, %v2392
        %v2395 = vmul.f32 %v2355, %v2393
        %v2396 = vmul.f32 %v2356, %v2393
        %v2397 = vmul.f32 %v2357, %v2393
        %v2398 = vmul.f32 %v2358, %v2393
        %v2399 = vmul.f32 %v2359, %v2393
        %v2400 = vmul.f32 %v2360, %v2393
        %v2401 = vmul.f32 %v2361, %v2393
        %v2402 = vmul.f32 %v2362, %v2393
        %v2403 = vmul.f32 %v2363, %v2393
        %v2404 = vmul.f32 %v2364, %v2393
        %v2405 = vmul.f32 %v2365, %v2393
        %v2406 = vmul.f32 %v2366, %v2393
        %v2407 = vmul.f32 %v2367, %v2393
        %v2408 = vmul.f32 %v2368, %v2393
        %v2409 = vmul.f32 %v2369, %v2393
        %v2410 = vmul.f32 %v2370, %v2393
        %v2411 = vmul.f32 %v2371, %v2393
        %v2412 = vmul.f32 %v2372, %v2393
        %v2413 = vmul.f32 %v2373, %v2393
        %v2414 = vmul.f32 %v2374, %v2393
        %v2415 = vmul.f32 %v2375, %v2393
        %v2416 = vmul.f32 %v2376, %v2393
        %v2417 = vmul.f32 %v2377, %v2393
        %v2418 = vmul.f32 %v2378, %v2393
        %v2419 = vmul.f32 %v2379, %v2393
        %v2420 = vmul.f32 %v2380, %v2393
        %v2421 = vmul.f32 %v2381, %v2393
        %v2422 = vmul.f32 %v2382, %v2393
        %v2423 = vmul.f32 %v2383, %v2393
        %v2424 = vmul.f32 %v2384, %v2393
        %v2425 = vmul.f32 %v2385, %v2393
        %v2426 = vmul.f32 %v2386, %v2393
        %v2427 = vadd.f32 %v2322, %v2395
        %v2428 = vadd.f32 %v2323, %v2396
        %v2429 = vadd.f32 %v2324, %v2397
        %v2430 = vadd.f32 %v2325, %v2398
        %v2431 = vadd.f32 %v2326, %v2399
        %v2432 = vadd.f32 %v2327, %v2400
        %v2433 = vadd.f32 %v2328, %v2401
        %v2434 = vadd.f32 %v2329, %v2402
        %v2435 = vadd.f32 %v2330, %v2403
        %v2436 = vadd.f32 %v2331, %v2404
        %v2437 = vadd.f32 %v2332, %v2405
        %v2438 = vadd.f32 %v2333, %v2406
        %v2439 = vadd.f32 %v2334, %v2407
        %v2440 = vadd.f32 %v2335, %v2408
        %v2441 = vadd.f32 %v2336, %v2409
        %v2442 = vadd.f32 %v2337, %v2410
        %v2443 = vadd.f32 %v2338, %v2411
        %v2444 = vadd.f32 %v2339, %v2412
        %v2445 = vadd.f32 %v2340, %v2413
        %v2446 = vadd.f32 %v2341, %v2414
        %v2447 = vadd.f32 %v2342, %v2415
        %v2448 = vadd.f32 %v2343, %v2416
        %v2449 = vadd.f32 %v2344, %v2417
        %v2450 = vadd.f32 %v2345, %v2418
        %v2451 = vadd.f32 %v2346, %v2419
        %v2452 = vadd.f32 %v2347, %v2420
        %v2453 = vadd.f32 %v2348, %v2421
        %v2454 = vadd.f32 %v2349, %v2422
        %v2455 = vadd.f32 %v2350, %v2423
        %v2456 = vadd.f32 %v2351, %v2424
        %v2457 = vadd.f32 %v2352, %v2425
        %v2458 = vadd.f32 %v2353, %v2426
        %v2459 = vld [vmem:[%s2354 + $0x1] sm:$0xff]
        %v2460 = vld [vmem:[%s2354 + $0x9] sm:$0xff]
        %v2461 = vld [vmem:[%s2354 + $0x19] sm:$0xff]
        %v2462 = vld [vmem:[%s2354 + $0x21] sm:$0xff]
        %v2463 = vld [vmem:[%s2354 + $0x31] sm:$0xff]
        %v2464 = vld [vmem:[%s2354 + $0x39] sm:$0xff]
        %v2465 = vld [vmem:[%s2354 + $0x49] sm:$0xff]
        %v2466 = vld [vmem:[%s2354 + $0x51] sm:$0xff]
        %v2467 = vld [vmem:[%s2354 + $0x61] sm:$0xff]
        %v2468 = vld [vmem:[%s2354 + $0x69] sm:$0xff]
        %v2469 = vld [vmem:[%s2354 + $0x79] sm:$0xff]
        %v2470 = vld [vmem:[%s2354 + $0x81] sm:$0xff]
        %v2471 = vld [vmem:[%s2354 + $0x91] sm:$0xff]
        %v2472 = vld [vmem:[%s2354 + $0x99] sm:$0xff]
        %v2473 = vld [vmem:[%s2354 + $0xa9] sm:$0xff]
        %v2474 = vld [vmem:[%s2354 + $0xb1] sm:$0xff]
        %v2475 = vld [vmem:[%s2354 + $0xc1] sm:$0xff]
        %v2476 = vld [vmem:[%s2354 + $0xc9] sm:$0xff]
        %v2477 = vld [vmem:[%s2354 + $0xd9] sm:$0xff]
        %v2478 = vld [vmem:[%s2354 + $0xe1] sm:$0xff]
        %v2479 = vld [vmem:[%s2354 + $0xf1] sm:$0xff]
        %v2480 = vld [vmem:[%s2354 + $0xf9] sm:$0xff]
        %v2481 = vld [vmem:[%s2354 + $0x109] sm:$0xff]
        %v2482 = vld [vmem:[%s2354 + $0x111] sm:$0xff]
        %v2483 = vld [vmem:[%s2354 + $0x121] sm:$0xff]
        %v2484 = vld [vmem:[%s2354 + $0x129] sm:$0xff]
        %v2485 = vld [vmem:[%s2354 + $0x139] sm:$0xff]
        %v2486 = vld [vmem:[%s2354 + $0x141] sm:$0xff]
        %v2487 = vld [vmem:[%s2354 + $0x151] sm:$0xff]
        %v2488 = vld [vmem:[%s2354 + $0x159] sm:$0xff]
        %v2489 = vld [vmem:[%s2354 + $0x169] sm:$0xff]
        %v2490 = vld [vmem:[%s2354 + $0x171] sm:$0xff]
        %s2491 = scalar_lea.vmem %s1, 22
        %v2492 = vld [vmem:[%s2491] sm:$0x1]
        %v2494 = vlaneseq
        %v2495 = vshrl.u32 %v2494, 7
        %v2496 = vsub.s32 0, %v2495
        %v2497 = vrot.slane %v2492, %v2496
        %v2499 = vmul.f32 %v2459, %v2497
        %v2500 = vmul.f32 %v2460, %v2497
        %v2501 = vmul.f32 %v2461, %v2497
        %v2502 = vmul.f32 %v2462, %v2497
        %v2503 = vmul.f32 %v2463, %v2497
        %v2504 = vmul.f32 %v2464, %v2497
        %v2505 = vmul.f32 %v2465, %v2497
        %v2506 = vmul.f32 %v2466, %v2497
        %v2507 = vmul.f32 %v2467, %v2497
        %v2508 = vmul.f32 %v2468, %v2497
        %v2509 = vmul.f32 %v2469, %v2497
        %v2510 = vmul.f32 %v2470, %v2497
        %v2511 = vmul.f32 %v2471, %v2497
        %v2512 = vmul.f32 %v2472, %v2497
        %v2513 = vmul.f32 %v2473, %v2497
        %v2514 = vmul.f32 %v2474, %v2497
        %v2515 = vmul.f32 %v2475, %v2497
        %v2516 = vmul.f32 %v2476, %v2497
        %v2517 = vmul.f32 %v2477, %v2497
        %v2518 = vmul.f32 %v2478, %v2497
        %v2519 = vmul.f32 %v2479, %v2497
        %v2520 = vmul.f32 %v2480, %v2497
        %v2521 = vmul.f32 %v2481, %v2497
        %v2522 = vmul.f32 %v2482, %v2497
        %v2523 = vmul.f32 %v2483, %v2497
        %v2524 = vmul.f32 %v2484, %v2497
        %v2525 = vmul.f32 %v2485, %v2497
        %v2526 = vmul.f32 %v2486, %v2497
        %v2527 = vmul.f32 %v2487, %v2497
        %v2528 = vmul.f32 %v2488, %v2497
        %v2529 = vmul.f32 %v2489, %v2497
        %v2530 = vmul.f32 %v2490, %v2497
        %v2531 = vadd.f32 %v2427, %v2499
        %v2532 = vadd.f32 %v2428, %v2500
        %v2533 = vadd.f32 %v2429, %v2501
        %v2534 = vadd.f32 %v2430, %v2502
        %v2535 = vadd.f32 %v2431, %v2503
        %v2536 = vadd.f32 %v2432, %v2504
        %v2537 = vadd.f32 %v2433, %v2505
        %v2538 = vadd.f32 %v2434, %v2506
        %v2539 = vadd.f32 %v2435, %v2507
        %v2540 = vadd.f32 %v2436, %v2508
        %v2541 = vadd.f32 %v2437, %v2509
        %v2542 = vadd.f32 %v2438, %v2510
        %v2543 = vadd.f32 %v2439, %v2511
        %v2544 = vadd.f32 %v2440, %v2512
        %v2545 = vadd.f32 %v2441, %v2513
        %v2546 = vadd.f32 %v2442, %v2514
        %v2547 = vadd.f32 %v2443, %v2515
        %v2548 = vadd.f32 %v2444, %v2516
        %v2549 = vadd.f32 %v2445, %v2517
        %v2550 = vadd.f32 %v2446, %v2518
        %v2551 = vadd.f32 %v2447, %v2519
        %v2552 = vadd.f32 %v2448, %v2520
        %v2553 = vadd.f32 %v2449, %v2521
        %v2554 = vadd.f32 %v2450, %v2522
        %v2555 = vadd.f32 %v2451, %v2523
        %v2556 = vadd.f32 %v2452, %v2524
        %v2557 = vadd.f32 %v2453, %v2525
        %v2558 = vadd.f32 %v2454, %v2526
        %v2559 = vadd.f32 %v2455, %v2527
        %v2560 = vadd.f32 %v2456, %v2528
        %v2561 = vadd.f32 %v2457, %v2529
        %v2562 = vadd.f32 %v2458, %v2530
        %v2563 = vld [vmem:[%s2354 + $0x2] sm:$0xff]
        %v2564 = vld [vmem:[%s2354 + $0xa] sm:$0xff]
        %v2565 = vld [vmem:[%s2354 + $0x1a] sm:$0xff]
        %v2566 = vld [vmem:[%s2354 + $0x22] sm:$0xff]
        %v2567 = vld [vmem:[%s2354 + $0x32] sm:$0xff]
        %v2568 = vld [vmem:[%s2354 + $0x3a] sm:$0xff]
        %v2569 = vld [vmem:[%s2354 + $0x4a] sm:$0xff]
        %v2570 = vld [vmem:[%s2354 + $0x52] sm:$0xff]
        %v2571 = vld [vmem:[%s2354 + $0x62] sm:$0xff]
        %v2572 = vld [vmem:[%s2354 + $0x6a] sm:$0xff]
        %v2573 = vld [vmem:[%s2354 + $0x7a] sm:$0xff]
        %v2574 = vld [vmem:[%s2354 + $0x82] sm:$0xff]
        %v2575 = vld [vmem:[%s2354 + $0x92] sm:$0xff]
        %v2576 = vld [vmem:[%s2354 + $0x9a] sm:$0xff]
        %v2577 = vld [vmem:[%s2354 + $0xaa] sm:$0xff]
        %v2578 = vld [vmem:[%s2354 + $0xb2] sm:$0xff]
        %v2579 = vld [vmem:[%s2354 + $0xc2] sm:$0xff]
        %v2580 = vld [vmem:[%s2354 + $0xca] sm:$0xff]
        %v2581 = vld [vmem:[%s2354 + $0xda] sm:$0xff]
        %v2582 = vld [vmem:[%s2354 + $0xe2] sm:$0xff]
        %v2583 = vld [vmem:[%s2354 + $0xf2] sm:$0xff]
        %v2584 = vld [vmem:[%s2354 + $0xfa] sm:$0xff]
        %v2585 = vld [vmem:[%s2354 + $0x10a] sm:$0xff]
        %v2586 = vld [vmem:[%s2354 + $0x112] sm:$0xff]
        %v2587 = vld [vmem:[%s2354 + $0x122] sm:$0xff]
        %v2588 = vld [vmem:[%s2354 + $0x12a] sm:$0xff]
        %v2589 = vld [vmem:[%s2354 + $0x13a] sm:$0xff]
        %v2590 = vld [vmem:[%s2354 + $0x142] sm:$0xff]
        %v2591 = vld [vmem:[%s2354 + $0x152] sm:$0xff]
        %v2592 = vld [vmem:[%s2354 + $0x15a] sm:$0xff]
        %v2593 = vld [vmem:[%s2354 + $0x16a] sm:$0xff]
        %v2594 = vld [vmem:[%s2354 + $0x172] sm:$0xff]
        %s2595 = scalar_lea.vmem %s1, 23
        %v2596 = vld [vmem:[%s2595] sm:$0x1]
        %v2598 = vlaneseq
        %v2599 = vshrl.u32 %v2598, 7
        %v2600 = vsub.s32 0, %v2599
        %v2601 = vrot.slane %v2596, %v2600
        %v2603 = vmul.f32 %v2563, %v2601
        %v2604 = vmul.f32 %v2564, %v2601
        %v2605 = vmul.f32 %v2565, %v2601
        %v2606 = vmul.f32 %v2566, %v2601
        %v2607 = vmul.f32 %v2567, %v2601
        %v2608 = vmul.f32 %v2568, %v2601
        %v2609 = vmul.f32 %v2569, %v2601
        %v2610 = vmul.f32 %v2570, %v2601
        %v2611 = vmul.f32 %v2571, %v2601
        %v2612 = vmul.f32 %v2572, %v2601
        %v2613 = vmul.f32 %v2573, %v2601
        %v2614 = vmul.f32 %v2574, %v2601
        %v2615 = vmul.f32 %v2575, %v2601
        %v2616 = vmul.f32 %v2576, %v2601
        %v2617 = vmul.f32 %v2577, %v2601
        %v2618 = vmul.f32 %v2578, %v2601
        %v2619 = vmul.f32 %v2579, %v2601
        %v2620 = vmul.f32 %v2580, %v2601
        %v2621 = vmul.f32 %v2581, %v2601
        %v2622 = vmul.f32 %v2582, %v2601
        %v2623 = vmul.f32 %v2583, %v2601
        %v2624 = vmul.f32 %v2584, %v2601
        %v2625 = vmul.f32 %v2585, %v2601
        %v2626 = vmul.f32 %v2586, %v2601
        %v2627 = vmul.f32 %v2587, %v2601
        %v2628 = vmul.f32 %v2588, %v2601
        %v2629 = vmul.f32 %v2589, %v2601
        %v2630 = vmul.f32 %v2590, %v2601
        %v2631 = vmul.f32 %v2591, %v2601
        %v2632 = vmul.f32 %v2592, %v2601
        %v2633 = vmul.f32 %v2593, %v2601
        %v2634 = vmul.f32 %v2594, %v2601
        %v2635 = vadd.f32 %v2531, %v2603
        %v2636 = vadd.f32 %v2532, %v2604
        %v2637 = vadd.f32 %v2533, %v2605
        %v2638 = vadd.f32 %v2534, %v2606
        %v2639 = vadd.f32 %v2535, %v2607
        %v2640 = vadd.f32 %v2536, %v2608
        %v2641 = vadd.f32 %v2537, %v2609
        %v2642 = vadd.f32 %v2538, %v2610
        %v2643 = vadd.f32 %v2539, %v2611
        %v2644 = vadd.f32 %v2540, %v2612
        %v2645 = vadd.f32 %v2541, %v2613
        %v2646 = vadd.f32 %v2542, %v2614
        %v2647 = vadd.f32 %v2543, %v2615
        %v2648 = vadd.f32 %v2544, %v2616
        %v2649 = vadd.f32 %v2545, %v2617
        %v2650 = vadd.f32 %v2546, %v2618
        %v2651 = vadd.f32 %v2547, %v2619
        %v2652 = vadd.f32 %v2548, %v2620
        %v2653 = vadd.f32 %v2549, %v2621
        %v2654 = vadd.f32 %v2550, %v2622
        %v2655 = vadd.f32 %v2551, %v2623
        %v2656 = vadd.f32 %v2552, %v2624
        %v2657 = vadd.f32 %v2553, %v2625
        %v2658 = vadd.f32 %v2554, %v2626
        %v2659 = vadd.f32 %v2555, %v2627
        %v2660 = vadd.f32 %v2556, %v2628
        %v2661 = vadd.f32 %v2557, %v2629
        %v2662 = vadd.f32 %v2558, %v2630
        %v2663 = vadd.f32 %v2559, %v2631
        %v2664 = vadd.f32 %v2560, %v2632
        %v2665 = vadd.f32 %v2561, %v2633
        %v2666 = vadd.f32 %v2562, %v2634
        %v2667 = vld [vmem:[%s2354 + $0x3] sm:$0xff]
        %v2668 = vld [vmem:[%s2354 + $0xb] sm:$0xff]
        %v2669 = vld [vmem:[%s2354 + $0x1b] sm:$0xff]
        %v2670 = vld [vmem:[%s2354 + $0x23] sm:$0xff]
        %v2671 = vld [vmem:[%s2354 + $0x33] sm:$0xff]
        %v2672 = vld [vmem:[%s2354 + $0x3b] sm:$0xff]
        %v2673 = vld [vmem:[%s2354 + $0x4b] sm:$0xff]
        %v2674 = vld [vmem:[%s2354 + $0x53] sm:$0xff]
        %v2675 = vld [vmem:[%s2354 + $0x63] sm:$0xff]
        %v2676 = vld [vmem:[%s2354 + $0x6b] sm:$0xff]
        %v2677 = vld [vmem:[%s2354 + $0x7b] sm:$0xff]
        %v2678 = vld [vmem:[%s2354 + $0x83] sm:$0xff]
        %v2679 = vld [vmem:[%s2354 + $0x93] sm:$0xff]
        %v2680 = vld [vmem:[%s2354 + $0x9b] sm:$0xff]
        %v2681 = vld [vmem:[%s2354 + $0xab] sm:$0xff]
        %v2682 = vld [vmem:[%s2354 + $0xb3] sm:$0xff]
        %v2683 = vld [vmem:[%s2354 + $0xc3] sm:$0xff]
        %v2684 = vld [vmem:[%s2354 + $0xcb] sm:$0xff]
        %v2685 = vld [vmem:[%s2354 + $0xdb] sm:$0xff]
        %v2686 = vld [vmem:[%s2354 + $0xe3] sm:$0xff]
        %v2687 = vld [vmem:[%s2354 + $0xf3] sm:$0xff]
        %v2688 = vld [vmem:[%s2354 + $0xfb] sm:$0xff]
        %v2689 = vld [vmem:[%s2354 + $0x10b] sm:$0xff]
        %v2690 = vld [vmem:[%s2354 + $0x113] sm:$0xff]
        %v2691 = vld [vmem:[%s2354 + $0x123] sm:$0xff]
        %v2692 = vld [vmem:[%s2354 + $0x12b] sm:$0xff]
        %v2693 = vld [vmem:[%s2354 + $0x13b] sm:$0xff]
        %v2694 = vld [vmem:[%s2354 + $0x143] sm:$0xff]
        %v2695 = vld [vmem:[%s2354 + $0x153] sm:$0xff]
        %v2696 = vld [vmem:[%s2354 + $0x15b] sm:$0xff]
        %v2697 = vld [vmem:[%s2354 + $0x16b] sm:$0xff]
        %v2698 = vld [vmem:[%s2354 + $0x173] sm:$0xff]
        %s2699 = scalar_lea.vmem %s1, 24
        %v2700 = vld [vmem:[%s2699] sm:$0x1]
        %v2702 = vlaneseq
        %v2703 = vshrl.u32 %v2702, 7
        %v2704 = vsub.s32 0, %v2703
        %v2705 = vrot.slane %v2700, %v2704
        %v2707 = vmul.f32 %v2667, %v2705
        %v2708 = vmul.f32 %v2668, %v2705
        %v2709 = vmul.f32 %v2669, %v2705
        %v2710 = vmul.f32 %v2670, %v2705
        %v2711 = vmul.f32 %v2671, %v2705
        %v2712 = vmul.f32 %v2672, %v2705
        %v2713 = vmul.f32 %v2673, %v2705
        %v2714 = vmul.f32 %v2674, %v2705
        %v2715 = vmul.f32 %v2675, %v2705
        %v2716 = vmul.f32 %v2676, %v2705
        %v2717 = vmul.f32 %v2677, %v2705
        %v2718 = vmul.f32 %v2678, %v2705
        %v2719 = vmul.f32 %v2679, %v2705
        %v2720 = vmul.f32 %v2680, %v2705
        %v2721 = vmul.f32 %v2681, %v2705
        %v2722 = vmul.f32 %v2682, %v2705
        %v2723 = vmul.f32 %v2683, %v2705
        %v2724 = vmul.f32 %v2684, %v2705
        %v2725 = vmul.f32 %v2685, %v2705
        %v2726 = vmul.f32 %v2686, %v2705
        %v2727 = vmul.f32 %v2687, %v2705
        %v2728 = vmul.f32 %v2688, %v2705
        %v2729 = vmul.f32 %v2689, %v2705
        %v2730 = vmul.f32 %v2690, %v2705
        %v2731 = vmul.f32 %v2691, %v2705
        %v2732 = vmul.f32 %v2692, %v2705
        %v2733 = vmul.f32 %v2693, %v2705
        %v2734 = vmul.f32 %v2694, %v2705
        %v2735 = vmul.f32 %v2695, %v2705
        %v2736 = vmul.f32 %v2696, %v2705
        %v2737 = vmul.f32 %v2697, %v2705
        %v2738 = vmul.f32 %v2698, %v2705
        %v2739 = vadd.f32 %v2635, %v2707
        %v2740 = vadd.f32 %v2636, %v2708
        %v2741 = vadd.f32 %v2637, %v2709
        %v2742 = vadd.f32 %v2638, %v2710
        %v2743 = vadd.f32 %v2639, %v2711
        %v2744 = vadd.f32 %v2640, %v2712
        %v2745 = vadd.f32 %v2641, %v2713
        %v2746 = vadd.f32 %v2642, %v2714
        %v2747 = vadd.f32 %v2643, %v2715
        %v2748 = vadd.f32 %v2644, %v2716
        %v2749 = vadd.f32 %v2645, %v2717
        %v2750 = vadd.f32 %v2646, %v2718
        %v2751 = vadd.f32 %v2647, %v2719
        %v2752 = vadd.f32 %v2648, %v2720
        %v2753 = vadd.f32 %v2649, %v2721
        %v2754 = vadd.f32 %v2650, %v2722
        %v2755 = vadd.f32 %v2651, %v2723
        %v2756 = vadd.f32 %v2652, %v2724
        %v2757 = vadd.f32 %v2653, %v2725
        %v2758 = vadd.f32 %v2654, %v2726
        %v2759 = vadd.f32 %v2655, %v2727
        %v2760 = vadd.f32 %v2656, %v2728
        %v2761 = vadd.f32 %v2657, %v2729
        %v2762 = vadd.f32 %v2658, %v2730
        %v2763 = vadd.f32 %v2659, %v2731
        %v2764 = vadd.f32 %v2660, %v2732
        %v2765 = vadd.f32 %v2661, %v2733
        %v2766 = vadd.f32 %v2662, %v2734
        %v2767 = vadd.f32 %v2663, %v2735
        %v2768 = vadd.f32 %v2664, %v2736
        %v2769 = vadd.f32 %v2665, %v2737
        %v2770 = vadd.f32 %v2666, %v2738
        %v2771 = vld [vmem:[%s2354 + $0x4] sm:$0xff]
        %v2772 = vld [vmem:[%s2354 + $0xc] sm:$0xff]
        %v2773 = vld [vmem:[%s2354 + $0x1c] sm:$0xff]
        %v2774 = vld [vmem:[%s2354 + $0x24] sm:$0xff]
        %v2775 = vld [vmem:[%s2354 + $0x34] sm:$0xff]
        %v2776 = vld [vmem:[%s2354 + $0x3c] sm:$0xff]
        %v2777 = vld [vmem:[%s2354 + $0x4c] sm:$0xff]
        %v2778 = vld [vmem:[%s2354 + $0x54] sm:$0xff]
        %v2779 = vld [vmem:[%s2354 + $0x64] sm:$0xff]
        %v2780 = vld [vmem:[%s2354 + $0x6c] sm:$0xff]
        %v2781 = vld [vmem:[%s2354 + $0x7c] sm:$0xff]
        %v2782 = vld [vmem:[%s2354 + $0x84] sm:$0xff]
        %v2783 = vld [vmem:[%s2354 + $0x94] sm:$0xff]
        %v2784 = vld [vmem:[%s2354 + $0x9c] sm:$0xff]
        %v2785 = vld [vmem:[%s2354 + $0xac] sm:$0xff]
        %v2786 = vld [vmem:[%s2354 + $0xb4] sm:$0xff]
        %v2787 = vld [vmem:[%s2354 + $0xc4] sm:$0xff]
        %v2788 = vld [vmem:[%s2354 + $0xcc] sm:$0xff]
        %v2789 = vld [vmem:[%s2354 + $0xdc] sm:$0xff]
        %v2790 = vld [vmem:[%s2354 + $0xe4] sm:$0xff]
        %v2791 = vld [vmem:[%s2354 + $0xf4] sm:$0xff]
        %v2792 = vld [vmem:[%s2354 + $0xfc] sm:$0xff]
        %v2793 = vld [vmem:[%s2354 + $0x10c] sm:$0xff]
        %v2794 = vld [vmem:[%s2354 + $0x114] sm:$0xff]
        %v2795 = vld [vmem:[%s2354 + $0x124] sm:$0xff]
        %v2796 = vld [vmem:[%s2354 + $0x12c] sm:$0xff]
        %v2797 = vld [vmem:[%s2354 + $0x13c] sm:$0xff]
        %v2798 = vld [vmem:[%s2354 + $0x144] sm:$0xff]
        %v2799 = vld [vmem:[%s2354 + $0x154] sm:$0xff]
        %v2800 = vld [vmem:[%s2354 + $0x15c] sm:$0xff]
        %v2801 = vld [vmem:[%s2354 + $0x16c] sm:$0xff]
        %v2802 = vld [vmem:[%s2354 + $0x174] sm:$0xff]
        %s2803 = scalar_lea.vmem %s1, 25
        %v2804 = vld [vmem:[%s2803] sm:$0x1]
        %v2806 = vlaneseq
        %v2807 = vshrl.u32 %v2806, 7
        %v2808 = vsub.s32 0, %v2807
        %v2809 = vrot.slane %v2804, %v2808
        %v2811 = vmul.f32 %v2771, %v2809
        %v2812 = vmul.f32 %v2772, %v2809
        %v2813 = vmul.f32 %v2773, %v2809
        %v2814 = vmul.f32 %v2774, %v2809
        %v2815 = vmul.f32 %v2775, %v2809
        %v2816 = vmul.f32 %v2776, %v2809
        %v2817 = vmul.f32 %v2777, %v2809
        %v2818 = vmul.f32 %v2778, %v2809
        %v2819 = vmul.f32 %v2779, %v2809
        %v2820 = vmul.f32 %v2780, %v2809
        %v2821 = vmul.f32 %v2781, %v2809
        %v2822 = vmul.f32 %v2782, %v2809
        %v2823 = vmul.f32 %v2783, %v2809
        %v2824 = vmul.f32 %v2784, %v2809
        %v2825 = vmul.f32 %v2785, %v2809
        %v2826 = vmul.f32 %v2786, %v2809
        %v2827 = vmul.f32 %v2787, %v2809
        %v2828 = vmul.f32 %v2788, %v2809
        %v2829 = vmul.f32 %v2789, %v2809
        %v2830 = vmul.f32 %v2790, %v2809
        %v2831 = vmul.f32 %v2791, %v2809
        %v2832 = vmul.f32 %v2792, %v2809
        %v2833 = vmul.f32 %v2793, %v2809
        %v2834 = vmul.f32 %v2794, %v2809
        %v2835 = vmul.f32 %v2795, %v2809
        %v2836 = vmul.f32 %v2796, %v2809
        %v2837 = vmul.f32 %v2797, %v2809
        %v2838 = vmul.f32 %v2798, %v2809
        %v2839 = vmul.f32 %v2799, %v2809
        %v2840 = vmul.f32 %v2800, %v2809
        %v2841 = vmul.f32 %v2801, %v2809
        %v2842 = vmul.f32 %v2802, %v2809
        %v2843 = vadd.f32 %v2739, %v2811
        %v2844 = vadd.f32 %v2740, %v2812
        %v2845 = vadd.f32 %v2741, %v2813
        %v2846 = vadd.f32 %v2742, %v2814
        %v2847 = vadd.f32 %v2743, %v2815
        %v2848 = vadd.f32 %v2744, %v2816
        %v2849 = vadd.f32 %v2745, %v2817
        %v2850 = vadd.f32 %v2746, %v2818
        %v2851 = vadd.f32 %v2747, %v2819
        %v2852 = vadd.f32 %v2748, %v2820
        %v2853 = vadd.f32 %v2749, %v2821
        %v2854 = vadd.f32 %v2750, %v2822
        %v2855 = vadd.f32 %v2751, %v2823
        %v2856 = vadd.f32 %v2752, %v2824
        %v2857 = vadd.f32 %v2753, %v2825
        %v2858 = vadd.f32 %v2754, %v2826
        %v2859 = vadd.f32 %v2755, %v2827
        %v2860 = vadd.f32 %v2756, %v2828
        %v2861 = vadd.f32 %v2757, %v2829
        %v2862 = vadd.f32 %v2758, %v2830
        %v2863 = vadd.f32 %v2759, %v2831
        %v2864 = vadd.f32 %v2760, %v2832
        %v2865 = vadd.f32 %v2761, %v2833
        %v2866 = vadd.f32 %v2762, %v2834
        %v2867 = vadd.f32 %v2763, %v2835
        %v2868 = vadd.f32 %v2764, %v2836
        %v2869 = vadd.f32 %v2765, %v2837
        %v2870 = vadd.f32 %v2766, %v2838
        %v2871 = vadd.f32 %v2767, %v2839
        %v2872 = vadd.f32 %v2768, %v2840
        %v2873 = vadd.f32 %v2769, %v2841
        %v2874 = vadd.f32 %v2770, %v2842
        %v2875 = vld [vmem:[%s2354 + $0x5] sm:$0xff]
        %v2876 = vld [vmem:[%s2354 + $0xd] sm:$0xff]
        %v2877 = vld [vmem:[%s2354 + $0x1d] sm:$0xff]
        %v2878 = vld [vmem:[%s2354 + $0x25] sm:$0xff]
        %v2879 = vld [vmem:[%s2354 + $0x35] sm:$0xff]
        %v2880 = vld [vmem:[%s2354 + $0x3d] sm:$0xff]
        %v2881 = vld [vmem:[%s2354 + $0x4d] sm:$0xff]
        %v2882 = vld [vmem:[%s2354 + $0x55] sm:$0xff]
        %v2883 = vld [vmem:[%s2354 + $0x65] sm:$0xff]
        %v2884 = vld [vmem:[%s2354 + $0x6d] sm:$0xff]
        %v2885 = vld [vmem:[%s2354 + $0x7d] sm:$0xff]
        %v2886 = vld [vmem:[%s2354 + $0x85] sm:$0xff]
        %v2887 = vld [vmem:[%s2354 + $0x95] sm:$0xff]
        %v2888 = vld [vmem:[%s2354 + $0x9d] sm:$0xff]
        %v2889 = vld [vmem:[%s2354 + $0xad] sm:$0xff]
        %v2890 = vld [vmem:[%s2354 + $0xb5] sm:$0xff]
        %v2891 = vld [vmem:[%s2354 + $0xc5] sm:$0xff]
        %v2892 = vld [vmem:[%s2354 + $0xcd] sm:$0xff]
        %v2893 = vld [vmem:[%s2354 + $0xdd] sm:$0xff]
        %v2894 = vld [vmem:[%s2354 + $0xe5] sm:$0xff]
        %v2895 = vld [vmem:[%s2354 + $0xf5] sm:$0xff]
        %v2896 = vld [vmem:[%s2354 + $0xfd] sm:$0xff]
        %v2897 = vld [vmem:[%s2354 + $0x10d] sm:$0xff]
        %v2898 = vld [vmem:[%s2354 + $0x115] sm:$0xff]
        %v2899 = vld [vmem:[%s2354 + $0x125] sm:$0xff]
        %v2900 = vld [vmem:[%s2354 + $0x12d] sm:$0xff]
        %v2901 = vld [vmem:[%s2354 + $0x13d] sm:$0xff]
        %v2902 = vld [vmem:[%s2354 + $0x145] sm:$0xff]
        %v2903 = vld [vmem:[%s2354 + $0x155] sm:$0xff]
        %v2904 = vld [vmem:[%s2354 + $0x15d] sm:$0xff]
        %v2905 = vld [vmem:[%s2354 + $0x16d] sm:$0xff]
        %v2906 = vld [vmem:[%s2354 + $0x175] sm:$0xff]
        %s2907 = scalar_lea.vmem %s1, 26
        %v2908 = vld [vmem:[%s2907] sm:$0x1]
        %v2910 = vlaneseq
        %v2911 = vshrl.u32 %v2910, 7
        %v2912 = vsub.s32 0, %v2911
        %v2913 = vrot.slane %v2908, %v2912
        %v2915 = vmul.f32 %v2875, %v2913
        %v2916 = vmul.f32 %v2876, %v2913
        %v2917 = vmul.f32 %v2877, %v2913
        %v2918 = vmul.f32 %v2878, %v2913
        %v2919 = vmul.f32 %v2879, %v2913
        %v2920 = vmul.f32 %v2880, %v2913
        %v2921 = vmul.f32 %v2881, %v2913
        %v2922 = vmul.f32 %v2882, %v2913
        %v2923 = vmul.f32 %v2883, %v2913
        %v2924 = vmul.f32 %v2884, %v2913
        %v2925 = vmul.f32 %v2885, %v2913
        %v2926 = vmul.f32 %v2886, %v2913
        %v2927 = vmul.f32 %v2887, %v2913
        %v2928 = vmul.f32 %v2888, %v2913
        %v2929 = vmul.f32 %v2889, %v2913
        %v2930 = vmul.f32 %v2890, %v2913
        %v2931 = vmul.f32 %v2891, %v2913
        %v2932 = vmul.f32 %v2892, %v2913
        %v2933 = vmul.f32 %v2893, %v2913
        %v2934 = vmul.f32 %v2894, %v2913
        %v2935 = vmul.f32 %v2895, %v2913
        %v2936 = vmul.f32 %v2896, %v2913
        %v2937 = vmul.f32 %v2897, %v2913
        %v2938 = vmul.f32 %v2898, %v2913
        %v2939 = vmul.f32 %v2899, %v2913
        %v2940 = vmul.f32 %v2900, %v2913
        %v2941 = vmul.f32 %v2901, %v2913
        %v2942 = vmul.f32 %v2902, %v2913
        %v2943 = vmul.f32 %v2903, %v2913
        %v2944 = vmul.f32 %v2904, %v2913
        %v2945 = vmul.f32 %v2905, %v2913
        %v2946 = vmul.f32 %v2906, %v2913
        %v2947 = vadd.f32 %v2843, %v2915
        %v2948 = vadd.f32 %v2844, %v2916
        %v2949 = vadd.f32 %v2845, %v2917
        %v2950 = vadd.f32 %v2846, %v2918
        %v2951 = vadd.f32 %v2847, %v2919
        %v2952 = vadd.f32 %v2848, %v2920
        %v2953 = vadd.f32 %v2849, %v2921
        %v2954 = vadd.f32 %v2850, %v2922
        %v2955 = vadd.f32 %v2851, %v2923
        %v2956 = vadd.f32 %v2852, %v2924
        %v2957 = vadd.f32 %v2853, %v2925
        %v2958 = vadd.f32 %v2854, %v2926
        %v2959 = vadd.f32 %v2855, %v2927
        %v2960 = vadd.f32 %v2856, %v2928
        %v2961 = vadd.f32 %v2857, %v2929
        %v2962 = vadd.f32 %v2858, %v2930
        %v2963 = vadd.f32 %v2859, %v2931
        %v2964 = vadd.f32 %v2860, %v2932
        %v2965 = vadd.f32 %v2861, %v2933
        %v2966 = vadd.f32 %v2862, %v2934
        %v2967 = vadd.f32 %v2863, %v2935
        %v2968 = vadd.f32 %v2864, %v2936
        %v2969 = vadd.f32 %v2865, %v2937
        %v2970 = vadd.f32 %v2866, %v2938
        %v2971 = vadd.f32 %v2867, %v2939
        %v2972 = vadd.f32 %v2868, %v2940
        %v2973 = vadd.f32 %v2869, %v2941
        %v2974 = vadd.f32 %v2870, %v2942
        %v2975 = vadd.f32 %v2871, %v2943
        %v2976 = vadd.f32 %v2872, %v2944
        %v2977 = vadd.f32 %v2873, %v2945
        %v2978 = vadd.f32 %v2874, %v2946
        %v2979 = vld [vmem:[%s2354 + $0x6] sm:$0xff]
        %v2980 = vld [vmem:[%s2354 + $0xe] sm:$0xff]
        %v2981 = vld [vmem:[%s2354 + $0x1e] sm:$0xff]
        %v2982 = vld [vmem:[%s2354 + $0x26] sm:$0xff]
        %v2983 = vld [vmem:[%s2354 + $0x36] sm:$0xff]
        %v2984 = vld [vmem:[%s2354 + $0x3e] sm:$0xff]
        %v2985 = vld [vmem:[%s2354 + $0x4e] sm:$0xff]
        %v2986 = vld [vmem:[%s2354 + $0x56] sm:$0xff]
        %v2987 = vld [vmem:[%s2354 + $0x66] sm:$0xff]
        %v2988 = vld [vmem:[%s2354 + $0x6e] sm:$0xff]
        %v2989 = vld [vmem:[%s2354 + $0x7e] sm:$0xff]
        %v2990 = vld [vmem:[%s2354 + $0x86] sm:$0xff]
        %v2991 = vld [vmem:[%s2354 + $0x96] sm:$0xff]
        %v2992 = vld [vmem:[%s2354 + $0x9e] sm:$0xff]
        %v2993 = vld [vmem:[%s2354 + $0xae] sm:$0xff]
        %v2994 = vld [vmem:[%s2354 + $0xb6] sm:$0xff]
        %v2995 = vld [vmem:[%s2354 + $0xc6] sm:$0xff]
        %v2996 = vld [vmem:[%s2354 + $0xce] sm:$0xff]
        %v2997 = vld [vmem:[%s2354 + $0xde] sm:$0xff]
        %v2998 = vld [vmem:[%s2354 + $0xe6] sm:$0xff]
        %v2999 = vld [vmem:[%s2354 + $0xf6] sm:$0xff]
        %v3000 = vld [vmem:[%s2354 + $0xfe] sm:$0xff]
        %v3001 = vld [vmem:[%s2354 + $0x10e] sm:$0xff]
        %v3002 = vld [vmem:[%s2354 + $0x116] sm:$0xff]
        %v3003 = vld [vmem:[%s2354 + $0x126] sm:$0xff]
        %v3004 = vld [vmem:[%s2354 + $0x12e] sm:$0xff]
        %v3005 = vld [vmem:[%s2354 + $0x13e] sm:$0xff]
        %v3006 = vld [vmem:[%s2354 + $0x146] sm:$0xff]
        %v3007 = vld [vmem:[%s2354 + $0x156] sm:$0xff]
        %v3008 = vld [vmem:[%s2354 + $0x15e] sm:$0xff]
        %v3009 = vld [vmem:[%s2354 + $0x16e] sm:$0xff]
        %v3010 = vld [vmem:[%s2354 + $0x176] sm:$0xff]
        %s3011 = scalar_lea.vmem %s1, 27
        %v3012 = vld [vmem:[%s3011] sm:$0x1]
        %v3014 = vlaneseq
        %v3015 = vshrl.u32 %v3014, 7
        %v3016 = vsub.s32 0, %v3015
        %v3017 = vrot.slane %v3012, %v3016
        %v3019 = vmul.f32 %v2979, %v3017
        %v3020 = vmul.f32 %v2980, %v3017
        %v3021 = vmul.f32 %v2981, %v3017
        %v3022 = vmul.f32 %v2982, %v3017
        %v3023 = vmul.f32 %v2983, %v3017
        %v3024 = vmul.f32 %v2984, %v3017
        %v3025 = vmul.f32 %v2985, %v3017
        %v3026 = vmul.f32 %v2986, %v3017
        %v3027 = vmul.f32 %v2987, %v3017
        %v3028 = vmul.f32 %v2988, %v3017
        %v3029 = vmul.f32 %v2989, %v3017
        %v3030 = vmul.f32 %v2990, %v3017
        %v3031 = vmul.f32 %v2991, %v3017
        %v3032 = vmul.f32 %v2992, %v3017
        %v3033 = vmul.f32 %v2993, %v3017
        %v3034 = vmul.f32 %v2994, %v3017
        %v3035 = vmul.f32 %v2995, %v3017
        %v3036 = vmul.f32 %v2996, %v3017
        %v3037 = vmul.f32 %v2997, %v3017
        %v3038 = vmul.f32 %v2998, %v3017
        %v3039 = vmul.f32 %v2999, %v3017
        %v3040 = vmul.f32 %v3000, %v3017
        %v3041 = vmul.f32 %v3001, %v3017
        %v3042 = vmul.f32 %v3002, %v3017
        %v3043 = vmul.f32 %v3003, %v3017
        %v3044 = vmul.f32 %v3004, %v3017
        %v3045 = vmul.f32 %v3005, %v3017
        %v3046 = vmul.f32 %v3006, %v3017
        %v3047 = vmul.f32 %v3007, %v3017
        %v3048 = vmul.f32 %v3008, %v3017
        %v3049 = vmul.f32 %v3009, %v3017
        %v3050 = vmul.f32 %v3010, %v3017
        %v3051 = vadd.f32 %v2947, %v3019
        %v3052 = vadd.f32 %v2948, %v3020
        %v3053 = vadd.f32 %v2949, %v3021
        %v3054 = vadd.f32 %v2950, %v3022
        %v3055 = vadd.f32 %v2951, %v3023
        %v3056 = vadd.f32 %v2952, %v3024
        %v3057 = vadd.f32 %v2953, %v3025
        %v3058 = vadd.f32 %v2954, %v3026
        %v3059 = vadd.f32 %v2955, %v3027
        %v3060 = vadd.f32 %v2956, %v3028
        %v3061 = vadd.f32 %v2957, %v3029
        %v3062 = vadd.f32 %v2958, %v3030
        %v3063 = vadd.f32 %v2959, %v3031
        %v3064 = vadd.f32 %v2960, %v3032
        %v3065 = vadd.f32 %v2961, %v3033
        %v3066 = vadd.f32 %v2962, %v3034
        %v3067 = vadd.f32 %v2963, %v3035
        %v3068 = vadd.f32 %v2964, %v3036
        %v3069 = vadd.f32 %v2965, %v3037
        %v3070 = vadd.f32 %v2966, %v3038
        %v3071 = vadd.f32 %v2967, %v3039
        %v3072 = vadd.f32 %v2968, %v3040
        %v3073 = vadd.f32 %v2969, %v3041
        %v3074 = vadd.f32 %v2970, %v3042
        %v3075 = vadd.f32 %v2971, %v3043
        %v3076 = vadd.f32 %v2972, %v3044
        %v3077 = vadd.f32 %v2973, %v3045
        %v3078 = vadd.f32 %v2974, %v3046
        %v3079 = vadd.f32 %v2975, %v3047
        %v3080 = vadd.f32 %v2976, %v3048
        %v3081 = vadd.f32 %v2977, %v3049
        %v3082 = vadd.f32 %v2978, %v3050
        %s3083 = scalar_lea.vmem %s168, 96
        %v3084 = vld [vmem:[%s3083] sm:$0xff]
        %v3085 = vld [vmem:[%s3083 + $0x8] sm:$0xff]
        %v3086 = vld [vmem:[%s3083 + $0x18] sm:$0xff]
        %v3087 = vld [vmem:[%s3083 + $0x20] sm:$0xff]
        %v3088 = vld [vmem:[%s3083 + $0x30] sm:$0xff]
        %v3089 = vld [vmem:[%s3083 + $0x38] sm:$0xff]
        %v3090 = vld [vmem:[%s3083 + $0x48] sm:$0xff]
        %v3091 = vld [vmem:[%s3083 + $0x50] sm:$0xff]
        %v3092 = vld [vmem:[%s3083 + $0x60] sm:$0xff]
        %v3093 = vld [vmem:[%s3083 + $0x68] sm:$0xff]
        %v3094 = vld [vmem:[%s3083 + $0x78] sm:$0xff]
        %v3095 = vld [vmem:[%s3083 + $0x80] sm:$0xff]
        %v3096 = vld [vmem:[%s3083 + $0x90] sm:$0xff]
        %v3097 = vld [vmem:[%s3083 + $0x98] sm:$0xff]
        %v3098 = vld [vmem:[%s3083 + $0xa8] sm:$0xff]
        %v3099 = vld [vmem:[%s3083 + $0xb0] sm:$0xff]
        %v3100 = vld [vmem:[%s3083 + $0xc0] sm:$0xff]
        %v3101 = vld [vmem:[%s3083 + $0xc8] sm:$0xff]
        %v3102 = vld [vmem:[%s3083 + $0xd8] sm:$0xff]
        %v3103 = vld [vmem:[%s3083 + $0xe0] sm:$0xff]
        %v3104 = vld [vmem:[%s3083 + $0xf0] sm:$0xff]
        %v3105 = vld [vmem:[%s3083 + $0xf8] sm:$0xff]
        %v3106 = vld [vmem:[%s3083 + $0x108] sm:$0xff]
        %v3107 = vld [vmem:[%s3083 + $0x110] sm:$0xff]
        %v3108 = vld [vmem:[%s3083 + $0x120] sm:$0xff]
        %v3109 = vld [vmem:[%s3083 + $0x128] sm:$0xff]
        %v3110 = vld [vmem:[%s3083 + $0x138] sm:$0xff]
        %v3111 = vld [vmem:[%s3083 + $0x140] sm:$0xff]
        %v3112 = vld [vmem:[%s3083 + $0x150] sm:$0xff]
        %v3113 = vld [vmem:[%s3083 + $0x158] sm:$0xff]
        %v3114 = vld [vmem:[%s3083 + $0x168] sm:$0xff]
        %v3115 = vld [vmem:[%s3083 + $0x170] sm:$0xff]
        %s3116 = scalar_lea.vmem %s1, 28
        %v3117 = vld [vmem:[%s3116] sm:$0x1]
        %v3119 = vlaneseq
        %v3120 = vshrl.u32 %v3119, 7
        %v3121 = vsub.s32 0, %v3120
        %v3122 = vrot.slane %v3117, %v3121
        %v3124 = vmul.f32 %v3084, %v3122
        %v3125 = vmul.f32 %v3085, %v3122
        %v3126 = vmul.f32 %v3086, %v3122
        %v3127 = vmul.f32 %v3087, %v3122
        %v3128 = vmul.f32 %v3088, %v3122
        %v3129 = vmul.f32 %v3089, %v3122
        %v3130 = vmul.f32 %v3090, %v3122
        %v3131 = vmul.f32 %v3091, %v3122
        %v3132 = vmul.f32 %v3092, %v3122
        %v3133 = vmul.f32 %v3093, %v3122
        %v3134 = vmul.f32 %v3094, %v3122
        %v3135 = vmul.f32 %v3095, %v3122
        %v3136 = vmul.f32 %v3096, %v3122
        %v3137 = vmul.f32 %v3097, %v3122
        %v3138 = vmul.f32 %v3098, %v3122
        %v3139 = vmul.f32 %v3099, %v3122
        %v3140 = vmul.f32 %v3100, %v3122
        %v3141 = vmul.f32 %v3101, %v3122
        %v3142 = vmul.f32 %v3102, %v3122
        %v3143 = vmul.f32 %v3103, %v3122
        %v3144 = vmul.f32 %v3104, %v3122
        %v3145 = vmul.f32 %v3105, %v3122
        %v3146 = vmul.f32 %v3106, %v3122
        %v3147 = vmul.f32 %v3107, %v3122
        %v3148 = vmul.f32 %v3108, %v3122
        %v3149 = vmul.f32 %v3109, %v3122
        %v3150 = vmul.f32 %v3110, %v3122
        %v3151 = vmul.f32 %v3111, %v3122
        %v3152 = vmul.f32 %v3112, %v3122
        %v3153 = vmul.f32 %v3113, %v3122
        %v3154 = vmul.f32 %v3114, %v3122
        %v3155 = vmul.f32 %v3115, %v3122
        %v3156 = vadd.f32 %v3051, %v3124
        %v3157 = vadd.f32 %v3052, %v3125
        %v3158 = vadd.f32 %v3053, %v3126
        %v3159 = vadd.f32 %v3054, %v3127
        %v3160 = vadd.f32 %v3055, %v3128
        %v3161 = vadd.f32 %v3056, %v3129
        %v3162 = vadd.f32 %v3057, %v3130
        %v3163 = vadd.f32 %v3058, %v3131
        %v3164 = vadd.f32 %v3059, %v3132
        %v3165 = vadd.f32 %v3060, %v3133
        %v3166 = vadd.f32 %v3061, %v3134
        %v3167 = vadd.f32 %v3062, %v3135
        %v3168 = vadd.f32 %v3063, %v3136
        %v3169 = vadd.f32 %v3064, %v3137
        %v3170 = vadd.f32 %v3065, %v3138
        %v3171 = vadd.f32 %v3066, %v3139
        %v3172 = vadd.f32 %v3067, %v3140
        %v3173 = vadd.f32 %v3068, %v3141
        %v3174 = vadd.f32 %v3069, %v3142
        %v3175 = vadd.f32 %v3070, %v3143
        %v3176 = vadd.f32 %v3071, %v3144
        %v3177 = vadd.f32 %v3072, %v3145
        %v3178 = vadd.f32 %v3073, %v3146
        %v3179 = vadd.f32 %v3074, %v3147
        %v3180 = vadd.f32 %v3075, %v3148
        %v3181 = vadd.f32 %v3076, %v3149
        %v3182 = vadd.f32 %v3077, %v3150
        %v3183 = vadd.f32 %v3078, %v3151
        %v3184 = vadd.f32 %v3079, %v3152
        %v3185 = vadd.f32 %v3080, %v3153
        %v3186 = vadd.f32 %v3081, %v3154
        %v3187 = vadd.f32 %v3082, %v3155
        %v3188 = vld [vmem:[%s3083 + $0x1] sm:$0xff]
        %v3189 = vld [vmem:[%s3083 + $0x9] sm:$0xff]
        %v3190 = vld [vmem:[%s3083 + $0x19] sm:$0xff]
        %v3191 = vld [vmem:[%s3083 + $0x21] sm:$0xff]
        %v3192 = vld [vmem:[%s3083 + $0x31] sm:$0xff]
        %v3193 = vld [vmem:[%s3083 + $0x39] sm:$0xff]
        %v3194 = vld [vmem:[%s3083 + $0x49] sm:$0xff]
        %v3195 = vld [vmem:[%s3083 + $0x51] sm:$0xff]
        %v3196 = vld [vmem:[%s3083 + $0x61] sm:$0xff]
        %v3197 = vld [vmem:[%s3083 + $0x69] sm:$0xff]
        %v3198 = vld [vmem:[%s3083 + $0x79] sm:$0xff]
        %v3199 = vld [vmem:[%s3083 + $0x81] sm:$0xff]
        %v3200 = vld [vmem:[%s3083 + $0x91] sm:$0xff]
        %v3201 = vld [vmem:[%s3083 + $0x99] sm:$0xff]
        %v3202 = vld [vmem:[%s3083 + $0xa9] sm:$0xff]
        %v3203 = vld [vmem:[%s3083 + $0xb1] sm:$0xff]
        %v3204 = vld [vmem:[%s3083 + $0xc1] sm:$0xff]
        %v3205 = vld [vmem:[%s3083 + $0xc9] sm:$0xff]
        %v3206 = vld [vmem:[%s3083 + $0xd9] sm:$0xff]
        %v3207 = vld [vmem:[%s3083 + $0xe1] sm:$0xff]
        %v3208 = vld [vmem:[%s3083 + $0xf1] sm:$0xff]
        %v3209 = vld [vmem:[%s3083 + $0xf9] sm:$0xff]
        %v3210 = vld [vmem:[%s3083 + $0x109] sm:$0xff]
        %v3211 = vld [vmem:[%s3083 + $0x111] sm:$0xff]
        %v3212 = vld [vmem:[%s3083 + $0x121] sm:$0xff]
        %v3213 = vld [vmem:[%s3083 + $0x129] sm:$0xff]
        %v3214 = vld [vmem:[%s3083 + $0x139] sm:$0xff]
        %v3215 = vld [vmem:[%s3083 + $0x141] sm:$0xff]
        %v3216 = vld [vmem:[%s3083 + $0x151] sm:$0xff]
        %v3217 = vld [vmem:[%s3083 + $0x159] sm:$0xff]
        %v3218 = vld [vmem:[%s3083 + $0x169] sm:$0xff]
        %v3219 = vld [vmem:[%s3083 + $0x171] sm:$0xff]
        %s3220 = scalar_lea.vmem %s1, 29
        %v3221 = vld [vmem:[%s3220] sm:$0x1]
        %v3223 = vlaneseq
        %v3224 = vshrl.u32 %v3223, 7
        %v3225 = vsub.s32 0, %v3224
        %v3226 = vrot.slane %v3221, %v3225
        %v3228 = vmul.f32 %v3188, %v3226
        %v3229 = vmul.f32 %v3189, %v3226
        %v3230 = vmul.f32 %v3190, %v3226
        %v3231 = vmul.f32 %v3191, %v3226
        %v3232 = vmul.f32 %v3192, %v3226
        %v3233 = vmul.f32 %v3193, %v3226
        %v3234 = vmul.f32 %v3194, %v3226
        %v3235 = vmul.f32 %v3195, %v3226
        %v3236 = vmul.f32 %v3196, %v3226
        %v3237 = vmul.f32 %v3197, %v3226
        %v3238 = vmul.f32 %v3198, %v3226
        %v3239 = vmul.f32 %v3199, %v3226
        %v3240 = vmul.f32 %v3200, %v3226
        %v3241 = vmul.f32 %v3201, %v3226
        %v3242 = vmul.f32 %v3202, %v3226
        %v3243 = vmul.f32 %v3203, %v3226
        %v3244 = vmul.f32 %v3204, %v3226
        %v3245 = vmul.f32 %v3205, %v3226
        %v3246 = vmul.f32 %v3206, %v3226
        %v3247 = vmul.f32 %v3207, %v3226
        %v3248 = vmul.f32 %v3208, %v3226
        %v3249 = vmul.f32 %v3209, %v3226
        %v3250 = vmul.f32 %v3210, %v3226
        %v3251 = vmul.f32 %v3211, %v3226
        %v3252 = vmul.f32 %v3212, %v3226
        %v3253 = vmul.f32 %v3213, %v3226
        %v3254 = vmul.f32 %v3214, %v3226
        %v3255 = vmul.f32 %v3215, %v3226
        %v3256 = vmul.f32 %v3216, %v3226
        %v3257 = vmul.f32 %v3217, %v3226
        %v3258 = vmul.f32 %v3218, %v3226
        %v3259 = vmul.f32 %v3219, %v3226
        %v3260 = vadd.f32 %v3156, %v3228
        %v3261 = vadd.f32 %v3157, %v3229
        %v3262 = vadd.f32 %v3158, %v3230
        %v3263 = vadd.f32 %v3159, %v3231
        %v3264 = vadd.f32 %v3160, %v3232
        %v3265 = vadd.f32 %v3161, %v3233
        %v3266 = vadd.f32 %v3162, %v3234
        %v3267 = vadd.f32 %v3163, %v3235
        %v3268 = vadd.f32 %v3164, %v3236
        %v3269 = vadd.f32 %v3165, %v3237
        %v3270 = vadd.f32 %v3166, %v3238
        %v3271 = vadd.f32 %v3167, %v3239
        %v3272 = vadd.f32 %v3168, %v3240
        %v3273 = vadd.f32 %v3169, %v3241
        %v3274 = vadd.f32 %v3170, %v3242
        %v3275 = vadd.f32 %v3171, %v3243
        %v3276 = vadd.f32 %v3172, %v3244
        %v3277 = vadd.f32 %v3173, %v3245
        %v3278 = vadd.f32 %v3174, %v3246
        %v3279 = vadd.f32 %v3175, %v3247
        %v3280 = vadd.f32 %v3176, %v3248
        %v3281 = vadd.f32 %v3177, %v3249
        %v3282 = vadd.f32 %v3178, %v3250
        %v3283 = vadd.f32 %v3179, %v3251
        %v3284 = vadd.f32 %v3180, %v3252
        %v3285 = vadd.f32 %v3181, %v3253
        %v3286 = vadd.f32 %v3182, %v3254
        %v3287 = vadd.f32 %v3183, %v3255
        %v3288 = vadd.f32 %v3184, %v3256
        %v3289 = vadd.f32 %v3185, %v3257
        %v3290 = vadd.f32 %v3186, %v3258
        %v3291 = vadd.f32 %v3187, %v3259
        %v3292 = vld [vmem:[%s3083 + $0x2] sm:$0xff]
        %v3293 = vld [vmem:[%s3083 + $0xa] sm:$0xff]
        %v3294 = vld [vmem:[%s3083 + $0x1a] sm:$0xff]
        %v3295 = vld [vmem:[%s3083 + $0x22] sm:$0xff]
        %v3296 = vld [vmem:[%s3083 + $0x32] sm:$0xff]
        %v3297 = vld [vmem:[%s3083 + $0x3a] sm:$0xff]
        %v3298 = vld [vmem:[%s3083 + $0x4a] sm:$0xff]
        %v3299 = vld [vmem:[%s3083 + $0x52] sm:$0xff]
        %v3300 = vld [vmem:[%s3083 + $0x62] sm:$0xff]
        %v3301 = vld [vmem:[%s3083 + $0x6a] sm:$0xff]
        %v3302 = vld [vmem:[%s3083 + $0x7a] sm:$0xff]
        %v3303 = vld [vmem:[%s3083 + $0x82] sm:$0xff]
        %v3304 = vld [vmem:[%s3083 + $0x92] sm:$0xff]
        %v3305 = vld [vmem:[%s3083 + $0x9a] sm:$0xff]
        %v3306 = vld [vmem:[%s3083 + $0xaa] sm:$0xff]
        %v3307 = vld [vmem:[%s3083 + $0xb2] sm:$0xff]
        %v3308 = vld [vmem:[%s3083 + $0xc2] sm:$0xff]
        %v3309 = vld [vmem:[%s3083 + $0xca] sm:$0xff]
        %v3310 = vld [vmem:[%s3083 + $0xda] sm:$0xff]
        %v3311 = vld [vmem:[%s3083 + $0xe2] sm:$0xff]
        %v3312 = vld [vmem:[%s3083 + $0xf2] sm:$0xff]
        %v3313 = vld [vmem:[%s3083 + $0xfa] sm:$0xff]
        %v3314 = vld [vmem:[%s3083 + $0x10a] sm:$0xff]
        %v3315 = vld [vmem:[%s3083 + $0x112] sm:$0xff]
        %v3316 = vld [vmem:[%s3083 + $0x122] sm:$0xff]
        %v3317 = vld [vmem:[%s3083 + $0x12a] sm:$0xff]
        %v3318 = vld [vmem:[%s3083 + $0x13a] sm:$0xff]
        %v3319 = vld [vmem:[%s3083 + $0x142] sm:$0xff]
        %v3320 = vld [vmem:[%s3083 + $0x152] sm:$0xff]
        %v3321 = vld [vmem:[%s3083 + $0x15a] sm:$0xff]
        %v3322 = vld [vmem:[%s3083 + $0x16a] sm:$0xff]
        %v3323 = vld [vmem:[%s3083 + $0x172] sm:$0xff]
        %s3324 = scalar_lea.vmem %s1, 30
        %v3325 = vld [vmem:[%s3324] sm:$0x1]
        %v3327 = vlaneseq
        %v3328 = vshrl.u32 %v3327, 7
        %v3329 = vsub.s32 0, %v3328
        %v3330 = vrot.slane %v3325, %v3329
        %v3332 = vmul.f32 %v3292, %v3330
        %v3333 = vmul.f32 %v3293, %v3330
        %v3334 = vmul.f32 %v3294, %v3330
        %v3335 = vmul.f32 %v3295, %v3330
        %v3336 = vmul.f32 %v3296, %v3330
        %v3337 = vmul.f32 %v3297, %v3330
        %v3338 = vmul.f32 %v3298, %v3330
        %v3339 = vmul.f32 %v3299, %v3330
        %v3340 = vmul.f32 %v3300, %v3330
        %v3341 = vmul.f32 %v3301, %v3330
        %v3342 = vmul.f32 %v3302, %v3330
        %v3343 = vmul.f32 %v3303, %v3330
        %v3344 = vmul.f32 %v3304, %v3330
        %v3345 = vmul.f32 %v3305, %v3330
        %v3346 = vmul.f32 %v3306, %v3330
        %v3347 = vmul.f32 %v3307, %v3330
        %v3348 = vmul.f32 %v3308, %v3330
        %v3349 = vmul.f32 %v3309, %v3330
        %v3350 = vmul.f32 %v3310, %v3330
        %v3351 = vmul.f32 %v3311, %v3330
        %v3352 = vmul.f32 %v3312, %v3330
        %v3353 = vmul.f32 %v3313, %v3330
        %v3354 = vmul.f32 %v3314, %v3330
        %v3355 = vmul.f32 %v3315, %v3330
        %v3356 = vmul.f32 %v3316, %v3330
        %v3357 = vmul.f32 %v3317, %v3330
        %v3358 = vmul.f32 %v3318, %v3330
        %v3359 = vmul.f32 %v3319, %v3330
        %v3360 = vmul.f32 %v3320, %v3330
        %v3361 = vmul.f32 %v3321, %v3330
        %v3362 = vmul.f32 %v3322, %v3330
        %v3363 = vmul.f32 %v3323, %v3330
        %v3364 = vadd.f32 %v3260, %v3332
        %v3365 = vadd.f32 %v3261, %v3333
        %v3366 = vadd.f32 %v3262, %v3334
        %v3367 = vadd.f32 %v3263, %v3335
        %v3368 = vadd.f32 %v3264, %v3336
        %v3369 = vadd.f32 %v3265, %v3337
        %v3370 = vadd.f32 %v3266, %v3338
        %v3371 = vadd.f32 %v3267, %v3339
        %v3372 = vadd.f32 %v3268, %v3340
        %v3373 = vadd.f32 %v3269, %v3341
        %v3374 = vadd.f32 %v3270, %v3342
        %v3375 = vadd.f32 %v3271, %v3343
        %v3376 = vadd.f32 %v3272, %v3344
        %v3377 = vadd.f32 %v3273, %v3345
        %v3378 = vadd.f32 %v3274, %v3346
        %v3379 = vadd.f32 %v3275, %v3347
        %v3380 = vadd.f32 %v3276, %v3348
        %v3381 = vadd.f32 %v3277, %v3349
        %v3382 = vadd.f32 %v3278, %v3350
        %v3383 = vadd.f32 %v3279, %v3351
        %v3384 = vadd.f32 %v3280, %v3352
        %v3385 = vadd.f32 %v3281, %v3353
        %v3386 = vadd.f32 %v3282, %v3354
        %v3387 = vadd.f32 %v3283, %v3355
        %v3388 = vadd.f32 %v3284, %v3356
        %v3389 = vadd.f32 %v3285, %v3357
        %v3390 = vadd.f32 %v3286, %v3358
        %v3391 = vadd.f32 %v3287, %v3359
        %v3392 = vadd.f32 %v3288, %v3360
        %v3393 = vadd.f32 %v3289, %v3361
        %v3394 = vadd.f32 %v3290, %v3362
        %v3395 = vadd.f32 %v3291, %v3363
        %v3396 = vld [vmem:[%s3083 + $0x3] sm:$0xff]
        %v3397 = vld [vmem:[%s3083 + $0xb] sm:$0xff]
        %v3398 = vld [vmem:[%s3083 + $0x1b] sm:$0xff]
        %v3399 = vld [vmem:[%s3083 + $0x23] sm:$0xff]
        %v3400 = vld [vmem:[%s3083 + $0x33] sm:$0xff]
        %v3401 = vld [vmem:[%s3083 + $0x3b] sm:$0xff]
        %v3402 = vld [vmem:[%s3083 + $0x4b] sm:$0xff]
        %v3403 = vld [vmem:[%s3083 + $0x53] sm:$0xff]
        %v3404 = vld [vmem:[%s3083 + $0x63] sm:$0xff]
        %v3405 = vld [vmem:[%s3083 + $0x6b] sm:$0xff]
        %v3406 = vld [vmem:[%s3083 + $0x7b] sm:$0xff]
        %v3407 = vld [vmem:[%s3083 + $0x83] sm:$0xff]
        %v3408 = vld [vmem:[%s3083 + $0x93] sm:$0xff]
        %v3409 = vld [vmem:[%s3083 + $0x9b] sm:$0xff]
        %v3410 = vld [vmem:[%s3083 + $0xab] sm:$0xff]
        %v3411 = vld [vmem:[%s3083 + $0xb3] sm:$0xff]
        %v3412 = vld [vmem:[%s3083 + $0xc3] sm:$0xff]
        %v3413 = vld [vmem:[%s3083 + $0xcb] sm:$0xff]
        %v3414 = vld [vmem:[%s3083 + $0xdb] sm:$0xff]
        %v3415 = vld [vmem:[%s3083 + $0xe3] sm:$0xff]
        %v3416 = vld [vmem:[%s3083 + $0xf3] sm:$0xff]
        %v3417 = vld [vmem:[%s3083 + $0xfb] sm:$0xff]
        %v3418 = vld [vmem:[%s3083 + $0x10b] sm:$0xff]
        %v3419 = vld [vmem:[%s3083 + $0x113] sm:$0xff]
        %v3420 = vld [vmem:[%s3083 + $0x123] sm:$0xff]
        %v3421 = vld [vmem:[%s3083 + $0x12b] sm:$0xff]
        %v3422 = vld [vmem:[%s3083 + $0x13b] sm:$0xff]
        %v3423 = vld [vmem:[%s3083 + $0x143] sm:$0xff]
        %v3424 = vld [vmem:[%s3083 + $0x153] sm:$0xff]
        %v3425 = vld [vmem:[%s3083 + $0x15b] sm:$0xff]
        %v3426 = vld [vmem:[%s3083 + $0x16b] sm:$0xff]
        %v3427 = vld [vmem:[%s3083 + $0x173] sm:$0xff]
        %s3428 = scalar_lea.vmem %s1, 31
        %v3429 = vld [vmem:[%s3428] sm:$0x1]
        %v3431 = vlaneseq
        %v3432 = vshrl.u32 %v3431, 7
        %v3433 = vsub.s32 0, %v3432
        %v3434 = vrot.slane %v3429, %v3433
        %v3436 = vmul.f32 %v3396, %v3434
        %v3437 = vmul.f32 %v3397, %v3434
        %v3438 = vmul.f32 %v3398, %v3434
        %v3439 = vmul.f32 %v3399, %v3434
        %v3440 = vmul.f32 %v3400, %v3434
        %v3441 = vmul.f32 %v3401, %v3434
        %v3442 = vmul.f32 %v3402, %v3434
        %v3443 = vmul.f32 %v3403, %v3434
        %v3444 = vmul.f32 %v3404, %v3434
        %v3445 = vmul.f32 %v3405, %v3434
        %v3446 = vmul.f32 %v3406, %v3434
        %v3447 = vmul.f32 %v3407, %v3434
        %v3448 = vmul.f32 %v3408, %v3434
        %v3449 = vmul.f32 %v3409, %v3434
        %v3450 = vmul.f32 %v3410, %v3434
        %v3451 = vmul.f32 %v3411, %v3434
        %v3452 = vmul.f32 %v3412, %v3434
        %v3453 = vmul.f32 %v3413, %v3434
        %v3454 = vmul.f32 %v3414, %v3434
        %v3455 = vmul.f32 %v3415, %v3434
        %v3456 = vmul.f32 %v3416, %v3434
        %v3457 = vmul.f32 %v3417, %v3434
        %v3458 = vmul.f32 %v3418, %v3434
        %v3459 = vmul.f32 %v3419, %v3434
        %v3460 = vmul.f32 %v3420, %v3434
        %v3461 = vmul.f32 %v3421, %v3434
        %v3462 = vmul.f32 %v3422, %v3434
        %v3463 = vmul.f32 %v3423, %v3434
        %v3464 = vmul.f32 %v3424, %v3434
        %v3465 = vmul.f32 %v3425, %v3434
        %v3466 = vmul.f32 %v3426, %v3434
        %v3467 = vmul.f32 %v3427, %v3434
        %v3468 = vadd.f32 %v3364, %v3436
        %v3469 = vadd.f32 %v3365, %v3437
        %v3470 = vadd.f32 %v3366, %v3438
        %v3471 = vadd.f32 %v3367, %v3439
        %v3472 = vadd.f32 %v3368, %v3440
        %v3473 = vadd.f32 %v3369, %v3441
        %v3474 = vadd.f32 %v3370, %v3442
        %v3475 = vadd.f32 %v3371, %v3443
        %v3476 = vadd.f32 %v3372, %v3444
        %v3477 = vadd.f32 %v3373, %v3445
        %v3478 = vadd.f32 %v3374, %v3446
        %v3479 = vadd.f32 %v3375, %v3447
        %v3480 = vadd.f32 %v3376, %v3448
        %v3481 = vadd.f32 %v3377, %v3449
        %v3482 = vadd.f32 %v3378, %v3450
        %v3483 = vadd.f32 %v3379, %v3451
        %v3484 = vadd.f32 %v3380, %v3452
        %v3485 = vadd.f32 %v3381, %v3453
        %v3486 = vadd.f32 %v3382, %v3454
        %v3487 = vadd.f32 %v3383, %v3455
        %v3488 = vadd.f32 %v3384, %v3456
        %v3489 = vadd.f32 %v3385, %v3457
        %v3490 = vadd.f32 %v3386, %v3458
        %v3491 = vadd.f32 %v3387, %v3459
        %v3492 = vadd.f32 %v3388, %v3460
        %v3493 = vadd.f32 %v3389, %v3461
        %v3494 = vadd.f32 %v3390, %v3462
        %v3495 = vadd.f32 %v3391, %v3463
        %v3496 = vadd.f32 %v3392, %v3464
        %v3497 = vadd.f32 %v3393, %v3465
        %v3498 = vadd.f32 %v3394, %v3466
        %v3499 = vadd.f32 %v3395, %v3467
        %v3500 = vld [vmem:[%s3083 + $0x4] sm:$0xff]
        %v3501 = vld [vmem:[%s3083 + $0xc] sm:$0xff]
        %v3502 = vld [vmem:[%s3083 + $0x1c] sm:$0xff]
        %v3503 = vld [vmem:[%s3083 + $0x24] sm:$0xff]
        %v3504 = vld [vmem:[%s3083 + $0x34] sm:$0xff]
        %v3505 = vld [vmem:[%s3083 + $0x3c] sm:$0xff]
        %v3506 = vld [vmem:[%s3083 + $0x4c] sm:$0xff]
        %v3507 = vld [vmem:[%s3083 + $0x54] sm:$0xff]
        %v3508 = vld [vmem:[%s3083 + $0x64] sm:$0xff]
        %v3509 = vld [vmem:[%s3083 + $0x6c] sm:$0xff]
        %v3510 = vld [vmem:[%s3083 + $0x7c] sm:$0xff]
        %v3511 = vld [vmem:[%s3083 + $0x84] sm:$0xff]
        %v3512 = vld [vmem:[%s3083 + $0x94] sm:$0xff]
        %v3513 = vld [vmem:[%s3083 + $0x9c] sm:$0xff]
        %v3514 = vld [vmem:[%s3083 + $0xac] sm:$0xff]
        %v3515 = vld [vmem:[%s3083 + $0xb4] sm:$0xff]
        %v3516 = vld [vmem:[%s3083 + $0xc4] sm:$0xff]
        %v3517 = vld [vmem:[%s3083 + $0xcc] sm:$0xff]
        %v3518 = vld [vmem:[%s3083 + $0xdc] sm:$0xff]
        %v3519 = vld [vmem:[%s3083 + $0xe4] sm:$0xff]
        %v3520 = vld [vmem:[%s3083 + $0xf4] sm:$0xff]
        %v3521 = vld [vmem:[%s3083 + $0xfc] sm:$0xff]
        %v3522 = vld [vmem:[%s3083 + $0x10c] sm:$0xff]
        %v3523 = vld [vmem:[%s3083 + $0x114] sm:$0xff]
        %v3524 = vld [vmem:[%s3083 + $0x124] sm:$0xff]
        %v3525 = vld [vmem:[%s3083 + $0x12c] sm:$0xff]
        %v3526 = vld [vmem:[%s3083 + $0x13c] sm:$0xff]
        %v3527 = vld [vmem:[%s3083 + $0x144] sm:$0xff]
        %v3528 = vld [vmem:[%s3083 + $0x154] sm:$0xff]
        %v3529 = vld [vmem:[%s3083 + $0x15c] sm:$0xff]
        %v3530 = vld [vmem:[%s3083 + $0x16c] sm:$0xff]
        %v3531 = vld [vmem:[%s3083 + $0x174] sm:$0xff]
        %s3532 = scalar_lea.vmem %s1, 32
        %v3533 = vld [vmem:[%s3532] sm:$0x1]
        %v3535 = vlaneseq
        %v3536 = vshrl.u32 %v3535, 7
        %v3537 = vsub.s32 0, %v3536
        %v3538 = vrot.slane %v3533, %v3537
        %v3540 = vmul.f32 %v3500, %v3538
        %v3541 = vmul.f32 %v3501, %v3538
        %v3542 = vmul.f32 %v3502, %v3538
        %v3543 = vmul.f32 %v3503, %v3538
        %v3544 = vmul.f32 %v3504, %v3538
        %v3545 = vmul.f32 %v3505, %v3538
        %v3546 = vmul.f32 %v3506, %v3538
        %v3547 = vmul.f32 %v3507, %v3538
        %v3548 = vmul.f32 %v3508, %v3538
        %v3549 = vmul.f32 %v3509, %v3538
        %v3550 = vmul.f32 %v3510, %v3538
        %v3551 = vmul.f32 %v3511, %v3538
        %v3552 = vmul.f32 %v3512, %v3538
        %v3553 = vmul.f32 %v3513, %v3538
        %v3554 = vmul.f32 %v3514, %v3538
        %v3555 = vmul.f32 %v3515, %v3538
        %v3556 = vmul.f32 %v3516, %v3538
        %v3557 = vmul.f32 %v3517, %v3538
        %v3558 = vmul.f32 %v3518, %v3538
        %v3559 = vmul.f32 %v3519, %v3538
        %v3560 = vmul.f32 %v3520, %v3538
        %v3561 = vmul.f32 %v3521, %v3538
        %v3562 = vmul.f32 %v3522, %v3538
        %v3563 = vmul.f32 %v3523, %v3538
        %v3564 = vmul.f32 %v3524, %v3538
        %v3565 = vmul.f32 %v3525, %v3538
        %v3566 = vmul.f32 %v3526, %v3538
        %v3567 = vmul.f32 %v3527, %v3538
        %v3568 = vmul.f32 %v3528, %v3538
        %v3569 = vmul.f32 %v3529, %v3538
        %v3570 = vmul.f32 %v3530, %v3538
        %v3571 = vmul.f32 %v3531, %v3538
        %v3572 = vadd.f32 %v3468, %v3540
        %v3573 = vadd.f32 %v3469, %v3541
        %v3574 = vadd.f32 %v3470, %v3542
        %v3575 = vadd.f32 %v3471, %v3543
        %v3576 = vadd.f32 %v3472, %v3544
        %v3577 = vadd.f32 %v3473, %v3545
        %v3578 = vadd.f32 %v3474, %v3546
        %v3579 = vadd.f32 %v3475, %v3547
        %v3580 = vadd.f32 %v3476, %v3548
        %v3581 = vadd.f32 %v3477, %v3549
        %v3582 = vadd.f32 %v3478, %v3550
        %v3583 = vadd.f32 %v3479, %v3551
        %v3584 = vadd.f32 %v3480, %v3552
        %v3585 = vadd.f32 %v3481, %v3553
        %v3586 = vadd.f32 %v3482, %v3554
        %v3587 = vadd.f32 %v3483, %v3555
        %v3588 = vadd.f32 %v3484, %v3556
        %v3589 = vadd.f32 %v3485, %v3557
        %v3590 = vadd.f32 %v3486, %v3558
        %v3591 = vadd.f32 %v3487, %v3559
        %v3592 = vadd.f32 %v3488, %v3560
        %v3593 = vadd.f32 %v3489, %v3561
        %v3594 = vadd.f32 %v3490, %v3562
        %v3595 = vadd.f32 %v3491, %v3563
        %v3596 = vadd.f32 %v3492, %v3564
        %v3597 = vadd.f32 %v3493, %v3565
        %v3598 = vadd.f32 %v3494, %v3566
        %v3599 = vadd.f32 %v3495, %v3567
        %v3600 = vadd.f32 %v3496, %v3568
        %v3601 = vadd.f32 %v3497, %v3569
        %v3602 = vadd.f32 %v3498, %v3570
        %v3603 = vadd.f32 %v3499, %v3571
        %v3604 = vld [vmem:[%s3083 + $0x5] sm:$0xff]
        %v3605 = vld [vmem:[%s3083 + $0xd] sm:$0xff]
        %v3606 = vld [vmem:[%s3083 + $0x1d] sm:$0xff]
        %v3607 = vld [vmem:[%s3083 + $0x25] sm:$0xff]
        %v3608 = vld [vmem:[%s3083 + $0x35] sm:$0xff]
        %v3609 = vld [vmem:[%s3083 + $0x3d] sm:$0xff]
        %v3610 = vld [vmem:[%s3083 + $0x4d] sm:$0xff]
        %v3611 = vld [vmem:[%s3083 + $0x55] sm:$0xff]
        %v3612 = vld [vmem:[%s3083 + $0x65] sm:$0xff]
        %v3613 = vld [vmem:[%s3083 + $0x6d] sm:$0xff]
        %v3614 = vld [vmem:[%s3083 + $0x7d] sm:$0xff]
        %v3615 = vld [vmem:[%s3083 + $0x85] sm:$0xff]
        %v3616 = vld [vmem:[%s3083 + $0x95] sm:$0xff]
        %v3617 = vld [vmem:[%s3083 + $0x9d] sm:$0xff]
        %v3618 = vld [vmem:[%s3083 + $0xad] sm:$0xff]
        %v3619 = vld [vmem:[%s3083 + $0xb5] sm:$0xff]
        %v3620 = vld [vmem:[%s3083 + $0xc5] sm:$0xff]
        %v3621 = vld [vmem:[%s3083 + $0xcd] sm:$0xff]
        %v3622 = vld [vmem:[%s3083 + $0xdd] sm:$0xff]
        %v3623 = vld [vmem:[%s3083 + $0xe5] sm:$0xff]
        %v3624 = vld [vmem:[%s3083 + $0xf5] sm:$0xff]
        %v3625 = vld [vmem:[%s3083 + $0xfd] sm:$0xff]
        %v3626 = vld [vmem:[%s3083 + $0x10d] sm:$0xff]
        %v3627 = vld [vmem:[%s3083 + $0x115] sm:$0xff]
        %v3628 = vld [vmem:[%s3083 + $0x125] sm:$0xff]
        %v3629 = vld [vmem:[%s3083 + $0x12d] sm:$0xff]
        %v3630 = vld [vmem:[%s3083 + $0x13d] sm:$0xff]
        %v3631 = vld [vmem:[%s3083 + $0x145] sm:$0xff]
        %v3632 = vld [vmem:[%s3083 + $0x155] sm:$0xff]
        %v3633 = vld [vmem:[%s3083 + $0x15d] sm:$0xff]
        %v3634 = vld [vmem:[%s3083 + $0x16d] sm:$0xff]
        %v3635 = vld [vmem:[%s3083 + $0x175] sm:$0xff]
        %s3636 = scalar_lea.vmem %s1, 33
        %v3637 = vld [vmem:[%s3636] sm:$0x1]
        %v3639 = vlaneseq
        %v3640 = vshrl.u32 %v3639, 7
        %v3641 = vsub.s32 0, %v3640
        %v3642 = vrot.slane %v3637, %v3641
        %v3644 = vmul.f32 %v3604, %v3642
        %v3645 = vmul.f32 %v3605, %v3642
        %v3646 = vmul.f32 %v3606, %v3642
        %v3647 = vmul.f32 %v3607, %v3642
        %v3648 = vmul.f32 %v3608, %v3642
        %v3649 = vmul.f32 %v3609, %v3642
        %v3650 = vmul.f32 %v3610, %v3642
        %v3651 = vmul.f32 %v3611, %v3642
        %v3652 = vmul.f32 %v3612, %v3642
        %v3653 = vmul.f32 %v3613, %v3642
        %v3654 = vmul.f32 %v3614, %v3642
        %v3655 = vmul.f32 %v3615, %v3642
        %v3656 = vmul.f32 %v3616, %v3642
        %v3657 = vmul.f32 %v3617, %v3642
        %v3658 = vmul.f32 %v3618, %v3642
        %v3659 = vmul.f32 %v3619, %v3642
        %v3660 = vmul.f32 %v3620, %v3642
        %v3661 = vmul.f32 %v3621, %v3642
        %v3662 = vmul.f32 %v3622, %v3642
        %v3663 = vmul.f32 %v3623, %v3642
        %v3664 = vmul.f32 %v3624, %v3642
        %v3665 = vmul.f32 %v3625, %v3642
        %v3666 = vmul.f32 %v3626, %v3642
        %v3667 = vmul.f32 %v3627, %v3642
        %v3668 = vmul.f32 %v3628, %v3642
        %v3669 = vmul.f32 %v3629, %v3642
        %v3670 = vmul.f32 %v3630, %v3642
        %v3671 = vmul.f32 %v3631, %v3642
        %v3672 = vmul.f32 %v3632, %v3642
        %v3673 = vmul.f32 %v3633, %v3642
        %v3674 = vmul.f32 %v3634, %v3642
        %v3675 = vmul.f32 %v3635, %v3642
        %v3676 = vadd.f32 %v3572, %v3644
        %v3677 = vadd.f32 %v3573, %v3645
        %v3678 = vadd.f32 %v3574, %v3646
        %v3679 = vadd.f32 %v3575, %v3647
        %v3680 = vadd.f32 %v3576, %v3648
        %v3681 = vadd.f32 %v3577, %v3649
        %v3682 = vadd.f32 %v3578, %v3650
        %v3683 = vadd.f32 %v3579, %v3651
        %v3684 = vadd.f32 %v3580, %v3652
        %v3685 = vadd.f32 %v3581, %v3653
        %v3686 = vadd.f32 %v3582, %v3654
        %v3687 = vadd.f32 %v3583, %v3655
        %v3688 = vadd.f32 %v3584, %v3656
        %v3689 = vadd.f32 %v3585, %v3657
        %v3690 = vadd.f32 %v3586, %v3658
        %v3691 = vadd.f32 %v3587, %v3659
        %v3692 = vadd.f32 %v3588, %v3660
        %v3693 = vadd.f32 %v3589, %v3661
        %v3694 = vadd.f32 %v3590, %v3662
        %v3695 = vadd.f32 %v3591, %v3663
        %v3696 = vadd.f32 %v3592, %v3664
        %v3697 = vadd.f32 %v3593, %v3665
        %v3698 = vadd.f32 %v3594, %v3666
        %v3699 = vadd.f32 %v3595, %v3667
        %v3700 = vadd.f32 %v3596, %v3668
        %v3701 = vadd.f32 %v3597, %v3669
        %v3702 = vadd.f32 %v3598, %v3670
        %v3703 = vadd.f32 %v3599, %v3671
        %v3704 = vadd.f32 %v3600, %v3672
        %v3705 = vadd.f32 %v3601, %v3673
        %v3706 = vadd.f32 %v3602, %v3674
        %v3707 = vadd.f32 %v3603, %v3675
        %v3708 = vld [vmem:[%s3083 + $0x6] sm:$0xff]
        %v3709 = vld [vmem:[%s3083 + $0xe] sm:$0xff]
        %v3710 = vld [vmem:[%s3083 + $0x1e] sm:$0xff]
        %v3711 = vld [vmem:[%s3083 + $0x26] sm:$0xff]
        %v3712 = vld [vmem:[%s3083 + $0x36] sm:$0xff]
        %v3713 = vld [vmem:[%s3083 + $0x3e] sm:$0xff]
        %v3714 = vld [vmem:[%s3083 + $0x4e] sm:$0xff]
        %v3715 = vld [vmem:[%s3083 + $0x56] sm:$0xff]
        %v3716 = vld [vmem:[%s3083 + $0x66] sm:$0xff]
        %v3717 = vld [vmem:[%s3083 + $0x6e] sm:$0xff]
        %v3718 = vld [vmem:[%s3083 + $0x7e] sm:$0xff]
        %v3719 = vld [vmem:[%s3083 + $0x86] sm:$0xff]
        %v3720 = vld [vmem:[%s3083 + $0x96] sm:$0xff]
        %v3721 = vld [vmem:[%s3083 + $0x9e] sm:$0xff]
        %v3722 = vld [vmem:[%s3083 + $0xae] sm:$0xff]
        %v3723 = vld [vmem:[%s3083 + $0xb6] sm:$0xff]
        %v3724 = vld [vmem:[%s3083 + $0xc6] sm:$0xff]
        %v3725 = vld [vmem:[%s3083 + $0xce] sm:$0xff]
        %v3726 = vld [vmem:[%s3083 + $0xde] sm:$0xff]
        %v3727 = vld [vmem:[%s3083 + $0xe6] sm:$0xff]
        %v3728 = vld [vmem:[%s3083 + $0xf6] sm:$0xff]
        %v3729 = vld [vmem:[%s3083 + $0xfe] sm:$0xff]
        %v3730 = vld [vmem:[%s3083 + $0x10e] sm:$0xff]
        %v3731 = vld [vmem:[%s3083 + $0x116] sm:$0xff]
        %v3732 = vld [vmem:[%s3083 + $0x126] sm:$0xff]
        %v3733 = vld [vmem:[%s3083 + $0x12e] sm:$0xff]
        %v3734 = vld [vmem:[%s3083 + $0x13e] sm:$0xff]
        %v3735 = vld [vmem:[%s3083 + $0x146] sm:$0xff]
        %v3736 = vld [vmem:[%s3083 + $0x156] sm:$0xff]
        %v3737 = vld [vmem:[%s3083 + $0x15e] sm:$0xff]
        %v3738 = vld [vmem:[%s3083 + $0x16e] sm:$0xff]
        %v3739 = vld [vmem:[%s3083 + $0x176] sm:$0xff]
        %s3740 = scalar_lea.vmem %s1, 34
        %v3741 = vld [vmem:[%s3740] sm:$0x1]
        %v3743 = vlaneseq
        %v3744 = vshrl.u32 %v3743, 7
        %v3745 = vsub.s32 0, %v3744
        %v3746 = vrot.slane %v3741, %v3745
        %v3748 = vmul.f32 %v3708, %v3746
        %v3749 = vmul.f32 %v3709, %v3746
        %v3750 = vmul.f32 %v3710, %v3746
        %v3751 = vmul.f32 %v3711, %v3746
        %v3752 = vmul.f32 %v3712, %v3746
        %v3753 = vmul.f32 %v3713, %v3746
        %v3754 = vmul.f32 %v3714, %v3746
        %v3755 = vmul.f32 %v3715, %v3746
        %v3756 = vmul.f32 %v3716, %v3746
        %v3757 = vmul.f32 %v3717, %v3746
        %v3758 = vmul.f32 %v3718, %v3746
        %v3759 = vmul.f32 %v3719, %v3746
        %v3760 = vmul.f32 %v3720, %v3746
        %v3761 = vmul.f32 %v3721, %v3746
        %v3762 = vmul.f32 %v3722, %v3746
        %v3763 = vmul.f32 %v3723, %v3746
        %v3764 = vmul.f32 %v3724, %v3746
        %v3765 = vmul.f32 %v3725, %v3746
        %v3766 = vmul.f32 %v3726, %v3746
        %v3767 = vmul.f32 %v3727, %v3746
        %v3768 = vmul.f32 %v3728, %v3746
        %v3769 = vmul.f32 %v3729, %v3746
        %v3770 = vmul.f32 %v3730, %v3746
        %v3771 = vmul.f32 %v3731, %v3746
        %v3772 = vmul.f32 %v3732, %v3746
        %v3773 = vmul.f32 %v3733, %v3746
        %v3774 = vmul.f32 %v3734, %v3746
        %v3775 = vmul.f32 %v3735, %v3746
        %v3776 = vmul.f32 %v3736, %v3746
        %v3777 = vmul.f32 %v3737, %v3746
        %v3778 = vmul.f32 %v3738, %v3746
        %v3779 = vmul.f32 %v3739, %v3746
        %v3780 = vadd.f32 %v3676, %v3748
        %v3781 = vadd.f32 %v3677, %v3749
        %v3782 = vadd.f32 %v3678, %v3750
        %v3783 = vadd.f32 %v3679, %v3751
        %v3784 = vadd.f32 %v3680, %v3752
        %v3785 = vadd.f32 %v3681, %v3753
        %v3786 = vadd.f32 %v3682, %v3754
        %v3787 = vadd.f32 %v3683, %v3755
        %v3788 = vadd.f32 %v3684, %v3756
        %v3789 = vadd.f32 %v3685, %v3757
        %v3790 = vadd.f32 %v3686, %v3758
        %v3791 = vadd.f32 %v3687, %v3759
        %v3792 = vadd.f32 %v3688, %v3760
        %v3793 = vadd.f32 %v3689, %v3761
        %v3794 = vadd.f32 %v3690, %v3762
        %v3795 = vadd.f32 %v3691, %v3763
        %v3796 = vadd.f32 %v3692, %v3764
        %v3797 = vadd.f32 %v3693, %v3765
        %v3798 = vadd.f32 %v3694, %v3766
        %v3799 = vadd.f32 %v3695, %v3767
        %v3800 = vadd.f32 %v3696, %v3768
        %v3801 = vadd.f32 %v3697, %v3769
        %v3802 = vadd.f32 %v3698, %v3770
        %v3803 = vadd.f32 %v3699, %v3771
        %v3804 = vadd.f32 %v3700, %v3772
        %v3805 = vadd.f32 %v3701, %v3773
        %v3806 = vadd.f32 %v3702, %v3774
        %v3807 = vadd.f32 %v3703, %v3775
        %v3808 = vadd.f32 %v3704, %v3776
        %v3809 = vadd.f32 %v3705, %v3777
        %v3810 = vadd.f32 %v3706, %v3778
        %v3811 = vadd.f32 %v3707, %v3779
        %s3812 = scalar_lea.vmem %s168, 120
        %v3813 = vld [vmem:[%s3812] sm:$0xff]
        %v3814 = vld [vmem:[%s3812 + $0x8] sm:$0xff]
        %v3815 = vld [vmem:[%s3812 + $0x18] sm:$0xff]
        %v3816 = vld [vmem:[%s3812 + $0x20] sm:$0xff]
        %v3817 = vld [vmem:[%s3812 + $0x30] sm:$0xff]
        %v3818 = vld [vmem:[%s3812 + $0x38] sm:$0xff]
        %v3819 = vld [vmem:[%s3812 + $0x48] sm:$0xff]
        %v3820 = vld [vmem:[%s3812 + $0x50] sm:$0xff]
        %v3821 = vld [vmem:[%s3812 + $0x60] sm:$0xff]
        %v3822 = vld [vmem:[%s3812 + $0x68] sm:$0xff]
        %v3823 = vld [vmem:[%s3812 + $0x78] sm:$0xff]
        %v3824 = vld [vmem:[%s3812 + $0x80] sm:$0xff]
        %v3825 = vld [vmem:[%s3812 + $0x90] sm:$0xff]
        %v3826 = vld [vmem:[%s3812 + $0x98] sm:$0xff]
        %v3827 = vld [vmem:[%s3812 + $0xa8] sm:$0xff]
        %v3828 = vld [vmem:[%s3812 + $0xb0] sm:$0xff]
        %v3829 = vld [vmem:[%s3812 + $0xc0] sm:$0xff]
        %v3830 = vld [vmem:[%s3812 + $0xc8] sm:$0xff]
        %v3831 = vld [vmem:[%s3812 + $0xd8] sm:$0xff]
        %v3832 = vld [vmem:[%s3812 + $0xe0] sm:$0xff]
        %v3833 = vld [vmem:[%s3812 + $0xf0] sm:$0xff]
        %v3834 = vld [vmem:[%s3812 + $0xf8] sm:$0xff]
        %v3835 = vld [vmem:[%s3812 + $0x108] sm:$0xff]
        %v3836 = vld [vmem:[%s3812 + $0x110] sm:$0xff]
        %v3837 = vld [vmem:[%s3812 + $0x120] sm:$0xff]
        %v3838 = vld [vmem:[%s3812 + $0x128] sm:$0xff]
        %v3839 = vld [vmem:[%s3812 + $0x138] sm:$0xff]
        %v3840 = vld [vmem:[%s3812 + $0x140] sm:$0xff]
        %v3841 = vld [vmem:[%s3812 + $0x150] sm:$0xff]
        %v3842 = vld [vmem:[%s3812 + $0x158] sm:$0xff]
        %v3843 = vld [vmem:[%s3812 + $0x168] sm:$0xff]
        %v3844 = vld [vmem:[%s3812 + $0x170] sm:$0xff]
        %s3845 = scalar_lea.vmem %s1, 35
        %v3846 = vld [vmem:[%s3845] sm:$0x1]
        %v3848 = vlaneseq
        %v3849 = vshrl.u32 %v3848, 7
        %v3850 = vsub.s32 0, %v3849
        %v3851 = vrot.slane %v3846, %v3850
        %v3853 = vmul.f32 %v3813, %v3851
        %v3854 = vmul.f32 %v3814, %v3851
        %v3855 = vmul.f32 %v3815, %v3851
        %v3856 = vmul.f32 %v3816, %v3851
        %v3857 = vmul.f32 %v3817, %v3851
        %v3858 = vmul.f32 %v3818, %v3851
        %v3859 = vmul.f32 %v3819, %v3851
        %v3860 = vmul.f32 %v3820, %v3851
        %v3861 = vmul.f32 %v3821, %v3851
        %v3862 = vmul.f32 %v3822, %v3851
        %v3863 = vmul.f32 %v3823, %v3851
        %v3864 = vmul.f32 %v3824, %v3851
        %v3865 = vmul.f32 %v3825, %v3851
        %v3866 = vmul.f32 %v3826, %v3851
        %v3867 = vmul.f32 %v3827, %v3851
        %v3868 = vmul.f32 %v3828, %v3851
        %v3869 = vmul.f32 %v3829, %v3851
        %v3870 = vmul.f32 %v3830, %v3851
        %v3871 = vmul.f32 %v3831, %v3851
        %v3872 = vmul.f32 %v3832, %v3851
        %v3873 = vmul.f32 %v3833, %v3851
        %v3874 = vmul.f32 %v3834, %v3851
        %v3875 = vmul.f32 %v3835, %v3851
        %v3876 = vmul.f32 %v3836, %v3851
        %v3877 = vmul.f32 %v3837, %v3851
        %v3878 = vmul.f32 %v3838, %v3851
        %v3879 = vmul.f32 %v3839, %v3851
        %v3880 = vmul.f32 %v3840, %v3851
        %v3881 = vmul.f32 %v3841, %v3851
        %v3882 = vmul.f32 %v3842, %v3851
        %v3883 = vmul.f32 %v3843, %v3851
        %v3884 = vmul.f32 %v3844, %v3851
        %v3885 = vadd.f32 %v3780, %v3853
        %v3886 = vadd.f32 %v3781, %v3854
        %v3887 = vadd.f32 %v3782, %v3855
        %v3888 = vadd.f32 %v3783, %v3856
        %v3889 = vadd.f32 %v3784, %v3857
        %v3890 = vadd.f32 %v3785, %v3858
        %v3891 = vadd.f32 %v3786, %v3859
        %v3892 = vadd.f32 %v3787, %v3860
        %v3893 = vadd.f32 %v3788, %v3861
        %v3894 = vadd.f32 %v3789, %v3862
        %v3895 = vadd.f32 %v3790, %v3863
        %v3896 = vadd.f32 %v3791, %v3864
        %v3897 = vadd.f32 %v3792, %v3865
        %v3898 = vadd.f32 %v3793, %v3866
        %v3899 = vadd.f32 %v3794, %v3867
        %v3900 = vadd.f32 %v3795, %v3868
        %v3901 = vadd.f32 %v3796, %v3869
        %v3902 = vadd.f32 %v3797, %v3870
        %v3903 = vadd.f32 %v3798, %v3871
        %v3904 = vadd.f32 %v3799, %v3872
        %v3905 = vadd.f32 %v3800, %v3873
        %v3906 = vadd.f32 %v3801, %v3874
        %v3907 = vadd.f32 %v3802, %v3875
        %v3908 = vadd.f32 %v3803, %v3876
        %v3909 = vadd.f32 %v3804, %v3877
        %v3910 = vadd.f32 %v3805, %v3878
        %v3911 = vadd.f32 %v3806, %v3879
        %v3912 = vadd.f32 %v3807, %v3880
        %v3913 = vadd.f32 %v3808, %v3881
        %v3914 = vadd.f32 %v3809, %v3882
        %v3915 = vadd.f32 %v3810, %v3883
        %v3916 = vadd.f32 %v3811, %v3884
        %v3917 = vld [vmem:[%s3812 + $0x1] sm:$0xff]
        %v3918 = vld [vmem:[%s3812 + $0x9] sm:$0xff]
        %v3919 = vld [vmem:[%s3812 + $0x19] sm:$0xff]
        %v3920 = vld [vmem:[%s3812 + $0x21] sm:$0xff]
        %v3921 = vld [vmem:[%s3812 + $0x31] sm:$0xff]
        %v3922 = vld [vmem:[%s3812 + $0x39] sm:$0xff]
        %v3923 = vld [vmem:[%s3812 + $0x49] sm:$0xff]
        %v3924 = vld [vmem:[%s3812 + $0x51] sm:$0xff]
        %v3925 = vld [vmem:[%s3812 + $0x61] sm:$0xff]
        %v3926 = vld [vmem:[%s3812 + $0x69] sm:$0xff]
        %v3927 = vld [vmem:[%s3812 + $0x79] sm:$0xff]
        %v3928 = vld [vmem:[%s3812 + $0x81] sm:$0xff]
        %v3929 = vld [vmem:[%s3812 + $0x91] sm:$0xff]
        %v3930 = vld [vmem:[%s3812 + $0x99] sm:$0xff]
        %v3931 = vld [vmem:[%s3812 + $0xa9] sm:$0xff]
        %v3932 = vld [vmem:[%s3812 + $0xb1] sm:$0xff]
        %v3933 = vld [vmem:[%s3812 + $0xc1] sm:$0xff]
        %v3934 = vld [vmem:[%s3812 + $0xc9] sm:$0xff]
        %v3935 = vld [vmem:[%s3812 + $0xd9] sm:$0xff]
        %v3936 = vld [vmem:[%s3812 + $0xe1] sm:$0xff]
        %v3937 = vld [vmem:[%s3812 + $0xf1] sm:$0xff]
        %v3938 = vld [vmem:[%s3812 + $0xf9] sm:$0xff]
        %v3939 = vld [vmem:[%s3812 + $0x109] sm:$0xff]
        %v3940 = vld [vmem:[%s3812 + $0x111] sm:$0xff]
        %v3941 = vld [vmem:[%s3812 + $0x121] sm:$0xff]
        %v3942 = vld [vmem:[%s3812 + $0x129] sm:$0xff]
        %v3943 = vld [vmem:[%s3812 + $0x139] sm:$0xff]
        %v3944 = vld [vmem:[%s3812 + $0x141] sm:$0xff]
        %v3945 = vld [vmem:[%s3812 + $0x151] sm:$0xff]
        %v3946 = vld [vmem:[%s3812 + $0x159] sm:$0xff]
        %v3947 = vld [vmem:[%s3812 + $0x169] sm:$0xff]
        %v3948 = vld [vmem:[%s3812 + $0x171] sm:$0xff]
        %s3949 = scalar_lea.vmem %s1, 36
        %v3950 = vld [vmem:[%s3949] sm:$0x1]
        %v3952 = vlaneseq
        %v3953 = vshrl.u32 %v3952, 7
        %v3954 = vsub.s32 0, %v3953
        %v3955 = vrot.slane %v3950, %v3954
        %v3957 = vmul.f32 %v3917, %v3955
        %v3958 = vmul.f32 %v3918, %v3955
        %v3959 = vmul.f32 %v3919, %v3955
        %v3960 = vmul.f32 %v3920, %v3955
        %v3961 = vmul.f32 %v3921, %v3955
        %v3962 = vmul.f32 %v3922, %v3955
        %v3963 = vmul.f32 %v3923, %v3955
        %v3964 = vmul.f32 %v3924, %v3955
        %v3965 = vmul.f32 %v3925, %v3955
        %v3966 = vmul.f32 %v3926, %v3955
        %v3967 = vmul.f32 %v3927, %v3955
        %v3968 = vmul.f32 %v3928, %v3955
        %v3969 = vmul.f32 %v3929, %v3955
        %v3970 = vmul.f32 %v3930, %v3955
        %v3971 = vmul.f32 %v3931, %v3955
        %v3972 = vmul.f32 %v3932, %v3955
        %v3973 = vmul.f32 %v3933, %v3955
        %v3974 = vmul.f32 %v3934, %v3955
        %v3975 = vmul.f32 %v3935, %v3955
        %v3976 = vmul.f32 %v3936, %v3955
        %v3977 = vmul.f32 %v3937, %v3955
        %v3978 = vmul.f32 %v3938, %v3955
        %v3979 = vmul.f32 %v3939, %v3955
        %v3980 = vmul.f32 %v3940, %v3955
        %v3981 = vmul.f32 %v3941, %v3955
        %v3982 = vmul.f32 %v3942, %v3955
        %v3983 = vmul.f32 %v3943, %v3955
        %v3984 = vmul.f32 %v3944, %v3955
        %v3985 = vmul.f32 %v3945, %v3955
        %v3986 = vmul.f32 %v3946, %v3955
        %v3987 = vmul.f32 %v3947, %v3955
        %v3988 = vmul.f32 %v3948, %v3955
        %v3989 = vadd.f32 %v3885, %v3957
        %v3990 = vadd.f32 %v3886, %v3958
        %v3991 = vadd.f32 %v3887, %v3959
        %v3992 = vadd.f32 %v3888, %v3960
        %v3993 = vadd.f32 %v3889, %v3961
        %v3994 = vadd.f32 %v3890, %v3962
        %v3995 = vadd.f32 %v3891, %v3963
        %v3996 = vadd.f32 %v3892, %v3964
        %v3997 = vadd.f32 %v3893, %v3965
        %v3998 = vadd.f32 %v3894, %v3966
        %v3999 = vadd.f32 %v3895, %v3967
        %v4000 = vadd.f32 %v3896, %v3968
        %v4001 = vadd.f32 %v3897, %v3969
        %v4002 = vadd.f32 %v3898, %v3970
        %v4003 = vadd.f32 %v3899, %v3971
        %v4004 = vadd.f32 %v3900, %v3972
        %v4005 = vadd.f32 %v3901, %v3973
        %v4006 = vadd.f32 %v3902, %v3974
        %v4007 = vadd.f32 %v3903, %v3975
        %v4008 = vadd.f32 %v3904, %v3976
        %v4009 = vadd.f32 %v3905, %v3977
        %v4010 = vadd.f32 %v3906, %v3978
        %v4011 = vadd.f32 %v3907, %v3979
        %v4012 = vadd.f32 %v3908, %v3980
        %v4013 = vadd.f32 %v3909, %v3981
        %v4014 = vadd.f32 %v3910, %v3982
        %v4015 = vadd.f32 %v3911, %v3983
        %v4016 = vadd.f32 %v3912, %v3984
        %v4017 = vadd.f32 %v3913, %v3985
        %v4018 = vadd.f32 %v3914, %v3986
        %v4019 = vadd.f32 %v3915, %v3987
        %v4020 = vadd.f32 %v3916, %v3988
        %v4021 = vld [vmem:[%s3812 + $0x2] sm:$0xff]
        %v4022 = vld [vmem:[%s3812 + $0xa] sm:$0xff]
        %v4023 = vld [vmem:[%s3812 + $0x1a] sm:$0xff]
        %v4024 = vld [vmem:[%s3812 + $0x22] sm:$0xff]
        %v4025 = vld [vmem:[%s3812 + $0x32] sm:$0xff]
        %v4026 = vld [vmem:[%s3812 + $0x3a] sm:$0xff]
        %v4027 = vld [vmem:[%s3812 + $0x4a] sm:$0xff]
        %v4028 = vld [vmem:[%s3812 + $0x52] sm:$0xff]
        %v4029 = vld [vmem:[%s3812 + $0x62] sm:$0xff]
        %v4030 = vld [vmem:[%s3812 + $0x6a] sm:$0xff]
        %v4031 = vld [vmem:[%s3812 + $0x7a] sm:$0xff]
        %v4032 = vld [vmem:[%s3812 + $0x82] sm:$0xff]
        %v4033 = vld [vmem:[%s3812 + $0x92] sm:$0xff]
        %v4034 = vld [vmem:[%s3812 + $0x9a] sm:$0xff]
        %v4035 = vld [vmem:[%s3812 + $0xaa] sm:$0xff]
        %v4036 = vld [vmem:[%s3812 + $0xb2] sm:$0xff]
        %v4037 = vld [vmem:[%s3812 + $0xc2] sm:$0xff]
        %v4038 = vld [vmem:[%s3812 + $0xca] sm:$0xff]
        %v4039 = vld [vmem:[%s3812 + $0xda] sm:$0xff]
        %v4040 = vld [vmem:[%s3812 + $0xe2] sm:$0xff]
        %v4041 = vld [vmem:[%s3812 + $0xf2] sm:$0xff]
        %v4042 = vld [vmem:[%s3812 + $0xfa] sm:$0xff]
        %v4043 = vld [vmem:[%s3812 + $0x10a] sm:$0xff]
        %v4044 = vld [vmem:[%s3812 + $0x112] sm:$0xff]
        %v4045 = vld [vmem:[%s3812 + $0x122] sm:$0xff]
        %v4046 = vld [vmem:[%s3812 + $0x12a] sm:$0xff]
        %v4047 = vld [vmem:[%s3812 + $0x13a] sm:$0xff]
        %v4048 = vld [vmem:[%s3812 + $0x142] sm:$0xff]
        %v4049 = vld [vmem:[%s3812 + $0x152] sm:$0xff]
        %v4050 = vld [vmem:[%s3812 + $0x15a] sm:$0xff]
        %v4051 = vld [vmem:[%s3812 + $0x16a] sm:$0xff]
        %v4052 = vld [vmem:[%s3812 + $0x172] sm:$0xff]
        %s4053 = scalar_lea.vmem %s1, 37
        %v4054 = vld [vmem:[%s4053] sm:$0x1]
        %v4056 = vlaneseq
        %v4057 = vshrl.u32 %v4056, 7
        %v4058 = vsub.s32 0, %v4057
        %v4059 = vrot.slane %v4054, %v4058
        %v4061 = vmul.f32 %v4021, %v4059
        %v4062 = vmul.f32 %v4022, %v4059
        %v4063 = vmul.f32 %v4023, %v4059
        %v4064 = vmul.f32 %v4024, %v4059
        %v4065 = vmul.f32 %v4025, %v4059
        %v4066 = vmul.f32 %v4026, %v4059
        %v4067 = vmul.f32 %v4027, %v4059
        %v4068 = vmul.f32 %v4028, %v4059
        %v4069 = vmul.f32 %v4029, %v4059
        %v4070 = vmul.f32 %v4030, %v4059
        %v4071 = vmul.f32 %v4031, %v4059
        %v4072 = vmul.f32 %v4032, %v4059
        %v4073 = vmul.f32 %v4033, %v4059
        %v4074 = vmul.f32 %v4034, %v4059
        %v4075 = vmul.f32 %v4035, %v4059
        %v4076 = vmul.f32 %v4036, %v4059
        %v4077 = vmul.f32 %v4037, %v4059
        %v4078 = vmul.f32 %v4038, %v4059
        %v4079 = vmul.f32 %v4039, %v4059
        %v4080 = vmul.f32 %v4040, %v4059
        %v4081 = vmul.f32 %v4041, %v4059
        %v4082 = vmul.f32 %v4042, %v4059
        %v4083 = vmul.f32 %v4043, %v4059
        %v4084 = vmul.f32 %v4044, %v4059
        %v4085 = vmul.f32 %v4045, %v4059
        %v4086 = vmul.f32 %v4046, %v4059
        %v4087 = vmul.f32 %v4047, %v4059
        %v4088 = vmul.f32 %v4048, %v4059
        %v4089 = vmul.f32 %v4049, %v4059
        %v4090 = vmul.f32 %v4050, %v4059
        %v4091 = vmul.f32 %v4051, %v4059
        %v4092 = vmul.f32 %v4052, %v4059
        %v4093 = vadd.f32 %v3989, %v4061
        %v4094 = vadd.f32 %v3990, %v4062
        %v4095 = vadd.f32 %v3991, %v4063
        %v4096 = vadd.f32 %v3992, %v4064
        %v4097 = vadd.f32 %v3993, %v4065
        %v4098 = vadd.f32 %v3994, %v4066
        %v4099 = vadd.f32 %v3995, %v4067
        %v4100 = vadd.f32 %v3996, %v4068
        %v4101 = vadd.f32 %v3997, %v4069
        %v4102 = vadd.f32 %v3998, %v4070
        %v4103 = vadd.f32 %v3999, %v4071
        %v4104 = vadd.f32 %v4000, %v4072
        %v4105 = vadd.f32 %v4001, %v4073
        %v4106 = vadd.f32 %v4002, %v4074
        %v4107 = vadd.f32 %v4003, %v4075
        %v4108 = vadd.f32 %v4004, %v4076
        %v4109 = vadd.f32 %v4005, %v4077
        %v4110 = vadd.f32 %v4006, %v4078
        %v4111 = vadd.f32 %v4007, %v4079
        %v4112 = vadd.f32 %v4008, %v4080
        %v4113 = vadd.f32 %v4009, %v4081
        %v4114 = vadd.f32 %v4010, %v4082
        %v4115 = vadd.f32 %v4011, %v4083
        %v4116 = vadd.f32 %v4012, %v4084
        %v4117 = vadd.f32 %v4013, %v4085
        %v4118 = vadd.f32 %v4014, %v4086
        %v4119 = vadd.f32 %v4015, %v4087
        %v4120 = vadd.f32 %v4016, %v4088
        %v4121 = vadd.f32 %v4017, %v4089
        %v4122 = vadd.f32 %v4018, %v4090
        %v4123 = vadd.f32 %v4019, %v4091
        %v4124 = vadd.f32 %v4020, %v4092
        %v4125 = vld [vmem:[%s3812 + $0x3] sm:$0xff]
        %v4126 = vld [vmem:[%s3812 + $0xb] sm:$0xff]
        %v4127 = vld [vmem:[%s3812 + $0x1b] sm:$0xff]
        %v4128 = vld [vmem:[%s3812 + $0x23] sm:$0xff]
        %v4129 = vld [vmem:[%s3812 + $0x33] sm:$0xff]
        %v4130 = vld [vmem:[%s3812 + $0x3b] sm:$0xff]
        %v4131 = vld [vmem:[%s3812 + $0x4b] sm:$0xff]
        %v4132 = vld [vmem:[%s3812 + $0x53] sm:$0xff]
        %v4133 = vld [vmem:[%s3812 + $0x63] sm:$0xff]
        %v4134 = vld [vmem:[%s3812 + $0x6b] sm:$0xff]
        %v4135 = vld [vmem:[%s3812 + $0x7b] sm:$0xff]
        %v4136 = vld [vmem:[%s3812 + $0x83] sm:$0xff]
        %v4137 = vld [vmem:[%s3812 + $0x93] sm:$0xff]
        %v4138 = vld [vmem:[%s3812 + $0x9b] sm:$0xff]
        %v4139 = vld [vmem:[%s3812 + $0xab] sm:$0xff]
        %v4140 = vld [vmem:[%s3812 + $0xb3] sm:$0xff]
        %v4141 = vld [vmem:[%s3812 + $0xc3] sm:$0xff]
        %v4142 = vld [vmem:[%s3812 + $0xcb] sm:$0xff]
        %v4143 = vld [vmem:[%s3812 + $0xdb] sm:$0xff]
        %v4144 = vld [vmem:[%s3812 + $0xe3] sm:$0xff]
        %v4145 = vld [vmem:[%s3812 + $0xf3] sm:$0xff]
        %v4146 = vld [vmem:[%s3812 + $0xfb] sm:$0xff]
        %v4147 = vld [vmem:[%s3812 + $0x10b] sm:$0xff]
        %v4148 = vld [vmem:[%s3812 + $0x113] sm:$0xff]
        %v4149 = vld [vmem:[%s3812 + $0x123] sm:$0xff]
        %v4150 = vld [vmem:[%s3812 + $0x12b] sm:$0xff]
        %v4151 = vld [vmem:[%s3812 + $0x13b] sm:$0xff]
        %v4152 = vld [vmem:[%s3812 + $0x143] sm:$0xff]
        %v4153 = vld [vmem:[%s3812 + $0x153] sm:$0xff]
        %v4154 = vld [vmem:[%s3812 + $0x15b] sm:$0xff]
        %v4155 = vld [vmem:[%s3812 + $0x16b] sm:$0xff]
        %v4156 = vld [vmem:[%s3812 + $0x173] sm:$0xff]
        %s4157 = scalar_lea.vmem %s1, 38
        %v4158 = vld [vmem:[%s4157] sm:$0x1]
        %v4160 = vlaneseq
        %v4161 = vshrl.u32 %v4160, 7
        %v4162 = vsub.s32 0, %v4161
        %v4163 = vrot.slane %v4158, %v4162
        %v4165 = vmul.f32 %v4125, %v4163
        %v4166 = vmul.f32 %v4126, %v4163
        %v4167 = vmul.f32 %v4127, %v4163
        %v4168 = vmul.f32 %v4128, %v4163
        %v4169 = vmul.f32 %v4129, %v4163
        %v4170 = vmul.f32 %v4130, %v4163
        %v4171 = vmul.f32 %v4131, %v4163
        %v4172 = vmul.f32 %v4132, %v4163
        %v4173 = vmul.f32 %v4133, %v4163
        %v4174 = vmul.f32 %v4134, %v4163
        %v4175 = vmul.f32 %v4135, %v4163
        %v4176 = vmul.f32 %v4136, %v4163
        %v4177 = vmul.f32 %v4137, %v4163
        %v4178 = vmul.f32 %v4138, %v4163
        %v4179 = vmul.f32 %v4139, %v4163
        %v4180 = vmul.f32 %v4140, %v4163
        %v4181 = vmul.f32 %v4141, %v4163
        %v4182 = vmul.f32 %v4142, %v4163
        %v4183 = vmul.f32 %v4143, %v4163
        %v4184 = vmul.f32 %v4144, %v4163
        %v4185 = vmul.f32 %v4145, %v4163
        %v4186 = vmul.f32 %v4146, %v4163
        %v4187 = vmul.f32 %v4147, %v4163
        %v4188 = vmul.f32 %v4148, %v4163
        %v4189 = vmul.f32 %v4149, %v4163
        %v4190 = vmul.f32 %v4150, %v4163
        %v4191 = vmul.f32 %v4151, %v4163
        %v4192 = vmul.f32 %v4152, %v4163
        %v4193 = vmul.f32 %v4153, %v4163
        %v4194 = vmul.f32 %v4154, %v4163
        %v4195 = vmul.f32 %v4155, %v4163
        %v4196 = vmul.f32 %v4156, %v4163
        %v4197 = vadd.f32 %v4093, %v4165
        %v4198 = vadd.f32 %v4094, %v4166
        %v4199 = vadd.f32 %v4095, %v4167
        %v4200 = vadd.f32 %v4096, %v4168
        %v4201 = vadd.f32 %v4097, %v4169
        %v4202 = vadd.f32 %v4098, %v4170
        %v4203 = vadd.f32 %v4099, %v4171
        %v4204 = vadd.f32 %v4100, %v4172
        %v4205 = vadd.f32 %v4101, %v4173
        %v4206 = vadd.f32 %v4102, %v4174
        %v4207 = vadd.f32 %v4103, %v4175
        %v4208 = vadd.f32 %v4104, %v4176
        %v4209 = vadd.f32 %v4105, %v4177
        %v4210 = vadd.f32 %v4106, %v4178
        %v4211 = vadd.f32 %v4107, %v4179
        %v4212 = vadd.f32 %v4108, %v4180
        %v4213 = vadd.f32 %v4109, %v4181
        %v4214 = vadd.f32 %v4110, %v4182
        %v4215 = vadd.f32 %v4111, %v4183
        %v4216 = vadd.f32 %v4112, %v4184
        %v4217 = vadd.f32 %v4113, %v4185
        %v4218 = vadd.f32 %v4114, %v4186
        %v4219 = vadd.f32 %v4115, %v4187
        %v4220 = vadd.f32 %v4116, %v4188
        %v4221 = vadd.f32 %v4117, %v4189
        %v4222 = vadd.f32 %v4118, %v4190
        %v4223 = vadd.f32 %v4119, %v4191
        %v4224 = vadd.f32 %v4120, %v4192
        %v4225 = vadd.f32 %v4121, %v4193
        %v4226 = vadd.f32 %v4122, %v4194
        %v4227 = vadd.f32 %v4123, %v4195
        %v4228 = vadd.f32 %v4124, %v4196
        %v4229 = vld [vmem:[%s3812 + $0x4] sm:$0xff]
        %v4230 = vld [vmem:[%s3812 + $0xc] sm:$0xff]
        %v4231 = vld [vmem:[%s3812 + $0x1c] sm:$0xff]
        %v4232 = vld [vmem:[%s3812 + $0x24] sm:$0xff]
        %v4233 = vld [vmem:[%s3812 + $0x34] sm:$0xff]
        %v4234 = vld [vmem:[%s3812 + $0x3c] sm:$0xff]
        %v4235 = vld [vmem:[%s3812 + $0x4c] sm:$0xff]
        %v4236 = vld [vmem:[%s3812 + $0x54] sm:$0xff]
        %v4237 = vld [vmem:[%s3812 + $0x64] sm:$0xff]
        %v4238 = vld [vmem:[%s3812 + $0x6c] sm:$0xff]
        %v4239 = vld [vmem:[%s3812 + $0x7c] sm:$0xff]
        %v4240 = vld [vmem:[%s3812 + $0x84] sm:$0xff]
        %v4241 = vld [vmem:[%s3812 + $0x94] sm:$0xff]
        %v4242 = vld [vmem:[%s3812 + $0x9c] sm:$0xff]
        %v4243 = vld [vmem:[%s3812 + $0xac] sm:$0xff]
        %v4244 = vld [vmem:[%s3812 + $0xb4] sm:$0xff]
        %v4245 = vld [vmem:[%s3812 + $0xc4] sm:$0xff]
        %v4246 = vld [vmem:[%s3812 + $0xcc] sm:$0xff]
        %v4247 = vld [vmem:[%s3812 + $0xdc] sm:$0xff]
        %v4248 = vld [vmem:[%s3812 + $0xe4] sm:$0xff]
        %v4249 = vld [vmem:[%s3812 + $0xf4] sm:$0xff]
        %v4250 = vld [vmem:[%s3812 + $0xfc] sm:$0xff]
        %v4251 = vld [vmem:[%s3812 + $0x10c] sm:$0xff]
        %v4252 = vld [vmem:[%s3812 + $0x114] sm:$0xff]
        %v4253 = vld [vmem:[%s3812 + $0x124] sm:$0xff]
        %v4254 = vld [vmem:[%s3812 + $0x12c] sm:$0xff]
        %v4255 = vld [vmem:[%s3812 + $0x13c] sm:$0xff]
        %v4256 = vld [vmem:[%s3812 + $0x144] sm:$0xff]
        %v4257 = vld [vmem:[%s3812 + $0x154] sm:$0xff]
        %v4258 = vld [vmem:[%s3812 + $0x15c] sm:$0xff]
        %v4259 = vld [vmem:[%s3812 + $0x16c] sm:$0xff]
        %v4260 = vld [vmem:[%s3812 + $0x174] sm:$0xff]
        %s4261 = scalar_lea.vmem %s1, 39
        %v4262 = vld [vmem:[%s4261] sm:$0x1]
        %v4264 = vlaneseq
        %v4265 = vshrl.u32 %v4264, 7
        %v4266 = vsub.s32 0, %v4265
        %v4267 = vrot.slane %v4262, %v4266
        %v4269 = vmul.f32 %v4229, %v4267
        %v4270 = vmul.f32 %v4230, %v4267
        %v4271 = vmul.f32 %v4231, %v4267
        %v4272 = vmul.f32 %v4232, %v4267
        %v4273 = vmul.f32 %v4233, %v4267
        %v4274 = vmul.f32 %v4234, %v4267
        %v4275 = vmul.f32 %v4235, %v4267
        %v4276 = vmul.f32 %v4236, %v4267
        %v4277 = vmul.f32 %v4237, %v4267
        %v4278 = vmul.f32 %v4238, %v4267
        %v4279 = vmul.f32 %v4239, %v4267
        %v4280 = vmul.f32 %v4240, %v4267
        %v4281 = vmul.f32 %v4241, %v4267
        %v4282 = vmul.f32 %v4242, %v4267
        %v4283 = vmul.f32 %v4243, %v4267
        %v4284 = vmul.f32 %v4244, %v4267
        %v4285 = vmul.f32 %v4245, %v4267
        %v4286 = vmul.f32 %v4246, %v4267
        %v4287 = vmul.f32 %v4247, %v4267
        %v4288 = vmul.f32 %v4248, %v4267
        %v4289 = vmul.f32 %v4249, %v4267
        %v4290 = vmul.f32 %v4250, %v4267
        %v4291 = vmul.f32 %v4251, %v4267
        %v4292 = vmul.f32 %v4252, %v4267
        %v4293 = vmul.f32 %v4253, %v4267
        %v4294 = vmul.f32 %v4254, %v4267
        %v4295 = vmul.f32 %v4255, %v4267
        %v4296 = vmul.f32 %v4256, %v4267
        %v4297 = vmul.f32 %v4257, %v4267
        %v4298 = vmul.f32 %v4258, %v4267
        %v4299 = vmul.f32 %v4259, %v4267
        %v4300 = vmul.f32 %v4260, %v4267
        %v4301 = vadd.f32 %v4197, %v4269
        %v4302 = vadd.f32 %v4198, %v4270
        %v4303 = vadd.f32 %v4199, %v4271
        %v4304 = vadd.f32 %v4200, %v4272
        %v4305 = vadd.f32 %v4201, %v4273
        %v4306 = vadd.f32 %v4202, %v4274
        %v4307 = vadd.f32 %v4203, %v4275
        %v4308 = vadd.f32 %v4204, %v4276
        %v4309 = vadd.f32 %v4205, %v4277
        %v4310 = vadd.f32 %v4206, %v4278
        %v4311 = vadd.f32 %v4207, %v4279
        %v4312 = vadd.f32 %v4208, %v4280
        %v4313 = vadd.f32 %v4209, %v4281
        %v4314 = vadd.f32 %v4210, %v4282
        %v4315 = vadd.f32 %v4211, %v4283
        %v4316 = vadd.f32 %v4212, %v4284
        %v4317 = vadd.f32 %v4213, %v4285
        %v4318 = vadd.f32 %v4214, %v4286
        %v4319 = vadd.f32 %v4215, %v4287
        %v4320 = vadd.f32 %v4216, %v4288
        %v4321 = vadd.f32 %v4217, %v4289
        %v4322 = vadd.f32 %v4218, %v4290
        %v4323 = vadd.f32 %v4219, %v4291
        %v4324 = vadd.f32 %v4220, %v4292
        %v4325 = vadd.f32 %v4221, %v4293
        %v4326 = vadd.f32 %v4222, %v4294
        %v4327 = vadd.f32 %v4223, %v4295
        %v4328 = vadd.f32 %v4224, %v4296
        %v4329 = vadd.f32 %v4225, %v4297
        %v4330 = vadd.f32 %v4226, %v4298
        %v4331 = vadd.f32 %v4227, %v4299
        %v4332 = vadd.f32 %v4228, %v4300
        %v4333 = vld [vmem:[%s3812 + $0x5] sm:$0xff]
        %v4334 = vld [vmem:[%s3812 + $0xd] sm:$0xff]
        %v4335 = vld [vmem:[%s3812 + $0x1d] sm:$0xff]
        %v4336 = vld [vmem:[%s3812 + $0x25] sm:$0xff]
        %v4337 = vld [vmem:[%s3812 + $0x35] sm:$0xff]
        %v4338 = vld [vmem:[%s3812 + $0x3d] sm:$0xff]
        %v4339 = vld [vmem:[%s3812 + $0x4d] sm:$0xff]
        %v4340 = vld [vmem:[%s3812 + $0x55] sm:$0xff]
        %v4341 = vld [vmem:[%s3812 + $0x65] sm:$0xff]
        %v4342 = vld [vmem:[%s3812 + $0x6d] sm:$0xff]
        %v4343 = vld [vmem:[%s3812 + $0x7d] sm:$0xff]
        %v4344 = vld [vmem:[%s3812 + $0x85] sm:$0xff]
        %v4345 = vld [vmem:[%s3812 + $0x95] sm:$0xff]
        %v4346 = vld [vmem:[%s3812 + $0x9d] sm:$0xff]
        %v4347 = vld [vmem:[%s3812 + $0xad] sm:$0xff]
        %v4348 = vld [vmem:[%s3812 + $0xb5] sm:$0xff]
        %v4349 = vld [vmem:[%s3812 + $0xc5] sm:$0xff]
        %v4350 = vld [vmem:[%s3812 + $0xcd] sm:$0xff]
        %v4351 = vld [vmem:[%s3812 + $0xdd] sm:$0xff]
        %v4352 = vld [vmem:[%s3812 + $0xe5] sm:$0xff]
        %v4353 = vld [vmem:[%s3812 + $0xf5] sm:$0xff]
        %v4354 = vld [vmem:[%s3812 + $0xfd] sm:$0xff]
        %v4355 = vld [vmem:[%s3812 + $0x10d] sm:$0xff]
        %v4356 = vld [vmem:[%s3812 + $0x115] sm:$0xff]
        %v4357 = vld [vmem:[%s3812 + $0x125] sm:$0xff]
        %v4358 = vld [vmem:[%s3812 + $0x12d] sm:$0xff]
        %v4359 = vld [vmem:[%s3812 + $0x13d] sm:$0xff]
        %v4360 = vld [vmem:[%s3812 + $0x145] sm:$0xff]
        %v4361 = vld [vmem:[%s3812 + $0x155] sm:$0xff]
        %v4362 = vld [vmem:[%s3812 + $0x15d] sm:$0xff]
        %v4363 = vld [vmem:[%s3812 + $0x16d] sm:$0xff]
        %v4364 = vld [vmem:[%s3812 + $0x175] sm:$0xff]
        %s4365 = scalar_lea.vmem %s1, 40
        %v4366 = vld [vmem:[%s4365] sm:$0x1]
        %v4368 = vlaneseq
        %v4369 = vshrl.u32 %v4368, 7
        %v4370 = vsub.s32 0, %v4369
        %v4371 = vrot.slane %v4366, %v4370
        %v4373 = vmul.f32 %v4333, %v4371
        %v4374 = vmul.f32 %v4334, %v4371
        %v4375 = vmul.f32 %v4335, %v4371
        %v4376 = vmul.f32 %v4336, %v4371
        %v4377 = vmul.f32 %v4337, %v4371
        %v4378 = vmul.f32 %v4338, %v4371
        %v4379 = vmul.f32 %v4339, %v4371
        %v4380 = vmul.f32 %v4340, %v4371
        %v4381 = vmul.f32 %v4341, %v4371
        %v4382 = vmul.f32 %v4342, %v4371
        %v4383 = vmul.f32 %v4343, %v4371
        %v4384 = vmul.f32 %v4344, %v4371
        %v4385 = vmul.f32 %v4345, %v4371
        %v4386 = vmul.f32 %v4346, %v4371
        %v4387 = vmul.f32 %v4347, %v4371
        %v4388 = vmul.f32 %v4348, %v4371
        %v4389 = vmul.f32 %v4349, %v4371
        %v4390 = vmul.f32 %v4350, %v4371
        %v4391 = vmul.f32 %v4351, %v4371
        %v4392 = vmul.f32 %v4352, %v4371
        %v4393 = vmul.f32 %v4353, %v4371
        %v4394 = vmul.f32 %v4354, %v4371
        %v4395 = vmul.f32 %v4355, %v4371
        %v4396 = vmul.f32 %v4356, %v4371
        %v4397 = vmul.f32 %v4357, %v4371
        %v4398 = vmul.f32 %v4358, %v4371
        %v4399 = vmul.f32 %v4359, %v4371
        %v4400 = vmul.f32 %v4360, %v4371
        %v4401 = vmul.f32 %v4361, %v4371
        %v4402 = vmul.f32 %v4362, %v4371
        %v4403 = vmul.f32 %v4363, %v4371
        %v4404 = vmul.f32 %v4364, %v4371
        %v4405 = vadd.f32 %v4301, %v4373
        %v4406 = vadd.f32 %v4302, %v4374
        %v4407 = vadd.f32 %v4303, %v4375
        %v4408 = vadd.f32 %v4304, %v4376
        %v4409 = vadd.f32 %v4305, %v4377
        %v4410 = vadd.f32 %v4306, %v4378
        %v4411 = vadd.f32 %v4307, %v4379
        %v4412 = vadd.f32 %v4308, %v4380
        %v4413 = vadd.f32 %v4309, %v4381
        %v4414 = vadd.f32 %v4310, %v4382
        %v4415 = vadd.f32 %v4311, %v4383
        %v4416 = vadd.f32 %v4312, %v4384
        %v4417 = vadd.f32 %v4313, %v4385
        %v4418 = vadd.f32 %v4314, %v4386
        %v4419 = vadd.f32 %v4315, %v4387
        %v4420 = vadd.f32 %v4316, %v4388
        %v4421 = vadd.f32 %v4317, %v4389
        %v4422 = vadd.f32 %v4318, %v4390
        %v4423 = vadd.f32 %v4319, %v4391
        %v4424 = vadd.f32 %v4320, %v4392
        %v4425 = vadd.f32 %v4321, %v4393
        %v4426 = vadd.f32 %v4322, %v4394
        %v4427 = vadd.f32 %v4323, %v4395
        %v4428 = vadd.f32 %v4324, %v4396
        %v4429 = vadd.f32 %v4325, %v4397
        %v4430 = vadd.f32 %v4326, %v4398
        %v4431 = vadd.f32 %v4327, %v4399
        %v4432 = vadd.f32 %v4328, %v4400
        %v4433 = vadd.f32 %v4329, %v4401
        %v4434 = vadd.f32 %v4330, %v4402
        %v4435 = vadd.f32 %v4331, %v4403
        %v4436 = vadd.f32 %v4332, %v4404
        %v4437 = vld [vmem:[%s3812 + $0x6] sm:$0xff]
        %v4438 = vld [vmem:[%s3812 + $0xe] sm:$0xff]
        %v4439 = vld [vmem:[%s3812 + $0x1e] sm:$0xff]
        %v4440 = vld [vmem:[%s3812 + $0x26] sm:$0xff]
        %v4441 = vld [vmem:[%s3812 + $0x36] sm:$0xff]
        %v4442 = vld [vmem:[%s3812 + $0x3e] sm:$0xff]
        %v4443 = vld [vmem:[%s3812 + $0x4e] sm:$0xff]
        %v4444 = vld [vmem:[%s3812 + $0x56] sm:$0xff]
        %v4445 = vld [vmem:[%s3812 + $0x66] sm:$0xff]
        %v4446 = vld [vmem:[%s3812 + $0x6e] sm:$0xff]
        %v4447 = vld [vmem:[%s3812 + $0x7e] sm:$0xff]
        %v4448 = vld [vmem:[%s3812 + $0x86] sm:$0xff]
        %v4449 = vld [vmem:[%s3812 + $0x96] sm:$0xff]
        %v4450 = vld [vmem:[%s3812 + $0x9e] sm:$0xff]
        %v4451 = vld [vmem:[%s3812 + $0xae] sm:$0xff]
        %v4452 = vld [vmem:[%s3812 + $0xb6] sm:$0xff]
        %v4453 = vld [vmem:[%s3812 + $0xc6] sm:$0xff]
        %v4454 = vld [vmem:[%s3812 + $0xce] sm:$0xff]
        %v4455 = vld [vmem:[%s3812 + $0xde] sm:$0xff]
        %v4456 = vld [vmem:[%s3812 + $0xe6] sm:$0xff]
        %v4457 = vld [vmem:[%s3812 + $0xf6] sm:$0xff]
        %v4458 = vld [vmem:[%s3812 + $0xfe] sm:$0xff]
        %v4459 = vld [vmem:[%s3812 + $0x10e] sm:$0xff]
        %v4460 = vld [vmem:[%s3812 + $0x116] sm:$0xff]
        %v4461 = vld [vmem:[%s3812 + $0x126] sm:$0xff]
        %v4462 = vld [vmem:[%s3812 + $0x12e] sm:$0xff]
        %v4463 = vld [vmem:[%s3812 + $0x13e] sm:$0xff]
        %v4464 = vld [vmem:[%s3812 + $0x146] sm:$0xff]
        %v4465 = vld [vmem:[%s3812 + $0x156] sm:$0xff]
        %v4466 = vld [vmem:[%s3812 + $0x15e] sm:$0xff]
        %v4467 = vld [vmem:[%s3812 + $0x16e] sm:$0xff]
        %v4468 = vld [vmem:[%s3812 + $0x176] sm:$0xff]
        %s4469 = scalar_lea.vmem %s1, 41
        %v4470 = vld [vmem:[%s4469] sm:$0x1]
        %v4472 = vlaneseq
        %v4473 = vshrl.u32 %v4472, 7
        %v4474 = vsub.s32 0, %v4473
        %v4475 = vrot.slane %v4470, %v4474
        %v4477 = vmul.f32 %v4437, %v4475
        %v4478 = vmul.f32 %v4438, %v4475
        %v4479 = vmul.f32 %v4439, %v4475
        %v4480 = vmul.f32 %v4440, %v4475
        %v4481 = vmul.f32 %v4441, %v4475
        %v4482 = vmul.f32 %v4442, %v4475
        %v4483 = vmul.f32 %v4443, %v4475
        %v4484 = vmul.f32 %v4444, %v4475
        %v4485 = vmul.f32 %v4445, %v4475
        %v4486 = vmul.f32 %v4446, %v4475
        %v4487 = vmul.f32 %v4447, %v4475
        %v4488 = vmul.f32 %v4448, %v4475
        %v4489 = vmul.f32 %v4449, %v4475
        %v4490 = vmul.f32 %v4450, %v4475
        %v4491 = vmul.f32 %v4451, %v4475
        %v4492 = vmul.f32 %v4452, %v4475
        %v4493 = vmul.f32 %v4453, %v4475
        %v4494 = vmul.f32 %v4454, %v4475
        %v4495 = vmul.f32 %v4455, %v4475
        %v4496 = vmul.f32 %v4456, %v4475
        %v4497 = vmul.f32 %v4457, %v4475
        %v4498 = vmul.f32 %v4458, %v4475
        %v4499 = vmul.f32 %v4459, %v4475
        %v4500 = vmul.f32 %v4460, %v4475
        %v4501 = vmul.f32 %v4461, %v4475
        %v4502 = vmul.f32 %v4462, %v4475
        %v4503 = vmul.f32 %v4463, %v4475
        %v4504 = vmul.f32 %v4464, %v4475
        %v4505 = vmul.f32 %v4465, %v4475
        %v4506 = vmul.f32 %v4466, %v4475
        %v4507 = vmul.f32 %v4467, %v4475
        %v4508 = vmul.f32 %v4468, %v4475
        %v4509 = vadd.f32 %v4405, %v4477
        %v4510 = vadd.f32 %v4406, %v4478
        %v4511 = vadd.f32 %v4407, %v4479
        %v4512 = vadd.f32 %v4408, %v4480
        %v4513 = vadd.f32 %v4409, %v4481
        %v4514 = vadd.f32 %v4410, %v4482
        %v4515 = vadd.f32 %v4411, %v4483
        %v4516 = vadd.f32 %v4412, %v4484
        %v4517 = vadd.f32 %v4413, %v4485
        %v4518 = vadd.f32 %v4414, %v4486
        %v4519 = vadd.f32 %v4415, %v4487
        %v4520 = vadd.f32 %v4416, %v4488
        %v4521 = vadd.f32 %v4417, %v4489
        %v4522 = vadd.f32 %v4418, %v4490
        %v4523 = vadd.f32 %v4419, %v4491
        %v4524 = vadd.f32 %v4420, %v4492
        %v4525 = vadd.f32 %v4421, %v4493
        %v4526 = vadd.f32 %v4422, %v4494
        %v4527 = vadd.f32 %v4423, %v4495
        %v4528 = vadd.f32 %v4424, %v4496
        %v4529 = vadd.f32 %v4425, %v4497
        %v4530 = vadd.f32 %v4426, %v4498
        %v4531 = vadd.f32 %v4427, %v4499
        %v4532 = vadd.f32 %v4428, %v4500
        %v4533 = vadd.f32 %v4429, %v4501
        %v4534 = vadd.f32 %v4430, %v4502
        %v4535 = vadd.f32 %v4431, %v4503
        %v4536 = vadd.f32 %v4432, %v4504
        %v4537 = vadd.f32 %v4433, %v4505
        %v4538 = vadd.f32 %v4434, %v4506
        %v4539 = vadd.f32 %v4435, %v4507
        %v4540 = vadd.f32 %v4436, %v4508
        %s4541 = scalar_lea.vmem %s168, 144
        %v4542 = vld [vmem:[%s4541] sm:$0xff]
        %v4543 = vld [vmem:[%s4541 + $0x8] sm:$0xff]
        %v4544 = vld [vmem:[%s4541 + $0x18] sm:$0xff]
        %v4545 = vld [vmem:[%s4541 + $0x20] sm:$0xff]
        %v4546 = vld [vmem:[%s4541 + $0x30] sm:$0xff]
        %v4547 = vld [vmem:[%s4541 + $0x38] sm:$0xff]
        %v4548 = vld [vmem:[%s4541 + $0x48] sm:$0xff]
        %v4549 = vld [vmem:[%s4541 + $0x50] sm:$0xff]
        %v4550 = vld [vmem:[%s4541 + $0x60] sm:$0xff]
        %v4551 = vld [vmem:[%s4541 + $0x68] sm:$0xff]
        %v4552 = vld [vmem:[%s4541 + $0x78] sm:$0xff]
        %v4553 = vld [vmem:[%s4541 + $0x80] sm:$0xff]
        %v4554 = vld [vmem:[%s4541 + $0x90] sm:$0xff]
        %v4555 = vld [vmem:[%s4541 + $0x98] sm:$0xff]
        %v4556 = vld [vmem:[%s4541 + $0xa8] sm:$0xff]
        %v4557 = vld [vmem:[%s4541 + $0xb0] sm:$0xff]
        %v4558 = vld [vmem:[%s4541 + $0xc0] sm:$0xff]
        %v4559 = vld [vmem:[%s4541 + $0xc8] sm:$0xff]
        %v4560 = vld [vmem:[%s4541 + $0xd8] sm:$0xff]
        %v4561 = vld [vmem:[%s4541 + $0xe0] sm:$0xff]
        %v4562 = vld [vmem:[%s4541 + $0xf0] sm:$0xff]
        %v4563 = vld [vmem:[%s4541 + $0xf8] sm:$0xff]
        %v4564 = vld [vmem:[%s4541 + $0x108] sm:$0xff]
        %v4565 = vld [vmem:[%s4541 + $0x110] sm:$0xff]
        %v4566 = vld [vmem:[%s4541 + $0x120] sm:$0xff]
        %v4567 = vld [vmem:[%s4541 + $0x128] sm:$0xff]
        %v4568 = vld [vmem:[%s4541 + $0x138] sm:$0xff]
        %v4569 = vld [vmem:[%s4541 + $0x140] sm:$0xff]
        %v4570 = vld [vmem:[%s4541 + $0x150] sm:$0xff]
        %v4571 = vld [vmem:[%s4541 + $0x158] sm:$0xff]
        %v4572 = vld [vmem:[%s4541 + $0x168] sm:$0xff]
        %v4573 = vld [vmem:[%s4541 + $0x170] sm:$0xff]
        %s4574 = scalar_lea.vmem %s1, 42
        %v4575 = vld [vmem:[%s4574] sm:$0x1]
        %v4577 = vlaneseq
        %v4578 = vshrl.u32 %v4577, 7
        %v4579 = vsub.s32 0, %v4578
        %v4580 = vrot.slane %v4575, %v4579
        %v4582 = vmul.f32 %v4542, %v4580
        %v4583 = vmul.f32 %v4543, %v4580
        %v4584 = vmul.f32 %v4544, %v4580
        %v4585 = vmul.f32 %v4545, %v4580
        %v4586 = vmul.f32 %v4546, %v4580
        %v4587 = vmul.f32 %v4547, %v4580
        %v4588 = vmul.f32 %v4548, %v4580
        %v4589 = vmul.f32 %v4549, %v4580
        %v4590 = vmul.f32 %v4550, %v4580
        %v4591 = vmul.f32 %v4551, %v4580
        %v4592 = vmul.f32 %v4552, %v4580
        %v4593 = vmul.f32 %v4553, %v4580
        %v4594 = vmul.f32 %v4554, %v4580
        %v4595 = vmul.f32 %v4555, %v4580
        %v4596 = vmul.f32 %v4556, %v4580
        %v4597 = vmul.f32 %v4557, %v4580
        %v4598 = vmul.f32 %v4558, %v4580
        %v4599 = vmul.f32 %v4559, %v4580
        %v4600 = vmul.f32 %v4560, %v4580
        %v4601 = vmul.f32 %v4561, %v4580
        %v4602 = vmul.f32 %v4562, %v4580
        %v4603 = vmul.f32 %v4563, %v4580
        %v4604 = vmul.f32 %v4564, %v4580
        %v4605 = vmul.f32 %v4565, %v4580
        %v4606 = vmul.f32 %v4566, %v4580
        %v4607 = vmul.f32 %v4567, %v4580
        %v4608 = vmul.f32 %v4568, %v4580
        %v4609 = vmul.f32 %v4569, %v4580
        %v4610 = vmul.f32 %v4570, %v4580
        %v4611 = vmul.f32 %v4571, %v4580
        %v4612 = vmul.f32 %v4572, %v4580
        %v4613 = vmul.f32 %v4573, %v4580
        %v4614 = vadd.f32 %v4509, %v4582
        %v4615 = vadd.f32 %v4510, %v4583
        %v4616 = vadd.f32 %v4511, %v4584
        %v4617 = vadd.f32 %v4512, %v4585
        %v4618 = vadd.f32 %v4513, %v4586
        %v4619 = vadd.f32 %v4514, %v4587
        %v4620 = vadd.f32 %v4515, %v4588
        %v4621 = vadd.f32 %v4516, %v4589
        %v4622 = vadd.f32 %v4517, %v4590
        %v4623 = vadd.f32 %v4518, %v4591
        %v4624 = vadd.f32 %v4519, %v4592
        %v4625 = vadd.f32 %v4520, %v4593
        %v4626 = vadd.f32 %v4521, %v4594
        %v4627 = vadd.f32 %v4522, %v4595
        %v4628 = vadd.f32 %v4523, %v4596
        %v4629 = vadd.f32 %v4524, %v4597
        %v4630 = vadd.f32 %v4525, %v4598
        %v4631 = vadd.f32 %v4526, %v4599
        %v4632 = vadd.f32 %v4527, %v4600
        %v4633 = vadd.f32 %v4528, %v4601
        %v4634 = vadd.f32 %v4529, %v4602
        %v4635 = vadd.f32 %v4530, %v4603
        %v4636 = vadd.f32 %v4531, %v4604
        %v4637 = vadd.f32 %v4532, %v4605
        %v4638 = vadd.f32 %v4533, %v4606
        %v4639 = vadd.f32 %v4534, %v4607
        %v4640 = vadd.f32 %v4535, %v4608
        %v4641 = vadd.f32 %v4536, %v4609
        %v4642 = vadd.f32 %v4537, %v4610
        %v4643 = vadd.f32 %v4538, %v4611
        %v4644 = vadd.f32 %v4539, %v4612
        %v4645 = vadd.f32 %v4540, %v4613
        %v4646 = vld [vmem:[%s4541 + $0x1] sm:$0xff]
        %v4647 = vld [vmem:[%s4541 + $0x9] sm:$0xff]
        %v4648 = vld [vmem:[%s4541 + $0x19] sm:$0xff]
        %v4649 = vld [vmem:[%s4541 + $0x21] sm:$0xff]
        %v4650 = vld [vmem:[%s4541 + $0x31] sm:$0xff]
        %v4651 = vld [vmem:[%s4541 + $0x39] sm:$0xff]
        %v4652 = vld [vmem:[%s4541 + $0x49] sm:$0xff]
        %v4653 = vld [vmem:[%s4541 + $0x51] sm:$0xff]
        %v4654 = vld [vmem:[%s4541 + $0x61] sm:$0xff]
        %v4655 = vld [vmem:[%s4541 + $0x69] sm:$0xff]
        %v4656 = vld [vmem:[%s4541 + $0x79] sm:$0xff]
        %v4657 = vld [vmem:[%s4541 + $0x81] sm:$0xff]
        %v4658 = vld [vmem:[%s4541 + $0x91] sm:$0xff]
        %v4659 = vld [vmem:[%s4541 + $0x99] sm:$0xff]
        %v4660 = vld [vmem:[%s4541 + $0xa9] sm:$0xff]
        %v4661 = vld [vmem:[%s4541 + $0xb1] sm:$0xff]
        %v4662 = vld [vmem:[%s4541 + $0xc1] sm:$0xff]
        %v4663 = vld [vmem:[%s4541 + $0xc9] sm:$0xff]
        %v4664 = vld [vmem:[%s4541 + $0xd9] sm:$0xff]
        %v4665 = vld [vmem:[%s4541 + $0xe1] sm:$0xff]
        %v4666 = vld [vmem:[%s4541 + $0xf1] sm:$0xff]
        %v4667 = vld [vmem:[%s4541 + $0xf9] sm:$0xff]
        %v4668 = vld [vmem:[%s4541 + $0x109] sm:$0xff]
        %v4669 = vld [vmem:[%s4541 + $0x111] sm:$0xff]
        %v4670 = vld [vmem:[%s4541 + $0x121] sm:$0xff]
        %v4671 = vld [vmem:[%s4541 + $0x129] sm:$0xff]
        %v4672 = vld [vmem:[%s4541 + $0x139] sm:$0xff]
        %v4673 = vld [vmem:[%s4541 + $0x141] sm:$0xff]
        %v4674 = vld [vmem:[%s4541 + $0x151] sm:$0xff]
        %v4675 = vld [vmem:[%s4541 + $0x159] sm:$0xff]
        %v4676 = vld [vmem:[%s4541 + $0x169] sm:$0xff]
        %v4677 = vld [vmem:[%s4541 + $0x171] sm:$0xff]
        %s4678 = scalar_lea.vmem %s1, 43
        %v4679 = vld [vmem:[%s4678] sm:$0x1]
        %v4681 = vlaneseq
        %v4682 = vshrl.u32 %v4681, 7
        %v4683 = vsub.s32 0, %v4682
        %v4684 = vrot.slane %v4679, %v4683
        %v4686 = vmul.f32 %v4646, %v4684
        %v4687 = vmul.f32 %v4647, %v4684
        %v4688 = vmul.f32 %v4648, %v4684
        %v4689 = vmul.f32 %v4649, %v4684
        %v4690 = vmul.f32 %v4650, %v4684
        %v4691 = vmul.f32 %v4651, %v4684
        %v4692 = vmul.f32 %v4652, %v4684
        %v4693 = vmul.f32 %v4653, %v4684
        %v4694 = vmul.f32 %v4654, %v4684
        %v4695 = vmul.f32 %v4655, %v4684
        %v4696 = vmul.f32 %v4656, %v4684
        %v4697 = vmul.f32 %v4657, %v4684
        %v4698 = vmul.f32 %v4658, %v4684
        %v4699 = vmul.f32 %v4659, %v4684
        %v4700 = vmul.f32 %v4660, %v4684
        %v4701 = vmul.f32 %v4661, %v4684
        %v4702 = vmul.f32 %v4662, %v4684
        %v4703 = vmul.f32 %v4663, %v4684
        %v4704 = vmul.f32 %v4664, %v4684
        %v4705 = vmul.f32 %v4665, %v4684
        %v4706 = vmul.f32 %v4666, %v4684
        %v4707 = vmul.f32 %v4667, %v4684
        %v4708 = vmul.f32 %v4668, %v4684
        %v4709 = vmul.f32 %v4669, %v4684
        %v4710 = vmul.f32 %v4670, %v4684
        %v4711 = vmul.f32 %v4671, %v4684
        %v4712 = vmul.f32 %v4672, %v4684
        %v4713 = vmul.f32 %v4673, %v4684
        %v4714 = vmul.f32 %v4674, %v4684
        %v4715 = vmul.f32 %v4675, %v4684
        %v4716 = vmul.f32 %v4676, %v4684
        %v4717 = vmul.f32 %v4677, %v4684
        %v4718 = vadd.f32 %v4614, %v4686
        %v4719 = vadd.f32 %v4615, %v4687
        %v4720 = vadd.f32 %v4616, %v4688
        %v4721 = vadd.f32 %v4617, %v4689
        %v4722 = vadd.f32 %v4618, %v4690
        %v4723 = vadd.f32 %v4619, %v4691
        %v4724 = vadd.f32 %v4620, %v4692
        %v4725 = vadd.f32 %v4621, %v4693
        %v4726 = vadd.f32 %v4622, %v4694
        %v4727 = vadd.f32 %v4623, %v4695
        %v4728 = vadd.f32 %v4624, %v4696
        %v4729 = vadd.f32 %v4625, %v4697
        %v4730 = vadd.f32 %v4626, %v4698
        %v4731 = vadd.f32 %v4627, %v4699
        %v4732 = vadd.f32 %v4628, %v4700
        %v4733 = vadd.f32 %v4629, %v4701
        %v4734 = vadd.f32 %v4630, %v4702
        %v4735 = vadd.f32 %v4631, %v4703
        %v4736 = vadd.f32 %v4632, %v4704
        %v4737 = vadd.f32 %v4633, %v4705
        %v4738 = vadd.f32 %v4634, %v4706
        %v4739 = vadd.f32 %v4635, %v4707
        %v4740 = vadd.f32 %v4636, %v4708
        %v4741 = vadd.f32 %v4637, %v4709
        %v4742 = vadd.f32 %v4638, %v4710
        %v4743 = vadd.f32 %v4639, %v4711
        %v4744 = vadd.f32 %v4640, %v4712
        %v4745 = vadd.f32 %v4641, %v4713
        %v4746 = vadd.f32 %v4642, %v4714
        %v4747 = vadd.f32 %v4643, %v4715
        %v4748 = vadd.f32 %v4644, %v4716
        %v4749 = vadd.f32 %v4645, %v4717
        %v4750 = vld [vmem:[%s4541 + $0x2] sm:$0xff]
        %v4751 = vld [vmem:[%s4541 + $0xa] sm:$0xff]
        %v4752 = vld [vmem:[%s4541 + $0x1a] sm:$0xff]
        %v4753 = vld [vmem:[%s4541 + $0x22] sm:$0xff]
        %v4754 = vld [vmem:[%s4541 + $0x32] sm:$0xff]
        %v4755 = vld [vmem:[%s4541 + $0x3a] sm:$0xff]
        %v4756 = vld [vmem:[%s4541 + $0x4a] sm:$0xff]
        %v4757 = vld [vmem:[%s4541 + $0x52] sm:$0xff]
        %v4758 = vld [vmem:[%s4541 + $0x62] sm:$0xff]
        %v4759 = vld [vmem:[%s4541 + $0x6a] sm:$0xff]
        %v4760 = vld [vmem:[%s4541 + $0x7a] sm:$0xff]
        %v4761 = vld [vmem:[%s4541 + $0x82] sm:$0xff]
        %v4762 = vld [vmem:[%s4541 + $0x92] sm:$0xff]
        %v4763 = vld [vmem:[%s4541 + $0x9a] sm:$0xff]
        %v4764 = vld [vmem:[%s4541 + $0xaa] sm:$0xff]
        %v4765 = vld [vmem:[%s4541 + $0xb2] sm:$0xff]
        %v4766 = vld [vmem:[%s4541 + $0xc2] sm:$0xff]
        %v4767 = vld [vmem:[%s4541 + $0xca] sm:$0xff]
        %v4768 = vld [vmem:[%s4541 + $0xda] sm:$0xff]
        %v4769 = vld [vmem:[%s4541 + $0xe2] sm:$0xff]
        %v4770 = vld [vmem:[%s4541 + $0xf2] sm:$0xff]
        %v4771 = vld [vmem:[%s4541 + $0xfa] sm:$0xff]
        %v4772 = vld [vmem:[%s4541 + $0x10a] sm:$0xff]
        %v4773 = vld [vmem:[%s4541 + $0x112] sm:$0xff]
        %v4774 = vld [vmem:[%s4541 + $0x122] sm:$0xff]
        %v4775 = vld [vmem:[%s4541 + $0x12a] sm:$0xff]
        %v4776 = vld [vmem:[%s4541 + $0x13a] sm:$0xff]
        %v4777 = vld [vmem:[%s4541 + $0x142] sm:$0xff]
        %v4778 = vld [vmem:[%s4541 + $0x152] sm:$0xff]
        %v4779 = vld [vmem:[%s4541 + $0x15a] sm:$0xff]
        %v4780 = vld [vmem:[%s4541 + $0x16a] sm:$0xff]
        %v4781 = vld [vmem:[%s4541 + $0x172] sm:$0xff]
        %s4782 = scalar_lea.vmem %s1, 44
        %v4783 = vld [vmem:[%s4782] sm:$0x1]
        %v4785 = vlaneseq
        %v4786 = vshrl.u32 %v4785, 7
        %v4787 = vsub.s32 0, %v4786
        %v4788 = vrot.slane %v4783, %v4787
        %v4790 = vmul.f32 %v4750, %v4788
        %v4791 = vmul.f32 %v4751, %v4788
        %v4792 = vmul.f32 %v4752, %v4788
        %v4793 = vmul.f32 %v4753, %v4788
        %v4794 = vmul.f32 %v4754, %v4788
        %v4795 = vmul.f32 %v4755, %v4788
        %v4796 = vmul.f32 %v4756, %v4788
        %v4797 = vmul.f32 %v4757, %v4788
        %v4798 = vmul.f32 %v4758, %v4788
        %v4799 = vmul.f32 %v4759, %v4788
        %v4800 = vmul.f32 %v4760, %v4788
        %v4801 = vmul.f32 %v4761, %v4788
        %v4802 = vmul.f32 %v4762, %v4788
        %v4803 = vmul.f32 %v4763, %v4788
        %v4804 = vmul.f32 %v4764, %v4788
        %v4805 = vmul.f32 %v4765, %v4788
        %v4806 = vmul.f32 %v4766, %v4788
        %v4807 = vmul.f32 %v4767, %v4788
        %v4808 = vmul.f32 %v4768, %v4788
        %v4809 = vmul.f32 %v4769, %v4788
        %v4810 = vmul.f32 %v4770, %v4788
        %v4811 = vmul.f32 %v4771, %v4788
        %v4812 = vmul.f32 %v4772, %v4788
        %v4813 = vmul.f32 %v4773, %v4788
        %v4814 = vmul.f32 %v4774, %v4788
        %v4815 = vmul.f32 %v4775, %v4788
        %v4816 = vmul.f32 %v4776, %v4788
        %v4817 = vmul.f32 %v4777, %v4788
        %v4818 = vmul.f32 %v4778, %v4788
        %v4819 = vmul.f32 %v4779, %v4788
        %v4820 = vmul.f32 %v4780, %v4788
        %v4821 = vmul.f32 %v4781, %v4788
        %v4822 = vadd.f32 %v4718, %v4790
        %v4823 = vadd.f32 %v4719, %v4791
        %v4824 = vadd.f32 %v4720, %v4792
        %v4825 = vadd.f32 %v4721, %v4793
        %v4826 = vadd.f32 %v4722, %v4794
        %v4827 = vadd.f32 %v4723, %v4795
        %v4828 = vadd.f32 %v4724, %v4796
        %v4829 = vadd.f32 %v4725, %v4797
        %v4830 = vadd.f32 %v4726, %v4798
        %v4831 = vadd.f32 %v4727, %v4799
        %v4832 = vadd.f32 %v4728, %v4800
        %v4833 = vadd.f32 %v4729, %v4801
        %v4834 = vadd.f32 %v4730, %v4802
        %v4835 = vadd.f32 %v4731, %v4803
        %v4836 = vadd.f32 %v4732, %v4804
        %v4837 = vadd.f32 %v4733, %v4805
        %v4838 = vadd.f32 %v4734, %v4806
        %v4839 = vadd.f32 %v4735, %v4807
        %v4840 = vadd.f32 %v4736, %v4808
        %v4841 = vadd.f32 %v4737, %v4809
        %v4842 = vadd.f32 %v4738, %v4810
        %v4843 = vadd.f32 %v4739, %v4811
        %v4844 = vadd.f32 %v4740, %v4812
        %v4845 = vadd.f32 %v4741, %v4813
        %v4846 = vadd.f32 %v4742, %v4814
        %v4847 = vadd.f32 %v4743, %v4815
        %v4848 = vadd.f32 %v4744, %v4816
        %v4849 = vadd.f32 %v4745, %v4817
        %v4850 = vadd.f32 %v4746, %v4818
        %v4851 = vadd.f32 %v4747, %v4819
        %v4852 = vadd.f32 %v4748, %v4820
        %v4853 = vadd.f32 %v4749, %v4821
        %v4854 = vld [vmem:[%s4541 + $0x3] sm:$0xff]
        %v4855 = vld [vmem:[%s4541 + $0xb] sm:$0xff]
        %v4856 = vld [vmem:[%s4541 + $0x1b] sm:$0xff]
        %v4857 = vld [vmem:[%s4541 + $0x23] sm:$0xff]
        %v4858 = vld [vmem:[%s4541 + $0x33] sm:$0xff]
        %v4859 = vld [vmem:[%s4541 + $0x3b] sm:$0xff]
        %v4860 = vld [vmem:[%s4541 + $0x4b] sm:$0xff]
        %v4861 = vld [vmem:[%s4541 + $0x53] sm:$0xff]
        %v4862 = vld [vmem:[%s4541 + $0x63] sm:$0xff]
        %v4863 = vld [vmem:[%s4541 + $0x6b] sm:$0xff]
        %v4864 = vld [vmem:[%s4541 + $0x7b] sm:$0xff]
        %v4865 = vld [vmem:[%s4541 + $0x83] sm:$0xff]
        %v4866 = vld [vmem:[%s4541 + $0x93] sm:$0xff]
        %v4867 = vld [vmem:[%s4541 + $0x9b] sm:$0xff]
        %v4868 = vld [vmem:[%s4541 + $0xab] sm:$0xff]
        %v4869 = vld [vmem:[%s4541 + $0xb3] sm:$0xff]
        %v4870 = vld [vmem:[%s4541 + $0xc3] sm:$0xff]
        %v4871 = vld [vmem:[%s4541 + $0xcb] sm:$0xff]
        %v4872 = vld [vmem:[%s4541 + $0xdb] sm:$0xff]
        %v4873 = vld [vmem:[%s4541 + $0xe3] sm:$0xff]
        %v4874 = vld [vmem:[%s4541 + $0xf3] sm:$0xff]
        %v4875 = vld [vmem:[%s4541 + $0xfb] sm:$0xff]
        %v4876 = vld [vmem:[%s4541 + $0x10b] sm:$0xff]
        %v4877 = vld [vmem:[%s4541 + $0x113] sm:$0xff]
        %v4878 = vld [vmem:[%s4541 + $0x123] sm:$0xff]
        %v4879 = vld [vmem:[%s4541 + $0x12b] sm:$0xff]
        %v4880 = vld [vmem:[%s4541 + $0x13b] sm:$0xff]
        %v4881 = vld [vmem:[%s4541 + $0x143] sm:$0xff]
        %v4882 = vld [vmem:[%s4541 + $0x153] sm:$0xff]
        %v4883 = vld [vmem:[%s4541 + $0x15b] sm:$0xff]
        %v4884 = vld [vmem:[%s4541 + $0x16b] sm:$0xff]
        %v4885 = vld [vmem:[%s4541 + $0x173] sm:$0xff]
        %s4886 = scalar_lea.vmem %s1, 45
        %v4887 = vld [vmem:[%s4886] sm:$0x1]
        %v4889 = vlaneseq
        %v4890 = vshrl.u32 %v4889, 7
        %v4891 = vsub.s32 0, %v4890
        %v4892 = vrot.slane %v4887, %v4891
        %v4894 = vmul.f32 %v4854, %v4892
        %v4895 = vmul.f32 %v4855, %v4892
        %v4896 = vmul.f32 %v4856, %v4892
        %v4897 = vmul.f32 %v4857, %v4892
        %v4898 = vmul.f32 %v4858, %v4892
        %v4899 = vmul.f32 %v4859, %v4892
        %v4900 = vmul.f32 %v4860, %v4892
        %v4901 = vmul.f32 %v4861, %v4892
        %v4902 = vmul.f32 %v4862, %v4892
        %v4903 = vmul.f32 %v4863, %v4892
        %v4904 = vmul.f32 %v4864, %v4892
        %v4905 = vmul.f32 %v4865, %v4892
        %v4906 = vmul.f32 %v4866, %v4892
        %v4907 = vmul.f32 %v4867, %v4892
        %v4908 = vmul.f32 %v4868, %v4892
        %v4909 = vmul.f32 %v4869, %v4892
        %v4910 = vmul.f32 %v4870, %v4892
        %v4911 = vmul.f32 %v4871, %v4892
        %v4912 = vmul.f32 %v4872, %v4892
        %v4913 = vmul.f32 %v4873, %v4892
        %v4914 = vmul.f32 %v4874, %v4892
        %v4915 = vmul.f32 %v4875, %v4892
        %v4916 = vmul.f32 %v4876, %v4892
        %v4917 = vmul.f32 %v4877, %v4892
        %v4918 = vmul.f32 %v4878, %v4892
        %v4919 = vmul.f32 %v4879, %v4892
        %v4920 = vmul.f32 %v4880, %v4892
        %v4921 = vmul.f32 %v4881, %v4892
        %v4922 = vmul.f32 %v4882, %v4892
        %v4923 = vmul.f32 %v4883, %v4892
        %v4924 = vmul.f32 %v4884, %v4892
        %v4925 = vmul.f32 %v4885, %v4892
        %v4926 = vadd.f32 %v4822, %v4894
        %v4927 = vadd.f32 %v4823, %v4895
        %v4928 = vadd.f32 %v4824, %v4896
        %v4929 = vadd.f32 %v4825, %v4897
        %v4930 = vadd.f32 %v4826, %v4898
        %v4931 = vadd.f32 %v4827, %v4899
        %v4932 = vadd.f32 %v4828, %v4900
        %v4933 = vadd.f32 %v4829, %v4901
        %v4934 = vadd.f32 %v4830, %v4902
        %v4935 = vadd.f32 %v4831, %v4903
        %v4936 = vadd.f32 %v4832, %v4904
        %v4937 = vadd.f32 %v4833, %v4905
        %v4938 = vadd.f32 %v4834, %v4906
        %v4939 = vadd.f32 %v4835, %v4907
        %v4940 = vadd.f32 %v4836, %v4908
        %v4941 = vadd.f32 %v4837, %v4909
        %v4942 = vadd.f32 %v4838, %v4910
        %v4943 = vadd.f32 %v4839, %v4911
        %v4944 = vadd.f32 %v4840, %v4912
        %v4945 = vadd.f32 %v4841, %v4913
        %v4946 = vadd.f32 %v4842, %v4914
        %v4947 = vadd.f32 %v4843, %v4915
        %v4948 = vadd.f32 %v4844, %v4916
        %v4949 = vadd.f32 %v4845, %v4917
        %v4950 = vadd.f32 %v4846, %v4918
        %v4951 = vadd.f32 %v4847, %v4919
        %v4952 = vadd.f32 %v4848, %v4920
        %v4953 = vadd.f32 %v4849, %v4921
        %v4954 = vadd.f32 %v4850, %v4922
        %v4955 = vadd.f32 %v4851, %v4923
        %v4956 = vadd.f32 %v4852, %v4924
        %v4957 = vadd.f32 %v4853, %v4925
        %v4958 = vld [vmem:[%s4541 + $0x4] sm:$0xff]
        %v4959 = vld [vmem:[%s4541 + $0xc] sm:$0xff]
        %v4960 = vld [vmem:[%s4541 + $0x1c] sm:$0xff]
        %v4961 = vld [vmem:[%s4541 + $0x24] sm:$0xff]
        %v4962 = vld [vmem:[%s4541 + $0x34] sm:$0xff]
        %v4963 = vld [vmem:[%s4541 + $0x3c] sm:$0xff]
        %v4964 = vld [vmem:[%s4541 + $0x4c] sm:$0xff]
        %v4965 = vld [vmem:[%s4541 + $0x54] sm:$0xff]
        %v4966 = vld [vmem:[%s4541 + $0x64] sm:$0xff]
        %v4967 = vld [vmem:[%s4541 + $0x6c] sm:$0xff]
        %v4968 = vld [vmem:[%s4541 + $0x7c] sm:$0xff]
        %v4969 = vld [vmem:[%s4541 + $0x84] sm:$0xff]
        %v4970 = vld [vmem:[%s4541 + $0x94] sm:$0xff]
        %v4971 = vld [vmem:[%s4541 + $0x9c] sm:$0xff]
        %v4972 = vld [vmem:[%s4541 + $0xac] sm:$0xff]
        %v4973 = vld [vmem:[%s4541 + $0xb4] sm:$0xff]
        %v4974 = vld [vmem:[%s4541 + $0xc4] sm:$0xff]
        %v4975 = vld [vmem:[%s4541 + $0xcc] sm:$0xff]
        %v4976 = vld [vmem:[%s4541 + $0xdc] sm:$0xff]
        %v4977 = vld [vmem:[%s4541 + $0xe4] sm:$0xff]
        %v4978 = vld [vmem:[%s4541 + $0xf4] sm:$0xff]
        %v4979 = vld [vmem:[%s4541 + $0xfc] sm:$0xff]
        %v4980 = vld [vmem:[%s4541 + $0x10c] sm:$0xff]
        %v4981 = vld [vmem:[%s4541 + $0x114] sm:$0xff]
        %v4982 = vld [vmem:[%s4541 + $0x124] sm:$0xff]
        %v4983 = vld [vmem:[%s4541 + $0x12c] sm:$0xff]
        %v4984 = vld [vmem:[%s4541 + $0x13c] sm:$0xff]
        %v4985 = vld [vmem:[%s4541 + $0x144] sm:$0xff]
        %v4986 = vld [vmem:[%s4541 + $0x154] sm:$0xff]
        %v4987 = vld [vmem:[%s4541 + $0x15c] sm:$0xff]
        %v4988 = vld [vmem:[%s4541 + $0x16c] sm:$0xff]
        %v4989 = vld [vmem:[%s4541 + $0x174] sm:$0xff]
        %s4990 = scalar_lea.vmem %s1, 46
        %v4991 = vld [vmem:[%s4990] sm:$0x1]
        %v4993 = vlaneseq
        %v4994 = vshrl.u32 %v4993, 7
        %v4995 = vsub.s32 0, %v4994
        %v4996 = vrot.slane %v4991, %v4995
        %v4998 = vmul.f32 %v4958, %v4996
        %v4999 = vmul.f32 %v4959, %v4996
        %v5000 = vmul.f32 %v4960, %v4996
        %v5001 = vmul.f32 %v4961, %v4996
        %v5002 = vmul.f32 %v4962, %v4996
        %v5003 = vmul.f32 %v4963, %v4996
        %v5004 = vmul.f32 %v4964, %v4996
        %v5005 = vmul.f32 %v4965, %v4996
        %v5006 = vmul.f32 %v4966, %v4996
        %v5007 = vmul.f32 %v4967, %v4996
        %v5008 = vmul.f32 %v4968, %v4996
        %v5009 = vmul.f32 %v4969, %v4996
        %v5010 = vmul.f32 %v4970, %v4996
        %v5011 = vmul.f32 %v4971, %v4996
        %v5012 = vmul.f32 %v4972, %v4996
        %v5013 = vmul.f32 %v4973, %v4996
        %v5014 = vmul.f32 %v4974, %v4996
        %v5015 = vmul.f32 %v4975, %v4996
        %v5016 = vmul.f32 %v4976, %v4996
        %v5017 = vmul.f32 %v4977, %v4996
        %v5018 = vmul.f32 %v4978, %v4996
        %v5019 = vmul.f32 %v4979, %v4996
        %v5020 = vmul.f32 %v4980, %v4996
        %v5021 = vmul.f32 %v4981, %v4996
        %v5022 = vmul.f32 %v4982, %v4996
        %v5023 = vmul.f32 %v4983, %v4996
        %v5024 = vmul.f32 %v4984, %v4996
        %v5025 = vmul.f32 %v4985, %v4996
        %v5026 = vmul.f32 %v4986, %v4996
        %v5027 = vmul.f32 %v4987, %v4996
        %v5028 = vmul.f32 %v4988, %v4996
        %v5029 = vmul.f32 %v4989, %v4996
        %v5030 = vadd.f32 %v4926, %v4998
        %v5031 = vadd.f32 %v4927, %v4999
        %v5032 = vadd.f32 %v4928, %v5000
        %v5033 = vadd.f32 %v4929, %v5001
        %v5034 = vadd.f32 %v4930, %v5002
        %v5035 = vadd.f32 %v4931, %v5003
        %v5036 = vadd.f32 %v4932, %v5004
        %v5037 = vadd.f32 %v4933, %v5005
        %v5038 = vadd.f32 %v4934, %v5006
        %v5039 = vadd.f32 %v4935, %v5007
        %v5040 = vadd.f32 %v4936, %v5008
        %v5041 = vadd.f32 %v4937, %v5009
        %v5042 = vadd.f32 %v4938, %v5010
        %v5043 = vadd.f32 %v4939, %v5011
        %v5044 = vadd.f32 %v4940, %v5012
        %v5045 = vadd.f32 %v4941, %v5013
        %v5046 = vadd.f32 %v4942, %v5014
        %v5047 = vadd.f32 %v4943, %v5015
        %v5048 = vadd.f32 %v4944, %v5016
        %v5049 = vadd.f32 %v4945, %v5017
        %v5050 = vadd.f32 %v4946, %v5018
        %v5051 = vadd.f32 %v4947, %v5019
        %v5052 = vadd.f32 %v4948, %v5020
        %v5053 = vadd.f32 %v4949, %v5021
        %v5054 = vadd.f32 %v4950, %v5022
        %v5055 = vadd.f32 %v4951, %v5023
        %v5056 = vadd.f32 %v4952, %v5024
        %v5057 = vadd.f32 %v4953, %v5025
        %v5058 = vadd.f32 %v4954, %v5026
        %v5059 = vadd.f32 %v4955, %v5027
        %v5060 = vadd.f32 %v4956, %v5028
        %v5061 = vadd.f32 %v4957, %v5029
        %v5062 = vld [vmem:[%s4541 + $0x5] sm:$0xff]
        %v5063 = vld [vmem:[%s4541 + $0xd] sm:$0xff]
        %v5064 = vld [vmem:[%s4541 + $0x1d] sm:$0xff]
        %v5065 = vld [vmem:[%s4541 + $0x25] sm:$0xff]
        %v5066 = vld [vmem:[%s4541 + $0x35] sm:$0xff]
        %v5067 = vld [vmem:[%s4541 + $0x3d] sm:$0xff]
        %v5068 = vld [vmem:[%s4541 + $0x4d] sm:$0xff]
        %v5069 = vld [vmem:[%s4541 + $0x55] sm:$0xff]
        %v5070 = vld [vmem:[%s4541 + $0x65] sm:$0xff]
        %v5071 = vld [vmem:[%s4541 + $0x6d] sm:$0xff]
        %v5072 = vld [vmem:[%s4541 + $0x7d] sm:$0xff]
        %v5073 = vld [vmem:[%s4541 + $0x85] sm:$0xff]
        %v5074 = vld [vmem:[%s4541 + $0x95] sm:$0xff]
        %v5075 = vld [vmem:[%s4541 + $0x9d] sm:$0xff]
        %v5076 = vld [vmem:[%s4541 + $0xad] sm:$0xff]
        %v5077 = vld [vmem:[%s4541 + $0xb5] sm:$0xff]
        %v5078 = vld [vmem:[%s4541 + $0xc5] sm:$0xff]
        %v5079 = vld [vmem:[%s4541 + $0xcd] sm:$0xff]
        %v5080 = vld [vmem:[%s4541 + $0xdd] sm:$0xff]
        %v5081 = vld [vmem:[%s4541 + $0xe5] sm:$0xff]
        %v5082 = vld [vmem:[%s4541 + $0xf5] sm:$0xff]
        %v5083 = vld [vmem:[%s4541 + $0xfd] sm:$0xff]
        %v5084 = vld [vmem:[%s4541 + $0x10d] sm:$0xff]
        %v5085 = vld [vmem:[%s4541 + $0x115] sm:$0xff]
        %v5086 = vld [vmem:[%s4541 + $0x125] sm:$0xff]
        %v5087 = vld [vmem:[%s4541 + $0x12d] sm:$0xff]
        %v5088 = vld [vmem:[%s4541 + $0x13d] sm:$0xff]
        %v5089 = vld [vmem:[%s4541 + $0x145] sm:$0xff]
        %v5090 = vld [vmem:[%s4541 + $0x155] sm:$0xff]
        %v5091 = vld [vmem:[%s4541 + $0x15d] sm:$0xff]
        %v5092 = vld [vmem:[%s4541 + $0x16d] sm:$0xff]
        %v5093 = vld [vmem:[%s4541 + $0x175] sm:$0xff]
        %s5094 = scalar_lea.vmem %s1, 47
        %v5095 = vld [vmem:[%s5094] sm:$0x1]
        %v5097 = vlaneseq
        %v5098 = vshrl.u32 %v5097, 7
        %v5099 = vsub.s32 0, %v5098
        %v5100 = vrot.slane %v5095, %v5099
        %v5102 = vmul.f32 %v5062, %v5100
        %v5103 = vmul.f32 %v5063, %v5100
        %v5104 = vmul.f32 %v5064, %v5100
        %v5105 = vmul.f32 %v5065, %v5100
        %v5106 = vmul.f32 %v5066, %v5100
        %v5107 = vmul.f32 %v5067, %v5100
        %v5108 = vmul.f32 %v5068, %v5100
        %v5109 = vmul.f32 %v5069, %v5100
        %v5110 = vmul.f32 %v5070, %v5100
        %v5111 = vmul.f32 %v5071, %v5100
        %v5112 = vmul.f32 %v5072, %v5100
        %v5113 = vmul.f32 %v5073, %v5100
        %v5114 = vmul.f32 %v5074, %v5100
        %v5115 = vmul.f32 %v5075, %v5100
        %v5116 = vmul.f32 %v5076, %v5100
        %v5117 = vmul.f32 %v5077, %v5100
        %v5118 = vmul.f32 %v5078, %v5100
        %v5119 = vmul.f32 %v5079, %v5100
        %v5120 = vmul.f32 %v5080, %v5100
        %v5121 = vmul.f32 %v5081, %v5100
        %v5122 = vmul.f32 %v5082, %v5100
        %v5123 = vmul.f32 %v5083, %v5100
        %v5124 = vmul.f32 %v5084, %v5100
        %v5125 = vmul.f32 %v5085, %v5100
        %v5126 = vmul.f32 %v5086, %v5100
        %v5127 = vmul.f32 %v5087, %v5100
        %v5128 = vmul.f32 %v5088, %v5100
        %v5129 = vmul.f32 %v5089, %v5100
        %v5130 = vmul.f32 %v5090, %v5100
        %v5131 = vmul.f32 %v5091, %v5100
        %v5132 = vmul.f32 %v5092, %v5100
        %v5133 = vmul.f32 %v5093, %v5100
        %v5134 = vadd.f32 %v5030, %v5102
        %v5135 = vadd.f32 %v5031, %v5103
        %v5136 = vadd.f32 %v5032, %v5104
        %v5137 = vadd.f32 %v5033, %v5105
        %v5138 = vadd.f32 %v5034, %v5106
        %v5139 = vadd.f32 %v5035, %v5107
        %v5140 = vadd.f32 %v5036, %v5108
        %v5141 = vadd.f32 %v5037, %v5109
        %v5142 = vadd.f32 %v5038, %v5110
        %v5143 = vadd.f32 %v5039, %v5111
        %v5144 = vadd.f32 %v5040, %v5112
        %v5145 = vadd.f32 %v5041, %v5113
        %v5146 = vadd.f32 %v5042, %v5114
        %v5147 = vadd.f32 %v5043, %v5115
        %v5148 = vadd.f32 %v5044, %v5116
        %v5149 = vadd.f32 %v5045, %v5117
        %v5150 = vadd.f32 %v5046, %v5118
        %v5151 = vadd.f32 %v5047, %v5119
        %v5152 = vadd.f32 %v5048, %v5120
        %v5153 = vadd.f32 %v5049, %v5121
        %v5154 = vadd.f32 %v5050, %v5122
        %v5155 = vadd.f32 %v5051, %v5123
        %v5156 = vadd.f32 %v5052, %v5124
        %v5157 = vadd.f32 %v5053, %v5125
        %v5158 = vadd.f32 %v5054, %v5126
        %v5159 = vadd.f32 %v5055, %v5127
        %v5160 = vadd.f32 %v5056, %v5128
        %v5161 = vadd.f32 %v5057, %v5129
        %v5162 = vadd.f32 %v5058, %v5130
        %v5163 = vadd.f32 %v5059, %v5131
        %v5164 = vadd.f32 %v5060, %v5132
        %v5165 = vadd.f32 %v5061, %v5133
        %v5166 = vld [vmem:[%s4541 + $0x6] sm:$0xff]
        %v5167 = vld [vmem:[%s4541 + $0xe] sm:$0xff]
        %v5168 = vld [vmem:[%s4541 + $0x1e] sm:$0xff]
        %v5169 = vld [vmem:[%s4541 + $0x26] sm:$0xff]
        %v5170 = vld [vmem:[%s4541 + $0x36] sm:$0xff]
        %v5171 = vld [vmem:[%s4541 + $0x3e] sm:$0xff]
        %v5172 = vld [vmem:[%s4541 + $0x4e] sm:$0xff]
        %v5173 = vld [vmem:[%s4541 + $0x56] sm:$0xff]
        %v5174 = vld [vmem:[%s4541 + $0x66] sm:$0xff]
        %v5175 = vld [vmem:[%s4541 + $0x6e] sm:$0xff]
        %v5176 = vld [vmem:[%s4541 + $0x7e] sm:$0xff]
        %v5177 = vld [vmem:[%s4541 + $0x86] sm:$0xff]
        %v5178 = vld [vmem:[%s4541 + $0x96] sm:$0xff]
        %v5179 = vld [vmem:[%s4541 + $0x9e] sm:$0xff]
        %v5180 = vld [vmem:[%s4541 + $0xae] sm:$0xff]
        %v5181 = vld [vmem:[%s4541 + $0xb6] sm:$0xff]
        %v5182 = vld [vmem:[%s4541 + $0xc6] sm:$0xff]
        %v5183 = vld [vmem:[%s4541 + $0xce] sm:$0xff]
        %v5184 = vld [vmem:[%s4541 + $0xde] sm:$0xff]
        %v5185 = vld [vmem:[%s4541 + $0xe6] sm:$0xff]
        %v5186 = vld [vmem:[%s4541 + $0xf6] sm:$0xff]
        %v5187 = vld [vmem:[%s4541 + $0xfe] sm:$0xff]
        %v5188 = vld [vmem:[%s4541 + $0x10e] sm:$0xff]
        %v5189 = vld [vmem:[%s4541 + $0x116] sm:$0xff]
        %v5190 = vld [vmem:[%s4541 + $0x126] sm:$0xff]
        %v5191 = vld [vmem:[%s4541 + $0x12e] sm:$0xff]
        %v5192 = vld [vmem:[%s4541 + $0x13e] sm:$0xff]
        %v5193 = vld [vmem:[%s4541 + $0x146] sm:$0xff]
        %v5194 = vld [vmem:[%s4541 + $0x156] sm:$0xff]
        %v5195 = vld [vmem:[%s4541 + $0x15e] sm:$0xff]
        %v5196 = vld [vmem:[%s4541 + $0x16e] sm:$0xff]
        %v5197 = vld [vmem:[%s4541 + $0x176] sm:$0xff]
        %s5198 = scalar_lea.vmem %s1, 48
        %v5199 = vld [vmem:[%s5198] sm:$0x1]
        %v5201 = vlaneseq
        %v5202 = vshrl.u32 %v5201, 7
        %v5203 = vsub.s32 0, %v5202
        %v5204 = vrot.slane %v5199, %v5203
        %v5206 = vmul.f32 %v5166, %v5204
        %v5207 = vmul.f32 %v5167, %v5204
        %v5208 = vmul.f32 %v5168, %v5204
        %v5209 = vmul.f32 %v5169, %v5204
        %v5210 = vmul.f32 %v5170, %v5204
        %v5211 = vmul.f32 %v5171, %v5204
        %v5212 = vmul.f32 %v5172, %v5204
        %v5213 = vmul.f32 %v5173, %v5204
        %v5214 = vmul.f32 %v5174, %v5204
        %v5215 = vmul.f32 %v5175, %v5204
        %v5216 = vmul.f32 %v5176, %v5204
        %v5217 = vmul.f32 %v5177, %v5204
        %v5218 = vmul.f32 %v5178, %v5204
        %v5219 = vmul.f32 %v5179, %v5204
        %v5220 = vmul.f32 %v5180, %v5204
        %v5221 = vmul.f32 %v5181, %v5204
        %v5222 = vmul.f32 %v5182, %v5204
        %v5223 = vmul.f32 %v5183, %v5204
        %v5224 = vmul.f32 %v5184, %v5204
        %v5225 = vmul.f32 %v5185, %v5204
        %v5226 = vmul.f32 %v5186, %v5204
        %v5227 = vmul.f32 %v5187, %v5204
        %v5228 = vmul.f32 %v5188, %v5204
        %v5229 = vmul.f32 %v5189, %v5204
        %v5230 = vmul.f32 %v5190, %v5204
        %v5231 = vmul.f32 %v5191, %v5204
        %v5232 = vmul.f32 %v5192, %v5204
        %v5233 = vmul.f32 %v5193, %v5204
        %v5234 = vmul.f32 %v5194, %v5204
        %v5235 = vmul.f32 %v5195, %v5204
        %v5236 = vmul.f32 %v5196, %v5204
        %v5237 = vmul.f32 %v5197, %v5204
        %v5238 = vadd.f32 %v5134, %v5206
        %v5239 = vadd.f32 %v5135, %v5207
        %v5240 = vadd.f32 %v5136, %v5208
        %v5241 = vadd.f32 %v5137, %v5209
        %v5242 = vadd.f32 %v5138, %v5210
        %v5243 = vadd.f32 %v5139, %v5211
        %v5244 = vadd.f32 %v5140, %v5212
        %v5245 = vadd.f32 %v5141, %v5213
        %v5246 = vadd.f32 %v5142, %v5214
        %v5247 = vadd.f32 %v5143, %v5215
        %v5248 = vadd.f32 %v5144, %v5216
        %v5249 = vadd.f32 %v5145, %v5217
        %v5250 = vadd.f32 %v5146, %v5218
        %v5251 = vadd.f32 %v5147, %v5219
        %v5252 = vadd.f32 %v5148, %v5220
        %v5253 = vadd.f32 %v5149, %v5221
        %v5254 = vadd.f32 %v5150, %v5222
        %v5255 = vadd.f32 %v5151, %v5223
        %v5256 = vadd.f32 %v5152, %v5224
        %v5257 = vadd.f32 %v5153, %v5225
        %v5258 = vadd.f32 %v5154, %v5226
        %v5259 = vadd.f32 %v5155, %v5227
        %v5260 = vadd.f32 %v5156, %v5228
        %v5261 = vadd.f32 %v5157, %v5229
        %v5262 = vadd.f32 %v5158, %v5230
        %v5263 = vadd.f32 %v5159, %v5231
        %v5264 = vadd.f32 %v5160, %v5232
        %v5265 = vadd.f32 %v5161, %v5233
        %v5266 = vadd.f32 %v5162, %v5234
        %v5267 = vadd.f32 %v5163, %v5235
        %v5268 = vadd.f32 %v5164, %v5236
        %v5269 = vadd.f32 %v5165, %v5237
        %v5270 = vld [vmem:[%s2] sm:$0x1]
        %v5272 = vlaneseq
        %v5273 = vshrl.u32 %v5272, 7
        %v5274 = vsub.s32 0, %v5273
        %v5275 = vrot.slane %v5270, %v5274
        %v5277 = vadd.f32 %v5238, %v5275
        %v5278 = vadd.f32 %v5239, %v5275
        %v5279 = vadd.f32 %v5240, %v5275
        %v5280 = vadd.f32 %v5241, %v5275
        %v5281 = vadd.f32 %v5242, %v5275
        %v5282 = vadd.f32 %v5243, %v5275
        %v5283 = vadd.f32 %v5244, %v5275
        %v5284 = vadd.f32 %v5245, %v5275
        %v5285 = vadd.f32 %v5246, %v5275
        %v5286 = vadd.f32 %v5247, %v5275
        %v5287 = vadd.f32 %v5248, %v5275
        %v5288 = vadd.f32 %v5249, %v5275
        %v5289 = vadd.f32 %v5250, %v5275
        %v5290 = vadd.f32 %v5251, %v5275
        %v5291 = vadd.f32 %v5252, %v5275
        %v5292 = vadd.f32 %v5253, %v5275
        %v5293 = vadd.f32 %v5254, %v5275
        %v5294 = vadd.f32 %v5255, %v5275
        %v5295 = vadd.f32 %v5256, %v5275
        %v5296 = vadd.f32 %v5257, %v5275
        %v5297 = vadd.f32 %v5258, %v5275
        %v5298 = vadd.f32 %v5259, %v5275
        %v5299 = vadd.f32 %v5260, %v5275
        %v5300 = vadd.f32 %v5261, %v5275
        %v5301 = vadd.f32 %v5262, %v5275
        %v5302 = vadd.f32 %v5263, %v5275
        %v5303 = vadd.f32 %v5264, %v5275
        %v5304 = vadd.f32 %v5265, %v5275
        %v5305 = vadd.f32 %v5266, %v5275
        %v5306 = vadd.f32 %v5267, %v5275
        %v5307 = vadd.f32 %v5268, %v5275
        %v5308 = vadd.f32 %v5269, %v5275
        %5309 = vst [vmem:[%s163] sm:$0xff] %v5277
        %5310 = vst [vmem:[%s163 + $0x8] sm:$0xff] %v5278
        %5311 = vst [vmem:[%s163 + $0x10] sm:$0xff] %v5279
        %5312 = vst [vmem:[%s163 + $0x18] sm:$0xff] %v5280
        %5313 = vst [vmem:[%s163 + $0x20] sm:$0xff] %v5281
        %5314 = vst [vmem:[%s163 + $0x28] sm:$0xff] %v5282
        %5315 = vst [vmem:[%s163 + $0x30] sm:$0xff] %v5283
        %5316 = vst [vmem:[%s163 + $0x38] sm:$0xff] %v5284
        %5317 = vst [vmem:[%s163 + $0x40] sm:$0xff] %v5285
        %5318 = vst [vmem:[%s163 + $0x48] sm:$0xff] %v5286
        %5319 = vst [vmem:[%s163 + $0x50] sm:$0xff] %v5287
        %5320 = vst [vmem:[%s163 + $0x58] sm:$0xff] %v5288
        %5321 = vst [vmem:[%s163 + $0x60] sm:$0xff] %v5289
        %5322 = vst [vmem:[%s163 + $0x68] sm:$0xff] %v5290
        %5323 = vst [vmem:[%s163 + $0x70] sm:$0xff] %v5291
        %5324 = vst [vmem:[%s163 + $0x78] sm:$0xff] %v5292
        %5325 = vst [vmem:[%s163 + $0x80] sm:$0xff] %v5293
        %5326 = vst [vmem:[%s163 + $0x88] sm:$0xff] %v5294
        %5327 = vst [vmem:[%s163 + $0x90] sm:$0xff] %v5295
        %5328 = vst [vmem:[%s163 + $0x98] sm:$0xff] %v5296
        %5329 = vst [vmem:[%s163 + $0xa0] sm:$0xff] %v5297
        %5330 = vst [vmem:[%s163 + $0xa8] sm:$0xff] %v5298
        %5331 = vst [vmem:[%s163 + $0xb0] sm:$0xff] %v5299
        %5332 = vst [vmem:[%s163 + $0xb8] sm:$0xff] %v5300
        %5333 = vst [vmem:[%s163 + $0xc0] sm:$0xff] %v5301
        %5334 = vst [vmem:[%s163 + $0xc8] sm:$0xff] %v5302
        %5335 = vst [vmem:[%s163 + $0xd0] sm:$0xff] %v5303
        %5336 = vst [vmem:[%s163 + $0xd8] sm:$0xff] %v5304
        %5337 = vst [vmem:[%s163 + $0xe0] sm:$0xff] %v5305
        %5338 = vst [vmem:[%s163 + $0xe8] sm:$0xff] %v5306
        %5339 = vst [vmem:[%s163 + $0xf0] sm:$0xff] %v5307
        %5340 = vst [vmem:[%s163 + $0xf8] sm:$0xff] %v5308
        %s5341 = sand.u32 %s93, 1
        %s5342 = scalar_lea.sflag [#allocation3], %s5341
        %s5343 = sand.u32 %s93, 1
        %s5344 = smul.addr %s5343, 256
        %s5345 = scalar_lea.vmem [#allocation2], %s5344
        // Predicated region
        $region33: #{inception_forward.1} parent=31 // pred_check
          %p5346 = pneg %p103
        $region34: #{inception_forward.1} parent=31 // pred_check_branch
          %5348 = sbr.rel (%p5346) target = $region36
        $region35: #{inception_forward.1} parent=31 // pred_region
          %s5350 = ssub.s32 4096, 4096
          %5351 = vsyncadd %s5342, %s5350
          %s5352 = smul.addr %s17, 32
          %s5353 = smul.addr %s5352, 128
          %s5354 = scalar_lea.hbm %s3, %s5353
          %s5355 = sshll.u32 %s5345, 4
          %s5356 = int_to_ptr.vmem [resolvable:$true] %s5355
          %5361 = dma.vmem_to_hbm [thread:$0]  %s5356, 4096, %s5354, %s5342, 128, 128, 8
        $region36: #{inception_forward.1} parent=31 // pred_fallthru
          _
      $region32: #{inception_forward.1} parent=5 // pred_fallthru
        _
      %p5362 = scmp.le.s32.totalorder 2, %s12
      // Predicated region
      $region37: #{inception_forward.1} parent=5 // pred_check
        %p5363 = pneg %p5362
      $region38: #{inception_forward.1} parent=5 // pred_check_branch
        %5365 = sbr.rel (%p5363) target = $region40
      $region39: #{inception_forward.1} parent=5 // pred_region
        %s5366 = ssub.s32 %s12, 2
        // Predicated region
        $region41: #{inception_forward.1} parent=39 // pred_check
          %p5367 = pneg %p109
        $region42: #{inception_forward.1} parent=39 // pred_check_branch
          %5369 = sbr.rel (%p5367) target = $region44
        $region43: #{inception_forward.1} parent=39 // pred_region
          %s5370 = sand.u32 %s94, 1
          %s5371 = scalar_lea.sflag [#allocation3], %s5370
          %s5372 = sand.u32 %s94, 1
          %s5373 = smul.addr %s5372, 256
          %s5374 = scalar_lea.vmem [#allocation2], %s5373
          %5375 = dma.done %s5371, 4096
        $region44: #{inception_forward.1} parent=39 // pred_fallthru
          _
      $region40: #{inception_forward.1} parent=5 // pred_fallthru
        _
    $region6: #{inception_forward.1} parent=1 // loop_footer
      %s16 = sadd.s32 1, %s12
    $region7: #{inception_forward.1} parent=1 // loop_footer_branch
      %11 = sbr.rel target = $region3
    $region8: #{inception_forward.1} parent=1 // loop_exit
      _
    %5376 = vsyncpa [#allocation3], 1
    %s5377 = scalar_lea.sflag [#allocation3], 1
    %5378 = vsyncpa %s5377, 1

</llo_original>
